<compile_context>
chip_gen: v7x
topology: tpu7x:2x2x1
jax: 0.10.0
libtpu: 0.0.40
codegen_flags: <defaults>
</compile_context>

<pallas_src>
import functools

import jax
import jax.numpy as jnp
from jax.experimental import pallas as pl
from jax.experimental.pallas import tpu as pltpu


# 32 MiB scoped VMEM is safe on every generation (v5e default is only 16 MiB,
# v7x has 64 MiB total per TC).  For production C=512 shapes, consider
# pipeline_mode=pl.Buffered(1) on the constant-index weight specs to avoid
# double-buffering the ~9*C*C weight bytes.
_VMEM_LIMIT = 32 * 1024 * 1024


# ---------------------------------------------------------------------------
# in-kernel helpers
# ---------------------------------------------------------------------------

def _relu(x):
    return jnp.maximum(x, 0.0)


def _conv3x3_tile(src_ref, w9_ref, row0, *, TH, W, C, pad, dil, cdt):
    """Pre-activation 3x3 dilated 'same' conv of one (TH, W) row tile.

    src_ref: (H+2*pad, W+2*pad, C) zero-padded source, VMEM-resident per batch elem.
    w9_ref : (9*C, C) tap-major stacked weight (row = (kh*3+kw)*C + cin).
    row0   : first output row of this tile (unpadded coordinates).
    Returns (TH*W, C) float32 (no bias).
    """
    base = pad - dil  # pad is the max halo of this tensor, so base >= 0
    taps = []
    for kh in range(3):
        r0 = row0 + base + kh * dil
        for kw in range(3):
            taps.append(src_ref[pl.ds(r0, TH), pl.ds(base + kw * dil, W), :])
    # im2col in VMEM: one K = 9*C matmul instead of 9 short-K matmuls + VPU adds.
    patch = jnp.concatenate(taps, axis=-1).reshape(TH * W, 9 * C).astype(cdt)
    return jnp.dot(patch, w9_ref[...].astype(cdt),
                   preferred_element_type=jnp.float32)


# ---------------------------------------------------------------------------
# kernels
# ---------------------------------------------------------------------------

def _conv_kernel(src_ref, w_ref, b_ref, o_ref, *, TH, W, C, pad, dil, cdt):
    """Plain pre-activation 3x3 dilated conv + bias (used for t1 and t22)."""
    row0 = pl.multiple_of(pl.program_id(1) * TH, TH)
    y = _conv3x3_tile(src_ref, w_ref, row0, TH=TH, W=W, C=C, pad=pad, dil=dil,
                      cdt=cdt) + b_ref[...]
    o_ref[...] = y.reshape(TH, W, C).astype(o_ref.dtype)


def _final_kernel(xp_ref, t1p_ref, t22p_ref, w2p_ref, w3p_ref,
                  bf2_ref, bf3_ref, out_ref, *, TH, W, C, pad3, pad5, cdt):
    """out = x + relu(t1) + sum of the four 1x1-folded dilated-conv branches."""
    row0 = pl.multiple_of(pl.program_id(1) * TH, TH)
    bf2 = bf2_ref[...]

    # Residual + relu(dilate1(x)).  t1 (stored with its bias) is sliced from the
    # already-resident padded copy, so no extra HBM traffic for it here.
    x_t = xp_ref[pl.ds(row0 + pad3, TH), pl.ds(pad3, W), :]
    t1_t = t1p_ref[pl.ds(row0 + pad3, TH), pl.ds(pad3, W), :]
    acc = (x_t.reshape(TH * W, C).astype(jnp.float32)
           + _relu(t1_t.reshape(TH * W, C).astype(jnp.float32)))

    # dilate2_out  = relu(1x1(dilate2(x)))       -> folded weight W2@Wp
    acc += _relu(_conv3x3_tile(xp_ref, w2p_ref, row0, TH=TH, W=W, C=C,
                               pad=pad3, dil=3, cdt=cdt) + bf2)
    # dilate3_out  = relu(1x1(dilate2(t1)))
    acc += _relu(_conv3x3_tile(t1p_ref, w2p_ref, row0, TH=TH, W=W, C=C,
                               pad=pad3, dil=3, cdt=cdt) + bf2)
    # dilate4_out  = relu(1x1(dilate3(t22)))     -> folded weight W3@Wp
    acc += _relu(_conv3x3_tile(t22p_ref, w3p_ref, row0, TH=TH, W=W, C=C,
                               pad=pad5, dil=5, cdt=cdt) + bf3_ref[...])
    # dilate5_out  = relu(1x1(dilate2(t22)))
    acc += _relu(_conv3x3_tile(t22p_ref, w2p_ref, row0, TH=TH, W=W, C=C,
                               pad=pad5, dil=3, cdt=cdt) + bf2)

    out_ref[...] = acc.reshape(TH, W, C)


# ---------------------------------------------------------------------------
# pallas_call wrappers
# ---------------------------------------------------------------------------

def _cparams():
    return pltpu.CompilerParams(
        dimension_semantics=("parallel", "parallel"),
        vmem_limit_bytes=_VMEM_LIMIT)


def _big_spec(Hp, Wp, C):
    # Block index depends only on n -> DMA'd once per batch element.
    return pl.BlockSpec((None, Hp, Wp, C), lambda n, h: (n, 0, 0, 0))


def _tile_spec(TH, W, C):
    return pl.BlockSpec((None, TH, W, C), lambda n, h: (n, h, 0, 0))


def _w_spec(K, C):
    return pl.BlockSpec((K, C), lambda n, h: (0, 0))


def _run_conv(src_p, w9, b, *, dil, pad, N, H, W, C, TH, cdt):
    kern = functools.partial(_conv_kernel, TH=TH, W=W, C=C, pad=pad, dil=dil, cdt=cdt)
    return pl.pallas_call(
        kern,
        out_shape=jax.ShapeDtypeStruct((N, H, W, C), cdt),
        grid=(N, H // TH),
        in_specs=[_big_spec(H + 2 * pad, W + 2 * pad, C),
                  _w_spec(9 * C, C), _w_spec(1, C)],
        out_specs=_tile_spec(TH, W, C),
        compiler_params=_cparams(),
    )(src_p, w9, b)


def _run_final(xp, t1p, t22p, w2p, w3p, bf2, bf3, *, N, H, W, C, TH, cdt):
    kern = functools.partial(_final_kernel, TH=TH, W=W, C=C, pad3=3, pad5=5, cdt=cdt)
    return pl.pallas_call(
        kern,
        out_shape=jax.ShapeDtypeStruct((N, H, W, C), jnp.float32),
        grid=(N, H // TH),
        in_specs=[_big_spec(H + 6, W + 6, C),
                  _big_spec(H + 6, W + 6, C),
                  _big_spec(H + 10, W + 10, C),
                  _w_spec(9 * C, C), _w_spec(9 * C, C),
                  _w_spec(1, C), _w_spec(1, C)],
        out_specs=_tile_spec(TH, W, C),
        compiler_params=_cparams(),
    )(xp, t1p, t22p, w2p, w3p, bf2, bf3)


# ---------------------------------------------------------------------------
# DACblock forward (NCHW in/out like PyTorch)
# ---------------------------------------------------------------------------

def _pick_row_tile(H, W, C, acc_budget_bytes=128 * 1024):
    """Largest divisor of H whose f32 (TH, W, C) tile fits ~32 vregs (no spill)."""
    best = 1
    for th in range(1, H + 1):
        if H % th == 0 and th * W * C * 4 <= acc_budget_bytes:
            best = th
    return best


def dac_block(x_nchw, params, *, compute_dtype=jnp.float32, row_tile=None):
    """DACblock forward. x_nchw: (N, C, H, W). Returns (N, C, H, W) float32."""
    cdt = compute_dtype
    x = jnp.transpose(x_nchw, (0, 2, 3, 1)).astype(cdt)          # -> NHWC
    N, H, W, C = x.shape

    w1, b1 = params["dilate1"]        # 3x3, dilation 1
    w2, b2 = params["dilate2"]        # 3x3, dilation 3
    w22, b22 = params["dilate2_2"]    # 3x3, dilation 2
    w3, b3 = params["dilate3"]        # 3x3, dilation 5
    wp, bp = params["conv1x1"]        # 1x1, (Cin, Cout)

    f32 = jnp.float32
    hi = jax.lax.Precision.HIGHEST
    # Tap-major stacked 3x3 weights: row = (kh*3+kw)*C + cin (matches im2col order).
    w1_9 = w1.reshape(9 * C, C).astype(cdt)
    w22_9 = w22.reshape(9 * C, C).astype(cdt)
    # Fold the 1x1 conv into the dilate2 / dilate3 weights (ReLU comes after the
    # 1x1, so the two linear maps compose exactly).  Fold done once, in f32/HIGHEST.
    w2p_9 = jnp.dot(w2.reshape(9 * C, C).astype(f32), wp.astype(f32),
                    precision=hi).astype(cdt)
    w3p_9 = jnp.dot(w3.reshape(9 * C, C).astype(f32), wp.astype(f32),
                    precision=hi).astype(cdt)
    b1_r = b1.reshape(1, C).astype(f32)
    b22_r = b22.reshape(1, C).astype(f32)
    bf2 = (jnp.dot(b2.astype(f32), wp.astype(f32), precision=hi)
           + bp.astype(f32)).reshape(1, C)
    bf3 = (jnp.dot(b3.astype(f32), wp.astype(f32), precision=hi)
           + bp.astype(f32)).reshape(1, C)

    TH = _pick_row_tile(H, W, C) if row_tile is None else row_tile
    if H % TH != 0:
        raise ValueError(f"row_tile={TH} must divide H={H}")

    # Pad each tensor ONCE, to the max halo any of its consumers needs.
    xp = jnp.pad(x, ((0, 0), (3, 3), (3, 3), (0, 0)))            # dil 1 & dil 3
    t1 = _run_conv(xp, w1_9, b1_r, dil=1, pad=3,
                   N=N, H=H, W=W, C=C, TH=TH, cdt=cdt)           # pre-ReLU dilate1(x)

    t1p = jnp.pad(t1, ((0, 0), (3, 3), (3, 3), (0, 0)))          # dil 2 & dil 3
    t22 = _run_conv(t1p, w22_9, b22_r, dil=2, pad=3,
                    N=N, H=H, W=W, C=C, TH=TH, cdt=cdt)          # pre-ReLU dilate2_2(t1)
    t22p = jnp.pad(t22, ((0, 0), (5, 5), (5, 5), (0, 0)))        # dil 5 & dil 3

    out = _run_final(xp, t1p, t22p, w2p_9, w3p_9, bf2, bf3,
                     N=N, H=H, W=W, C=C, TH=TH, cdt=cdt)

    return jnp.transpose(out, (0, 3, 1, 2))                      # -> NCHW (f32)


# ---------------------------------------------------------------------------
# Pure-JAX reference (correctness check only)
# ---------------------------------------------------------------------------

def _conv_ref(x, w, b, dil):
    y = jax.lax.conv_general_dilated(
        x, w, window_strides=(1, 1), padding=[(dil, dil), (dil, dil)],
        rhs_dilation=(dil, dil), dimension_numbers=("NHWC", "HWIO", "NHWC"),
        precision=jax.lax.Precision.HIGHEST)
    return y + b


def dac_block_ref(x_nchw, params):
    x = jnp.transpose(x_nchw, (0, 2, 3, 1)).astype(jnp.float32)
    w1, b1 = params["dilate1"]
    w2, b2 = params["dilate2"]
    w22, b22 = params["dilate2_2"]
    w3, b3 = params["dilate3"]
    wp, bp = params["conv1x1"]
    relu = lambda t: jnp.maximum(t, 0.0)
    c1x1 = lambda t: jnp.einsum("nhwc,cd->nhwd", t, wp,
                                precision=jax.lax.Precision.HIGHEST) + bp

    t1 = _conv_ref(x, w1, b1, 1)                 # pre-ReLU dilate1(x)
    d1 = relu(t1)
    d2 = relu(c1x1(_conv_ref(x, w2, b2, 3)))
    d3 = relu(c1x1(_conv_ref(t1, w2, b2, 3)))
    t22 = _conv_ref(t1, w22, b22, 2)
    d4 = relu(c1x1(_conv_ref(t22, w3, b3, 5)))
    d5 = relu(c1x1(_conv_ref(t22, w2, b2, 3)))
    out = x + d1 + d2 + d3 + d4 + d5
    return jnp.transpose(out, (0, 3, 1, 2))


# ---------------------------------------------------------------------------

if __name__ == "__main__":
    key = jax.random.PRNGKey(0)
    # C=128 keeps the channel (lane) dim dense and the im2col K=9C matmul aligned,
    # matching the production CE-Net regime (C=512) while staying small.
    N, C, H, W = 2, 128, 16, 16
    ks = jax.random.split(key, 11)

    x_nchw = jax.random.normal(ks[0], (N, C, H, W), jnp.float32)

    def w3x3(k):  # HWIO 3x3 weight, unit-variance outputs
        return jax.random.normal(k, (3, 3, C, C), jnp.float32) * (9 * C) ** -0.5

    def bias(k):  # module zero-inits biases; use small random ones to test the path
        return jax.random.normal(k, (C,), jnp.float32) * 0.1

    params = {
        "dilate1":   (w3x3(ks[1]), bias(ks[6])),
        "dilate2":   (w3x3(ks[2]), bias(ks[7])),    # dilation 3
        "dilate2_2": (w3x3(ks[3]), bias(ks[8])),    # dilation 2
        "dilate3":   (w3x3(ks[4]), bias(ks[9])),    # dilation 5
        "conv1x1":   (jax.random.normal(ks[5], (C, C), jnp.float32) * C ** -0.5,
                      bias(ks[10])),
    }

    ref = dac_block_ref(x_nchw, params)
    run = jax.jit(dac_block, static_argnames=("compute_dtype", "row_tile"))

    # f32 compute path (2 row tiles per image).
    out_f32 = jax.block_until_ready(
        run(x_nchw, params, compute_dtype=jnp.float32, row_tile=8))
    assert out_f32.shape == (N, C, H, W) and out_f32.dtype == jnp.float32
    err32 = float(jnp.max(jnp.abs(out_f32 - ref)))
    assert jnp.allclose(out_f32, ref, atol=1e-3, rtol=1e-3), err32

    # bf16 compute path (4 row tiles per image); compare relative RMS vs f32 ref.
    out_bf16 = jax.block_until_ready(
        run(x_nchw, params, compute_dtype=jnp.bfloat16, row_tile=4))
    rel_rms = float(jnp.sqrt(jnp.mean((out_bf16 - ref) ** 2))
                    / jnp.sqrt(jnp.mean(ref ** 2)))
    assert rel_rms < 0.05, rel_rms

    print("KERNEL_OK")
</pallas_src>

<mosaic_0001>
module attributes {stable_mosaic.version = 11 : i64} {
  func.func @_conv_kernel(%arg0: i32, %arg1: i32, %arg2: memref<1x22x22x128xf32, #tpu.memory_space<vmem>>, %arg3: memref<1152x128xf32, #tpu.memory_space<vmem>>, %arg4: memref<1x128xf32, #tpu.memory_space<vmem>>, %arg5: memref<1x8x16x128xf32, #tpu.memory_space<vmem>>) attributes {dimension_semantics = [#tpu.dimension_semantics<parallel>, #tpu.dimension_semantics<parallel>], iteration_bounds = array<i64: 2, 2>, scalar_prefetch = 0 : i64, scratch_operands = 0 : i64, tpu.core_type = #tpu.core_type<tc>, window_params = [{transform_indices = @transform_0, window_bounds = array<i64: 1, 22, 22, 128>}, {pipeline_mode = #tpu.pipeline_mode<synchronous>, transform_indices = @transform_1, window_bounds = array<i64: 1152, 128>}, {pipeline_mode = #tpu.pipeline_mode<synchronous>, transform_indices = @transform_2, window_bounds = array<i64: 1, 128>}, {transform_indices = @transform_3, window_bounds = array<i64: 1, 8, 16, 128>}]} {
    %c8_i32 = arith.constant 8 : i32
    %0 = arith.muli %arg1, %c8_i32 : i32
    %1 = tpu.assume_multiple %0, 8 : i32
    %c2_i32 = arith.constant 2 : i32
    %2 = arith.addi %1, %c2_i32 : i32
    %c0_i32 = arith.constant 0 : i32
    %3 = arith.addi %2, %c0_i32 : i32
    %c0 = arith.constant 0 : index
    %4 = arith.index_cast %3 : i32 to index
    %c2 = arith.constant 2 : index
    %c0_0 = arith.constant 0 : index
    %5 = vector.load %arg2[%c0, %4, %c2, %c0_0] : memref<1x22x22x128xf32, #tpu.memory_space<vmem>>, vector<1x8x16x128xf32>
    %6 = vector.shape_cast %5 : vector<1x8x16x128xf32> to vector<8x16x128xf32>
    %c0_1 = arith.constant 0 : index
    %7 = arith.index_cast %3 : i32 to index
    %c3 = arith.constant 3 : index
    %c0_2 = arith.constant 0 : index
    %8 = vector.load %arg2[%c0_1, %7, %c3, %c0_2] : memref<1x22x22x128xf32, #tpu.memory_space<vmem>>, vector<1x8x16x128xf32>
    %9 = vector.shape_cast %8 : vector<1x8x16x128xf32> to vector<8x16x128xf32>
    %c0_3 = arith.constant 0 : index
    %10 = arith.index_cast %3 : i32 to index
    %c4 = arith.constant 4 : index
    %c0_4 = arith.constant 0 : index
    %11 = vector.load %arg2[%c0_3, %10, %c4, %c0_4] : memref<1x22x22x128xf32, #tpu.memory_space<vmem>>, vector<1x8x16x128xf32>
    %12 = vector.shape_cast %11 : vector<1x8x16x128xf32> to vector<8x16x128xf32>
    %c2_i32_5 = arith.constant 2 : i32
    %13 = arith.addi %1, %c2_i32_5 : i32
    %c1_i32 = arith.constant 1 : i32
    %14 = arith.addi %13, %c1_i32 : i32
    %c0_6 = arith.constant 0 : index
    %15 = arith.index_cast %14 : i32 to index
    %c2_7 = arith.constant 2 : index
    %c0_8 = arith.constant 0 : index
    %16 = vector.load %arg2[%c0_6, %15, %c2_7, %c0_8] : memref<1x22x22x128xf32, #tpu.memory_space<vmem>>, vector<1x8x16x128xf32>
    %17 = vector.shape_cast %16 : vector<1x8x16x128xf32> to vector<8x16x128xf32>
    %c0_9 = arith.constant 0 : index
    %18 = arith.index_cast %14 : i32 to index
    %c3_10 = arith.constant 3 : index
    %c0_11 = arith.constant 0 : index
    %19 = vector.load %arg2[%c0_9, %18, %c3_10, %c0_11] : memref<1x22x22x128xf32, #tpu.memory_space<vmem>>, vector<1x8x16x128xf32>
    %20 = vector.shape_cast %19 : vector<1x8x16x128xf32> to vector<8x16x128xf32>
    %c0_12 = arith.constant 0 : index
    %21 = arith.index_cast %14 : i32 to index
    %c4_13 = arith.constant 4 : index
    %c0_14 = arith.constant 0 : index
    %22 = vector.load %arg2[%c0_12, %21, %c4_13, %c0_14] : memref<1x22x22x128xf32, #tpu.memory_space<vmem>>, vector<1x8x16x128xf32>
    %23 = vector.shape_cast %22 : vector<1x8x16x128xf32> to vector<8x16x128xf32>
    %c2_i32_15 = arith.constant 2 : i32
    %24 = arith.addi %1, %c2_i32_15 : i32
    %c2_i32_16 = arith.constant 2 : i32
    %25 = arith.addi %24, %c2_i32_16 : i32
    %c0_17 = arith.constant 0 : index
    %26 = arith.index_cast %25 : i32 to index
    %c2_18 = arith.constant 2 : index
    %c0_19 = arith.constant 0 : index
    %27 = vector.load %arg2[%c0_17, %26, %c2_18, %c0_19] : memref<1x22x22x128xf32, #tpu.memory_space<vmem>>, vector<1x8x16x128xf32>
    %28 = vector.shape_cast %27 : vector<1x8x16x128xf32> to vector<8x16x128xf32>
    %c0_20 = arith.constant 0 : index
    %29 = arith.index_cast %25 : i32 to index
    %c3_21 = arith.constant 3 : index
    %c0_22 = arith.constant 0 : index
    %30 = vector.load %arg2[%c0_20, %29, %c3_21, %c0_22] : memref<1x22x22x128xf32, #tpu.memory_space<vmem>>, vector<1x8x16x128xf32>
    %31 = vector.shape_cast %30 : vector<1x8x16x128xf32> to vector<8x16x128xf32>
    %c0_23 = arith.constant 0 : index
    %32 = arith.index_cast %25 : i32 to index
    %c4_24 = arith.constant 4 : index
    %c0_25 = arith.constant 0 : index
    %33 = vector.load %arg2[%c0_23, %32, %c4_24, %c0_25] : memref<1x22x22x128xf32, #tpu.memory_space<vmem>>, vector<1x8x16x128xf32>
    %34 = vector.shape_cast %33 : vector<1x8x16x128xf32> to vector<8x16x128xf32>
    %35 = tpu.concatenate %6, %9, %12, %17, %20, %23, %28, %31, %34 in 2 : vector<8x16x128xf32>, vector<8x16x128xf32>, vector<8x16x128xf32>, vector<8x16x128xf32>, vector<8x16x128xf32>, vector<8x16x128xf32>, vector<8x16x128xf32>, vector<8x16x128xf32>, vector<8x16x128xf32> -> vector<8x16x1152xf32>
    %36 = vector.shape_cast %35 : vector<8x16x1152xf32> to vector<128x1152xf32>
    %c0_26 = arith.constant 0 : index
    %c0_27 = arith.constant 0 : index
    %37 = vector.load %arg3[%c0_26, %c0_27] : memref<1152x128xf32, #tpu.memory_space<vmem>>, vector<1152x128xf32>
    %cst = arith.constant dense<0.000000e+00> : vector<128x128xf32>
    %38 = tpu.matmul %36, %37, %cst {dimension_numbers = #tpu.dot_dimension_numbers<[1], [0], [0], [1], [0, 0, 1, 1], [], []>} : vector<128x1152xf32>, vector<1152x128xf32>, vector<128x128xf32> -> vector<128x128xf32>
    %c0_28 = arith.constant 0 : index
    %c0_29 = arith.constant 0 : index
    %39 = vector.load %arg4[%c0_28, %c0_29] : memref<1x128xf32, #tpu.memory_space<vmem>>, vector<1x128xf32>
    %40 = vector.broadcast %39 : vector<1x128xf32> to vector<128x128xf32>
    %41 = arith.addf %38, %40 : vector<128x128xf32>
    %42 = vector.shape_cast %41 : vector<128x128xf32> to vector<8x16x128xf32>
    %c0_30 = arith.constant 0 : index
    %c0_31 = arith.constant 0 : index
    %c0_32 = arith.constant 0 : index
    %c0_33 = arith.constant 0 : index
    %43 = vector.load %arg5[%c0_30, %c0_31, %c0_32, %c0_33] : memref<1x8x16x128xf32, #tpu.memory_space<vmem>>, vector<1x8x16x128xf32>
    %44 = vector.shape_cast %43 : vector<1x8x16x128xf32> to vector<8x16x128xf32>
    %45 = vector.shape_cast %42 : vector<8x16x128xf32> to vector<1x8x16x128xf32>
    tpu.vector_store %arg5[%c0_30, %c0_31, %c0_32, %c0_33], %45 {strides = array<i32>} : memref<1x8x16x128xf32, #tpu.memory_space<vmem>>, vector<1x8x16x128xf32>,
    return
  }
  func.func @transform_0(%arg0: i32, %arg1: i32) -> (i32, i32, i32, i32) {
    %c0_i32 = arith.constant 0 : i32
    %c0_i32_0 = arith.constant 0 : i32
    %c0_i32_1 = arith.constant 0 : i32
    %c0_i32_2 = arith.constant 0 : i32
    return %arg0, %c0_i32, %c0_i32_0, %c0_i32_1 : i32, i32, i32, i32
  }
  func.func @transform_1(%arg0: i32, %arg1: i32) -> (i32, i32) {
    %c0_i32 = arith.constant 0 : i32
    %c0_i32_0 = arith.constant 0 : i32
    %c0_i32_1 = arith.constant 0 : i32
    return %c0_i32, %c0_i32_0 : i32, i32
  }
  func.func @transform_2(%arg0: i32, %arg1: i32) -> (i32, i32) {
    %c0_i32 = arith.constant 0 : i32
    %c0_i32_0 = arith.constant 0 : i32
    %c0_i32_1 = arith.constant 0 : i32
    return %c0_i32, %c0_i32_0 : i32, i32
  }
  func.func @transform_3(%arg0: i32, %arg1: i32) -> (i32, i32, i32, i32) {
    %c0_i32 = arith.constant 0 : i32
    %c0_i32_0 = arith.constant 0 : i32
    %c0_i32_1 = arith.constant 0 : i32
    return %arg0, %arg1, %c0_i32, %c0_i32_0 : i32, i32, i32, i32
  }
}

module attributes {stable_mosaic.version = 11 : i64} {
  func.func @_conv_kernel(%arg0: i32, %arg1: i32, %arg2: memref<1x22x22x128xf32, #tpu.memory_space<vmem>>, %arg3: memref<1152x128xf32, #tpu.memory_space<vmem>>, %arg4: memref<1x128xf32, #tpu.memory_space<vmem>>, %arg5: memref<1x8x16x128xf32, #tpu.memory_space<vmem>>) attributes {dimension_semantics = [#tpu.dimension_semantics<parallel>, #tpu.dimension_semantics<parallel>], iteration_bounds = array<i64: 2, 2>, scalar_prefetch = 0 : i64, scratch_operands = 0 : i64, tpu.core_type = #tpu.core_type<tc>, window_params = [{transform_indices = @transform_0, window_bounds = array<i64: 1, 22, 22, 128>}, {pipeline_mode = #tpu.pipeline_mode<synchronous>, transform_indices = @transform_1, window_bounds = array<i64: 1152, 128>}, {pipeline_mode = #tpu.pipeline_mode<synchronous>, transform_indices = @transform_2, window_bounds = array<i64: 1, 128>}, {transform_indices = @transform_3, window_bounds = array<i64: 1, 8, 16, 128>}]} {
    %c8_i32 = arith.constant 8 : i32
    %0 = arith.muli %arg1, %c8_i32 : i32
    %1 = tpu.assume_multiple %0, 8 : i32
    %c1_i32 = arith.constant 1 : i32
    %2 = arith.addi %1, %c1_i32 : i32
    %c0_i32 = arith.constant 0 : i32
    %3 = arith.addi %2, %c0_i32 : i32
    %c0 = arith.constant 0 : index
    %4 = arith.index_cast %3 : i32 to index
    %c1 = arith.constant 1 : index
    %c0_0 = arith.constant 0 : index
    %5 = vector.load %arg2[%c0, %4, %c1, %c0_0] : memref<1x22x22x128xf32, #tpu.memory_space<vmem>>, vector<1x8x16x128xf32>
    %6 = vector.shape_cast %5 : vector<1x8x16x128xf32> to vector<8x16x128xf32>
    %c0_1 = arith.constant 0 : index
    %7 = arith.index_cast %3 : i32 to index
    %c3 = arith.constant 3 : index
    %c0_2 = arith.constant 0 : index
    %8 = vector.load %arg2[%c0_1, %7, %c3, %c0_2] : memref<1x22x22x128xf32, #tpu.memory_space<vmem>>, vector<1x8x16x128xf32>
    %9 = vector.shape_cast %8 : vector<1x8x16x128xf32> to vector<8x16x128xf32>
    %c0_3 = arith.constant 0 : index
    %10 = arith.index_cast %3 : i32 to index
    %c5 = arith.constant 5 : index
    %c0_4 = arith.constant 0 : index
    %11 = vector.load %arg2[%c0_3, %10, %c5, %c0_4] : memref<1x22x22x128xf32, #tpu.memory_space<vmem>>, vector<1x8x16x128xf32>
    %12 = vector.shape_cast %11 : vector<1x8x16x128xf32> to vector<8x16x128xf32>
    %c1_i32_5 = arith.constant 1 : i32
    %13 = arith.addi %1, %c1_i32_5 : i32
    %c2_i32 = arith.constant 2 : i32
    %14 = arith.addi %13, %c2_i32 : i32
    %c0_6 = arith.constant 0 : index
    %15 = arith.index_cast %14 : i32 to index
    %c1_7 = arith.constant 1 : index
    %c0_8 = arith.constant 0 : index
    %16 = vector.load %arg2[%c0_6, %15, %c1_7, %c0_8] : memref<1x22x22x128xf32, #tpu.memory_space<vmem>>, vector<1x8x16x128xf32>
    %17 = vector.shape_cast %16 : vector<1x8x16x128xf32> to vector<8x16x128xf32>
    %c0_9 = arith.constant 0 : index
    %18 = arith.index_cast %14 : i32 to index
    %c3_10 = arith.constant 3 : index
    %c0_11 = arith.constant 0 : index
    %19 = vector.load %arg2[%c0_9, %18, %c3_10, %c0_11] : memref<1x22x22x128xf32, #tpu.memory_space<vmem>>, vector<1x8x16x128xf32>
    %20 = vector.shape_cast %19 : vector<1x8x16x128xf32> to vector<8x16x128xf32>
    %c0_12 = arith.constant 0 : index
    %21 = arith.index_cast %14 : i32 to index
    %c5_13 = arith.constant 5 : index
    %c0_14 = arith.constant 0 : index
    %22 = vector.load %arg2[%c0_12, %21, %c5_13, %c0_14] : memref<1x22x22x128xf32, #tpu.memory_space<vmem>>, vector<1x8x16x128xf32>
    %23 = vector.shape_cast %22 : vector<1x8x16x128xf32> to vector<8x16x128xf32>
    %c1_i32_15 = arith.constant 1 : i32
    %24 = arith.addi %1, %c1_i32_15 : i32
    %c4_i32 = arith.constant 4 : i32
    %25 = arith.addi %24, %c4_i32 : i32
    %c0_16 = arith.constant 0 : index
    %26 = arith.index_cast %25 : i32 to index
    %c1_17 = arith.constant 1 : index
    %c0_18 = arith.constant 0 : index
    %27 = vector.load %arg2[%c0_16, %26, %c1_17, %c0_18] : memref<1x22x22x128xf32, #tpu.memory_space<vmem>>, vector<1x8x16x128xf32>
    %28 = vector.shape_cast %27 : vector<1x8x16x128xf32> to vector<8x16x128xf32>
    %c0_19 = arith.constant 0 : index
    %29 = arith.index_cast %25 : i32 to index
    %c3_20 = arith.constant 3 : index
    %c0_21 = arith.constant 0 : index
    %30 = vector.load %arg2[%c0_19, %29, %c3_20, %c0_21] : memref<1x22x22x128xf32, #tpu.memory_space<vmem>>, vector<1x8x16x128xf32>
    %31 = vector.shape_cast %30 : vector<1x8x16x128xf32> to vector<8x16x128xf32>
    %c0_22 = arith.constant 0 : index
    %32 = arith.index_cast %25 : i32 to index
    %c5_23 = arith.constant 5 : index
    %c0_24 = arith.constant 0 : index
    %33 = vector.load %arg2[%c0_22, %32, %c5_23, %c0_24] : memref<1x22x22x128xf32, #tpu.memory_space<vmem>>, vector<1x8x16x128xf32>
    %34 = vector.shape_cast %33 : vector<1x8x16x128xf32> to vector<8x16x128xf32>
    %35 = tpu.concatenate %6, %9, %12, %17, %20, %23, %28, %31, %34 in 2 : vector<8x16x128xf32>, vector<8x16x128xf32>, vector<8x16x128xf32>, vector<8x16x128xf32>, vector<8x16x128xf32>, vector<8x16x128xf32>, vector<8x16x128xf32>, vector<8x16x128xf32>, vector<8x16x128xf32> -> vector<8x16x1152xf32>
    %36 = vector.shape_cast %35 : vector<8x16x1152xf32> to vector<128x1152xf32>
    %c0_25 = arith.constant 0 : index
    %c0_26 = arith.constant 0 : index
    %37 = vector.load %arg3[%c0_25, %c0_26] : memref<1152x128xf32, #tpu.memory_space<vmem>>, vector<1152x128xf32>
    %cst = arith.constant dense<0.000000e+00> : vector<128x128xf32>
    %38 = tpu.matmul %36, %37, %cst {dimension_numbers = #tpu.dot_dimension_numbers<[1], [0], [0], [1], [0, 0, 1, 1], [], []>} : vector<128x1152xf32>, vector<1152x128xf32>, vector<128x128xf32> -> vector<128x128xf32>
    %c0_27 = arith.constant 0 : index
    %c0_28 = arith.constant 0 : index
    %39 = vector.load %arg4[%c0_27, %c0_28] : memref<1x128xf32, #tpu.memory_space<vmem>>, vector<1x128xf32>
    %40 = vector.broadcast %39 : vector<1x128xf32> to vector<128x128xf32>
    %41 = arith.addf %38, %40 : vector<128x128xf32>
    %42 = vector.shape_cast %41 : vector<128x128xf32> to vector<8x16x128xf32>
    %c0_29 = arith.constant 0 : index
    %c0_30 = arith.constant 0 : index
    %c0_31 = arith.constant 0 : index
    %c0_32 = arith.constant 0 : index
    %43 = vector.load %arg5[%c0_29, %c0_30, %c0_31, %c0_32] : memref<1x8x16x128xf32, #tpu.memory_space<vmem>>, vector<1x8x16x128xf32>
    %44 = vector.shape_cast %43 : vector<1x8x16x128xf32> to vector<8x16x128xf32>
    %45 = vector.shape_cast %42 : vector<8x16x128xf32> to vector<1x8x16x128xf32>
    tpu.vector_store %arg5[%c0_29, %c0_30, %c0_31, %c0_32], %45 {strides = array<i32>} : memref<1x8x16x128xf32, #tpu.memory_space<vmem>>, vector<1x8x16x128xf32>,
    return
  }
  func.func @transform_0(%arg0: i32, %arg1: i32) -> (i32, i32, i32, i32) {
    %c0_i32 = arith.constant 0 : i32
    %c0_i32_0 = arith.constant 0 : i32
    %c0_i32_1 = arith.constant 0 : i32
    %c0_i32_2 = arith.constant 0 : i32
    return %arg0, %c0_i32, %c0_i32_0, %c0_i32_1 : i32, i32, i32, i32
  }
  func.func @transform_1(%arg0: i32, %arg1: i32) -> (i32, i32) {
    %c0_i32 = arith.constant 0 : i32
    %c0_i32_0 = arith.constant 0 : i32
    %c0_i32_1 = arith.constant 0 : i32
    return %c0_i32, %c0_i32_0 : i32, i32
  }
  func.func @transform_2(%arg0: i32, %arg1: i32) -> (i32, i32) {
    %c0_i32 = arith.constant 0 : i32
    %c0_i32_0 = arith.constant 0 : i32
    %c0_i32_1 = arith.constant 0 : i32
    return %c0_i32, %c0_i32_0 : i32, i32
  }
  func.func @transform_3(%arg0: i32, %arg1: i32) -> (i32, i32, i32, i32) {
    %c0_i32 = arith.constant 0 : i32
    %c0_i32_0 = arith.constant 0 : i32
    %c0_i32_1 = arith.constant 0 : i32
    return %arg0, %arg1, %c0_i32, %c0_i32_0 : i32, i32, i32, i32
  }
}

module attributes {stable_mosaic.version = 11 : i64} {
  func.func @_final_kernel(%arg0: i32, %arg1: i32, %arg2: memref<1x22x22x128xf32, #tpu.memory_space<vmem>>, %arg3: memref<1x22x22x128xf32, #tpu.memory_space<vmem>>, %arg4: memref<1x26x26x128xf32, #tpu.memory_space<vmem>>, %arg5: memref<1152x128xf32, #tpu.memory_space<vmem>>, %arg6: memref<1152x128xf32, #tpu.memory_space<vmem>>, %arg7: memref<1x128xf32, #tpu.memory_space<vmem>>, %arg8: memref<1x128xf32, #tpu.memory_space<vmem>>, %arg9: memref<1x8x16x128xf32, #tpu.memory_space<vmem>>) attributes {dimension_semantics = [#tpu.dimension_semantics<parallel>, #tpu.dimension_semantics<parallel>], iteration_bounds = array<i64: 2, 2>, scalar_prefetch = 0 : i64, scratch_operands = 0 : i64, tpu.core_type = #tpu.core_type<tc>, window_params = [{transform_indices = @transform_0, window_bounds = array<i64: 1, 22, 22, 128>}, {transform_indices = @transform_1, window_bounds = array<i64: 1, 22, 22, 128>}, {transform_indices = @transform_2, window_bounds = array<i64: 1, 26, 26, 128>}, {pipeline_mode = #tpu.pipeline_mode<synchronous>, transform_indices = @transform_3, window_bounds = array<i64: 1152, 128>}, {pipeline_mode = #tpu.pipeline_mode<synchronous>, transform_indices = @transform_4, window_bounds = array<i64: 1152, 128>}, {pipeline_mode = #tpu.pipeline_mode<synchronous>, transform_indices = @transform_5, window_bounds = array<i64: 1, 128>}, {pipeline_mode = #tpu.pipeline_mode<synchronous>, transform_indices = @transform_6, window_bounds = array<i64: 1, 128>}, {transform_indices = @transform_7, window_bounds = array<i64: 1, 8, 16, 128>}]} {
    %c8_i32 = arith.constant 8 : i32
    %0 = arith.muli %arg1, %c8_i32 : i32
    %1 = tpu.assume_multiple %0, 8 : i32
    %c0 = arith.constant 0 : index
    %c0_0 = arith.constant 0 : index
    %2 = vector.load %arg7[%c0, %c0_0] : memref<1x128xf32, #tpu.memory_space<vmem>>, vector<1x128xf32>
    %c3_i32 = arith.constant 3 : i32
    %3 = arith.addi %1, %c3_i32 : i32
    %c0_1 = arith.constant 0 : index
    %4 = arith.index_cast %3 : i32 to index
    %c3 = arith.constant 3 : index
    %c0_2 = arith.constant 0 : index
    %5 = vector.load %arg2[%c0_1, %4, %c3, %c0_2] : memref<1x22x22x128xf32, #tpu.memory_space<vmem>>, vector<1x8x16x128xf32>
    %6 = vector.shape_cast %5 : vector<1x8x16x128xf32> to vector<8x16x128xf32>
    %c3_i32_3 = arith.constant 3 : i32
    %7 = arith.addi %1, %c3_i32_3 : i32
    %c0_4 = arith.constant 0 : index
    %8 = arith.index_cast %7 : i32 to index
    %c3_5 = arith.constant 3 : index
    %c0_6 = arith.constant 0 : index
    %9 = vector.load %arg3[%c0_4, %8, %c3_5, %c0_6] : memref<1x22x22x128xf32, #tpu.memory_space<vmem>>, vector<1x8x16x128xf32>
    %10 = vector.shape_cast %9 : vector<1x8x16x128xf32> to vector<8x16x128xf32>
    %11 = vector.shape_cast %6 : vector<8x16x128xf32> to vector<128x128xf32>
    %12 = vector.shape_cast %10 : vector<8x16x128xf32> to vector<128x128xf32>
    %cst = arith.constant 0.000000e+00 : f32
    %13 = vector.broadcast %cst : f32 to vector<128x128xf32>
    %14 = arith.maximumf %12, %13 : vector<128x128xf32>
    %15 = arith.addf %11, %14 : vector<128x128xf32>
    %c0_i32 = arith.constant 0 : i32
    %16 = arith.addi %1, %c0_i32 : i32
    %c0_i32_7 = arith.constant 0 : i32
    %17 = arith.addi %16, %c0_i32_7 : i32
    %c0_8 = arith.constant 0 : index
    %18 = arith.index_cast %17 : i32 to index
    %c0_9 = arith.constant 0 : index
    %c0_10 = arith.constant 0 : index
    %19 = vector.load %arg2[%c0_8, %18, %c0_9, %c0_10] : memref<1x22x22x128xf32, #tpu.memory_space<vmem>>, vector<1x8x16x128xf32>
    %20 = vector.shape_cast %19 : vector<1x8x16x128xf32> to vector<8x16x128xf32>
    %c0_11 = arith.constant 0 : index
    %21 = arith.index_cast %17 : i32 to index
    %c3_12 = arith.constant 3 : index
    %c0_13 = arith.constant 0 : index
    %22 = vector.load %arg2[%c0_11, %21, %c3_12, %c0_13] : memref<1x22x22x128xf32, #tpu.memory_space<vmem>>, vector<1x8x16x128xf32>
    %23 = vector.shape_cast %22 : vector<1x8x16x128xf32> to vector<8x16x128xf32>
    %c0_14 = arith.constant 0 : index
    %24 = arith.index_cast %17 : i32 to index
    %c6 = arith.constant 6 : index
    %c0_15 = arith.constant 0 : index
    %25 = vector.load %arg2[%c0_14, %24, %c6, %c0_15] : memref<1x22x22x128xf32, #tpu.memory_space<vmem>>, vector<1x8x16x128xf32>
    %26 = vector.shape_cast %25 : vector<1x8x16x128xf32> to vector<8x16x128xf32>
    %c0_i32_16 = arith.constant 0 : i32
    %27 = arith.addi %1, %c0_i32_16 : i32
    %c3_i32_17 = arith.constant 3 : i32
    %28 = arith.addi %27, %c3_i32_17 : i32
    %c0_18 = arith.constant 0 : index
    %29 = arith.index_cast %28 : i32 to index
    %c0_19 = arith.constant 0 : index
    %c0_20 = arith.constant 0 : index
    %30 = vector.load %arg2[%c0_18, %29, %c0_19, %c0_20] : memref<1x22x22x128xf32, #tpu.memory_space<vmem>>, vector<1x8x16x128xf32>
    %31 = vector.shape_cast %30 : vector<1x8x16x128xf32> to vector<8x16x128xf32>
    %c0_21 = arith.constant 0 : index
    %32 = arith.index_cast %28 : i32 to index
    %c3_22 = arith.constant 3 : index
    %c0_23 = arith.constant 0 : index
    %33 = vector.load %arg2[%c0_21, %32, %c3_22, %c0_23] : memref<1x22x22x128xf32, #tpu.memory_space<vmem>>, vector<1x8x16x128xf32>
    %34 = vector.shape_cast %33 : vector<1x8x16x128xf32> to vector<8x16x128xf32>
    %c0_24 = arith.constant 0 : index
    %35 = arith.index_cast %28 : i32 to index
    %c6_25 = arith.constant 6 : index
    %c0_26 = arith.constant 0 : index
    %36 = vector.load %arg2[%c0_24, %35, %c6_25, %c0_26] : memref<1x22x22x128xf32, #tpu.memory_space<vmem>>, vector<1x8x16x128xf32>
    %37 = vector.shape_cast %36 : vector<1x8x16x128xf32> to vector<8x16x128xf32>
    %c0_i32_27 = arith.constant 0 : i32
    %38 = arith.addi %1, %c0_i32_27 : i32
    %c6_i32 = arith.constant 6 : i32
    %39 = arith.addi %38, %c6_i32 : i32
    %c0_28 = arith.constant 0 : index
    %40 = arith.index_cast %39 : i32 to index
    %c0_29 = arith.constant 0 : index
    %c0_30 = arith.constant 0 : index
    %41 = vector.load %arg2[%c0_28, %40, %c0_29, %c0_30] : memref<1x22x22x128xf32, #tpu.memory_space<vmem>>, vector<1x8x16x128xf32>
    %42 = vector.shape_cast %41 : vector<1x8x16x128xf32> to vector<8x16x128xf32>
    %c0_31 = arith.constant 0 : index
    %43 = arith.index_cast %39 : i32 to index
    %c3_32 = arith.constant 3 : index
    %c0_33 = arith.constant 0 : index
    %44 = vector.load %arg2[%c0_31, %43, %c3_32, %c0_33] : memref<1x22x22x128xf32, #tpu.memory_space<vmem>>, vector<1x8x16x128xf32>
    %45 = vector.shape_cast %44 : vector<1x8x16x128xf32> to vector<8x16x128xf32>
    %c0_34 = arith.constant 0 : index
    %46 = arith.index_cast %39 : i32 to index
    %c6_35 = arith.constant 6 : index
    %c0_36 = arith.constant 0 : index
    %47 = vector.load %arg2[%c0_34, %46, %c6_35, %c0_36] : memref<1x22x22x128xf32, #tpu.memory_space<vmem>>, vector<1x8x16x128xf32>
    %48 = vector.shape_cast %47 : vector<1x8x16x128xf32> to vector<8x16x128xf32>
    %49 = tpu.concatenate %20, %23, %26, %31, %34, %37, %42, %45, %48 in 2 : vector<8x16x128xf32>, vector<8x16x128xf32>, vector<8x16x128xf32>, vector<8x16x128xf32>, vector<8x16x128xf32>, vector<8x16x128xf32>, vector<8x16x128xf32>, vector<8x16x128xf32>, vector<8x16x128xf32> -> vector<8x16x1152xf32>
    %50 = vector.shape_cast %49 : vector<8x16x1152xf32> to vector<128x1152xf32>
    %c0_37 = arith.constant 0 : index
    %c0_38 = arith.constant 0 : index
    %51 = vector.load %arg5[%c0_37, %c0_38] : memref<1152x128xf32, #tpu.memory_space<vmem>>, vector<1152x128xf32>
    %cst_39 = arith.constant dense<0.000000e+00> : vector<128x128xf32>
    %52 = tpu.matmul %50, %51, %cst_39 {dimension_numbers = #tpu.dot_dimension_numbers<[1], [0], [0], [1], [0, 0, 1, 1], [], []>} : vector<128x1152xf32>, vector<1152x128xf32>, vector<128x128xf32> -> vector<128x128xf32>
    %53 = vector.broadcast %2 : vector<1x128xf32> to vector<128x128xf32>
    %54 = arith.addf %52, %53 : vector<128x128xf32>
    %cst_40 = arith.constant 0.000000e+00 : f32
    %55 = vector.broadcast %cst_40 : f32 to vector<128x128xf32>
    %56 = arith.maximumf %54, %55 : vector<128x128xf32>
    %57 = arith.addf %15, %56 : vector<128x128xf32>
    %c0_i32_41 = arith.constant 0 : i32
    %58 = arith.addi %1, %c0_i32_41 : i32
    %c0_i32_42 = arith.constant 0 : i32
    %59 = arith.addi %58, %c0_i32_42 : i32
    %c0_43 = arith.constant 0 : index
    %60 = arith.index_cast %59 : i32 to index
    %c0_44 = arith.constant 0 : index
    %c0_45 = arith.constant 0 : index
    %61 = vector.load %arg3[%c0_43, %60, %c0_44, %c0_45] : memref<1x22x22x128xf32, #tpu.memory_space<vmem>>, vector<1x8x16x128xf32>
    %62 = vector.shape_cast %61 : vector<1x8x16x128xf32> to vector<8x16x128xf32>
    %c0_46 = arith.constant 0 : index
    %63 = arith.index_cast %59 : i32 to index
    %c3_47 = arith.constant 3 : index
    %c0_48 = arith.constant 0 : index
    %64 = vector.load %arg3[%c0_46, %63, %c3_47, %c0_48] : memref<1x22x22x128xf32, #tpu.memory_space<vmem>>, vector<1x8x16x128xf32>
    %65 = vector.shape_cast %64 : vector<1x8x16x128xf32> to vector<8x16x128xf32>
    %c0_49 = arith.constant 0 : index
    %66 = arith.index_cast %59 : i32 to index
    %c6_50 = arith.constant 6 : index
    %c0_51 = arith.constant 0 : index
    %67 = vector.load %arg3[%c0_49, %66, %c6_50, %c0_51] : memref<1x22x22x128xf32, #tpu.memory_space<vmem>>, vector<1x8x16x128xf32>
    %68 = vector.shape_cast %67 : vector<1x8x16x128xf32> to vector<8x16x128xf32>
    %c0_i32_52 = arith.constant 0 : i32
    %69 = arith.addi %1, %c0_i32_52 : i32
    %c3_i32_53 = arith.constant 3 : i32
    %70 = arith.addi %69, %c3_i32_53 : i32
    %c0_54 = arith.constant 0 : index
    %71 = arith.index_cast %70 : i32 to index
    %c0_55 = arith.constant 0 : index
    %c0_56 = arith.constant 0 : index
    %72 = vector.load %arg3[%c0_54, %71, %c0_55, %c0_56] : memref<1x22x22x128xf32, #tpu.memory_space<vmem>>, vector<1x8x16x128xf32>
    %73 = vector.shape_cast %72 : vector<1x8x16x128xf32> to vector<8x16x128xf32>
    %c0_57 = arith.constant 0 : index
    %74 = arith.index_cast %70 : i32 to index
    %c3_58 = arith.constant 3 : index
    %c0_59 = arith.constant 0 : index
    %75 = vector.load %arg3[%c0_57, %74, %c3_58, %c0_59] : memref<1x22x22x128xf32, #tpu.memory_space<vmem>>, vector<1x8x16x128xf32>
    %76 = vector.shape_cast %75 : vector<1x8x16x128xf32> to vector<8x16x128xf32>
    %c0_60 = arith.constant 0 : index
    %77 = arith.index_cast %70 : i32 to index
    %c6_61 = arith.constant 6 : index
    %c0_62 = arith.constant 0 : index
    %78 = vector.load %arg3[%c0_60, %77, %c6_61, %c0_62] : memref<1x22x22x128xf32, #tpu.memory_space<vmem>>, vector<1x8x16x128xf32>
    %79 = vector.shape_cast %78 : vector<1x8x16x128xf32> to vector<8x16x128xf32>
    %c0_i32_63 = arith.constant 0 : i32
    %80 = arith.addi %1, %c0_i32_63 : i32
    %c6_i32_64 = arith.constant 6 : i32
    %81 = arith.addi %80, %c6_i32_64 : i32
    %c0_65 = arith.constant 0 : index
    %82 = arith.index_cast %81 : i32 to index
    %c0_66 = arith.constant 0 : index
    %c0_67 = arith.constant 0 : index
    %83 = vector.load %arg3[%c0_65, %82, %c0_66, %c0_67] : memref<1x22x22x128xf32, #tpu.memory_space<vmem>>, vector<1x8x16x128xf32>
    %84 = vector.shape_cast %83 : vector<1x8x16x128xf32> to vector<8x16x128xf32>
    %c0_68 = arith.constant 0 : index
    %85 = arith.index_cast %81 : i32 to index
    %c3_69 = arith.constant 3 : index
    %c0_70 = arith.constant 0 : index
    %86 = vector.load %arg3[%c0_68, %85, %c3_69, %c0_70] : memref<1x22x22x128xf32, #tpu.memory_space<vmem>>, vector<1x8x16x128xf32>
    %87 = vector.shape_cast %86 : vector<1x8x16x128xf32> to vector<8x16x128xf32>
    %c0_71 = arith.constant 0 : index
    %88 = arith.index_cast %81 : i32 to index
    %c6_72 = arith.constant 6 : index
    %c0_73 = arith.constant 0 : index
    %89 = vector.load %arg3[%c0_71, %88, %c6_72, %c0_73] : memref<1x22x22x128xf32, #tpu.memory_space<vmem>>, vector<1x8x16x128xf32>
    %90 = vector.shape_cast %89 : vector<1x8x16x128xf32> to vector<8x16x128xf32>
    %91 = tpu.concatenate %62, %65, %68, %73, %76, %79, %84, %87, %90 in 2 : vector<8x16x128xf32>, vector<8x16x128xf32>, vector<8x16x128xf32>, vector<8x16x128xf32>, vector<8x16x128xf32>, vector<8x16x128xf32>, vector<8x16x128xf32>, vector<8x16x128xf32>, vector<8x16x128xf32> -> vector<8x16x1152xf32>
    %92 = vector.shape_cast %91 : vector<8x16x1152xf32> to vector<128x1152xf32>
    %c0_74 = arith.constant 0 : index
    %c0_75 = arith.constant 0 : index
    %93 = vector.load %arg5[%c0_74, %c0_75] : memref<1152x128xf32, #tpu.memory_space<vmem>>, vector<1152x128xf32>
    %cst_76 = arith.constant dense<0.000000e+00> : vector<128x128xf32>
    %94 = tpu.matmul %92, %93, %cst_76 {dimension_numbers = #tpu.dot_dimension_numbers<[1], [0], [0], [1], [0, 0, 1, 1], [], []>} : vector<128x1152xf32>, vector<1152x128xf32>, vector<128x128xf32> -> vector<128x128xf32>
    %95 = vector.broadcast %2 : vector<1x128xf32> to vector<128x128xf32>
    %96 = arith.addf %94, %95 : vector<128x128xf32>
    %cst_77 = arith.constant 0.000000e+00 : f32
    %97 = vector.broadcast %cst_77 : f32 to vector<128x128xf32>
    %98 = arith.maximumf %96, %97 : vector<128x128xf32>
    %99 = arith.addf %57, %98 : vector<128x128xf32>
    %c0_i32_78 = arith.constant 0 : i32
    %100 = arith.addi %1, %c0_i32_78 : i32
    %c0_i32_79 = arith.constant 0 : i32
    %101 = arith.addi %100, %c0_i32_79 : i32
    %c0_80 = arith.constant 0 : index
    %102 = arith.index_cast %101 : i32 to index
    %c0_81 = arith.constant 0 : index
    %c0_82 = arith.constant 0 : index
    %103 = vector.load %arg4[%c0_80, %102, %c0_81, %c0_82] : memref<1x26x26x128xf32, #tpu.memory_space<vmem>>, vector<1x8x16x128xf32>
    %104 = vector.shape_cast %103 : vector<1x8x16x128xf32> to vector<8x16x128xf32>
    %c0_83 = arith.constant 0 : index
    %105 = arith.index_cast %101 : i32 to index
    %c5 = arith.constant 5 : index
    %c0_84 = arith.constant 0 : index
    %106 = vector.load %arg4[%c0_83, %105, %c5, %c0_84] : memref<1x26x26x128xf32, #tpu.memory_space<vmem>>, vector<1x8x16x128xf32>
    %107 = vector.shape_cast %106 : vector<1x8x16x128xf32> to vector<8x16x128xf32>
    %c0_85 = arith.constant 0 : index
    %108 = arith.index_cast %101 : i32 to index
    %c10 = arith.constant 10 : index
    %c0_86 = arith.constant 0 : index
    %109 = vector.load %arg4[%c0_85, %108, %c10, %c0_86] : memref<1x26x26x128xf32, #tpu.memory_space<vmem>>, vector<1x8x16x128xf32>
    %110 = vector.shape_cast %109 : vector<1x8x16x128xf32> to vector<8x16x128xf32>
    %c0_i32_87 = arith.constant 0 : i32
    %111 = arith.addi %1, %c0_i32_87 : i32
    %c5_i32 = arith.constant 5 : i32
    %112 = arith.addi %111, %c5_i32 : i32
    %c0_88 = arith.constant 0 : index
    %113 = arith.index_cast %112 : i32 to index
    %c0_89 = arith.constant 0 : index
    %c0_90 = arith.constant 0 : index
    %114 = vector.load %arg4[%c0_88, %113, %c0_89, %c0_90] : memref<1x26x26x128xf32, #tpu.memory_space<vmem>>, vector<1x8x16x128xf32>
    %115 = vector.shape_cast %114 : vector<1x8x16x128xf32> to vector<8x16x128xf32>
    %c0_91 = arith.constant 0 : index
    %116 = arith.index_cast %112 : i32 to index
    %c5_92 = arith.constant 5 : index
    %c0_93 = arith.constant 0 : index
    %117 = vector.load %arg4[%c0_91, %116, %c5_92, %c0_93] : memref<1x26x26x128xf32, #tpu.memory_space<vmem>>, vector<1x8x16x128xf32>
    %118 = vector.shape_cast %117 : vector<1x8x16x128xf32> to vector<8x16x128xf32>
    %c0_94 = arith.constant 0 : index
    %119 = arith.index_cast %112 : i32 to index
    %c10_95 = arith.constant 10 : index
    %c0_96 = arith.constant 0 : index
    %120 = vector.load %arg4[%c0_94, %119, %c10_95, %c0_96] : memref<1x26x26x128xf32, #tpu.memory_space<vmem>>, vector<1x8x16x128xf32>
    %121 = vector.shape_cast %120 : vector<1x8x16x128xf32> to vector<8x16x128xf32>
    %c0_i32_97 = arith.constant 0 : i32
    %122 = arith.addi %1, %c0_i32_97 : i32
    %c10_i32 = arith.constant 10 : i32
    %123 = arith.addi %122, %c10_i32 : i32
    %c0_98 = arith.constant 0 : index
    %124 = arith.index_cast %123 : i32 to index
    %c0_99 = arith.constant 0 : index
    %c0_100 = arith.constant 0 : index
    %125 = vector.load %arg4[%c0_98, %124, %c0_99, %c0_100] : memref<1x26x26x128xf32, #tpu.memory_space<vmem>>, vector<1x8x16x128xf32>
    %126 = vector.shape_cast %125 : vector<1x8x16x128xf32> to vector<8x16x128xf32>
    %c0_101 = arith.constant 0 : index
    %127 = arith.index_cast %123 : i32 to index
    %c5_102 = arith.constant 5 : index
    %c0_103 = arith.constant 0 : index
    %128 = vector.load %arg4[%c0_101, %127, %c5_102, %c0_103] : memref<1x26x26x128xf32, #tpu.memory_space<vmem>>, vector<1x8x16x128xf32>
    %129 = vector.shape_cast %128 : vector<1x8x16x128xf32> to vector<8x16x128xf32>
    %c0_104 = arith.constant 0 : index
    %130 = arith.index_cast %123 : i32 to index
    %c10_105 = arith.constant 10 : index
    %c0_106 = arith.constant 0 : index
    %131 = vector.load %arg4[%c0_104, %130, %c10_105, %c0_106] : memref<1x26x26x128xf32, #tpu.memory_space<vmem>>, vector<1x8x16x128xf32>
    %132 = vector.shape_cast %131 : vector<1x8x16x128xf32> to vector<8x16x128xf32>
    %133 = tpu.concatenate %104, %107, %110, %115, %118, %121, %126, %129, %132 in 2 : vector<8x16x128xf32>, vector<8x16x128xf32>, vector<8x16x128xf32>, vector<8x16x128xf32>, vector<8x16x128xf32>, vector<8x16x128xf32>, vector<8x16x128xf32>, vector<8x16x128xf32>, vector<8x16x128xf32> -> vector<8x16x1152xf32>
    %134 = vector.shape_cast %133 : vector<8x16x1152xf32> to vector<128x1152xf32>
    %c0_107 = arith.constant 0 : index
    %c0_108 = arith.constant 0 : index
    %135 = vector.load %arg6[%c0_107, %c0_108] : memref<1152x128xf32, #tpu.memory_space<vmem>>, vector<1152x128xf32>
    %cst_109 = arith.constant dense<0.000000e+00> : vector<128x128xf32>
    %136 = tpu.matmul %134, %135, %cst_109 {dimension_numbers = #tpu.dot_dimension_numbers<[1], [0], [0], [1], [0, 0, 1, 1], [], []>} : vector<128x1152xf32>, vector<1152x128xf32>, vector<128x128xf32> -> vector<128x128xf32>
    %c0_110 = arith.constant 0 : index
    %c0_111 = arith.constant 0 : index
    %137 = vector.load %arg8[%c0_110, %c0_111] : memref<1x128xf32, #tpu.memory_space<vmem>>, vector<1x128xf32>
    %138 = vector.broadcast %137 : vector<1x128xf32> to vector<128x128xf32>
    %139 = arith.addf %136, %138 : vector<128x128xf32>
    %cst_112 = arith.constant 0.000000e+00 : f32
    %140 = vector.broadcast %cst_112 : f32 to vector<128x128xf32>
    %141 = arith.maximumf %139, %140 : vector<128x128xf32>
    %142 = arith.addf %99, %141 : vector<128x128xf32>
    %c2_i32 = arith.constant 2 : i32
    %143 = arith.addi %1, %c2_i32 : i32
    %c0_i32_113 = arith.constant 0 : i32
    %144 = arith.addi %143, %c0_i32_113 : i32
    %c0_114 = arith.constant 0 : index
    %145 = arith.index_cast %144 : i32 to index
    %c2 = arith.constant 2 : index
    %c0_115 = arith.constant 0 : index
    %146 = vector.load %arg4[%c0_114, %145, %c2, %c0_115] : memref<1x26x26x128xf32, #tpu.memory_space<vmem>>, vector<1x8x16x128xf32>
    %147 = vector.shape_cast %146 : vector<1x8x16x128xf32> to vector<8x16x128xf32>
    %c0_116 = arith.constant 0 : index
    %148 = arith.index_cast %144 : i32 to index
    %c5_117 = arith.constant 5 : index
    %c0_118 = arith.constant 0 : index
    %149 = vector.load %arg4[%c0_116, %148, %c5_117, %c0_118] : memref<1x26x26x128xf32, #tpu.memory_space<vmem>>, vector<1x8x16x128xf32>
    %150 = vector.shape_cast %149 : vector<1x8x16x128xf32> to vector<8x16x128xf32>
    %c0_119 = arith.constant 0 : index
    %151 = arith.index_cast %144 : i32 to index
    %c8 = arith.constant 8 : index
    %c0_120 = arith.constant 0 : index
    %152 = vector.load %arg4[%c0_119, %151, %c8, %c0_120] : memref<1x26x26x128xf32, #tpu.memory_space<vmem>>, vector<1x8x16x128xf32>
    %153 = vector.shape_cast %152 : vector<1x8x16x128xf32> to vector<8x16x128xf32>
    %c2_i32_121 = arith.constant 2 : i32
    %154 = arith.addi %1, %c2_i32_121 : i32
    %c3_i32_122 = arith.constant 3 : i32
    %155 = arith.addi %154, %c3_i32_122 : i32
    %c0_123 = arith.constant 0 : index
    %156 = arith.index_cast %155 : i32 to index
    %c2_124 = arith.constant 2 : index
    %c0_125 = arith.constant 0 : index
    %157 = vector.load %arg4[%c0_123, %156, %c2_124, %c0_125] : memref<1x26x26x128xf32, #tpu.memory_space<vmem>>, vector<1x8x16x128xf32>
    %158 = vector.shape_cast %157 : vector<1x8x16x128xf32> to vector<8x16x128xf32>
    %c0_126 = arith.constant 0 : index
    %159 = arith.index_cast %155 : i32 to index
    %c5_127 = arith.constant 5 : index
    %c0_128 = arith.constant 0 : index
    %160 = vector.load %arg4[%c0_126, %159, %c5_127, %c0_128] : memref<1x26x26x128xf32, #tpu.memory_space<vmem>>, vector<1x8x16x128xf32>
    %161 = vector.shape_cast %160 : vector<1x8x16x128xf32> to vector<8x16x128xf32>
    %c0_129 = arith.constant 0 : index
    %162 = arith.index_cast %155 : i32 to index
    %c8_130 = arith.constant 8 : index
    %c0_131 = arith.constant 0 : index
    %163 = vector.load %arg4[%c0_129, %162, %c8_130, %c0_131] : memref<1x26x26x128xf32, #tpu.memory_space<vmem>>, vector<1x8x16x128xf32>
    %164 = vector.shape_cast %163 : vector<1x8x16x128xf32> to vector<8x16x128xf32>
    %c2_i32_132 = arith.constant 2 : i32
    %165 = arith.addi %1, %c2_i32_132 : i32
    %c6_i32_133 = arith.constant 6 : i32
    %166 = arith.addi %165, %c6_i32_133 : i32
    %c0_134 = arith.constant 0 : index
    %167 = arith.index_cast %166 : i32 to index
    %c2_135 = arith.constant 2 : index
    %c0_136 = arith.constant 0 : index
    %168 = vector.load %arg4[%c0_134, %167, %c2_135, %c0_136] : memref<1x26x26x128xf32, #tpu.memory_space<vmem>>, vector<1x8x16x128xf32>
    %169 = vector.shape_cast %168 : vector<1x8x16x128xf32> to vector<8x16x128xf32>
    %c0_137 = arith.constant 0 : index
    %170 = arith.index_cast %166 : i32 to index
    %c5_138 = arith.constant 5 : index
    %c0_139 = arith.constant 0 : index
    %171 = vector.load %arg4[%c0_137, %170, %c5_138, %c0_139] : memref<1x26x26x128xf32, #tpu.memory_space<vmem>>, vector<1x8x16x128xf32>
    %172 = vector.shape_cast %171 : vector<1x8x16x128xf32> to vector<8x16x128xf32>
    %c0_140 = arith.constant 0 : index
    %173 = arith.index_cast %166 : i32 to index
    %c8_141 = arith.constant 8 : index
    %c0_142 = arith.constant 0 : index
    %174 = vector.load %arg4[%c0_140, %173, %c8_141, %c0_142] : memref<1x26x26x128xf32, #tpu.memory_space<vmem>>, vector<1x8x16x128xf32>
    %175 = vector.shape_cast %174 : vector<1x8x16x128xf32> to vector<8x16x128xf32>
    %176 = tpu.concatenate %147, %150, %153, %158, %161, %164, %169, %172, %175 in 2 : vector<8x16x128xf32>, vector<8x16x128xf32>, vector<8x16x128xf32>, vector<8x16x128xf32>, vector<8x16x128xf32>, vector<8x16x128xf32>, vector<8x16x128xf32>, vector<8x16x128xf32>, vector<8x16x128xf32> -> vector<8x16x1152xf32>
    %177 = vector.shape_cast %176 : vector<8x16x1152xf32> to vector<128x1152xf32>
    %c0_143 = arith.constant 0 : index
    %c0_144 = arith.constant 0 : index
    %178 = vector.load %arg5[%c0_143, %c0_144] : memref<1152x128xf32, #tpu.memory_space<vmem>>, vector<1152x128xf32>
    %cst_145 = arith.constant dense<0.000000e+00> : vector<128x128xf32>
    %179 = tpu.matmul %177, %178, %cst_145 {dimension_numbers = #tpu.dot_dimension_numbers<[1], [0], [0], [1], [0, 0, 1, 1], [], []>} : vector<128x1152xf32>, vector<1152x128xf32>, vector<128x128xf32> -> vector<128x128xf32>
    %180 = vector.broadcast %2 : vector<1x128xf32> to vector<128x128xf32>
    %181 = arith.addf %179, %180 : vector<128x128xf32>
    %cst_146 = arith.constant 0.000000e+00 : f32
    %182 = vector.broadcast %cst_146 : f32 to vector<128x128xf32>
    %183 = arith.maximumf %181, %182 : vector<128x128xf32>
    %184 = arith.addf %142, %183 : vector<128x128xf32>
    %185 = vector.shape_cast %184 : vector<128x128xf32> to vector<8x16x128xf32>
    %c0_147 = arith.constant 0 : index
    %c0_148 = arith.constant 0 : index
    %c0_149 = arith.constant 0 : index
    %c0_150 = arith.constant 0 : index
    %186 = vector.load %arg9[%c0_147, %c0_148, %c0_149, %c0_150] : memref<1x8x16x128xf32, #tpu.memory_space<vmem>>, vector<1x8x16x128xf32>
    %187 = vector.shape_cast %186 : vector<1x8x16x128xf32> to vector<8x16x128xf32>
    %188 = vector.shape_cast %185 : vector<8x16x128xf32> to vector<1x8x16x128xf32>
    tpu.vector_store %arg9[%c0_147, %c0_148, %c0_149, %c0_150], %188 {strides = array<i32>} : memref<1x8x16x128xf32, #tpu.memory_space<vmem>>, vector<1x8x16x128xf32>,
    return
  }
  func.func @transform_0(%arg0: i32, %arg1: i32) -> (i32, i32, i32, i32) {
    %c0_i32 = arith.constant 0 : i32
    %c0_i32_0 = arith.constant 0 : i32
    %c0_i32_1 = arith.constant 0 : i32
    %c0_i32_2 = arith.constant 0 : i32
    return %arg0, %c0_i32, %c0_i32_0, %c0_i32_1 : i32, i32, i32, i32
  }
  func.func @transform_1(%arg0: i32, %arg1: i32) -> (i32, i32, i32, i32) {
    %c0_i32 = arith.constant 0 : i32
    %c0_i32_0 = arith.constant 0 : i32
    %c0_i32_1 = arith.constant 0 : i32
    %c0_i32_2 = arith.constant 0 : i32
    return %arg0, %c0_i32, %c0_i32_0, %c0_i32_1 : i32, i32, i32, i32
  }
  func.func @transform_2(%arg0: i32, %arg1: i32) -> (i32, i32, i32, i32) {
    %c0_i32 = arith.constant 0 : i32
    %c0_i32_0 = arith.constant 0 : i32
    %c0_i32_1 = arith.constant 0 : i32
    %c0_i32_2 = arith.constant 0 : i32
    return %arg0, %c0_i32, %c0_i32_0, %c0_i32_1 : i32, i32, i32, i32
  }
  func.func @transform_3(%arg0: i32, %arg1: i32) -> (i32, i32) {
    %c0_i32 = arith.constant 0 : i32
    %c0_i32_0 = arith.constant 0 : i32
    %c0_i32_1 = arith.constant 0 : i32
    return %c0_i32, %c0_i32_0 : i32, i32
  }
  func.func @transform_4(%arg0: i32, %arg1: i32) -> (i32, i32) {
    %c0_i32 = arith.constant 0 : i32
    %c0_i32_0 = arith.constant 0 : i32
    %c0_i32_1 = arith.constant 0 : i32
    return %c0_i32, %c0_i32_0 : i32, i32
  }
  func.func @transform_5(%arg0: i32, %arg1: i32) -> (i32, i32) {
    %c0_i32 = arith.constant 0 : i32
    %c0_i32_0 = arith.constant 0 : i32
    %c0_i32_1 = arith.constant 0 : i32
    return %c0_i32, %c0_i32_0 : i32, i32
  }
  func.func @transform_6(%arg0: i32, %arg1: i32) -> (i32, i32) {
    %c0_i32 = arith.constant 0 : i32
    %c0_i32_0 = arith.constant 0 : i32
    %c0_i32_1 = arith.constant 0 : i32
    return %c0_i32, %c0_i32_0 : i32, i32
  }
  func.func @transform_7(%arg0: i32, %arg1: i32) -> (i32, i32, i32, i32) {
    %c0_i32 = arith.constant 0 : i32
    %c0_i32_0 = arith.constant 0 : i32
    %c0_i32_1 = arith.constant 0 : i32
    return %arg0, %arg1, %c0_i32, %c0_i32_0 : i32, i32, i32, i32
  }
}

</mosaic_0001>

<llo_original>
// kernel: dac_block.4
$region0: #{dac_block.4}
  #allocation0 [shape = 'u32[]', space=smem, size = 0x4, offset = 0x4, fixed_abs, tag = 'smem constant byte address 0x4 - core index']
  #allocation1 [shape = 'u32[144,128]{1,0:T(1,128)}', space=vmem, size = 0x12000, scoped, tag = 'internal scratch']
  %s0 = inlined_call_operand.vmem [shape: f32[2,22,22,128], index: 0, kind: input, shape index: {}]
  %s1 = inlined_call_operand.vmem [shape: f32[1152,128], index: 1, kind: input, shape index: {}]
  %s2 = inlined_call_operand.vmem [shape: f32[1,128], index: 2, kind: input, shape index: {}]
  %s3 = inlined_call_operand.vmem [shape: f32[2,16,16,128], index: 3, kind: output, shape index: {}]
  %s4 = sld [smem:[#allocation0]]
  $region45: #{dac_block.4} parent=0
    _
  %s6 = ssub.s32 1, %s4
  %s7 = scalar_select 0, %s6, %s4
  loop: start=0, step=1, limit=6
  $region2: #{dac_block.4} parent=0 // loop_pre_header
    _
  $region3: #{dac_block.4} parent=0 // loop_header
    %s9 = sphi 0, %s13
    %p10 = scmp.ge.s32.totalorder %s9, 6
    %s16 = sphi 0, %s28
    %s17 = sphi 0, %s24
    %s18 = sphi 0, %s16
    %s19 = sphi 0, %s17
    %s20 = sphi 0, %s18
    %s21 = sphi 0, %s19
    %s31 = sphi 0, %s33
    %s34 = sphi 0, %s31
    %s35 = sphi 0, %s34
    %s51 = sphi 0, %s35
    %s55 = sphi 0, %s55
    %s57 = sphi 0, %s55
    %s58 = sphi 0, %s57
    %s72 = sphi 0, %s58
    %s76 = sphi 0, %s76
    %s78 = sphi 0, %s76
    %s79 = sphi 0, %s78
    %s93 = sphi 0, %s79
    %s101 = sphi 0, %s103
    %s104 = sphi 0, %s101
    %s105 = sphi 0, %s104
    %s121 = sphi 0, %s105
  $region4: #{dac_block.4} parent=0 // loop_header_branch
    %12 = sbr.rel (%p10) target = $region8
  $region5: #{dac_block.4} parent=0 // loop_body
    %s14 = ssub.s32 %s9, 1
    %s15 = ssub.s32 %s9, 2
    %s22 = sadd.s32 1, %s17
    %p23 = scmp.ge.s32.totalorder %s22, 2
    %s24 = scalar_select %p23, 0, %s22
    %s25 = sadd.s32 1, %s16
    %s26 = scalar_select %p23, %s25, %s16
    %p27 = scmp.ge.s32.totalorder %s26, 2
    %s28 = scalar_select %p27, 0, %s26
    %s29 = ssub.s32 %s16, %s28
    %p30 = scmp.eq.s32.totalorder %s29, 0
    %s32 = sadd.s32 %s31, 1
    %s33 = scalar_select %p30, %s31, %s32
    %p36 = pneg %p30
    %p37 = scmp.eq.s32.totalorder %s9, 3
    %p38 = por %p36, %p37
    %p39 = scmp.ne.s32.totalorder %s31, %s34
    %p40 = scmp.eq.s32.totalorder %s9, 0
    %p41 = por %p39, %p40
    %p42 = scmp.ne.s32.totalorder %s31, %s34
    %p43 = scmp.eq.s32.totalorder %s14, 3
    %p44 = por %p42, %p43
    %p45 = scmp.ne.s32.totalorder %s34, %s35
    %p46 = scmp.eq.s32.totalorder %s14, 0
    %p47 = por %p45, %p46
    %p48 = scmp.ne.s32.totalorder %s34, %s35
    %p49 = scmp.eq.s32.totalorder %s15, 3
    %p50 = por %p48, %p49
    %p52 = scmp.ne.s32.totalorder %s35, %s51
    %p53 = scmp.eq.s32.totalorder %s15, 0
    %p54 = por %p52, %p53
    %s56 = sadd.s32 %s55, 1
    %p59 = scmp.eq.s32.totalorder %s9, 3
    %p60 = scmp.ne.s32.totalorder %s55, %s57
    %p61 = scmp.eq.s32.totalorder %s9, 0
    %p62 = por %p60, %p61
    %p63 = scmp.ne.s32.totalorder %s55, %s57
    %p64 = scmp.eq.s32.totalorder %s14, 3
    %p65 = por %p63, %p64
    %p66 = scmp.ne.s32.totalorder %s57, %s58
    %p67 = scmp.eq.s32.totalorder %s14, 0
    %p68 = por %p66, %p67
    %p69 = scmp.ne.s32.totalorder %s57, %s58
    %p70 = scmp.eq.s32.totalorder %s15, 3
    %p71 = por %p69, %p70
    %p73 = scmp.ne.s32.totalorder %s58, %s72
    %p74 = scmp.eq.s32.totalorder %s15, 0
    %p75 = por %p73, %p74
    %s77 = sadd.s32 %s76, 1
    %p80 = scmp.eq.s32.totalorder %s9, 3
    %p81 = scmp.ne.s32.totalorder %s76, %s78
    %p82 = scmp.eq.s32.totalorder %s9, 0
    %p83 = por %p81, %p82
    %p84 = scmp.ne.s32.totalorder %s76, %s78
    %p85 = scmp.eq.s32.totalorder %s14, 3
    %p86 = por %p84, %p85
    %p87 = scmp.ne.s32.totalorder %s78, %s79
    %p88 = scmp.eq.s32.totalorder %s14, 0
    %p89 = por %p87, %p88
    %p90 = scmp.ne.s32.totalorder %s78, %s79
    %p91 = scmp.eq.s32.totalorder %s15, 3
    %p92 = por %p90, %p91
    %p94 = scmp.ne.s32.totalorder %s79, %s93
    %p95 = scmp.eq.s32.totalorder %s15, 0
    %p96 = por %p94, %p95
    %s97 = ssub.s32 %s16, %s28
    %s98 = ssub.s32 %s17, %s24
    %s99 = sor.u32 %s97, %s98
    %p100 = scmp.eq.s32.totalorder %s99, 0
    %s102 = sadd.s32 %s101, 1
    %s103 = scalar_select %p100, %s101, %s102
    %p106 = pneg %p100
    %p107 = scmp.eq.s32.totalorder %s9, 3
    %p108 = por %p106, %p107
    %p109 = scmp.ne.s32.totalorder %s101, %s104
    %p110 = scmp.eq.s32.totalorder %s9, 0
    %p111 = por %p109, %p110
    %p112 = scmp.ne.s32.totalorder %s101, %s104
    %p113 = scmp.eq.s32.totalorder %s14, 3
    %p114 = por %p112, %p113
    %p115 = scmp.ne.s32.totalorder %s104, %s105
    %p116 = scmp.eq.s32.totalorder %s14, 0
    %p117 = por %p115, %p116
    %p118 = scmp.ne.s32.totalorder %s104, %s105
    %p119 = scmp.eq.s32.totalorder %s15, 3
    %p120 = por %p118, %p119
    %p122 = scmp.ne.s32.totalorder %s105, %s121
    %p123 = scmp.eq.s32.totalorder %s15, 0
    %p124 = por %p122, %p123
    %p125 = scmp.le.s32.totalorder 1, %s9
    %p126 = scmp.lt.s32.totalorder %s9, 5
    %p127 = pnand %p125, %p126
    %p128 = pneg %p127
    // Predicated region
    $region9: #{dac_block.4} parent=5 // pred_check
      _
    $region10: #{dac_block.4} parent=5 // pred_check_branch
      %130 = sbr.rel (%p127) target = $region12
    $region11: #{dac_block.4} parent=5 // pred_region
      %s131 = ssub.s32 %s9, 1
      // Predicated region
      $region13: #{dac_block.4} parent=11 // pred_check
        %p132 = pneg %p68
      $region14: #{dac_block.4} parent=11 // pred_check_branch
        %134 = sbr.rel (%p132) target = $region16
      $region15: #{dac_block.4} parent=11 // pred_region
        _
      $region16: #{dac_block.4} parent=11 // pred_fallthru
        _
      // Predicated region
      $region17: #{dac_block.4} parent=11 // pred_check
        %p135 = pneg %p89
      $region18: #{dac_block.4} parent=11 // pred_check_branch
        %137 = sbr.rel (%p135) target = $region20
      $region19: #{dac_block.4} parent=11 // pred_region
        _
      $region20: #{dac_block.4} parent=11 // pred_fallthru
        _
    $region12: #{dac_block.4} parent=5 // pred_fallthru
      _
    %p138 = scmp.lt.s32.totalorder %s9, 4
    // Predicated region
    $region21: #{dac_block.4} parent=5 // pred_check
      %p139 = pneg %p138
    $region22: #{dac_block.4} parent=5 // pred_check_branch
      %141 = sbr.rel (%p139) target = $region24
    $region23: #{dac_block.4} parent=5 // pred_region
      // Predicated region
      $region25: #{dac_block.4} parent=23 // pred_check
        %p142 = pneg %p41
      $region26: #{dac_block.4} parent=23 // pred_check_branch
        %144 = sbr.rel (%p142) target = $region28
      $region27: #{dac_block.4} parent=23 // pred_region
        %p145 = scmp.lt.s32.totalorder %s16, 1
        %s146 = scalar_select %p145, %s16, 1
        %s147 = smul.addr %s146, 66
        %s148 = smul.addr %s147, 8
        %s149 = scalar_lea.vmem %s0, %s148
      $region28: #{dac_block.4} parent=23 // pred_fallthru
        _
    $region24: #{dac_block.4} parent=5 // pred_fallthru
      _
    %p150 = scmp.le.s32.totalorder 1, %s9
    %p151 = scmp.lt.s32.totalorder %s9, 5
    %p152 = pnand %p150, %p151
    %p153 = pneg %p152
    // Predicated region
    $region29: #{dac_block.4} parent=5 // pred_check
      _
    $region30: #{dac_block.4} parent=5 // pred_check_branch
      %155 = sbr.rel (%p152) target = $region32
    $region31: #{dac_block.4} parent=5 // pred_region
      %s156 = ssub.s32 %s9, 1
      %p157 = scmp.lt.s32.totalorder %s18, 1
      %s158 = scalar_select %p157, %s18, 1
      %s159 = smul.addr %s158, 66
      %s160 = smul.addr %s159, 8
      %s161 = scalar_lea.vmem %s0, %s160
      %p162 = pneg %p47
      %p163 = pneg %p44
      %p164 = pneg %p68
      %p165 = pneg %p65
      %p166 = pneg %p89
      %p167 = pneg %p86
      %p168 = pneg %p117
      %p169 = pneg %p114
      %s170 = smul.u32 8, %s19
      %p171 = scmp.lt.s32.totalorder %s18, 1
      %s172 = scalar_select %p171, %s18, 1
      %p173 = scmp.lt.s32.totalorder %s170, 15
      %s174 = scalar_select %p173, %s170, 15
      %s175 = smul.addr %s174, 2
      %s176 = smul.addr %s172, 32
      %s177 = sadd.s32 %s175, %s176
      %s178 = smul.addr %s177, 8
      %s179 = scalar_lea.vmem %s3, %s178
      %p180 = scmp.lt.s32.totalorder %s18, 1
      %s181 = scalar_select %p180, %s18, 1
      %s182 = smul.addr %s181, 66
      %s183 = smul.addr %s182, 8
      %s184 = scalar_lea.vmem %s0, %s183
      %s185 = smul.u32 8, %s19
      %p186 = scmp.lt.s32.totalorder %s18, 1
      %s187 = scalar_select %p186, %s18, 1
      %p188 = scmp.lt.s32.totalorder %s185, 15
      %s189 = scalar_select %p188, %s185, 15
      %s190 = smul.addr %s189, 2
      %s191 = smul.addr %s187, 32
      %s192 = sadd.s32 %s190, %s191
      %s193 = smul.addr %s192, 8
      %s194 = scalar_lea.vmem %s3, %s193
      %s195 = smul.u32 8, %s19
      %s196 = smul.u32 %s19, 8
      %s197 = sadd.s32 %s196, 1
      %s198 = smul.u32 %s197, 24
      %s199 = scalar_lea.vmem %s184, %s198
      %v200 = vld [vmem:[%s199 + $0x1] sm:$0xff]
      %v201 = vld [vmem:[%s199 + $0x9] sm:$0xff]
      %v202 = vld [vmem:[%s199 + $0x19] sm:$0xff]
      %v203 = vld [vmem:[%s199 + $0x21] sm:$0xff]
      %v204 = vld [vmem:[%s199 + $0x31] sm:$0xff]
      %v205 = vld [vmem:[%s199 + $0x39] sm:$0xff]
      %v206 = vld [vmem:[%s199 + $0x49] sm:$0xff]
      %v207 = vld [vmem:[%s199 + $0x51] sm:$0xff]
      %v208 = vld [vmem:[%s199 + $0x61] sm:$0xff]
      %v209 = vld [vmem:[%s199 + $0x69] sm:$0xff]
      %v210 = vld [vmem:[%s199 + $0x79] sm:$0xff]
      %v211 = vld [vmem:[%s199 + $0x81] sm:$0xff]
      %v212 = vld [vmem:[%s199 + $0x91] sm:$0xff]
      %v213 = vld [vmem:[%s199 + $0x99] sm:$0xff]
      %v214 = vld [vmem:[%s199 + $0xa9] sm:$0xff]
      %v215 = vld [vmem:[%s199 + $0xb1] sm:$0xff]
      %v216 = vld [vmem:[%s199 + $0x3] sm:$0xff]
      %v217 = vld [vmem:[%s199 + $0xb] sm:$0xff]
      %v218 = vld [vmem:[%s199 + $0x1b] sm:$0xff]
      %v219 = vld [vmem:[%s199 + $0x23] sm:$0xff]
      %v220 = vld [vmem:[%s199 + $0x33] sm:$0xff]
      %v221 = vld [vmem:[%s199 + $0x3b] sm:$0xff]
      %v222 = vld [vmem:[%s199 + $0x4b] sm:$0xff]
      %v223 = vld [vmem:[%s199 + $0x53] sm:$0xff]
      %v224 = vld [vmem:[%s199 + $0x63] sm:$0xff]
      %v225 = vld [vmem:[%s199 + $0x6b] sm:$0xff]
      %v226 = vld [vmem:[%s199 + $0x7b] sm:$0xff]
      %v227 = vld [vmem:[%s199 + $0x83] sm:$0xff]
      %v228 = vld [vmem:[%s199 + $0x93] sm:$0xff]
      %v229 = vld [vmem:[%s199 + $0x9b] sm:$0xff]
      %v230 = vld [vmem:[%s199 + $0xab] sm:$0xff]
      %v231 = vld [vmem:[%s199 + $0xb3] sm:$0xff]
      %v232 = vld [vmem:[%s199 + $0x5] sm:$0xff]
      %v233 = vld [vmem:[%s199 + $0xd] sm:$0xff]
      %v234 = vld [vmem:[%s199 + $0x1d] sm:$0xff]
      %v235 = vld [vmem:[%s199 + $0x25] sm:$0xff]
      %v236 = vld [vmem:[%s199 + $0x35] sm:$0xff]
      %v237 = vld [vmem:[%s199 + $0x3d] sm:$0xff]
      %v238 = vld [vmem:[%s199 + $0x4d] sm:$0xff]
      %v239 = vld [vmem:[%s199 + $0x55] sm:$0xff]
      %v240 = vld [vmem:[%s199 + $0x65] sm:$0xff]
      %v241 = vld [vmem:[%s199 + $0x6d] sm:$0xff]
      %v242 = vld [vmem:[%s199 + $0x7d] sm:$0xff]
      %v243 = vld [vmem:[%s199 + $0x85] sm:$0xff]
      %v244 = vld [vmem:[%s199 + $0x95] sm:$0xff]
      %v245 = vld [vmem:[%s199 + $0x9d] sm:$0xff]
      %v246 = vld [vmem:[%s199 + $0xad] sm:$0xff]
      %v247 = vld [vmem:[%s199 + $0xb5] sm:$0xff]
      %s248 = sadd.s32 %s196, 3
      %s249 = smul.u32 %s248, 24
      %s250 = scalar_lea.vmem %s184, %s249
      %v251 = vld [vmem:[%s250 + $0x1] sm:$0xff]
      %v252 = vld [vmem:[%s250 + $0x9] sm:$0xff]
      %v253 = vld [vmem:[%s250 + $0x19] sm:$0xff]
      %v254 = vld [vmem:[%s250 + $0x21] sm:$0xff]
      %v255 = vld [vmem:[%s250 + $0x31] sm:$0xff]
      %v256 = vld [vmem:[%s250 + $0x39] sm:$0xff]
      %v257 = vld [vmem:[%s250 + $0x49] sm:$0xff]
      %v258 = vld [vmem:[%s250 + $0x51] sm:$0xff]
      %v259 = vld [vmem:[%s250 + $0x61] sm:$0xff]
      %v260 = vld [vmem:[%s250 + $0x69] sm:$0xff]
      %v261 = vld [vmem:[%s250 + $0x79] sm:$0xff]
      %v262 = vld [vmem:[%s250 + $0x81] sm:$0xff]
      %v263 = vld [vmem:[%s250 + $0x91] sm:$0xff]
      %v264 = vld [vmem:[%s250 + $0x99] sm:$0xff]
      %v265 = vld [vmem:[%s250 + $0xa9] sm:$0xff]
      %v266 = vld [vmem:[%s250 + $0xb1] sm:$0xff]
      %v267 = vld [vmem:[%s250 + $0x3] sm:$0xff]
      %v268 = vld [vmem:[%s250 + $0xb] sm:$0xff]
      %v269 = vld [vmem:[%s250 + $0x1b] sm:$0xff]
      %v270 = vld [vmem:[%s250 + $0x23] sm:$0xff]
      %v271 = vld [vmem:[%s250 + $0x33] sm:$0xff]
      %v272 = vld [vmem:[%s250 + $0x3b] sm:$0xff]
      %v273 = vld [vmem:[%s250 + $0x4b] sm:$0xff]
      %v274 = vld [vmem:[%s250 + $0x53] sm:$0xff]
      %v275 = vld [vmem:[%s250 + $0x63] sm:$0xff]
      %v276 = vld [vmem:[%s250 + $0x6b] sm:$0xff]
      %v277 = vld [vmem:[%s250 + $0x7b] sm:$0xff]
      %v278 = vld [vmem:[%s250 + $0x83] sm:$0xff]
      %v279 = vld [vmem:[%s250 + $0x93] sm:$0xff]
      %v280 = vld [vmem:[%s250 + $0x9b] sm:$0xff]
      %v281 = vld [vmem:[%s250 + $0xab] sm:$0xff]
      %v282 = vld [vmem:[%s250 + $0xb3] sm:$0xff]
      %v283 = vld [vmem:[%s250 + $0x5] sm:$0xff]
      %v284 = vld [vmem:[%s250 + $0xd] sm:$0xff]
      %v285 = vld [vmem:[%s250 + $0x1d] sm:$0xff]
      %v286 = vld [vmem:[%s250 + $0x25] sm:$0xff]
      %v287 = vld [vmem:[%s250 + $0x35] sm:$0xff]
      %v288 = vld [vmem:[%s250 + $0x3d] sm:$0xff]
      %v289 = vld [vmem:[%s250 + $0x4d] sm:$0xff]
      %v290 = vld [vmem:[%s250 + $0x55] sm:$0xff]
      %v291 = vld [vmem:[%s250 + $0x65] sm:$0xff]
      %v292 = vld [vmem:[%s250 + $0x6d] sm:$0xff]
      %v293 = vld [vmem:[%s250 + $0x7d] sm:$0xff]
      %v294 = vld [vmem:[%s250 + $0x85] sm:$0xff]
      %v295 = vld [vmem:[%s250 + $0x95] sm:$0xff]
      %v296 = vld [vmem:[%s250 + $0x9d] sm:$0xff]
      %v297 = vld [vmem:[%s250 + $0xad] sm:$0xff]
      %v298 = vld [vmem:[%s250 + $0xb5] sm:$0xff]
      %s299 = sadd.s32 %s196, 5
      %s300 = smul.u32 %s299, 24
      %s301 = scalar_lea.vmem %s184, %s300
      %v302 = vld [vmem:[%s301 + $0x1] sm:$0xff]
      %v303 = vld [vmem:[%s301 + $0x9] sm:$0xff]
      %v304 = vld [vmem:[%s301 + $0x19] sm:$0xff]
      %v305 = vld [vmem:[%s301 + $0x21] sm:$0xff]
      %v306 = vld [vmem:[%s301 + $0x31] sm:$0xff]
      %v307 = vld [vmem:[%s301 + $0x39] sm:$0xff]
      %v308 = vld [vmem:[%s301 + $0x49] sm:$0xff]
      %v309 = vld [vmem:[%s301 + $0x51] sm:$0xff]
      %v310 = vld [vmem:[%s301 + $0x61] sm:$0xff]
      %v311 = vld [vmem:[%s301 + $0x69] sm:$0xff]
      %v312 = vld [vmem:[%s301 + $0x79] sm:$0xff]
      %v313 = vld [vmem:[%s301 + $0x81] sm:$0xff]
      %v314 = vld [vmem:[%s301 + $0x91] sm:$0xff]
      %v315 = vld [vmem:[%s301 + $0x99] sm:$0xff]
      %v316 = vld [vmem:[%s301 + $0xa9] sm:$0xff]
      %v317 = vld [vmem:[%s301 + $0xb1] sm:$0xff]
      %v318 = vld [vmem:[%s301 + $0x3] sm:$0xff]
      %v319 = vld [vmem:[%s301 + $0xb] sm:$0xff]
      %v320 = vld [vmem:[%s301 + $0x1b] sm:$0xff]
      %v321 = vld [vmem:[%s301 + $0x23] sm:$0xff]
      %v322 = vld [vmem:[%s301 + $0x33] sm:$0xff]
      %v323 = vld [vmem:[%s301 + $0x3b] sm:$0xff]
      %v324 = vld [vmem:[%s301 + $0x4b] sm:$0xff]
      %v325 = vld [vmem:[%s301 + $0x53] sm:$0xff]
      %v326 = vld [vmem:[%s301 + $0x63] sm:$0xff]
      %v327 = vld [vmem:[%s301 + $0x6b] sm:$0xff]
      %v328 = vld [vmem:[%s301 + $0x7b] sm:$0xff]
      %v329 = vld [vmem:[%s301 + $0x83] sm:$0xff]
      %v330 = vld [vmem:[%s301 + $0x93] sm:$0xff]
      %v331 = vld [vmem:[%s301 + $0x9b] sm:$0xff]
      %v332 = vld [vmem:[%s301 + $0xab] sm:$0xff]
      %v333 = vld [vmem:[%s301 + $0xb3] sm:$0xff]
      %v334 = vld [vmem:[%s301 + $0x5] sm:$0xff]
      %v335 = vld [vmem:[%s301 + $0xd] sm:$0xff]
      %v336 = vld [vmem:[%s301 + $0x1d] sm:$0xff]
      %v337 = vld [vmem:[%s301 + $0x25] sm:$0xff]
      %v338 = vld [vmem:[%s301 + $0x35] sm:$0xff]
      %v339 = vld [vmem:[%s301 + $0x3d] sm:$0xff]
      %v340 = vld [vmem:[%s301 + $0x4d] sm:$0xff]
      %v341 = vld [vmem:[%s301 + $0x55] sm:$0xff]
      %v342 = vld [vmem:[%s301 + $0x65] sm:$0xff]
      %v343 = vld [vmem:[%s301 + $0x6d] sm:$0xff]
      %v344 = vld [vmem:[%s301 + $0x7d] sm:$0xff]
      %v345 = vld [vmem:[%s301 + $0x85] sm:$0xff]
      %v346 = vld [vmem:[%s301 + $0x95] sm:$0xff]
      %v347 = vld [vmem:[%s301 + $0x9d] sm:$0xff]
      %v348 = vld [vmem:[%s301 + $0xad] sm:$0xff]
      %v349 = vld [vmem:[%s301 + $0xb5] sm:$0xff]
      %v350 = vld [vmem:[%s1] sm:$0xff]
      %v351 = vld [vmem:[%s1 + $0x8] sm:$0xff]
      %v352 = vld [vmem:[%s1 + $0x10] sm:$0xff]
      %v353 = vld [vmem:[%s1 + $0x18] sm:$0xff]
      %v354 = vld [vmem:[%s1 + $0x20] sm:$0xff]
      %v355 = vld [vmem:[%s1 + $0x28] sm:$0xff]
      %v356 = vld [vmem:[%s1 + $0x30] sm:$0xff]
      %v357 = vld [vmem:[%s1 + $0x38] sm:$0xff]
      %v358 = vld [vmem:[%s1 + $0x40] sm:$0xff]
      %v359 = vld [vmem:[%s1 + $0x48] sm:$0xff]
      %v360 = vld [vmem:[%s1 + $0x50] sm:$0xff]
      %v361 = vld [vmem:[%s1 + $0x58] sm:$0xff]
      %v362 = vld [vmem:[%s1 + $0x60] sm:$0xff]
      %v363 = vld [vmem:[%s1 + $0x68] sm:$0xff]
      %v364 = vld [vmem:[%s1 + $0x70] sm:$0xff]
      %v365 = vld [vmem:[%s1 + $0x78] sm:$0xff]
      %v366 = vld [vmem:[%s1 + $0x80] sm:$0xff]
      %v367 = vld [vmem:[%s1 + $0x88] sm:$0xff]
      %v368 = vld [vmem:[%s1 + $0x90] sm:$0xff]
      %v369 = vld [vmem:[%s1 + $0x98] sm:$0xff]
      %v370 = vld [vmem:[%s1 + $0xa0] sm:$0xff]
      %v371 = vld [vmem:[%s1 + $0xa8] sm:$0xff]
      %v372 = vld [vmem:[%s1 + $0xb0] sm:$0xff]
      %v373 = vld [vmem:[%s1 + $0xb8] sm:$0xff]
      %v374 = vld [vmem:[%s1 + $0xc0] sm:$0xff]
      %v375 = vld [vmem:[%s1 + $0xc8] sm:$0xff]
      %v376 = vld [vmem:[%s1 + $0xd0] sm:$0xff]
      %v377 = vld [vmem:[%s1 + $0xd8] sm:$0xff]
      %v378 = vld [vmem:[%s1 + $0xe0] sm:$0xff]
      %v379 = vld [vmem:[%s1 + $0xe8] sm:$0xff]
      %v380 = vld [vmem:[%s1 + $0xf0] sm:$0xff]
      %v381 = vld [vmem:[%s1 + $0xf8] sm:$0xff]
      %v382 = vld [vmem:[%s1 + $0x100] sm:$0xff]
      %v383 = vld [vmem:[%s1 + $0x108] sm:$0xff]
      %v384 = vld [vmem:[%s1 + $0x110] sm:$0xff]
      %v385 = vld [vmem:[%s1 + $0x118] sm:$0xff]
      %v386 = vld [vmem:[%s1 + $0x120] sm:$0xff]
      %v387 = vld [vmem:[%s1 + $0x128] sm:$0xff]
      %v388 = vld [vmem:[%s1 + $0x130] sm:$0xff]
      %v389 = vld [vmem:[%s1 + $0x138] sm:$0xff]
      %v390 = vld [vmem:[%s1 + $0x140] sm:$0xff]
      %v391 = vld [vmem:[%s1 + $0x148] sm:$0xff]
      %v392 = vld [vmem:[%s1 + $0x150] sm:$0xff]
      %v393 = vld [vmem:[%s1 + $0x158] sm:$0xff]
      %v394 = vld [vmem:[%s1 + $0x160] sm:$0xff]
      %v395 = vld [vmem:[%s1 + $0x168] sm:$0xff]
      %v396 = vld [vmem:[%s1 + $0x170] sm:$0xff]
      %v397 = vld [vmem:[%s1 + $0x178] sm:$0xff]
      %v398 = vld [vmem:[%s1 + $0x180] sm:$0xff]
      %v399 = vld [vmem:[%s1 + $0x188] sm:$0xff]
      %v400 = vld [vmem:[%s1 + $0x190] sm:$0xff]
      %v401 = vld [vmem:[%s1 + $0x198] sm:$0xff]
      %v402 = vld [vmem:[%s1 + $0x1a0] sm:$0xff]
      %v403 = vld [vmem:[%s1 + $0x1a8] sm:$0xff]
      %v404 = vld [vmem:[%s1 + $0x1b0] sm:$0xff]
      %v405 = vld [vmem:[%s1 + $0x1b8] sm:$0xff]
      %v406 = vld [vmem:[%s1 + $0x1c0] sm:$0xff]
      %v407 = vld [vmem:[%s1 + $0x1c8] sm:$0xff]
      %v408 = vld [vmem:[%s1 + $0x1d0] sm:$0xff]
      %v409 = vld [vmem:[%s1 + $0x1d8] sm:$0xff]
      %v410 = vld [vmem:[%s1 + $0x1e0] sm:$0xff]
      %v411 = vld [vmem:[%s1 + $0x1e8] sm:$0xff]
      %v412 = vld [vmem:[%s1 + $0x1f0] sm:$0xff]
      %v413 = vld [vmem:[%s1 + $0x1f8] sm:$0xff]
      %v414 = vld [vmem:[%s1 + $0x200] sm:$0xff]
      %v415 = vld [vmem:[%s1 + $0x208] sm:$0xff]
      %v416 = vld [vmem:[%s1 + $0x210] sm:$0xff]
      %v417 = vld [vmem:[%s1 + $0x218] sm:$0xff]
      %v418 = vld [vmem:[%s1 + $0x220] sm:$0xff]
      %v419 = vld [vmem:[%s1 + $0x228] sm:$0xff]
      %v420 = vld [vmem:[%s1 + $0x230] sm:$0xff]
      %v421 = vld [vmem:[%s1 + $0x238] sm:$0xff]
      %v422 = vld [vmem:[%s1 + $0x240] sm:$0xff]
      %v423 = vld [vmem:[%s1 + $0x248] sm:$0xff]
      %v424 = vld [vmem:[%s1 + $0x250] sm:$0xff]
      %v425 = vld [vmem:[%s1 + $0x258] sm:$0xff]
      %v426 = vld [vmem:[%s1 + $0x260] sm:$0xff]
      %v427 = vld [vmem:[%s1 + $0x268] sm:$0xff]
      %v428 = vld [vmem:[%s1 + $0x270] sm:$0xff]
      %v429 = vld [vmem:[%s1 + $0x278] sm:$0xff]
      %v430 = vld [vmem:[%s1 + $0x280] sm:$0xff]
      %v431 = vld [vmem:[%s1 + $0x288] sm:$0xff]
      %v432 = vld [vmem:[%s1 + $0x290] sm:$0xff]
      %v433 = vld [vmem:[%s1 + $0x298] sm:$0xff]
      %v434 = vld [vmem:[%s1 + $0x2a0] sm:$0xff]
      %v435 = vld [vmem:[%s1 + $0x2a8] sm:$0xff]
      %v436 = vld [vmem:[%s1 + $0x2b0] sm:$0xff]
      %v437 = vld [vmem:[%s1 + $0x2b8] sm:$0xff]
      %v438 = vld [vmem:[%s1 + $0x2c0] sm:$0xff]
      %v439 = vld [vmem:[%s1 + $0x2c8] sm:$0xff]
      %v440 = vld [vmem:[%s1 + $0x2d0] sm:$0xff]
      %v441 = vld [vmem:[%s1 + $0x2d8] sm:$0xff]
      %v442 = vld [vmem:[%s1 + $0x2e0] sm:$0xff]
      %v443 = vld [vmem:[%s1 + $0x2e8] sm:$0xff]
      %v444 = vld [vmem:[%s1 + $0x2f0] sm:$0xff]
      %v445 = vld [vmem:[%s1 + $0x2f8] sm:$0xff]
      %v446 = vld [vmem:[%s1 + $0x300] sm:$0xff]
      %v447 = vld [vmem:[%s1 + $0x308] sm:$0xff]
      %v448 = vld [vmem:[%s1 + $0x310] sm:$0xff]
      %v449 = vld [vmem:[%s1 + $0x318] sm:$0xff]
      %v450 = vld [vmem:[%s1 + $0x320] sm:$0xff]
      %v451 = vld [vmem:[%s1 + $0x328] sm:$0xff]
      %v452 = vld [vmem:[%s1 + $0x330] sm:$0xff]
      %v453 = vld [vmem:[%s1 + $0x338] sm:$0xff]
      %v454 = vld [vmem:[%s1 + $0x340] sm:$0xff]
      %v455 = vld [vmem:[%s1 + $0x348] sm:$0xff]
      %v456 = vld [vmem:[%s1 + $0x350] sm:$0xff]
      %v457 = vld [vmem:[%s1 + $0x358] sm:$0xff]
      %v458 = vld [vmem:[%s1 + $0x360] sm:$0xff]
      %v459 = vld [vmem:[%s1 + $0x368] sm:$0xff]
      %v460 = vld [vmem:[%s1 + $0x370] sm:$0xff]
      %v461 = vld [vmem:[%s1 + $0x378] sm:$0xff]
      %v462 = vld [vmem:[%s1 + $0x380] sm:$0xff]
      %v463 = vld [vmem:[%s1 + $0x388] sm:$0xff]
      %v464 = vld [vmem:[%s1 + $0x390] sm:$0xff]
      %v465 = vld [vmem:[%s1 + $0x398] sm:$0xff]
      %v466 = vld [vmem:[%s1 + $0x3a0] sm:$0xff]
      %v467 = vld [vmem:[%s1 + $0x3a8] sm:$0xff]
      %v468 = vld [vmem:[%s1 + $0x3b0] sm:$0xff]
      %v469 = vld [vmem:[%s1 + $0x3b8] sm:$0xff]
      %v470 = vld [vmem:[%s1 + $0x3c0] sm:$0xff]
      %v471 = vld [vmem:[%s1 + $0x3c8] sm:$0xff]
      %v472 = vld [vmem:[%s1 + $0x3d0] sm:$0xff]
      %v473 = vld [vmem:[%s1 + $0x3d8] sm:$0xff]
      %v474 = vld [vmem:[%s1 + $0x3e0] sm:$0xff]
      %v475 = vld [vmem:[%s1 + $0x3e8] sm:$0xff]
      %v476 = vld [vmem:[%s1 + $0x3f0] sm:$0xff]
      %v477 = vld [vmem:[%s1 + $0x3f8] sm:$0xff]
      %v478 = vld [vmem:[%s1 + $0x400] sm:$0xff]
      %v479 = vld [vmem:[%s1 + $0x408] sm:$0xff]
      %v480 = vld [vmem:[%s1 + $0x410] sm:$0xff]
      %v481 = vld [vmem:[%s1 + $0x418] sm:$0xff]
      %v482 = vld [vmem:[%s1 + $0x420] sm:$0xff]
      %v483 = vld [vmem:[%s1 + $0x428] sm:$0xff]
      %v484 = vld [vmem:[%s1 + $0x430] sm:$0xff]
      %v485 = vld [vmem:[%s1 + $0x438] sm:$0xff]
      %v486 = vld [vmem:[%s1 + $0x440] sm:$0xff]
      %v487 = vld [vmem:[%s1 + $0x448] sm:$0xff]
      %v488 = vld [vmem:[%s1 + $0x450] sm:$0xff]
      %v489 = vld [vmem:[%s1 + $0x458] sm:$0xff]
      %v490 = vld [vmem:[%s1 + $0x460] sm:$0xff]
      %v491 = vld [vmem:[%s1 + $0x468] sm:$0xff]
      %v492 = vld [vmem:[%s1 + $0x470] sm:$0xff]
      %v493 = vld [vmem:[%s1 + $0x478] sm:$0xff]
      %v494 = vld [vmem:[%s2] sm:$0x1]
      %v496 = vlaneseq
      %v497 = vshrl.u32 %v496, 7
      %v498 = vsub.s32 0, %v497
      %v499 = vrot.slane %v494, %v498
      %501 = vmatprep.subr.mxu0 0.0
      %502 = vmatpush1.msra.mxu0 %v350
      %503 = vmatprep.subr.mxu0 0.0
      %504 = vmatpush1.msra.mxu0 %v351
      %505 = vmatprep.subr.mxu0 0.0
      %506 = vmatpush1.msra.mxu0 %v352
      %507 = vmatprep.subr.mxu0 0.0
      %508 = vmatpush1.msra.mxu0 %v353
      %509 = vmatprep.subr.mxu0 0.0
      %510 = vmatpush1.msra.mxu0 %v354
      %511 = vmatprep.subr.mxu0 0.0
      %512 = vmatpush1.msra.mxu0 %v355
      %513 = vmatprep.subr.mxu0 0.0
      %514 = vmatpush1.msra.mxu0 %v356
      %515 = vmatprep.subr.mxu0 0.0
      %516 = vmatpush1.msra.mxu0 %v357
      %517 = vmatprep.subr.mxu0 0.0
      %518 = vmatpush1.msra.mxu0 %v358
      %519 = vmatprep.subr.mxu0 0.0
      %520 = vmatpush1.msra.mxu0 %v359
      %521 = vmatprep.subr.mxu0 0.0
      %522 = vmatpush1.msra.mxu0 %v360
      %523 = vmatprep.subr.mxu0 0.0
      %524 = vmatpush1.msra.mxu0 %v361
      %525 = vmatprep.subr.mxu0 0.0
      %526 = vmatpush1.msra.mxu0 %v362
      %527 = vmatprep.subr.mxu0 0.0
      %528 = vmatpush1.msra.mxu0 %v363
      %529 = vmatprep.subr.mxu0 0.0
      %530 = vmatpush1.msra.mxu0 %v364
      %531 = vmatprep.subr.mxu0 0.0
      %532 = vmatpush1.msra.mxu0 %v365
      %533 = vmatprep.subr.mxu0 0.0
      %534 = vmatpush1.msra.mxu0 %v366
      %535 = vmatprep.subr.mxu0 0.0
      %536 = vmatpush1.msra.mxu0 %v367
      %537 = vmatprep.subr.mxu0 0.0
      %538 = vmatpush1.msra.mxu0 %v368
      %539 = vmatprep.subr.mxu0 0.0
      %540 = vmatpush1.msra.mxu0 %v369
      %541 = vmatprep.subr.mxu0 0.0
      %542 = vmatpush1.msra.mxu0 %v370
      %543 = vmatprep.subr.mxu0 0.0
      %544 = vmatpush1.msra.mxu0 %v371
      %545 = vmatprep.subr.mxu0 0.0
      %546 = vmatpush1.msra.mxu0 %v372
      %547 = vmatprep.subr.mxu0 0.0
      %548 = vmatpush1.msra.mxu0 %v373
      %549 = vmatprep.subr.mxu0 0.0
      %550 = vmatpush1.msra.mxu0 %v374
      %551 = vmatprep.subr.mxu0 0.0
      %552 = vmatpush1.msra.mxu0 %v375
      %553 = vmatprep.subr.mxu0 0.0
      %554 = vmatpush1.msra.mxu0 %v376
      %555 = vmatprep.subr.mxu0 0.0
      %556 = vmatpush1.msra.mxu0 %v377
      %557 = vmatprep.subr.mxu0 0.0
      %558 = vmatpush1.msra.mxu0 %v378
      %559 = vmatprep.subr.mxu0 0.0
      %560 = vmatpush1.msra.mxu0 %v379
      %561 = vmatprep.subr.mxu0 0.0
      %562 = vmatpush1.msra.mxu0 %v380
      %563 = vmatprep.subr.mxu0 0.0
      %564 = vmatpush1.msra.mxu0 %v381
      %565 = vmatprep.mubr.f32.mxu0 %v216
      %566 = vmatmul.mubr.f32.gmra.mrb[0].mxu0 %v200
      %v567 = vpop.f32.mrb[0].mxu0
      %v568 = vadd.f32 %v499, %v567
      %v569 = vpop.f32.mrb[0].mxu0
      %570 = vmatprep.mubr.f32.mxu0 %v217
      %571 = vmatmul.mubr.f32.gmra.mrb[0].mxu0 %v201
      %v572 = vpop.f32.mrb[0].mxu0
      %v573 = vadd.f32 %v499, %v572
      %v574 = vpop.f32.mrb[0].mxu0
      %575 = vmatprep.mubr.f32.mxu0 %v218
      %576 = vmatmul.mubr.f32.gmra.mrb[0].mxu0 %v202
      %v577 = vpop.f32.mrb[0].mxu0
      %v578 = vadd.f32 %v499, %v577
      %v579 = vpop.f32.mrb[0].mxu0
      %580 = vmatprep.mubr.f32.mxu0 %v219
      %581 = vmatmul.mubr.f32.gmra.mrb[0].mxu0 %v203
      %v582 = vpop.f32.mrb[0].mxu0
      %v583 = vadd.f32 %v499, %v582
      %v584 = vpop.f32.mrb[0].mxu0
      %585 = vmatprep.mubr.f32.mxu0 %v220
      %586 = vmatmul.mubr.f32.gmra.mrb[0].mxu0 %v204
      %v587 = vpop.f32.mrb[0].mxu0
      %v588 = vadd.f32 %v499, %v587
      %v589 = vpop.f32.mrb[0].mxu0
      %590 = vmatprep.mubr.f32.mxu0 %v221
      %591 = vmatmul.mubr.f32.gmra.mrb[0].mxu0 %v205
      %v592 = vpop.f32.mrb[0].mxu0
      %v593 = vadd.f32 %v499, %v592
      %v594 = vpop.f32.mrb[0].mxu0
      %595 = vmatprep.mubr.f32.mxu0 %v222
      %596 = vmatmul.mubr.f32.gmra.mrb[0].mxu0 %v206
      %v597 = vpop.f32.mrb[0].mxu0
      %v598 = vadd.f32 %v499, %v597
      %v599 = vpop.f32.mrb[0].mxu0
      %600 = vmatprep.mubr.f32.mxu0 %v223
      %601 = vmatmul.mubr.f32.gmra.mrb[0].mxu0 %v207
      %v602 = vpop.f32.mrb[0].mxu0
      %v603 = vadd.f32 %v499, %v602
      %v604 = vpop.f32.mrb[0].mxu0
      %605 = vmatprep.mubr.f32.mxu0 %v224
      %606 = vmatmul.mubr.f32.gmra.mrb[0].mxu0 %v208
      %v607 = vpop.f32.mrb[0].mxu0
      %v608 = vadd.f32 %v499, %v607
      %v609 = vpop.f32.mrb[0].mxu0
      %610 = vmatprep.mubr.f32.mxu0 %v225
      %611 = vmatmul.mubr.f32.gmra.mrb[0].mxu0 %v209
      %v612 = vpop.f32.mrb[0].mxu0
      %v613 = vadd.f32 %v499, %v612
      %v614 = vpop.f32.mrb[0].mxu0
      %615 = vmatprep.mubr.f32.mxu0 %v226
      %616 = vmatmul.mubr.f32.gmra.mrb[0].mxu0 %v210
      %v617 = vpop.f32.mrb[0].mxu0
      %v618 = vadd.f32 %v499, %v617
      %v619 = vpop.f32.mrb[0].mxu0
      %620 = vmatprep.mubr.f32.mxu0 %v227
      %621 = vmatmul.mubr.f32.gmra.mrb[0].mxu0 %v211
      %v622 = vpop.f32.mrb[0].mxu0
      %v623 = vadd.f32 %v499, %v622
      %v624 = vpop.f32.mrb[0].mxu0
      %625 = vmatprep.mubr.f32.mxu0 %v228
      %626 = vmatmul.mubr.f32.gmra.mrb[0].mxu0 %v212
      %v627 = vpop.f32.mrb[0].mxu0
      %v628 = vadd.f32 %v499, %v627
      %v629 = vpop.f32.mrb[0].mxu0
      %630 = vmatprep.mubr.f32.mxu0 %v229
      %631 = vmatmul.mubr.f32.gmra.mrb[0].mxu0 %v213
      %v632 = vpop.f32.mrb[0].mxu0
      %v633 = vadd.f32 %v499, %v632
      %v634 = vpop.f32.mrb[0].mxu0
      %635 = vmatprep.mubr.f32.mxu0 %v230
      %636 = vmatmul.mubr.f32.gmra.mrb[0].mxu0 %v214
      %v637 = vpop.f32.mrb[0].mxu0
      %v638 = vadd.f32 %v499, %v637
      %v639 = vpop.f32.mrb[0].mxu0
      %640 = vmatprep.mubr.f32.mxu0 %v231
      %641 = vmatmul.mubr.f32.gmra.mrb[0].mxu0 %v215
      %v642 = vpop.f32.mrb[0].mxu0
      %v643 = vadd.f32 %v499, %v642
      %v644 = vpop.f32.mrb[0].mxu0
      %645 = vdwg.mxu0
      %646 = vmatprep.subr.mxu0 0.0
      %647 = vmatpush1.msra.mxu0 %v382
      %648 = vmatprep.subr.mxu0 0.0
      %649 = vmatpush1.msra.mxu0 %v383
      %650 = vmatprep.subr.mxu0 0.0
      %651 = vmatpush1.msra.mxu0 %v384
      %652 = vmatprep.subr.mxu0 0.0
      %653 = vmatpush1.msra.mxu0 %v385
      %654 = vmatprep.subr.mxu0 0.0
      %655 = vmatpush1.msra.mxu0 %v386
      %656 = vmatprep.subr.mxu0 0.0
      %657 = vmatpush1.msra.mxu0 %v387
      %658 = vmatprep.subr.mxu0 0.0
      %659 = vmatpush1.msra.mxu0 %v388
      %660 = vmatprep.subr.mxu0 0.0
      %661 = vmatpush1.msra.mxu0 %v389
      %662 = vmatprep.subr.mxu0 0.0
      %663 = vmatpush1.msra.mxu0 %v390
      %664 = vmatprep.subr.mxu0 0.0
      %665 = vmatpush1.msra.mxu0 %v391
      %666 = vmatprep.subr.mxu0 0.0
      %667 = vmatpush1.msra.mxu0 %v392
      %668 = vmatprep.subr.mxu0 0.0
      %669 = vmatpush1.msra.mxu0 %v393
      %670 = vmatprep.subr.mxu0 0.0
      %671 = vmatpush1.msra.mxu0 %v394
      %672 = vmatprep.subr.mxu0 0.0
      %673 = vmatpush1.msra.mxu0 %v395
      %674 = vmatprep.subr.mxu0 0.0
      %675 = vmatpush1.msra.mxu0 %v396
      %676 = vmatprep.subr.mxu0 0.0
      %677 = vmatpush1.msra.mxu0 %v397
      %678 = vmatprep.subr.mxu0 0.0
      %679 = vmatpush1.msra.mxu0 %v398
      %680 = vmatprep.subr.mxu0 0.0
      %681 = vmatpush1.msra.mxu0 %v399
      %682 = vmatprep.subr.mxu0 0.0
      %683 = vmatpush1.msra.mxu0 %v400
      %684 = vmatprep.subr.mxu0 0.0
      %685 = vmatpush1.msra.mxu0 %v401
      %686 = vmatprep.subr.mxu0 0.0
      %687 = vmatpush1.msra.mxu0 %v402
      %688 = vmatprep.subr.mxu0 0.0
      %689 = vmatpush1.msra.mxu0 %v403
      %690 = vmatprep.subr.mxu0 0.0
      %691 = vmatpush1.msra.mxu0 %v404
      %692 = vmatprep.subr.mxu0 0.0
      %693 = vmatpush1.msra.mxu0 %v405
      %694 = vmatprep.subr.mxu0 0.0
      %695 = vmatpush1.msra.mxu0 %v406
      %696 = vmatprep.subr.mxu0 0.0
      %697 = vmatpush1.msra.mxu0 %v407
      %698 = vmatprep.subr.mxu0 0.0
      %699 = vmatpush1.msra.mxu0 %v408
      %700 = vmatprep.subr.mxu0 0.0
      %701 = vmatpush1.msra.mxu0 %v409
      %702 = vmatprep.subr.mxu0 0.0
      %703 = vmatpush1.msra.mxu0 %v410
      %704 = vmatprep.subr.mxu0 0.0
      %705 = vmatpush1.msra.mxu0 %v411
      %706 = vmatprep.subr.mxu0 0.0
      %707 = vmatpush1.msra.mxu0 %v412
      %708 = vmatprep.subr.mxu0 0.0
      %709 = vmatpush1.msra.mxu0 %v413
      %710 = vmatprep.mubr.f32.mxu0 %v251
      %711 = vmatmul.mubr.f32.gmra.mrb[0].mxu0 %v232
      %v712 = vpop.f32.mrb[0].mxu0
      %v713 = vadd.f32 %v568, %v712
      %v714 = vpop.f32.mrb[0].mxu0
      %715 = vmatprep.mubr.f32.mxu0 %v252
      %716 = vmatmul.mubr.f32.gmra.mrb[0].mxu0 %v233
      %v717 = vpop.f32.mrb[0].mxu0
      %v718 = vadd.f32 %v573, %v717
      %v719 = vpop.f32.mrb[0].mxu0
      %720 = vmatprep.mubr.f32.mxu0 %v253
      %721 = vmatmul.mubr.f32.gmra.mrb[0].mxu0 %v234
      %v722 = vpop.f32.mrb[0].mxu0
      %v723 = vadd.f32 %v578, %v722
      %v724 = vpop.f32.mrb[0].mxu0
      %725 = vmatprep.mubr.f32.mxu0 %v254
      %726 = vmatmul.mubr.f32.gmra.mrb[0].mxu0 %v235
      %v727 = vpop.f32.mrb[0].mxu0
      %v728 = vadd.f32 %v583, %v727
      %v729 = vpop.f32.mrb[0].mxu0
      %730 = vmatprep.mubr.f32.mxu0 %v255
      %731 = vmatmul.mubr.f32.gmra.mrb[0].mxu0 %v236
      %v732 = vpop.f32.mrb[0].mxu0
      %v733 = vadd.f32 %v588, %v732
      %v734 = vpop.f32.mrb[0].mxu0
      %735 = vmatprep.mubr.f32.mxu0 %v256
      %736 = vmatmul.mubr.f32.gmra.mrb[0].mxu0 %v237
      %v737 = vpop.f32.mrb[0].mxu0
      %v738 = vadd.f32 %v593, %v737
      %v739 = vpop.f32.mrb[0].mxu0
      %740 = vmatprep.mubr.f32.mxu0 %v257
      %741 = vmatmul.mubr.f32.gmra.mrb[0].mxu0 %v238
      %v742 = vpop.f32.mrb[0].mxu0
      %v743 = vadd.f32 %v598, %v742
      %v744 = vpop.f32.mrb[0].mxu0
      %745 = vmatprep.mubr.f32.mxu0 %v258
      %746 = vmatmul.mubr.f32.gmra.mrb[0].mxu0 %v239
      %v747 = vpop.f32.mrb[0].mxu0
      %v748 = vadd.f32 %v603, %v747
      %v749 = vpop.f32.mrb[0].mxu0
      %750 = vmatprep.mubr.f32.mxu0 %v259
      %751 = vmatmul.mubr.f32.gmra.mrb[0].mxu0 %v240
      %v752 = vpop.f32.mrb[0].mxu0
      %v753 = vadd.f32 %v608, %v752
      %v754 = vpop.f32.mrb[0].mxu0
      %755 = vmatprep.mubr.f32.mxu0 %v260
      %756 = vmatmul.mubr.f32.gmra.mrb[0].mxu0 %v241
      %v757 = vpop.f32.mrb[0].mxu0
      %v758 = vadd.f32 %v613, %v757
      %v759 = vpop.f32.mrb[0].mxu0
      %760 = vmatprep.mubr.f32.mxu0 %v261
      %761 = vmatmul.mubr.f32.gmra.mrb[0].mxu0 %v242
      %v762 = vpop.f32.mrb[0].mxu0
      %v763 = vadd.f32 %v618, %v762
      %v764 = vpop.f32.mrb[0].mxu0
      %765 = vmatprep.mubr.f32.mxu0 %v262
      %766 = vmatmul.mubr.f32.gmra.mrb[0].mxu0 %v243
      %v767 = vpop.f32.mrb[0].mxu0
      %v768 = vadd.f32 %v623, %v767
      %v769 = vpop.f32.mrb[0].mxu0
      %770 = vmatprep.mubr.f32.mxu0 %v263
      %771 = vmatmul.mubr.f32.gmra.mrb[0].mxu0 %v244
      %v772 = vpop.f32.mrb[0].mxu0
      %v773 = vadd.f32 %v628, %v772
      %v774 = vpop.f32.mrb[0].mxu0
      %775 = vmatprep.mubr.f32.mxu0 %v264
      %776 = vmatmul.mubr.f32.gmra.mrb[0].mxu0 %v245
      %v777 = vpop.f32.mrb[0].mxu0
      %v778 = vadd.f32 %v633, %v777
      %v779 = vpop.f32.mrb[0].mxu0
      %780 = vmatprep.mubr.f32.mxu0 %v265
      %781 = vmatmul.mubr.f32.gmra.mrb[0].mxu0 %v246
      %v782 = vpop.f32.mrb[0].mxu0
      %v783 = vadd.f32 %v638, %v782
      %v784 = vpop.f32.mrb[0].mxu0
      %785 = vmatprep.mubr.f32.mxu0 %v266
      %786 = vmatmul.mubr.f32.gmra.mrb[0].mxu0 %v247
      %v787 = vpop.f32.mrb[0].mxu0
      %v788 = vadd.f32 %v643, %v787
      %v789 = vpop.f32.mrb[0].mxu0
      %790 = vdwg.mxu0
      %791 = vmatprep.subr.mxu0 0.0
      %792 = vmatpush1.msra.mxu0 %v414
      %793 = vmatprep.subr.mxu0 0.0
      %794 = vmatpush1.msra.mxu0 %v415
      %795 = vmatprep.subr.mxu0 0.0
      %796 = vmatpush1.msra.mxu0 %v416
      %797 = vmatprep.subr.mxu0 0.0
      %798 = vmatpush1.msra.mxu0 %v417
      %799 = vmatprep.subr.mxu0 0.0
      %800 = vmatpush1.msra.mxu0 %v418
      %801 = vmatprep.subr.mxu0 0.0
      %802 = vmatpush1.msra.mxu0 %v419
      %803 = vmatprep.subr.mxu0 0.0
      %804 = vmatpush1.msra.mxu0 %v420
      %805 = vmatprep.subr.mxu0 0.0
      %806 = vmatpush1.msra.mxu0 %v421
      %807 = vmatprep.subr.mxu0 0.0
      %808 = vmatpush1.msra.mxu0 %v422
      %809 = vmatprep.subr.mxu0 0.0
      %810 = vmatpush1.msra.mxu0 %v423
      %811 = vmatprep.subr.mxu0 0.0
      %812 = vmatpush1.msra.mxu0 %v424
      %813 = vmatprep.subr.mxu0 0.0
      %814 = vmatpush1.msra.mxu0 %v425
      %815 = vmatprep.subr.mxu0 0.0
      %816 = vmatpush1.msra.mxu0 %v426
      %817 = vmatprep.subr.mxu0 0.0
      %818 = vmatpush1.msra.mxu0 %v427
      %819 = vmatprep.subr.mxu0 0.0
      %820 = vmatpush1.msra.mxu0 %v428
      %821 = vmatprep.subr.mxu0 0.0
      %822 = vmatpush1.msra.mxu0 %v429
      %823 = vmatprep.subr.mxu0 0.0
      %824 = vmatpush1.msra.mxu0 %v430
      %825 = vmatprep.subr.mxu0 0.0
      %826 = vmatpush1.msra.mxu0 %v431
      %827 = vmatprep.subr.mxu0 0.0
      %828 = vmatpush1.msra.mxu0 %v432
      %829 = vmatprep.subr.mxu0 0.0
      %830 = vmatpush1.msra.mxu0 %v433
      %831 = vmatprep.subr.mxu0 0.0
      %832 = vmatpush1.msra.mxu0 %v434
      %833 = vmatprep.subr.mxu0 0.0
      %834 = vmatpush1.msra.mxu0 %v435
      %835 = vmatprep.subr.mxu0 0.0
      %836 = vmatpush1.msra.mxu0 %v436
      %837 = vmatprep.subr.mxu0 0.0
      %838 = vmatpush1.msra.mxu0 %v437
      %839 = vmatprep.subr.mxu0 0.0
      %840 = vmatpush1.msra.mxu0 %v438
      %841 = vmatprep.subr.mxu0 0.0
      %842 = vmatpush1.msra.mxu0 %v439
      %843 = vmatprep.subr.mxu0 0.0
      %844 = vmatpush1.msra.mxu0 %v440
      %845 = vmatprep.subr.mxu0 0.0
      %846 = vmatpush1.msra.mxu0 %v441
      %847 = vmatprep.subr.mxu0 0.0
      %848 = vmatpush1.msra.mxu0 %v442
      %849 = vmatprep.subr.mxu0 0.0
      %850 = vmatpush1.msra.mxu0 %v443
      %851 = vmatprep.subr.mxu0 0.0
      %852 = vmatpush1.msra.mxu0 %v444
      %853 = vmatprep.subr.mxu0 0.0
      %854 = vmatpush1.msra.mxu0 %v445
      %855 = vmatprep.mubr.f32.mxu0 %v283
      %856 = vmatmul.mubr.f32.gmra.mrb[0].mxu0 %v267
      %v857 = vpop.f32.mrb[0].mxu0
      %v858 = vadd.f32 %v713, %v857
      %v859 = vpop.f32.mrb[0].mxu0
      %860 = vmatprep.mubr.f32.mxu0 %v284
      %861 = vmatmul.mubr.f32.gmra.mrb[0].mxu0 %v268
      %v862 = vpop.f32.mrb[0].mxu0
      %v863 = vadd.f32 %v718, %v862
      %v864 = vpop.f32.mrb[0].mxu0
      %865 = vmatprep.mubr.f32.mxu0 %v285
      %866 = vmatmul.mubr.f32.gmra.mrb[0].mxu0 %v269
      %v867 = vpop.f32.mrb[0].mxu0
      %v868 = vadd.f32 %v723, %v867
      %v869 = vpop.f32.mrb[0].mxu0
      %870 = vmatprep.mubr.f32.mxu0 %v286
      %871 = vmatmul.mubr.f32.gmra.mrb[0].mxu0 %v270
      %v872 = vpop.f32.mrb[0].mxu0
      %v873 = vadd.f32 %v728, %v872
      %v874 = vpop.f32.mrb[0].mxu0
      %875 = vmatprep.mubr.f32.mxu0 %v287
      %876 = vmatmul.mubr.f32.gmra.mrb[0].mxu0 %v271
      %v877 = vpop.f32.mrb[0].mxu0
      %v878 = vadd.f32 %v733, %v877
      %v879 = vpop.f32.mrb[0].mxu0
      %880 = vmatprep.mubr.f32.mxu0 %v288
      %881 = vmatmul.mubr.f32.gmra.mrb[0].mxu0 %v272
      %v882 = vpop.f32.mrb[0].mxu0
      %v883 = vadd.f32 %v738, %v882
      %v884 = vpop.f32.mrb[0].mxu0
      %885 = vmatprep.mubr.f32.mxu0 %v289
      %886 = vmatmul.mubr.f32.gmra.mrb[0].mxu0 %v273
      %v887 = vpop.f32.mrb[0].mxu0
      %v888 = vadd.f32 %v743, %v887
      %v889 = vpop.f32.mrb[0].mxu0
      %890 = vmatprep.mubr.f32.mxu0 %v290
      %891 = vmatmul.mubr.f32.gmra.mrb[0].mxu0 %v274
      %v892 = vpop.f32.mrb[0].mxu0
      %v893 = vadd.f32 %v748, %v892
      %v894 = vpop.f32.mrb[0].mxu0
      %895 = vmatprep.mubr.f32.mxu0 %v291
      %896 = vmatmul.mubr.f32.gmra.mrb[0].mxu0 %v275
      %v897 = vpop.f32.mrb[0].mxu0
      %v898 = vadd.f32 %v753, %v897
      %v899 = vpop.f32.mrb[0].mxu0
      %900 = vmatprep.mubr.f32.mxu0 %v292
      %901 = vmatmul.mubr.f32.gmra.mrb[0].mxu0 %v276
      %v902 = vpop.f32.mrb[0].mxu0
      %v903 = vadd.f32 %v758, %v902
      %v904 = vpop.f32.mrb[0].mxu0
      %905 = vmatprep.mubr.f32.mxu0 %v293
      %906 = vmatmul.mubr.f32.gmra.mrb[0].mxu0 %v277
      %v907 = vpop.f32.mrb[0].mxu0
      %v908 = vadd.f32 %v763, %v907
      %v909 = vpop.f32.mrb[0].mxu0
      %910 = vmatprep.mubr.f32.mxu0 %v294
      %911 = vmatmul.mubr.f32.gmra.mrb[0].mxu0 %v278
      %v912 = vpop.f32.mrb[0].mxu0
      %v913 = vadd.f32 %v768, %v912
      %v914 = vpop.f32.mrb[0].mxu0
      %915 = vmatprep.mubr.f32.mxu0 %v295
      %916 = vmatmul.mubr.f32.gmra.mrb[0].mxu0 %v279
      %v917 = vpop.f32.mrb[0].mxu0
      %v918 = vadd.f32 %v773, %v917
      %v919 = vpop.f32.mrb[0].mxu0
      %920 = vmatprep.mubr.f32.mxu0 %v296
      %921 = vmatmul.mubr.f32.gmra.mrb[0].mxu0 %v280
      %v922 = vpop.f32.mrb[0].mxu0
      %v923 = vadd.f32 %v778, %v922
      %v924 = vpop.f32.mrb[0].mxu0
      %925 = vmatprep.mubr.f32.mxu0 %v297
      %926 = vmatmul.mubr.f32.gmra.mrb[0].mxu0 %v281
      %v927 = vpop.f32.mrb[0].mxu0
      %v928 = vadd.f32 %v783, %v927
      %v929 = vpop.f32.mrb[0].mxu0
      %930 = vmatprep.mubr.f32.mxu0 %v298
      %931 = vmatmul.mubr.f32.gmra.mrb[0].mxu0 %v282
      %v932 = vpop.f32.mrb[0].mxu0
      %v933 = vadd.f32 %v788, %v932
      %v934 = vpop.f32.mrb[0].mxu0
      %935 = vdwg.mxu0
      %936 = vmatprep.subr.mxu0 0.0
      %937 = vmatpush1.msra.mxu0 %v446
      %938 = vmatprep.subr.mxu0 0.0
      %939 = vmatpush1.msra.mxu0 %v447
      %940 = vmatprep.subr.mxu0 0.0
      %941 = vmatpush1.msra.mxu0 %v448
      %942 = vmatprep.subr.mxu0 0.0
      %943 = vmatpush1.msra.mxu0 %v449
      %944 = vmatprep.subr.mxu0 0.0
      %945 = vmatpush1.msra.mxu0 %v450
      %946 = vmatprep.subr.mxu0 0.0
      %947 = vmatpush1.msra.mxu0 %v451
      %948 = vmatprep.subr.mxu0 0.0
      %949 = vmatpush1.msra.mxu0 %v452
      %950 = vmatprep.subr.mxu0 0.0
      %951 = vmatpush1.msra.mxu0 %v453
      %952 = vmatprep.subr.mxu0 0.0
      %953 = vmatpush1.msra.mxu0 %v454
      %954 = vmatprep.subr.mxu0 0.0
      %955 = vmatpush1.msra.mxu0 %v455
      %956 = vmatprep.subr.mxu0 0.0
      %957 = vmatpush1.msra.mxu0 %v456
      %958 = vmatprep.subr.mxu0 0.0
      %959 = vmatpush1.msra.mxu0 %v457
      %960 = vmatprep.subr.mxu0 0.0
      %961 = vmatpush1.msra.mxu0 %v458
      %962 = vmatprep.subr.mxu0 0.0
      %963 = vmatpush1.msra.mxu0 %v459
      %964 = vmatprep.subr.mxu0 0.0
      %965 = vmatpush1.msra.mxu0 %v460
      %966 = vmatprep.subr.mxu0 0.0
      %967 = vmatpush1.msra.mxu0 %v461
      %968 = vmatprep.subr.mxu0 0.0
      %969 = vmatpush1.msra.mxu0 %v462
      %970 = vmatprep.subr.mxu0 0.0
      %971 = vmatpush1.msra.mxu0 %v463
      %972 = vmatprep.subr.mxu0 0.0
      %973 = vmatpush1.msra.mxu0 %v464
      %974 = vmatprep.subr.mxu0 0.0
      %975 = vmatpush1.msra.mxu0 %v465
      %976 = vmatprep.subr.mxu0 0.0
      %977 = vmatpush1.msra.mxu0 %v466
      %978 = vmatprep.subr.mxu0 0.0
      %979 = vmatpush1.msra.mxu0 %v467
      %980 = vmatprep.subr.mxu0 0.0
      %981 = vmatpush1.msra.mxu0 %v468
      %982 = vmatprep.subr.mxu0 0.0
      %983 = vmatpush1.msra.mxu0 %v469
      %984 = vmatprep.subr.mxu0 0.0
      %985 = vmatpush1.msra.mxu0 %v470
      %986 = vmatprep.subr.mxu0 0.0
      %987 = vmatpush1.msra.mxu0 %v471
      %988 = vmatprep.subr.mxu0 0.0
      %989 = vmatpush1.msra.mxu0 %v472
      %990 = vmatprep.subr.mxu0 0.0
      %991 = vmatpush1.msra.mxu0 %v473
      %992 = vmatprep.subr.mxu0 0.0
      %993 = vmatpush1.msra.mxu0 %v474
      %994 = vmatprep.subr.mxu0 0.0
      %995 = vmatpush1.msra.mxu0 %v475
      %996 = vmatprep.subr.mxu0 0.0
      %997 = vmatpush1.msra.mxu0 %v476
      %998 = vmatprep.subr.mxu0 0.0
      %999 = vmatpush1.msra.mxu0 %v477
      %1000 = vmatprep.mubr.f32.mxu0 %v318
      %1001 = vmatmul.mubr.f32.gmra.mrb[0].mxu0 %v302
      %v1002 = vpop.f32.mrb[0].mxu0
      %v1003 = vadd.f32 %v858, %v1002
      %v1004 = vpop.f32.mrb[0].mxu0
      %1005 = vmatprep.mubr.f32.mxu0 %v319
      %1006 = vmatmul.mubr.f32.gmra.mrb[0].mxu0 %v303
      %v1007 = vpop.f32.mrb[0].mxu0
      %v1008 = vadd.f32 %v863, %v1007
      %v1009 = vpop.f32.mrb[0].mxu0
      %1010 = vmatprep.mubr.f32.mxu0 %v320
      %1011 = vmatmul.mubr.f32.gmra.mrb[0].mxu0 %v304
      %v1012 = vpop.f32.mrb[0].mxu0
      %v1013 = vadd.f32 %v868, %v1012
      %v1014 = vpop.f32.mrb[0].mxu0
      %1015 = vmatprep.mubr.f32.mxu0 %v321
      %1016 = vmatmul.mubr.f32.gmra.mrb[0].mxu0 %v305
      %v1017 = vpop.f32.mrb[0].mxu0
      %v1018 = vadd.f32 %v873, %v1017
      %v1019 = vpop.f32.mrb[0].mxu0
      %1020 = vmatprep.mubr.f32.mxu0 %v322
      %1021 = vmatmul.mubr.f32.gmra.mrb[0].mxu0 %v306
      %v1022 = vpop.f32.mrb[0].mxu0
      %v1023 = vadd.f32 %v878, %v1022
      %v1024 = vpop.f32.mrb[0].mxu0
      %1025 = vmatprep.mubr.f32.mxu0 %v323
      %1026 = vmatmul.mubr.f32.gmra.mrb[0].mxu0 %v307
      %v1027 = vpop.f32.mrb[0].mxu0
      %v1028 = vadd.f32 %v883, %v1027
      %v1029 = vpop.f32.mrb[0].mxu0
      %1030 = vmatprep.mubr.f32.mxu0 %v324
      %1031 = vmatmul.mubr.f32.gmra.mrb[0].mxu0 %v308
      %v1032 = vpop.f32.mrb[0].mxu0
      %v1033 = vadd.f32 %v888, %v1032
      %v1034 = vpop.f32.mrb[0].mxu0
      %1035 = vmatprep.mubr.f32.mxu0 %v325
      %1036 = vmatmul.mubr.f32.gmra.mrb[0].mxu0 %v309
      %v1037 = vpop.f32.mrb[0].mxu0
      %v1038 = vadd.f32 %v893, %v1037
      %v1039 = vpop.f32.mrb[0].mxu0
      %1040 = vmatprep.mubr.f32.mxu0 %v326
      %1041 = vmatmul.mubr.f32.gmra.mrb[0].mxu0 %v310
      %v1042 = vpop.f32.mrb[0].mxu0
      %v1043 = vadd.f32 %v898, %v1042
      %v1044 = vpop.f32.mrb[0].mxu0
      %1045 = vmatprep.mubr.f32.mxu0 %v327
      %1046 = vmatmul.mubr.f32.gmra.mrb[0].mxu0 %v311
      %v1047 = vpop.f32.mrb[0].mxu0
      %v1048 = vadd.f32 %v903, %v1047
      %v1049 = vpop.f32.mrb[0].mxu0
      %1050 = vmatprep.mubr.f32.mxu0 %v328
      %1051 = vmatmul.mubr.f32.gmra.mrb[0].mxu0 %v312
      %v1052 = vpop.f32.mrb[0].mxu0
      %v1053 = vadd.f32 %v908, %v1052
      %v1054 = vpop.f32.mrb[0].mxu0
      %1055 = vmatprep.mubr.f32.mxu0 %v329
      %1056 = vmatmul.mubr.f32.gmra.mrb[0].mxu0 %v313
      %v1057 = vpop.f32.mrb[0].mxu0
      %v1058 = vadd.f32 %v913, %v1057
      %v1059 = vpop.f32.mrb[0].mxu0
      %1060 = vmatprep.mubr.f32.mxu0 %v330
      %1061 = vmatmul.mubr.f32.gmra.mrb[0].mxu0 %v314
      %v1062 = vpop.f32.mrb[0].mxu0
      %v1063 = vadd.f32 %v918, %v1062
      %v1064 = vpop.f32.mrb[0].mxu0
      %1065 = vmatprep.mubr.f32.mxu0 %v331
      %1066 = vmatmul.mubr.f32.gmra.mrb[0].mxu0 %v315
      %v1067 = vpop.f32.mrb[0].mxu0
      %v1068 = vadd.f32 %v923, %v1067
      %v1069 = vpop.f32.mrb[0].mxu0
      %1070 = vmatprep.mubr.f32.mxu0 %v332
      %1071 = vmatmul.mubr.f32.gmra.mrb[0].mxu0 %v316
      %v1072 = vpop.f32.mrb[0].mxu0
      %v1073 = vadd.f32 %v928, %v1072
      %v1074 = vpop.f32.mrb[0].mxu0
      %1075 = vmatprep.mubr.f32.mxu0 %v333
      %1076 = vmatmul.mubr.f32.gmra.mrb[0].mxu0 %v317
      %v1077 = vpop.f32.mrb[0].mxu0
      %v1078 = vadd.f32 %v933, %v1077
      %v1079 = vpop.f32.mrb[0].mxu0
      %1080 = vdwg.mxu0
      %1081 = vmatprep.subr.mxu0 0.0
      %1082 = vmatpush1.msra.mxu0 %v478
      %1083 = vmatprep.subr.mxu0 0.0
      %1084 = vmatpush1.msra.mxu0 %v479
      %1085 = vmatprep.subr.mxu0 0.0
      %1086 = vmatpush1.msra.mxu0 %v480
      %1087 = vmatprep.subr.mxu0 0.0
      %1088 = vmatpush1.msra.mxu0 %v481
      %1089 = vmatprep.subr.mxu0 0.0
      %1090 = vmatpush1.msra.mxu0 %v482
      %1091 = vmatprep.subr.mxu0 0.0
      %1092 = vmatpush1.msra.mxu0 %v483
      %1093 = vmatprep.subr.mxu0 0.0
      %1094 = vmatpush1.msra.mxu0 %v484
      %1095 = vmatprep.subr.mxu0 0.0
      %1096 = vmatpush1.msra.mxu0 %v485
      %1097 = vmatprep.subr.mxu0 0.0
      %1098 = vmatpush1.msra.mxu0 %v486
      %1099 = vmatprep.subr.mxu0 0.0
      %1100 = vmatpush1.msra.mxu0 %v487
      %1101 = vmatprep.subr.mxu0 0.0
      %1102 = vmatpush1.msra.mxu0 %v488
      %1103 = vmatprep.subr.mxu0 0.0
      %1104 = vmatpush1.msra.mxu0 %v489
      %1105 = vmatprep.subr.mxu0 0.0
      %1106 = vmatpush1.msra.mxu0 %v490
      %1107 = vmatprep.subr.mxu0 0.0
      %1108 = vmatpush1.msra.mxu0 %v491
      %1109 = vmatprep.subr.mxu0 0.0
      %1110 = vmatpush1.msra.mxu0 %v492
      %1111 = vmatprep.subr.mxu0 0.0
      %1112 = vmatpush1.msra.mxu0 %v493
      %1113 = vmatprep.subr.mxu0 0.0
      %1114 = vmatpush1.msra.mxu0 0.0
      %1115 = vmatprep.subr.mxu0 0.0
      %1116 = vmatpush1.msra.mxu0 0.0
      %1117 = vmatprep.subr.mxu0 0.0
      %1118 = vmatpush1.msra.mxu0 0.0
      %1119 = vmatprep.subr.mxu0 0.0
      %1120 = vmatpush1.msra.mxu0 0.0
      %1121 = vmatprep.subr.mxu0 0.0
      %1122 = vmatpush1.msra.mxu0 0.0
      %1123 = vmatprep.subr.mxu0 0.0
      %1124 = vmatpush1.msra.mxu0 0.0
      %1125 = vmatprep.subr.mxu0 0.0
      %1126 = vmatpush1.msra.mxu0 0.0
      %1127 = vmatprep.subr.mxu0 0.0
      %1128 = vmatpush1.msra.mxu0 0.0
      %1129 = vmatprep.subr.mxu0 0.0
      %1130 = vmatpush1.msra.mxu0 0.0
      %1131 = vmatprep.subr.mxu0 0.0
      %1132 = vmatpush1.msra.mxu0 0.0
      %1133 = vmatprep.subr.mxu0 0.0
      %1134 = vmatpush1.msra.mxu0 0.0
      %1135 = vmatprep.subr.mxu0 0.0
      %1136 = vmatpush1.msra.mxu0 0.0
      %1137 = vmatprep.subr.mxu0 0.0
      %1138 = vmatpush1.msra.mxu0 0.0
      %1139 = vmatprep.subr.mxu0 0.0
      %1140 = vmatpush1.msra.mxu0 0.0
      %1141 = vmatprep.subr.mxu0 0.0
      %1142 = vmatpush1.msra.mxu0 0.0
      %1143 = vmatprep.subr.mxu0 0.0
      %1144 = vmatpush1.msra.mxu0 0.0
      %1145 = vmatprep.mubr.f32.mxu0 0.0
      %1146 = vmatmul.mubr.f32.gmra.mrb[0].mxu0 %v334
      %v1147 = vpop.f32.mrb[0].mxu0
      %v1148 = vadd.f32 %v1003, %v1147
      %v1149 = vpop.f32.mrb[0].mxu0
      %1150 = vmatprep.mubr.f32.mxu0 0.0
      %1151 = vmatmul.mubr.f32.gmra.mrb[0].mxu0 %v335
      %v1152 = vpop.f32.mrb[0].mxu0
      %v1153 = vadd.f32 %v1008, %v1152
      %v1154 = vpop.f32.mrb[0].mxu0
      %1155 = vmatprep.mubr.f32.mxu0 0.0
      %1156 = vmatmul.mubr.f32.gmra.mrb[0].mxu0 %v336
      %v1157 = vpop.f32.mrb[0].mxu0
      %v1158 = vadd.f32 %v1013, %v1157
      %v1159 = vpop.f32.mrb[0].mxu0
      %1160 = vmatprep.mubr.f32.mxu0 0.0
      %1161 = vmatmul.mubr.f32.gmra.mrb[0].mxu0 %v337
      %v1162 = vpop.f32.mrb[0].mxu0
      %v1163 = vadd.f32 %v1018, %v1162
      %v1164 = vpop.f32.mrb[0].mxu0
      %1165 = vmatprep.mubr.f32.mxu0 0.0
      %1166 = vmatmul.mubr.f32.gmra.mrb[0].mxu0 %v338
      %v1167 = vpop.f32.mrb[0].mxu0
      %v1168 = vadd.f32 %v1023, %v1167
      %v1169 = vpop.f32.mrb[0].mxu0
      %1170 = vmatprep.mubr.f32.mxu0 0.0
      %1171 = vmatmul.mubr.f32.gmra.mrb[0].mxu0 %v339
      %v1172 = vpop.f32.mrb[0].mxu0
      %v1173 = vadd.f32 %v1028, %v1172
      %v1174 = vpop.f32.mrb[0].mxu0
      %1175 = vmatprep.mubr.f32.mxu0 0.0
      %1176 = vmatmul.mubr.f32.gmra.mrb[0].mxu0 %v340
      %v1177 = vpop.f32.mrb[0].mxu0
      %v1178 = vadd.f32 %v1033, %v1177
      %v1179 = vpop.f32.mrb[0].mxu0
      %1180 = vmatprep.mubr.f32.mxu0 0.0
      %1181 = vmatmul.mubr.f32.gmra.mrb[0].mxu0 %v341
      %v1182 = vpop.f32.mrb[0].mxu0
      %v1183 = vadd.f32 %v1038, %v1182
      %v1184 = vpop.f32.mrb[0].mxu0
      %1185 = vmatprep.mubr.f32.mxu0 0.0
      %1186 = vmatmul.mubr.f32.gmra.mrb[0].mxu0 %v342
      %v1187 = vpop.f32.mrb[0].mxu0
      %v1188 = vadd.f32 %v1043, %v1187
      %v1189 = vpop.f32.mrb[0].mxu0
      %1190 = vmatprep.mubr.f32.mxu0 0.0
      %1191 = vmatmul.mubr.f32.gmra.mrb[0].mxu0 %v343
      %v1192 = vpop.f32.mrb[0].mxu0
      %v1193 = vadd.f32 %v1048, %v1192
      %v1194 = vpop.f32.mrb[0].mxu0
      %1195 = vmatprep.mubr.f32.mxu0 0.0
      %1196 = vmatmul.mubr.f32.gmra.mrb[0].mxu0 %v344
      %v1197 = vpop.f32.mrb[0].mxu0
      %v1198 = vadd.f32 %v1053, %v1197
      %v1199 = vpop.f32.mrb[0].mxu0
      %1200 = vmatprep.mubr.f32.mxu0 0.0
      %1201 = vmatmul.mubr.f32.gmra.mrb[0].mxu0 %v345
      %v1202 = vpop.f32.mrb[0].mxu0
      %v1203 = vadd.f32 %v1058, %v1202
      %v1204 = vpop.f32.mrb[0].mxu0
      %1205 = vmatprep.mubr.f32.mxu0 0.0
      %1206 = vmatmul.mubr.f32.gmra.mrb[0].mxu0 %v346
      %v1207 = vpop.f32.mrb[0].mxu0
      %v1208 = vadd.f32 %v1063, %v1207
      %v1209 = vpop.f32.mrb[0].mxu0
      %1210 = vmatprep.mubr.f32.mxu0 0.0
      %1211 = vmatmul.mubr.f32.gmra.mrb[0].mxu0 %v347
      %v1212 = vpop.f32.mrb[0].mxu0
      %v1213 = vadd.f32 %v1068, %v1212
      %v1214 = vpop.f32.mrb[0].mxu0
      %1215 = vmatprep.mubr.f32.mxu0 0.0
      %1216 = vmatmul.mubr.f32.gmra.mrb[0].mxu0 %v348
      %v1217 = vpop.f32.mrb[0].mxu0
      %v1218 = vadd.f32 %v1073, %v1217
      %v1219 = vpop.f32.mrb[0].mxu0
      %1220 = vmatprep.mubr.f32.mxu0 0.0
      %1221 = vmatmul.mubr.f32.gmra.mrb[0].mxu0 %v349
      %v1222 = vpop.f32.mrb[0].mxu0
      %v1223 = vadd.f32 %v1078, %v1222
      %v1224 = vpop.f32.mrb[0].mxu0
      %1225 = vdwg.mxu0
      %1226 = vst [vmem:[%s194] sm:$0xff] %v1148
      %1227 = vst [vmem:[%s194 + $0x8] sm:$0xff] %v1153
      %1228 = vst [vmem:[%s194 + $0x10] sm:$0xff] %v1158
      %1229 = vst [vmem:[%s194 + $0x18] sm:$0xff] %v1163
      %1230 = vst [vmem:[%s194 + $0x20] sm:$0xff] %v1168
      %1231 = vst [vmem:[%s194 + $0x28] sm:$0xff] %v1173
      %1232 = vst [vmem:[%s194 + $0x30] sm:$0xff] %v1178
      %1233 = vst [vmem:[%s194 + $0x38] sm:$0xff] %v1183
      %1234 = vst [vmem:[%s194 + $0x40] sm:$0xff] %v1188
      %1235 = vst [vmem:[%s194 + $0x48] sm:$0xff] %v1193
      %1236 = vst [vmem:[%s194 + $0x50] sm:$0xff] %v1198
      %1237 = vst [vmem:[%s194 + $0x58] sm:$0xff] %v1203
      %1238 = vst [vmem:[%s194 + $0x60] sm:$0xff] %v1208
      %1239 = vst [vmem:[%s194 + $0x68] sm:$0xff] %v1213
      %1240 = vst [vmem:[%s194 + $0x70] sm:$0xff] %v1218
      %1241 = vst [vmem:[%s194 + $0x78] sm:$0xff] %v1223
      %s1242 = smul.u32 8, %s19
      %p1243 = scmp.lt.s32.totalorder %s18, 1
      %s1244 = scalar_select %p1243, %s18, 1
      %p1245 = scmp.lt.s32.totalorder %s1242, 15
      %s1246 = scalar_select %p1245, %s1242, 15
      %s1247 = smul.addr %s1246, 2
      %s1248 = smul.addr %s1244, 32
      %s1249 = sadd.s32 %s1247, %s1248
      %s1250 = smul.addr %s1249, 8
      %s1251 = scalar_lea.vmem %s3, %s1250
      // Predicated region
      $region33: #{dac_block.4} parent=31 // pred_check
        %p1252 = pneg %p114
      $region34: #{dac_block.4} parent=31 // pred_check_branch
        %1254 = sbr.rel (%p1252) target = $region36
      $region35: #{dac_block.4} parent=31 // pred_region
        %s1255 = smul.u32 8, %s19
      $region36: #{dac_block.4} parent=31 // pred_fallthru
        _
    $region32: #{dac_block.4} parent=5 // pred_fallthru
      _
    %p1256 = scmp.le.s32.totalorder 2, %s9
    // Predicated region
    $region37: #{dac_block.4} parent=5 // pred_check
      %p1257 = pneg %p1256
    $region38: #{dac_block.4} parent=5 // pred_check_branch
      %1259 = sbr.rel (%p1257) target = $region40
    $region39: #{dac_block.4} parent=5 // pred_region
      %s1260 = ssub.s32 %s9, 2
      // Predicated region
      $region41: #{dac_block.4} parent=39 // pred_check
        %p1261 = pneg %p120
      $region42: #{dac_block.4} parent=39 // pred_check_branch
        %1263 = sbr.rel (%p1261) target = $region44
      $region43: #{dac_block.4} parent=39 // pred_region
        %s1264 = smul.u32 8, %s21
        %p1265 = scmp.lt.s32.totalorder %s20, 1
        %s1266 = scalar_select %p1265, %s20, 1
        %p1267 = scmp.lt.s32.totalorder %s1264, 15
        %s1268 = scalar_select %p1267, %s1264, 15
        %s1269 = smul.addr %s1268, 2
        %s1270 = smul.addr %s1266, 32
        %s1271 = sadd.s32 %s1269, %s1270
        %s1272 = smul.addr %s1271, 8
        %s1273 = scalar_lea.vmem %s3, %s1272
      $region44: #{dac_block.4} parent=39 // pred_fallthru
        _
    $region40: #{dac_block.4} parent=5 // pred_fallthru
      _
  $region6: #{dac_block.4} parent=0 // loop_footer
    %s13 = sadd.s32 1, %s9
  $region7: #{dac_block.4} parent=0 // loop_footer_branch
    %8 = sbr.rel target = $region3
  $region8: #{dac_block.4} parent=0 // loop_exit
    _

// kernel: dac_block.3
$region0: #{dac_block.3}
  #allocation0 [shape = 'u32[]', space=smem, size = 0x4, offset = 0x4, fixed_abs, tag = 'smem constant byte address 0x4 - core index']
  #allocation1 [shape = 'u32[144,128]{1,0:T(1,128)}', space=vmem, size = 0x12000, scoped, tag = 'internal scratch']
  %s0 = inlined_call_operand.vmem [shape: f32[2,22,22,128], index: 0, kind: input, shape index: {}]
  %s1 = inlined_call_operand.vmem [shape: f32[1152,128], index: 1, kind: input, shape index: {}]
  %s2 = inlined_call_operand.vmem [shape: f32[1,128], index: 2, kind: input, shape index: {}]
  %s3 = inlined_call_operand.vmem [shape: f32[2,16,16,128], index: 3, kind: output, shape index: {}]
  %s4 = sld [smem:[#allocation0]]
  $region45: #{dac_block.3} parent=0
    _
  %s6 = ssub.s32 1, %s4
  %s7 = scalar_select 0, %s6, %s4
  loop: start=0, step=1, limit=6
  $region2: #{dac_block.3} parent=0 // loop_pre_header
    _
  $region3: #{dac_block.3} parent=0 // loop_header
    %s9 = sphi 0, %s13
    %p10 = scmp.ge.s32.totalorder %s9, 6
    %s16 = sphi 0, %s28
    %s17 = sphi 0, %s24
    %s18 = sphi 0, %s16
    %s19 = sphi 0, %s17
    %s20 = sphi 0, %s18
    %s21 = sphi 0, %s19
    %s31 = sphi 0, %s33
    %s34 = sphi 0, %s31
    %s35 = sphi 0, %s34
    %s51 = sphi 0, %s35
    %s55 = sphi 0, %s55
    %s57 = sphi 0, %s55
    %s58 = sphi 0, %s57
    %s72 = sphi 0, %s58
    %s76 = sphi 0, %s76
    %s78 = sphi 0, %s76
    %s79 = sphi 0, %s78
    %s93 = sphi 0, %s79
    %s101 = sphi 0, %s103
    %s104 = sphi 0, %s101
    %s105 = sphi 0, %s104
    %s121 = sphi 0, %s105
  $region4: #{dac_block.3} parent=0 // loop_header_branch
    %12 = sbr.rel (%p10) target = $region8
  $region5: #{dac_block.3} parent=0 // loop_body
    %s14 = ssub.s32 %s9, 1
    %s15 = ssub.s32 %s9, 2
    %s22 = sadd.s32 1, %s17
    %p23 = scmp.ge.s32.totalorder %s22, 2
    %s24 = scalar_select %p23, 0, %s22
    %s25 = sadd.s32 1, %s16
    %s26 = scalar_select %p23, %s25, %s16
    %p27 = scmp.ge.s32.totalorder %s26, 2
    %s28 = scalar_select %p27, 0, %s26
    %s29 = ssub.s32 %s16, %s28
    %p30 = scmp.eq.s32.totalorder %s29, 0
    %s32 = sadd.s32 %s31, 1
    %s33 = scalar_select %p30, %s31, %s32
    %p36 = pneg %p30
    %p37 = scmp.eq.s32.totalorder %s9, 3
    %p38 = por %p36, %p37
    %p39 = scmp.ne.s32.totalorder %s31, %s34
    %p40 = scmp.eq.s32.totalorder %s9, 0
    %p41 = por %p39, %p40
    %p42 = scmp.ne.s32.totalorder %s31, %s34
    %p43 = scmp.eq.s32.totalorder %s14, 3
    %p44 = por %p42, %p43
    %p45 = scmp.ne.s32.totalorder %s34, %s35
    %p46 = scmp.eq.s32.totalorder %s14, 0
    %p47 = por %p45, %p46
    %p48 = scmp.ne.s32.totalorder %s34, %s35
    %p49 = scmp.eq.s32.totalorder %s15, 3
    %p50 = por %p48, %p49
    %p52 = scmp.ne.s32.totalorder %s35, %s51
    %p53 = scmp.eq.s32.totalorder %s15, 0
    %p54 = por %p52, %p53
    %s56 = sadd.s32 %s55, 1
    %p59 = scmp.eq.s32.totalorder %s9, 3
    %p60 = scmp.ne.s32.totalorder %s55, %s57
    %p61 = scmp.eq.s32.totalorder %s9, 0
    %p62 = por %p60, %p61
    %p63 = scmp.ne.s32.totalorder %s55, %s57
    %p64 = scmp.eq.s32.totalorder %s14, 3
    %p65 = por %p63, %p64
    %p66 = scmp.ne.s32.totalorder %s57, %s58
    %p67 = scmp.eq.s32.totalorder %s14, 0
    %p68 = por %p66, %p67
    %p69 = scmp.ne.s32.totalorder %s57, %s58
    %p70 = scmp.eq.s32.totalorder %s15, 3
    %p71 = por %p69, %p70
    %p73 = scmp.ne.s32.totalorder %s58, %s72
    %p74 = scmp.eq.s32.totalorder %s15, 0
    %p75 = por %p73, %p74
    %s77 = sadd.s32 %s76, 1
    %p80 = scmp.eq.s32.totalorder %s9, 3
    %p81 = scmp.ne.s32.totalorder %s76, %s78
    %p82 = scmp.eq.s32.totalorder %s9, 0
    %p83 = por %p81, %p82
    %p84 = scmp.ne.s32.totalorder %s76, %s78
    %p85 = scmp.eq.s32.totalorder %s14, 3
    %p86 = por %p84, %p85
    %p87 = scmp.ne.s32.totalorder %s78, %s79
    %p88 = scmp.eq.s32.totalorder %s14, 0
    %p89 = por %p87, %p88
    %p90 = scmp.ne.s32.totalorder %s78, %s79
    %p91 = scmp.eq.s32.totalorder %s15, 3
    %p92 = por %p90, %p91
    %p94 = scmp.ne.s32.totalorder %s79, %s93
    %p95 = scmp.eq.s32.totalorder %s15, 0
    %p96 = por %p94, %p95
    %s97 = ssub.s32 %s16, %s28
    %s98 = ssub.s32 %s17, %s24
    %s99 = sor.u32 %s97, %s98
    %p100 = scmp.eq.s32.totalorder %s99, 0
    %s102 = sadd.s32 %s101, 1
    %s103 = scalar_select %p100, %s101, %s102
    %p106 = pneg %p100
    %p107 = scmp.eq.s32.totalorder %s9, 3
    %p108 = por %p106, %p107
    %p109 = scmp.ne.s32.totalorder %s101, %s104
    %p110 = scmp.eq.s32.totalorder %s9, 0
    %p111 = por %p109, %p110
    %p112 = scmp.ne.s32.totalorder %s101, %s104
    %p113 = scmp.eq.s32.totalorder %s14, 3
    %p114 = por %p112, %p113
    %p115 = scmp.ne.s32.totalorder %s104, %s105
    %p116 = scmp.eq.s32.totalorder %s14, 0
    %p117 = por %p115, %p116
    %p118 = scmp.ne.s32.totalorder %s104, %s105
    %p119 = scmp.eq.s32.totalorder %s15, 3
    %p120 = por %p118, %p119
    %p122 = scmp.ne.s32.totalorder %s105, %s121
    %p123 = scmp.eq.s32.totalorder %s15, 0
    %p124 = por %p122, %p123
    %p125 = scmp.le.s32.totalorder 1, %s9
    %p126 = scmp.lt.s32.totalorder %s9, 5
    %p127 = pnand %p125, %p126
    %p128 = pneg %p127
    // Predicated region
    $region9: #{dac_block.3} parent=5 // pred_check
      _
    $region10: #{dac_block.3} parent=5 // pred_check_branch
      %130 = sbr.rel (%p127) target = $region12
    $region11: #{dac_block.3} parent=5 // pred_region
      %s131 = ssub.s32 %s9, 1
      // Predicated region
      $region13: #{dac_block.3} parent=11 // pred_check
        %p132 = pneg %p68
      $region14: #{dac_block.3} parent=11 // pred_check_branch
        %134 = sbr.rel (%p132) target = $region16
      $region15: #{dac_block.3} parent=11 // pred_region
        _
      $region16: #{dac_block.3} parent=11 // pred_fallthru
        _
      // Predicated region
      $region17: #{dac_block.3} parent=11 // pred_check
        %p135 = pneg %p89
      $region18: #{dac_block.3} parent=11 // pred_check_branch
        %137 = sbr.rel (%p135) target = $region20
      $region19: #{dac_block.3} parent=11 // pred_region
        _
      $region20: #{dac_block.3} parent=11 // pred_fallthru
        _
    $region12: #{dac_block.3} parent=5 // pred_fallthru
      _
    %p138 = scmp.lt.s32.totalorder %s9, 4
    // Predicated region
    $region21: #{dac_block.3} parent=5 // pred_check
      %p139 = pneg %p138
    $region22: #{dac_block.3} parent=5 // pred_check_branch
      %141 = sbr.rel (%p139) target = $region24
    $region23: #{dac_block.3} parent=5 // pred_region
      // Predicated region
      $region25: #{dac_block.3} parent=23 // pred_check
        %p142 = pneg %p41
      $region26: #{dac_block.3} parent=23 // pred_check_branch
        %144 = sbr.rel (%p142) target = $region28
      $region27: #{dac_block.3} parent=23 // pred_region
        %p145 = scmp.lt.s32.totalorder %s16, 1
        %s146 = scalar_select %p145, %s16, 1
        %s147 = smul.addr %s146, 66
        %s148 = smul.addr %s147, 8
        %s149 = scalar_lea.vmem %s0, %s148
      $region28: #{dac_block.3} parent=23 // pred_fallthru
        _
    $region24: #{dac_block.3} parent=5 // pred_fallthru
      _
    %p150 = scmp.le.s32.totalorder 1, %s9
    %p151 = scmp.lt.s32.totalorder %s9, 5
    %p152 = pnand %p150, %p151
    %p153 = pneg %p152
    // Predicated region
    $region29: #{dac_block.3} parent=5 // pred_check
      _
    $region30: #{dac_block.3} parent=5 // pred_check_branch
      %155 = sbr.rel (%p152) target = $region32
    $region31: #{dac_block.3} parent=5 // pred_region
      %s156 = ssub.s32 %s9, 1
      %p157 = scmp.lt.s32.totalorder %s18, 1
      %s158 = scalar_select %p157, %s18, 1
      %s159 = smul.addr %s158, 66
      %s160 = smul.addr %s159, 8
      %s161 = scalar_lea.vmem %s0, %s160
      %p162 = pneg %p47
      %p163 = pneg %p44
      %p164 = pneg %p68
      %p165 = pneg %p65
      %p166 = pneg %p89
      %p167 = pneg %p86
      %p168 = pneg %p117
      %p169 = pneg %p114
      %s170 = smul.u32 8, %s19
      %p171 = scmp.lt.s32.totalorder %s18, 1
      %s172 = scalar_select %p171, %s18, 1
      %p173 = scmp.lt.s32.totalorder %s170, 15
      %s174 = scalar_select %p173, %s170, 15
      %s175 = smul.addr %s174, 2
      %s176 = smul.addr %s172, 32
      %s177 = sadd.s32 %s175, %s176
      %s178 = smul.addr %s177, 8
      %s179 = scalar_lea.vmem %s3, %s178
      %p180 = scmp.lt.s32.totalorder %s18, 1
      %s181 = scalar_select %p180, %s18, 1
      %s182 = smul.addr %s181, 66
      %s183 = smul.addr %s182, 8
      %s184 = scalar_lea.vmem %s0, %s183
      %s185 = smul.u32 8, %s19
      %p186 = scmp.lt.s32.totalorder %s18, 1
      %s187 = scalar_select %p186, %s18, 1
      %p188 = scmp.lt.s32.totalorder %s185, 15
      %s189 = scalar_select %p188, %s185, 15
      %s190 = smul.addr %s189, 2
      %s191 = smul.addr %s187, 32
      %s192 = sadd.s32 %s190, %s191
      %s193 = smul.addr %s192, 8
      %s194 = scalar_lea.vmem %s3, %s193
      %s195 = smul.u32 8, %s19
      %s196 = smul.u32 %s19, 8
      %s197 = sadd.s32 %s196, 2
      %s198 = smul.u32 %s197, 24
      %s199 = scalar_lea.vmem %s184, %s198
      %v200 = vld [vmem:[%s199 + $0x2] sm:$0xff]
      %v201 = vld [vmem:[%s199 + $0xa] sm:$0xff]
      %v202 = vld [vmem:[%s199 + $0x1a] sm:$0xff]
      %v203 = vld [vmem:[%s199 + $0x22] sm:$0xff]
      %v204 = vld [vmem:[%s199 + $0x32] sm:$0xff]
      %v205 = vld [vmem:[%s199 + $0x3a] sm:$0xff]
      %v206 = vld [vmem:[%s199 + $0x4a] sm:$0xff]
      %v207 = vld [vmem:[%s199 + $0x52] sm:$0xff]
      %v208 = vld [vmem:[%s199 + $0x62] sm:$0xff]
      %v209 = vld [vmem:[%s199 + $0x6a] sm:$0xff]
      %v210 = vld [vmem:[%s199 + $0x7a] sm:$0xff]
      %v211 = vld [vmem:[%s199 + $0x82] sm:$0xff]
      %v212 = vld [vmem:[%s199 + $0x92] sm:$0xff]
      %v213 = vld [vmem:[%s199 + $0x9a] sm:$0xff]
      %v214 = vld [vmem:[%s199 + $0xaa] sm:$0xff]
      %v215 = vld [vmem:[%s199 + $0xb2] sm:$0xff]
      %v216 = vld [vmem:[%s199 + $0x3] sm:$0xff]
      %v217 = vld [vmem:[%s199 + $0xb] sm:$0xff]
      %v218 = vld [vmem:[%s199 + $0x1b] sm:$0xff]
      %v219 = vld [vmem:[%s199 + $0x23] sm:$0xff]
      %v220 = vld [vmem:[%s199 + $0x33] sm:$0xff]
      %v221 = vld [vmem:[%s199 + $0x3b] sm:$0xff]
      %v222 = vld [vmem:[%s199 + $0x4b] sm:$0xff]
      %v223 = vld [vmem:[%s199 + $0x53] sm:$0xff]
      %v224 = vld [vmem:[%s199 + $0x63] sm:$0xff]
      %v225 = vld [vmem:[%s199 + $0x6b] sm:$0xff]
      %v226 = vld [vmem:[%s199 + $0x7b] sm:$0xff]
      %v227 = vld [vmem:[%s199 + $0x83] sm:$0xff]
      %v228 = vld [vmem:[%s199 + $0x93] sm:$0xff]
      %v229 = vld [vmem:[%s199 + $0x9b] sm:$0xff]
      %v230 = vld [vmem:[%s199 + $0xab] sm:$0xff]
      %v231 = vld [vmem:[%s199 + $0xb3] sm:$0xff]
      %v232 = vld [vmem:[%s199 + $0x4] sm:$0xff]
      %v233 = vld [vmem:[%s199 + $0xc] sm:$0xff]
      %v234 = vld [vmem:[%s199 + $0x1c] sm:$0xff]
      %v235 = vld [vmem:[%s199 + $0x24] sm:$0xff]
      %v236 = vld [vmem:[%s199 + $0x34] sm:$0xff]
      %v237 = vld [vmem:[%s199 + $0x3c] sm:$0xff]
      %v238 = vld [vmem:[%s199 + $0x4c] sm:$0xff]
      %v239 = vld [vmem:[%s199 + $0x54] sm:$0xff]
      %v240 = vld [vmem:[%s199 + $0x64] sm:$0xff]
      %v241 = vld [vmem:[%s199 + $0x6c] sm:$0xff]
      %v242 = vld [vmem:[%s199 + $0x7c] sm:$0xff]
      %v243 = vld [vmem:[%s199 + $0x84] sm:$0xff]
      %v244 = vld [vmem:[%s199 + $0x94] sm:$0xff]
      %v245 = vld [vmem:[%s199 + $0x9c] sm:$0xff]
      %v246 = vld [vmem:[%s199 + $0xac] sm:$0xff]
      %v247 = vld [vmem:[%s199 + $0xb4] sm:$0xff]
      %s248 = sadd.s32 %s196, 3
      %s249 = smul.u32 %s248, 24
      %s250 = scalar_lea.vmem %s184, %s249
      %v251 = vld [vmem:[%s250 + $0x2] sm:$0xff]
      %v252 = vld [vmem:[%s250 + $0xa] sm:$0xff]
      %v253 = vld [vmem:[%s250 + $0x1a] sm:$0xff]
      %v254 = vld [vmem:[%s250 + $0x22] sm:$0xff]
      %v255 = vld [vmem:[%s250 + $0x32] sm:$0xff]
      %v256 = vld [vmem:[%s250 + $0x3a] sm:$0xff]
      %v257 = vld [vmem:[%s250 + $0x4a] sm:$0xff]
      %v258 = vld [vmem:[%s250 + $0x52] sm:$0xff]
      %v259 = vld [vmem:[%s250 + $0x62] sm:$0xff]
      %v260 = vld [vmem:[%s250 + $0x6a] sm:$0xff]
      %v261 = vld [vmem:[%s250 + $0x7a] sm:$0xff]
      %v262 = vld [vmem:[%s250 + $0x82] sm:$0xff]
      %v263 = vld [vmem:[%s250 + $0x92] sm:$0xff]
      %v264 = vld [vmem:[%s250 + $0x9a] sm:$0xff]
      %v265 = vld [vmem:[%s250 + $0xaa] sm:$0xff]
      %v266 = vld [vmem:[%s250 + $0xb2] sm:$0xff]
      %v267 = vld [vmem:[%s250 + $0x3] sm:$0xff]
      %v268 = vld [vmem:[%s250 + $0xb] sm:$0xff]
      %v269 = vld [vmem:[%s250 + $0x1b] sm:$0xff]
      %v270 = vld [vmem:[%s250 + $0x23] sm:$0xff]
      %v271 = vld [vmem:[%s250 + $0x33] sm:$0xff]
      %v272 = vld [vmem:[%s250 + $0x3b] sm:$0xff]
      %v273 = vld [vmem:[%s250 + $0x4b] sm:$0xff]
      %v274 = vld [vmem:[%s250 + $0x53] sm:$0xff]
      %v275 = vld [vmem:[%s250 + $0x63] sm:$0xff]
      %v276 = vld [vmem:[%s250 + $0x6b] sm:$0xff]
      %v277 = vld [vmem:[%s250 + $0x7b] sm:$0xff]
      %v278 = vld [vmem:[%s250 + $0x83] sm:$0xff]
      %v279 = vld [vmem:[%s250 + $0x93] sm:$0xff]
      %v280 = vld [vmem:[%s250 + $0x9b] sm:$0xff]
      %v281 = vld [vmem:[%s250 + $0xab] sm:$0xff]
      %v282 = vld [vmem:[%s250 + $0xb3] sm:$0xff]
      %v283 = vld [vmem:[%s250 + $0x4] sm:$0xff]
      %v284 = vld [vmem:[%s250 + $0xc] sm:$0xff]
      %v285 = vld [vmem:[%s250 + $0x1c] sm:$0xff]
      %v286 = vld [vmem:[%s250 + $0x24] sm:$0xff]
      %v287 = vld [vmem:[%s250 + $0x34] sm:$0xff]
      %v288 = vld [vmem:[%s250 + $0x3c] sm:$0xff]
      %v289 = vld [vmem:[%s250 + $0x4c] sm:$0xff]
      %v290 = vld [vmem:[%s250 + $0x54] sm:$0xff]
      %v291 = vld [vmem:[%s250 + $0x64] sm:$0xff]
      %v292 = vld [vmem:[%s250 + $0x6c] sm:$0xff]
      %v293 = vld [vmem:[%s250 + $0x7c] sm:$0xff]
      %v294 = vld [vmem:[%s250 + $0x84] sm:$0xff]
      %v295 = vld [vmem:[%s250 + $0x94] sm:$0xff]
      %v296 = vld [vmem:[%s250 + $0x9c] sm:$0xff]
      %v297 = vld [vmem:[%s250 + $0xac] sm:$0xff]
      %v298 = vld [vmem:[%s250 + $0xb4] sm:$0xff]
      %s299 = sadd.s32 %s196, 4
      %s300 = smul.u32 %s299, 24
      %s301 = scalar_lea.vmem %s184, %s300
      %v302 = vld [vmem:[%s301 + $0x2] sm:$0xff]
      %v303 = vld [vmem:[%s301 + $0xa] sm:$0xff]
      %v304 = vld [vmem:[%s301 + $0x1a] sm:$0xff]
      %v305 = vld [vmem:[%s301 + $0x22] sm:$0xff]
      %v306 = vld [vmem:[%s301 + $0x32] sm:$0xff]
      %v307 = vld [vmem:[%s301 + $0x3a] sm:$0xff]
      %v308 = vld [vmem:[%s301 + $0x4a] sm:$0xff]
      %v309 = vld [vmem:[%s301 + $0x52] sm:$0xff]
      %v310 = vld [vmem:[%s301 + $0x62] sm:$0xff]
      %v311 = vld [vmem:[%s301 + $0x6a] sm:$0xff]
      %v312 = vld [vmem:[%s301 + $0x7a] sm:$0xff]
      %v313 = vld [vmem:[%s301 + $0x82] sm:$0xff]
      %v314 = vld [vmem:[%s301 + $0x92] sm:$0xff]
      %v315 = vld [vmem:[%s301 + $0x9a] sm:$0xff]
      %v316 = vld [vmem:[%s301 + $0xaa] sm:$0xff]
      %v317 = vld [vmem:[%s301 + $0xb2] sm:$0xff]
      %v318 = vld [vmem:[%s301 + $0x3] sm:$0xff]
      %v319 = vld [vmem:[%s301 + $0xb] sm:$0xff]
      %v320 = vld [vmem:[%s301 + $0x1b] sm:$0xff]
      %v321 = vld [vmem:[%s301 + $0x23] sm:$0xff]
      %v322 = vld [vmem:[%s301 + $0x33] sm:$0xff]
      %v323 = vld [vmem:[%s301 + $0x3b] sm:$0xff]
      %v324 = vld [vmem:[%s301 + $0x4b] sm:$0xff]
      %v325 = vld [vmem:[%s301 + $0x53] sm:$0xff]
      %v326 = vld [vmem:[%s301 + $0x63] sm:$0xff]
      %v327 = vld [vmem:[%s301 + $0x6b] sm:$0xff]
      %v328 = vld [vmem:[%s301 + $0x7b] sm:$0xff]
      %v329 = vld [vmem:[%s301 + $0x83] sm:$0xff]
      %v330 = vld [vmem:[%s301 + $0x93] sm:$0xff]
      %v331 = vld [vmem:[%s301 + $0x9b] sm:$0xff]
      %v332 = vld [vmem:[%s301 + $0xab] sm:$0xff]
      %v333 = vld [vmem:[%s301 + $0xb3] sm:$0xff]
      %v334 = vld [vmem:[%s301 + $0x4] sm:$0xff]
      %v335 = vld [vmem:[%s301 + $0xc] sm:$0xff]
      %v336 = vld [vmem:[%s301 + $0x1c] sm:$0xff]
      %v337 = vld [vmem:[%s301 + $0x24] sm:$0xff]
      %v338 = vld [vmem:[%s301 + $0x34] sm:$0xff]
      %v339 = vld [vmem:[%s301 + $0x3c] sm:$0xff]
      %v340 = vld [vmem:[%s301 + $0x4c] sm:$0xff]
      %v341 = vld [vmem:[%s301 + $0x54] sm:$0xff]
      %v342 = vld [vmem:[%s301 + $0x64] sm:$0xff]
      %v343 = vld [vmem:[%s301 + $0x6c] sm:$0xff]
      %v344 = vld [vmem:[%s301 + $0x7c] sm:$0xff]
      %v345 = vld [vmem:[%s301 + $0x84] sm:$0xff]
      %v346 = vld [vmem:[%s301 + $0x94] sm:$0xff]
      %v347 = vld [vmem:[%s301 + $0x9c] sm:$0xff]
      %v348 = vld [vmem:[%s301 + $0xac] sm:$0xff]
      %v349 = vld [vmem:[%s301 + $0xb4] sm:$0xff]
      %v350 = vld [vmem:[%s1] sm:$0xff]
      %v351 = vld [vmem:[%s1 + $0x8] sm:$0xff]
      %v352 = vld [vmem:[%s1 + $0x10] sm:$0xff]
      %v353 = vld [vmem:[%s1 + $0x18] sm:$0xff]
      %v354 = vld [vmem:[%s1 + $0x20] sm:$0xff]
      %v355 = vld [vmem:[%s1 + $0x28] sm:$0xff]
      %v356 = vld [vmem:[%s1 + $0x30] sm:$0xff]
      %v357 = vld [vmem:[%s1 + $0x38] sm:$0xff]
      %v358 = vld [vmem:[%s1 + $0x40] sm:$0xff]
      %v359 = vld [vmem:[%s1 + $0x48] sm:$0xff]
      %v360 = vld [vmem:[%s1 + $0x50] sm:$0xff]
      %v361 = vld [vmem:[%s1 + $0x58] sm:$0xff]
      %v362 = vld [vmem:[%s1 + $0x60] sm:$0xff]
      %v363 = vld [vmem:[%s1 + $0x68] sm:$0xff]
      %v364 = vld [vmem:[%s1 + $0x70] sm:$0xff]
      %v365 = vld [vmem:[%s1 + $0x78] sm:$0xff]
      %v366 = vld [vmem:[%s1 + $0x80] sm:$0xff]
      %v367 = vld [vmem:[%s1 + $0x88] sm:$0xff]
      %v368 = vld [vmem:[%s1 + $0x90] sm:$0xff]
      %v369 = vld [vmem:[%s1 + $0x98] sm:$0xff]
      %v370 = vld [vmem:[%s1 + $0xa0] sm:$0xff]
      %v371 = vld [vmem:[%s1 + $0xa8] sm:$0xff]
      %v372 = vld [vmem:[%s1 + $0xb0] sm:$0xff]
      %v373 = vld [vmem:[%s1 + $0xb8] sm:$0xff]
      %v374 = vld [vmem:[%s1 + $0xc0] sm:$0xff]
      %v375 = vld [vmem:[%s1 + $0xc8] sm:$0xff]
      %v376 = vld [vmem:[%s1 + $0xd0] sm:$0xff]
      %v377 = vld [vmem:[%s1 + $0xd8] sm:$0xff]
      %v378 = vld [vmem:[%s1 + $0xe0] sm:$0xff]
      %v379 = vld [vmem:[%s1 + $0xe8] sm:$0xff]
      %v380 = vld [vmem:[%s1 + $0xf0] sm:$0xff]
      %v381 = vld [vmem:[%s1 + $0xf8] sm:$0xff]
      %v382 = vld [vmem:[%s1 + $0x100] sm:$0xff]
      %v383 = vld [vmem:[%s1 + $0x108] sm:$0xff]
      %v384 = vld [vmem:[%s1 + $0x110] sm:$0xff]
      %v385 = vld [vmem:[%s1 + $0x118] sm:$0xff]
      %v386 = vld [vmem:[%s1 + $0x120] sm:$0xff]
      %v387 = vld [vmem:[%s1 + $0x128] sm:$0xff]
      %v388 = vld [vmem:[%s1 + $0x130] sm:$0xff]
      %v389 = vld [vmem:[%s1 + $0x138] sm:$0xff]
      %v390 = vld [vmem:[%s1 + $0x140] sm:$0xff]
      %v391 = vld [vmem:[%s1 + $0x148] sm:$0xff]
      %v392 = vld [vmem:[%s1 + $0x150] sm:$0xff]
      %v393 = vld [vmem:[%s1 + $0x158] sm:$0xff]
      %v394 = vld [vmem:[%s1 + $0x160] sm:$0xff]
      %v395 = vld [vmem:[%s1 + $0x168] sm:$0xff]
      %v396 = vld [vmem:[%s1 + $0x170] sm:$0xff]
      %v397 = vld [vmem:[%s1 + $0x178] sm:$0xff]
      %v398 = vld [vmem:[%s1 + $0x180] sm:$0xff]
      %v399 = vld [vmem:[%s1 + $0x188] sm:$0xff]
      %v400 = vld [vmem:[%s1 + $0x190] sm:$0xff]
      %v401 = vld [vmem:[%s1 + $0x198] sm:$0xff]
      %v402 = vld [vmem:[%s1 + $0x1a0] sm:$0xff]
      %v403 = vld [vmem:[%s1 + $0x1a8] sm:$0xff]
      %v404 = vld [vmem:[%s1 + $0x1b0] sm:$0xff]
      %v405 = vld [vmem:[%s1 + $0x1b8] sm:$0xff]
      %v406 = vld [vmem:[%s1 + $0x1c0] sm:$0xff]
      %v407 = vld [vmem:[%s1 + $0x1c8] sm:$0xff]
      %v408 = vld [vmem:[%s1 + $0x1d0] sm:$0xff]
      %v409 = vld [vmem:[%s1 + $0x1d8] sm:$0xff]
      %v410 = vld [vmem:[%s1 + $0x1e0] sm:$0xff]
      %v411 = vld [vmem:[%s1 + $0x1e8] sm:$0xff]
      %v412 = vld [vmem:[%s1 + $0x1f0] sm:$0xff]
      %v413 = vld [vmem:[%s1 + $0x1f8] sm:$0xff]
      %v414 = vld [vmem:[%s1 + $0x200] sm:$0xff]
      %v415 = vld [vmem:[%s1 + $0x208] sm:$0xff]
      %v416 = vld [vmem:[%s1 + $0x210] sm:$0xff]
      %v417 = vld [vmem:[%s1 + $0x218] sm:$0xff]
      %v418 = vld [vmem:[%s1 + $0x220] sm:$0xff]
      %v419 = vld [vmem:[%s1 + $0x228] sm:$0xff]
      %v420 = vld [vmem:[%s1 + $0x230] sm:$0xff]
      %v421 = vld [vmem:[%s1 + $0x238] sm:$0xff]
      %v422 = vld [vmem:[%s1 + $0x240] sm:$0xff]
      %v423 = vld [vmem:[%s1 + $0x248] sm:$0xff]
      %v424 = vld [vmem:[%s1 + $0x250] sm:$0xff]
      %v425 = vld [vmem:[%s1 + $0x258] sm:$0xff]
      %v426 = vld [vmem:[%s1 + $0x260] sm:$0xff]
      %v427 = vld [vmem:[%s1 + $0x268] sm:$0xff]
      %v428 = vld [vmem:[%s1 + $0x270] sm:$0xff]
      %v429 = vld [vmem:[%s1 + $0x278] sm:$0xff]
      %v430 = vld [vmem:[%s1 + $0x280] sm:$0xff]
      %v431 = vld [vmem:[%s1 + $0x288] sm:$0xff]
      %v432 = vld [vmem:[%s1 + $0x290] sm:$0xff]
      %v433 = vld [vmem:[%s1 + $0x298] sm:$0xff]
      %v434 = vld [vmem:[%s1 + $0x2a0] sm:$0xff]
      %v435 = vld [vmem:[%s1 + $0x2a8] sm:$0xff]
      %v436 = vld [vmem:[%s1 + $0x2b0] sm:$0xff]
      %v437 = vld [vmem:[%s1 + $0x2b8] sm:$0xff]
      %v438 = vld [vmem:[%s1 + $0x2c0] sm:$0xff]
      %v439 = vld [vmem:[%s1 + $0x2c8] sm:$0xff]
      %v440 = vld [vmem:[%s1 + $0x2d0] sm:$0xff]
      %v441 = vld [vmem:[%s1 + $0x2d8] sm:$0xff]
      %v442 = vld [vmem:[%s1 + $0x2e0] sm:$0xff]
      %v443 = vld [vmem:[%s1 + $0x2e8] sm:$0xff]
      %v444 = vld [vmem:[%s1 + $0x2f0] sm:$0xff]
      %v445 = vld [vmem:[%s1 + $0x2f8] sm:$0xff]
      %v446 = vld [vmem:[%s1 + $0x300] sm:$0xff]
      %v447 = vld [vmem:[%s1 + $0x308] sm:$0xff]
      %v448 = vld [vmem:[%s1 + $0x310] sm:$0xff]
      %v449 = vld [vmem:[%s1 + $0x318] sm:$0xff]
      %v450 = vld [vmem:[%s1 + $0x320] sm:$0xff]
      %v451 = vld [vmem:[%s1 + $0x328] sm:$0xff]
      %v452 = vld [vmem:[%s1 + $0x330] sm:$0xff]
      %v453 = vld [vmem:[%s1 + $0x338] sm:$0xff]
      %v454 = vld [vmem:[%s1 + $0x340] sm:$0xff]
      %v455 = vld [vmem:[%s1 + $0x348] sm:$0xff]
      %v456 = vld [vmem:[%s1 + $0x350] sm:$0xff]
      %v457 = vld [vmem:[%s1 + $0x358] sm:$0xff]
      %v458 = vld [vmem:[%s1 + $0x360] sm:$0xff]
      %v459 = vld [vmem:[%s1 + $0x368] sm:$0xff]
      %v460 = vld [vmem:[%s1 + $0x370] sm:$0xff]
      %v461 = vld [vmem:[%s1 + $0x378] sm:$0xff]
      %v462 = vld [vmem:[%s1 + $0x380] sm:$0xff]
      %v463 = vld [vmem:[%s1 + $0x388] sm:$0xff]
      %v464 = vld [vmem:[%s1 + $0x390] sm:$0xff]
      %v465 = vld [vmem:[%s1 + $0x398] sm:$0xff]
      %v466 = vld [vmem:[%s1 + $0x3a0] sm:$0xff]
      %v467 = vld [vmem:[%s1 + $0x3a8] sm:$0xff]
      %v468 = vld [vmem:[%s1 + $0x3b0] sm:$0xff]
      %v469 = vld [vmem:[%s1 + $0x3b8] sm:$0xff]
      %v470 = vld [vmem:[%s1 + $0x3c0] sm:$0xff]
      %v471 = vld [vmem:[%s1 + $0x3c8] sm:$0xff]
      %v472 = vld [vmem:[%s1 + $0x3d0] sm:$0xff]
      %v473 = vld [vmem:[%s1 + $0x3d8] sm:$0xff]
      %v474 = vld [vmem:[%s1 + $0x3e0] sm:$0xff]
      %v475 = vld [vmem:[%s1 + $0x3e8] sm:$0xff]
      %v476 = vld [vmem:[%s1 + $0x3f0] sm:$0xff]
      %v477 = vld [vmem:[%s1 + $0x3f8] sm:$0xff]
      %v478 = vld [vmem:[%s1 + $0x400] sm:$0xff]
      %v479 = vld [vmem:[%s1 + $0x408] sm:$0xff]
      %v480 = vld [vmem:[%s1 + $0x410] sm:$0xff]
      %v481 = vld [vmem:[%s1 + $0x418] sm:$0xff]
      %v482 = vld [vmem:[%s1 + $0x420] sm:$0xff]
      %v483 = vld [vmem:[%s1 + $0x428] sm:$0xff]
      %v484 = vld [vmem:[%s1 + $0x430] sm:$0xff]
      %v485 = vld [vmem:[%s1 + $0x438] sm:$0xff]
      %v486 = vld [vmem:[%s1 + $0x440] sm:$0xff]
      %v487 = vld [vmem:[%s1 + $0x448] sm:$0xff]
      %v488 = vld [vmem:[%s1 + $0x450] sm:$0xff]
      %v489 = vld [vmem:[%s1 + $0x458] sm:$0xff]
      %v490 = vld [vmem:[%s1 + $0x460] sm:$0xff]
      %v491 = vld [vmem:[%s1 + $0x468] sm:$0xff]
      %v492 = vld [vmem:[%s1 + $0x470] sm:$0xff]
      %v493 = vld [vmem:[%s1 + $0x478] sm:$0xff]
      %v494 = vld [vmem:[%s2] sm:$0x1]
      %v496 = vlaneseq
      %v497 = vshrl.u32 %v496, 7
      %v498 = vsub.s32 0, %v497
      %v499 = vrot.slane %v494, %v498
      %501 = vmatprep.subr.mxu0 0.0
      %502 = vmatpush1.msra.mxu0 %v350
      %503 = vmatprep.subr.mxu0 0.0
      %504 = vmatpush1.msra.mxu0 %v351
      %505 = vmatprep.subr.mxu0 0.0
      %506 = vmatpush1.msra.mxu0 %v352
      %507 = vmatprep.subr.mxu0 0.0
      %508 = vmatpush1.msra.mxu0 %v353
      %509 = vmatprep.subr.mxu0 0.0
      %510 = vmatpush1.msra.mxu0 %v354
      %511 = vmatprep.subr.mxu0 0.0
      %512 = vmatpush1.msra.mxu0 %v355
      %513 = vmatprep.subr.mxu0 0.0
      %514 = vmatpush1.msra.mxu0 %v356
      %515 = vmatprep.subr.mxu0 0.0
      %516 = vmatpush1.msra.mxu0 %v357
      %517 = vmatprep.subr.mxu0 0.0
      %518 = vmatpush1.msra.mxu0 %v358
      %519 = vmatprep.subr.mxu0 0.0
      %520 = vmatpush1.msra.mxu0 %v359
      %521 = vmatprep.subr.mxu0 0.0
      %522 = vmatpush1.msra.mxu0 %v360
      %523 = vmatprep.subr.mxu0 0.0
      %524 = vmatpush1.msra.mxu0 %v361
      %525 = vmatprep.subr.mxu0 0.0
      %526 = vmatpush1.msra.mxu0 %v362
      %527 = vmatprep.subr.mxu0 0.0
      %528 = vmatpush1.msra.mxu0 %v363
      %529 = vmatprep.subr.mxu0 0.0
      %530 = vmatpush1.msra.mxu0 %v364
      %531 = vmatprep.subr.mxu0 0.0
      %532 = vmatpush1.msra.mxu0 %v365
      %533 = vmatprep.subr.mxu0 0.0
      %534 = vmatpush1.msra.mxu0 %v366
      %535 = vmatprep.subr.mxu0 0.0
      %536 = vmatpush1.msra.mxu0 %v367
      %537 = vmatprep.subr.mxu0 0.0
      %538 = vmatpush1.msra.mxu0 %v368
      %539 = vmatprep.subr.mxu0 0.0
      %540 = vmatpush1.msra.mxu0 %v369
      %541 = vmatprep.subr.mxu0 0.0
      %542 = vmatpush1.msra.mxu0 %v370
      %543 = vmatprep.subr.mxu0 0.0
      %544 = vmatpush1.msra.mxu0 %v371
      %545 = vmatprep.subr.mxu0 0.0
      %546 = vmatpush1.msra.mxu0 %v372
      %547 = vmatprep.subr.mxu0 0.0
      %548 = vmatpush1.msra.mxu0 %v373
      %549 = vmatprep.subr.mxu0 0.0
      %550 = vmatpush1.msra.mxu0 %v374
      %551 = vmatprep.subr.mxu0 0.0
      %552 = vmatpush1.msra.mxu0 %v375
      %553 = vmatprep.subr.mxu0 0.0
      %554 = vmatpush1.msra.mxu0 %v376
      %555 = vmatprep.subr.mxu0 0.0
      %556 = vmatpush1.msra.mxu0 %v377
      %557 = vmatprep.subr.mxu0 0.0
      %558 = vmatpush1.msra.mxu0 %v378
      %559 = vmatprep.subr.mxu0 0.0
      %560 = vmatpush1.msra.mxu0 %v379
      %561 = vmatprep.subr.mxu0 0.0
      %562 = vmatpush1.msra.mxu0 %v380
      %563 = vmatprep.subr.mxu0 0.0
      %564 = vmatpush1.msra.mxu0 %v381
      %565 = vmatprep.mubr.f32.mxu0 %v216
      %566 = vmatmul.mubr.f32.gmra.mrb[0].mxu0 %v200
      %v567 = vpop.f32.mrb[0].mxu0
      %v568 = vadd.f32 %v499, %v567
      %v569 = vpop.f32.mrb[0].mxu0
      %570 = vmatprep.mubr.f32.mxu0 %v217
      %571 = vmatmul.mubr.f32.gmra.mrb[0].mxu0 %v201
      %v572 = vpop.f32.mrb[0].mxu0
      %v573 = vadd.f32 %v499, %v572
      %v574 = vpop.f32.mrb[0].mxu0
      %575 = vmatprep.mubr.f32.mxu0 %v218
      %576 = vmatmul.mubr.f32.gmra.mrb[0].mxu0 %v202
      %v577 = vpop.f32.mrb[0].mxu0
      %v578 = vadd.f32 %v499, %v577
      %v579 = vpop.f32.mrb[0].mxu0
      %580 = vmatprep.mubr.f32.mxu0 %v219
      %581 = vmatmul.mubr.f32.gmra.mrb[0].mxu0 %v203
      %v582 = vpop.f32.mrb[0].mxu0
      %v583 = vadd.f32 %v499, %v582
      %v584 = vpop.f32.mrb[0].mxu0
      %585 = vmatprep.mubr.f32.mxu0 %v220
      %586 = vmatmul.mubr.f32.gmra.mrb[0].mxu0 %v204
      %v587 = vpop.f32.mrb[0].mxu0
      %v588 = vadd.f32 %v499, %v587
      %v589 = vpop.f32.mrb[0].mxu0
      %590 = vmatprep.mubr.f32.mxu0 %v221
      %591 = vmatmul.mubr.f32.gmra.mrb[0].mxu0 %v205
      %v592 = vpop.f32.mrb[0].mxu0
      %v593 = vadd.f32 %v499, %v592
      %v594 = vpop.f32.mrb[0].mxu0
      %595 = vmatprep.mubr.f32.mxu0 %v222
      %596 = vmatmul.mubr.f32.gmra.mrb[0].mxu0 %v206
      %v597 = vpop.f32.mrb[0].mxu0
      %v598 = vadd.f32 %v499, %v597
      %v599 = vpop.f32.mrb[0].mxu0
      %600 = vmatprep.mubr.f32.mxu0 %v223
      %601 = vmatmul.mubr.f32.gmra.mrb[0].mxu0 %v207
      %v602 = vpop.f32.mrb[0].mxu0
      %v603 = vadd.f32 %v499, %v602
      %v604 = vpop.f32.mrb[0].mxu0
      %605 = vmatprep.mubr.f32.mxu0 %v224
      %606 = vmatmul.mubr.f32.gmra.mrb[0].mxu0 %v208
      %v607 = vpop.f32.mrb[0].mxu0
      %v608 = vadd.f32 %v499, %v607
      %v609 = vpop.f32.mrb[0].mxu0
      %610 = vmatprep.mubr.f32.mxu0 %v225
      %611 = vmatmul.mubr.f32.gmra.mrb[0].mxu0 %v209
      %v612 = vpop.f32.mrb[0].mxu0
      %v613 = vadd.f32 %v499, %v612
      %v614 = vpop.f32.mrb[0].mxu0
      %615 = vmatprep.mubr.f32.mxu0 %v226
      %616 = vmatmul.mubr.f32.gmra.mrb[0].mxu0 %v210
      %v617 = vpop.f32.mrb[0].mxu0
      %v618 = vadd.f32 %v499, %v617
      %v619 = vpop.f32.mrb[0].mxu0
      %620 = vmatprep.mubr.f32.mxu0 %v227
      %621 = vmatmul.mubr.f32.gmra.mrb[0].mxu0 %v211
      %v622 = vpop.f32.mrb[0].mxu0
      %v623 = vadd.f32 %v499, %v622
      %v624 = vpop.f32.mrb[0].mxu0
      %625 = vmatprep.mubr.f32.mxu0 %v228
      %626 = vmatmul.mubr.f32.gmra.mrb[0].mxu0 %v212
      %v627 = vpop.f32.mrb[0].mxu0
      %v628 = vadd.f32 %v499, %v627
      %v629 = vpop.f32.mrb[0].mxu0
      %630 = vmatprep.mubr.f32.mxu0 %v229
      %631 = vmatmul.mubr.f32.gmra.mrb[0].mxu0 %v213
      %v632 = vpop.f32.mrb[0].mxu0
      %v633 = vadd.f32 %v499, %v632
      %v634 = vpop.f32.mrb[0].mxu0
      %635 = vmatprep.mubr.f32.mxu0 %v230
      %636 = vmatmul.mubr.f32.gmra.mrb[0].mxu0 %v214
      %v637 = vpop.f32.mrb[0].mxu0
      %v638 = vadd.f32 %v499, %v637
      %v639 = vpop.f32.mrb[0].mxu0
      %640 = vmatprep.mubr.f32.mxu0 %v231
      %641 = vmatmul.mubr.f32.gmra.mrb[0].mxu0 %v215
      %v642 = vpop.f32.mrb[0].mxu0
      %v643 = vadd.f32 %v499, %v642
      %v644 = vpop.f32.mrb[0].mxu0
      %645 = vdwg.mxu0
      %646 = vmatprep.subr.mxu0 0.0
      %647 = vmatpush1.msra.mxu0 %v382
      %648 = vmatprep.subr.mxu0 0.0
      %649 = vmatpush1.msra.mxu0 %v383
      %650 = vmatprep.subr.mxu0 0.0
      %651 = vmatpush1.msra.mxu0 %v384
      %652 = vmatprep.subr.mxu0 0.0
      %653 = vmatpush1.msra.mxu0 %v385
      %654 = vmatprep.subr.mxu0 0.0
      %655 = vmatpush1.msra.mxu0 %v386
      %656 = vmatprep.subr.mxu0 0.0
      %657 = vmatpush1.msra.mxu0 %v387
      %658 = vmatprep.subr.mxu0 0.0
      %659 = vmatpush1.msra.mxu0 %v388
      %660 = vmatprep.subr.mxu0 0.0
      %661 = vmatpush1.msra.mxu0 %v389
      %662 = vmatprep.subr.mxu0 0.0
      %663 = vmatpush1.msra.mxu0 %v390
      %664 = vmatprep.subr.mxu0 0.0
      %665 = vmatpush1.msra.mxu0 %v391
      %666 = vmatprep.subr.mxu0 0.0
      %667 = vmatpush1.msra.mxu0 %v392
      %668 = vmatprep.subr.mxu0 0.0
      %669 = vmatpush1.msra.mxu0 %v393
      %670 = vmatprep.subr.mxu0 0.0
      %671 = vmatpush1.msra.mxu0 %v394
      %672 = vmatprep.subr.mxu0 0.0
      %673 = vmatpush1.msra.mxu0 %v395
      %674 = vmatprep.subr.mxu0 0.0
      %675 = vmatpush1.msra.mxu0 %v396
      %676 = vmatprep.subr.mxu0 0.0
      %677 = vmatpush1.msra.mxu0 %v397
      %678 = vmatprep.subr.mxu0 0.0
      %679 = vmatpush1.msra.mxu0 %v398
      %680 = vmatprep.subr.mxu0 0.0
      %681 = vmatpush1.msra.mxu0 %v399
      %682 = vmatprep.subr.mxu0 0.0
      %683 = vmatpush1.msra.mxu0 %v400
      %684 = vmatprep.subr.mxu0 0.0
      %685 = vmatpush1.msra.mxu0 %v401
      %686 = vmatprep.subr.mxu0 0.0
      %687 = vmatpush1.msra.mxu0 %v402
      %688 = vmatprep.subr.mxu0 0.0
      %689 = vmatpush1.msra.mxu0 %v403
      %690 = vmatprep.subr.mxu0 0.0
      %691 = vmatpush1.msra.mxu0 %v404
      %692 = vmatprep.subr.mxu0 0.0
      %693 = vmatpush1.msra.mxu0 %v405
      %694 = vmatprep.subr.mxu0 0.0
      %695 = vmatpush1.msra.mxu0 %v406
      %696 = vmatprep.subr.mxu0 0.0
      %697 = vmatpush1.msra.mxu0 %v407
      %698 = vmatprep.subr.mxu0 0.0
      %699 = vmatpush1.msra.mxu0 %v408
      %700 = vmatprep.subr.mxu0 0.0
      %701 = vmatpush1.msra.mxu0 %v409
      %702 = vmatprep.subr.mxu0 0.0
      %703 = vmatpush1.msra.mxu0 %v410
      %704 = vmatprep.subr.mxu0 0.0
      %705 = vmatpush1.msra.mxu0 %v411
      %706 = vmatprep.subr.mxu0 0.0
      %707 = vmatpush1.msra.mxu0 %v412
      %708 = vmatprep.subr.mxu0 0.0
      %709 = vmatpush1.msra.mxu0 %v413
      %710 = vmatprep.mubr.f32.mxu0 %v251
      %711 = vmatmul.mubr.f32.gmra.mrb[0].mxu0 %v232
      %v712 = vpop.f32.mrb[0].mxu0
      %v713 = vadd.f32 %v568, %v712
      %v714 = vpop.f32.mrb[0].mxu0
      %715 = vmatprep.mubr.f32.mxu0 %v252
      %716 = vmatmul.mubr.f32.gmra.mrb[0].mxu0 %v233
      %v717 = vpop.f32.mrb[0].mxu0
      %v718 = vadd.f32 %v573, %v717
      %v719 = vpop.f32.mrb[0].mxu0
      %720 = vmatprep.mubr.f32.mxu0 %v253
      %721 = vmatmul.mubr.f32.gmra.mrb[0].mxu0 %v234
      %v722 = vpop.f32.mrb[0].mxu0
      %v723 = vadd.f32 %v578, %v722
      %v724 = vpop.f32.mrb[0].mxu0
      %725 = vmatprep.mubr.f32.mxu0 %v254
      %726 = vmatmul.mubr.f32.gmra.mrb[0].mxu0 %v235
      %v727 = vpop.f32.mrb[0].mxu0
      %v728 = vadd.f32 %v583, %v727
      %v729 = vpop.f32.mrb[0].mxu0
      %730 = vmatprep.mubr.f32.mxu0 %v255
      %731 = vmatmul.mubr.f32.gmra.mrb[0].mxu0 %v236
      %v732 = vpop.f32.mrb[0].mxu0
      %v733 = vadd.f32 %v588, %v732
      %v734 = vpop.f32.mrb[0].mxu0
      %735 = vmatprep.mubr.f32.mxu0 %v256
      %736 = vmatmul.mubr.f32.gmra.mrb[0].mxu0 %v237
      %v737 = vpop.f32.mrb[0].mxu0
      %v738 = vadd.f32 %v593, %v737
      %v739 = vpop.f32.mrb[0].mxu0
      %740 = vmatprep.mubr.f32.mxu0 %v257
      %741 = vmatmul.mubr.f32.gmra.mrb[0].mxu0 %v238
      %v742 = vpop.f32.mrb[0].mxu0
      %v743 = vadd.f32 %v598, %v742
      %v744 = vpop.f32.mrb[0].mxu0
      %745 = vmatprep.mubr.f32.mxu0 %v258
      %746 = vmatmul.mubr.f32.gmra.mrb[0].mxu0 %v239
      %v747 = vpop.f32.mrb[0].mxu0
      %v748 = vadd.f32 %v603, %v747
      %v749 = vpop.f32.mrb[0].mxu0
      %750 = vmatprep.mubr.f32.mxu0 %v259
      %751 = vmatmul.mubr.f32.gmra.mrb[0].mxu0 %v240
      %v752 = vpop.f32.mrb[0].mxu0
      %v753 = vadd.f32 %v608, %v752
      %v754 = vpop.f32.mrb[0].mxu0
      %755 = vmatprep.mubr.f32.mxu0 %v260
      %756 = vmatmul.mubr.f32.gmra.mrb[0].mxu0 %v241
      %v757 = vpop.f32.mrb[0].mxu0
      %v758 = vadd.f32 %v613, %v757
      %v759 = vpop.f32.mrb[0].mxu0
      %760 = vmatprep.mubr.f32.mxu0 %v261
      %761 = vmatmul.mubr.f32.gmra.mrb[0].mxu0 %v242
      %v762 = vpop.f32.mrb[0].mxu0
      %v763 = vadd.f32 %v618, %v762
      %v764 = vpop.f32.mrb[0].mxu0
      %765 = vmatprep.mubr.f32.mxu0 %v262
      %766 = vmatmul.mubr.f32.gmra.mrb[0].mxu0 %v243
      %v767 = vpop.f32.mrb[0].mxu0
      %v768 = vadd.f32 %v623, %v767
      %v769 = vpop.f32.mrb[0].mxu0
      %770 = vmatprep.mubr.f32.mxu0 %v263
      %771 = vmatmul.mubr.f32.gmra.mrb[0].mxu0 %v244
      %v772 = vpop.f32.mrb[0].mxu0
      %v773 = vadd.f32 %v628, %v772
      %v774 = vpop.f32.mrb[0].mxu0
      %775 = vmatprep.mubr.f32.mxu0 %v264
      %776 = vmatmul.mubr.f32.gmra.mrb[0].mxu0 %v245
      %v777 = vpop.f32.mrb[0].mxu0
      %v778 = vadd.f32 %v633, %v777
      %v779 = vpop.f32.mrb[0].mxu0
      %780 = vmatprep.mubr.f32.mxu0 %v265
      %781 = vmatmul.mubr.f32.gmra.mrb[0].mxu0 %v246
      %v782 = vpop.f32.mrb[0].mxu0
      %v783 = vadd.f32 %v638, %v782
      %v784 = vpop.f32.mrb[0].mxu0
      %785 = vmatprep.mubr.f32.mxu0 %v266
      %786 = vmatmul.mubr.f32.gmra.mrb[0].mxu0 %v247
      %v787 = vpop.f32.mrb[0].mxu0
      %v788 = vadd.f32 %v643, %v787
      %v789 = vpop.f32.mrb[0].mxu0
      %790 = vdwg.mxu0
      %791 = vmatprep.subr.mxu0 0.0
      %792 = vmatpush1.msra.mxu0 %v414
      %793 = vmatprep.subr.mxu0 0.0
      %794 = vmatpush1.msra.mxu0 %v415
      %795 = vmatprep.subr.mxu0 0.0
      %796 = vmatpush1.msra.mxu0 %v416
      %797 = vmatprep.subr.mxu0 0.0
      %798 = vmatpush1.msra.mxu0 %v417
      %799 = vmatprep.subr.mxu0 0.0
      %800 = vmatpush1.msra.mxu0 %v418
      %801 = vmatprep.subr.mxu0 0.0
      %802 = vmatpush1.msra.mxu0 %v419
      %803 = vmatprep.subr.mxu0 0.0
      %804 = vmatpush1.msra.mxu0 %v420
      %805 = vmatprep.subr.mxu0 0.0
      %806 = vmatpush1.msra.mxu0 %v421
      %807 = vmatprep.subr.mxu0 0.0
      %808 = vmatpush1.msra.mxu0 %v422
      %809 = vmatprep.subr.mxu0 0.0
      %810 = vmatpush1.msra.mxu0 %v423
      %811 = vmatprep.subr.mxu0 0.0
      %812 = vmatpush1.msra.mxu0 %v424
      %813 = vmatprep.subr.mxu0 0.0
      %814 = vmatpush1.msra.mxu0 %v425
      %815 = vmatprep.subr.mxu0 0.0
      %816 = vmatpush1.msra.mxu0 %v426
      %817 = vmatprep.subr.mxu0 0.0
      %818 = vmatpush1.msra.mxu0 %v427
      %819 = vmatprep.subr.mxu0 0.0
      %820 = vmatpush1.msra.mxu0 %v428
      %821 = vmatprep.subr.mxu0 0.0
      %822 = vmatpush1.msra.mxu0 %v429
      %823 = vmatprep.subr.mxu0 0.0
      %824 = vmatpush1.msra.mxu0 %v430
      %825 = vmatprep.subr.mxu0 0.0
      %826 = vmatpush1.msra.mxu0 %v431
      %827 = vmatprep.subr.mxu0 0.0
      %828 = vmatpush1.msra.mxu0 %v432
      %829 = vmatprep.subr.mxu0 0.0
      %830 = vmatpush1.msra.mxu0 %v433
      %831 = vmatprep.subr.mxu0 0.0
      %832 = vmatpush1.msra.mxu0 %v434
      %833 = vmatprep.subr.mxu0 0.0
      %834 = vmatpush1.msra.mxu0 %v435
      %835 = vmatprep.subr.mxu0 0.0
      %836 = vmatpush1.msra.mxu0 %v436
      %837 = vmatprep.subr.mxu0 0.0
      %838 = vmatpush1.msra.mxu0 %v437
      %839 = vmatprep.subr.mxu0 0.0
      %840 = vmatpush1.msra.mxu0 %v438
      %841 = vmatprep.subr.mxu0 0.0
      %842 = vmatpush1.msra.mxu0 %v439
      %843 = vmatprep.subr.mxu0 0.0
      %844 = vmatpush1.msra.mxu0 %v440
      %845 = vmatprep.subr.mxu0 0.0
      %846 = vmatpush1.msra.mxu0 %v441
      %847 = vmatprep.subr.mxu0 0.0
      %848 = vmatpush1.msra.mxu0 %v442
      %849 = vmatprep.subr.mxu0 0.0
      %850 = vmatpush1.msra.mxu0 %v443
      %851 = vmatprep.subr.mxu0 0.0
      %852 = vmatpush1.msra.mxu0 %v444
      %853 = vmatprep.subr.mxu0 0.0
      %854 = vmatpush1.msra.mxu0 %v445
      %855 = vmatprep.mubr.f32.mxu0 %v283
      %856 = vmatmul.mubr.f32.gmra.mrb[0].mxu0 %v267
      %v857 = vpop.f32.mrb[0].mxu0
      %v858 = vadd.f32 %v713, %v857
      %v859 = vpop.f32.mrb[0].mxu0
      %860 = vmatprep.mubr.f32.mxu0 %v284
      %861 = vmatmul.mubr.f32.gmra.mrb[0].mxu0 %v268
      %v862 = vpop.f32.mrb[0].mxu0
      %v863 = vadd.f32 %v718, %v862
      %v864 = vpop.f32.mrb[0].mxu0
      %865 = vmatprep.mubr.f32.mxu0 %v285
      %866 = vmatmul.mubr.f32.gmra.mrb[0].mxu0 %v269
      %v867 = vpop.f32.mrb[0].mxu0
      %v868 = vadd.f32 %v723, %v867
      %v869 = vpop.f32.mrb[0].mxu0
      %870 = vmatprep.mubr.f32.mxu0 %v286
      %871 = vmatmul.mubr.f32.gmra.mrb[0].mxu0 %v270
      %v872 = vpop.f32.mrb[0].mxu0
      %v873 = vadd.f32 %v728, %v872
      %v874 = vpop.f32.mrb[0].mxu0
      %875 = vmatprep.mubr.f32.mxu0 %v287
      %876 = vmatmul.mubr.f32.gmra.mrb[0].mxu0 %v271
      %v877 = vpop.f32.mrb[0].mxu0
      %v878 = vadd.f32 %v733, %v877
      %v879 = vpop.f32.mrb[0].mxu0
      %880 = vmatprep.mubr.f32.mxu0 %v288
      %881 = vmatmul.mubr.f32.gmra.mrb[0].mxu0 %v272
      %v882 = vpop.f32.mrb[0].mxu0
      %v883 = vadd.f32 %v738, %v882
      %v884 = vpop.f32.mrb[0].mxu0
      %885 = vmatprep.mubr.f32.mxu0 %v289
      %886 = vmatmul.mubr.f32.gmra.mrb[0].mxu0 %v273
      %v887 = vpop.f32.mrb[0].mxu0
      %v888 = vadd.f32 %v743, %v887
      %v889 = vpop.f32.mrb[0].mxu0
      %890 = vmatprep.mubr.f32.mxu0 %v290
      %891 = vmatmul.mubr.f32.gmra.mrb[0].mxu0 %v274
      %v892 = vpop.f32.mrb[0].mxu0
      %v893 = vadd.f32 %v748, %v892
      %v894 = vpop.f32.mrb[0].mxu0
      %895 = vmatprep.mubr.f32.mxu0 %v291
      %896 = vmatmul.mubr.f32.gmra.mrb[0].mxu0 %v275
      %v897 = vpop.f32.mrb[0].mxu0
      %v898 = vadd.f32 %v753, %v897
      %v899 = vpop.f32.mrb[0].mxu0
      %900 = vmatprep.mubr.f32.mxu0 %v292
      %901 = vmatmul.mubr.f32.gmra.mrb[0].mxu0 %v276
      %v902 = vpop.f32.mrb[0].mxu0
      %v903 = vadd.f32 %v758, %v902
      %v904 = vpop.f32.mrb[0].mxu0
      %905 = vmatprep.mubr.f32.mxu0 %v293
      %906 = vmatmul.mubr.f32.gmra.mrb[0].mxu0 %v277
      %v907 = vpop.f32.mrb[0].mxu0
      %v908 = vadd.f32 %v763, %v907
      %v909 = vpop.f32.mrb[0].mxu0
      %910 = vmatprep.mubr.f32.mxu0 %v294
      %911 = vmatmul.mubr.f32.gmra.mrb[0].mxu0 %v278
      %v912 = vpop.f32.mrb[0].mxu0
      %v913 = vadd.f32 %v768, %v912
      %v914 = vpop.f32.mrb[0].mxu0
      %915 = vmatprep.mubr.f32.mxu0 %v295
      %916 = vmatmul.mubr.f32.gmra.mrb[0].mxu0 %v279
      %v917 = vpop.f32.mrb[0].mxu0
      %v918 = vadd.f32 %v773, %v917
      %v919 = vpop.f32.mrb[0].mxu0
      %920 = vmatprep.mubr.f32.mxu0 %v296
      %921 = vmatmul.mubr.f32.gmra.mrb[0].mxu0 %v280
      %v922 = vpop.f32.mrb[0].mxu0
      %v923 = vadd.f32 %v778, %v922
      %v924 = vpop.f32.mrb[0].mxu0
      %925 = vmatprep.mubr.f32.mxu0 %v297
      %926 = vmatmul.mubr.f32.gmra.mrb[0].mxu0 %v281
      %v927 = vpop.f32.mrb[0].mxu0
      %v928 = vadd.f32 %v783, %v927
      %v929 = vpop.f32.mrb[0].mxu0
      %930 = vmatprep.mubr.f32.mxu0 %v298
      %931 = vmatmul.mubr.f32.gmra.mrb[0].mxu0 %v282
      %v932 = vpop.f32.mrb[0].mxu0
      %v933 = vadd.f32 %v788, %v932
      %v934 = vpop.f32.mrb[0].mxu0
      %935 = vdwg.mxu0
      %936 = vmatprep.subr.mxu0 0.0
      %937 = vmatpush1.msra.mxu0 %v446
      %938 = vmatprep.subr.mxu0 0.0
      %939 = vmatpush1.msra.mxu0 %v447
      %940 = vmatprep.subr.mxu0 0.0
      %941 = vmatpush1.msra.mxu0 %v448
      %942 = vmatprep.subr.mxu0 0.0
      %943 = vmatpush1.msra.mxu0 %v449
      %944 = vmatprep.subr.mxu0 0.0
      %945 = vmatpush1.msra.mxu0 %v450
      %946 = vmatprep.subr.mxu0 0.0
      %947 = vmatpush1.msra.mxu0 %v451
      %948 = vmatprep.subr.mxu0 0.0
      %949 = vmatpush1.msra.mxu0 %v452
      %950 = vmatprep.subr.mxu0 0.0
      %951 = vmatpush1.msra.mxu0 %v453
      %952 = vmatprep.subr.mxu0 0.0
      %953 = vmatpush1.msra.mxu0 %v454
      %954 = vmatprep.subr.mxu0 0.0
      %955 = vmatpush1.msra.mxu0 %v455
      %956 = vmatprep.subr.mxu0 0.0
      %957 = vmatpush1.msra.mxu0 %v456
      %958 = vmatprep.subr.mxu0 0.0
      %959 = vmatpush1.msra.mxu0 %v457
      %960 = vmatprep.subr.mxu0 0.0
      %961 = vmatpush1.msra.mxu0 %v458
      %962 = vmatprep.subr.mxu0 0.0
      %963 = vmatpush1.msra.mxu0 %v459
      %964 = vmatprep.subr.mxu0 0.0
      %965 = vmatpush1.msra.mxu0 %v460
      %966 = vmatprep.subr.mxu0 0.0
      %967 = vmatpush1.msra.mxu0 %v461
      %968 = vmatprep.subr.mxu0 0.0
      %969 = vmatpush1.msra.mxu0 %v462
      %970 = vmatprep.subr.mxu0 0.0
      %971 = vmatpush1.msra.mxu0 %v463
      %972 = vmatprep.subr.mxu0 0.0
      %973 = vmatpush1.msra.mxu0 %v464
      %974 = vmatprep.subr.mxu0 0.0
      %975 = vmatpush1.msra.mxu0 %v465
      %976 = vmatprep.subr.mxu0 0.0
      %977 = vmatpush1.msra.mxu0 %v466
      %978 = vmatprep.subr.mxu0 0.0
      %979 = vmatpush1.msra.mxu0 %v467
      %980 = vmatprep.subr.mxu0 0.0
      %981 = vmatpush1.msra.mxu0 %v468
      %982 = vmatprep.subr.mxu0 0.0
      %983 = vmatpush1.msra.mxu0 %v469
      %984 = vmatprep.subr.mxu0 0.0
      %985 = vmatpush1.msra.mxu0 %v470
      %986 = vmatprep.subr.mxu0 0.0
      %987 = vmatpush1.msra.mxu0 %v471
      %988 = vmatprep.subr.mxu0 0.0
      %989 = vmatpush1.msra.mxu0 %v472
      %990 = vmatprep.subr.mxu0 0.0
      %991 = vmatpush1.msra.mxu0 %v473
      %992 = vmatprep.subr.mxu0 0.0
      %993 = vmatpush1.msra.mxu0 %v474
      %994 = vmatprep.subr.mxu0 0.0
      %995 = vmatpush1.msra.mxu0 %v475
      %996 = vmatprep.subr.mxu0 0.0
      %997 = vmatpush1.msra.mxu0 %v476
      %998 = vmatprep.subr.mxu0 0.0
      %999 = vmatpush1.msra.mxu0 %v477
      %1000 = vmatprep.mubr.f32.mxu0 %v318
      %1001 = vmatmul.mubr.f32.gmra.mrb[0].mxu0 %v302
      %v1002 = vpop.f32.mrb[0].mxu0
      %v1003 = vadd.f32 %v858, %v1002
      %v1004 = vpop.f32.mrb[0].mxu0
      %1005 = vmatprep.mubr.f32.mxu0 %v319
      %1006 = vmatmul.mubr.f32.gmra.mrb[0].mxu0 %v303
      %v1007 = vpop.f32.mrb[0].mxu0
      %v1008 = vadd.f32 %v863, %v1007
      %v1009 = vpop.f32.mrb[0].mxu0
      %1010 = vmatprep.mubr.f32.mxu0 %v320
      %1011 = vmatmul.mubr.f32.gmra.mrb[0].mxu0 %v304
      %v1012 = vpop.f32.mrb[0].mxu0
      %v1013 = vadd.f32 %v868, %v1012
      %v1014 = vpop.f32.mrb[0].mxu0
      %1015 = vmatprep.mubr.f32.mxu0 %v321
      %1016 = vmatmul.mubr.f32.gmra.mrb[0].mxu0 %v305
      %v1017 = vpop.f32.mrb[0].mxu0
      %v1018 = vadd.f32 %v873, %v1017
      %v1019 = vpop.f32.mrb[0].mxu0
      %1020 = vmatprep.mubr.f32.mxu0 %v322
      %1021 = vmatmul.mubr.f32.gmra.mrb[0].mxu0 %v306
      %v1022 = vpop.f32.mrb[0].mxu0
      %v1023 = vadd.f32 %v878, %v1022
      %v1024 = vpop.f32.mrb[0].mxu0
      %1025 = vmatprep.mubr.f32.mxu0 %v323
      %1026 = vmatmul.mubr.f32.gmra.mrb[0].mxu0 %v307
      %v1027 = vpop.f32.mrb[0].mxu0
      %v1028 = vadd.f32 %v883, %v1027
      %v1029 = vpop.f32.mrb[0].mxu0
      %1030 = vmatprep.mubr.f32.mxu0 %v324
      %1031 = vmatmul.mubr.f32.gmra.mrb[0].mxu0 %v308
      %v1032 = vpop.f32.mrb[0].mxu0
      %v1033 = vadd.f32 %v888, %v1032
      %v1034 = vpop.f32.mrb[0].mxu0
      %1035 = vmatprep.mubr.f32.mxu0 %v325
      %1036 = vmatmul.mubr.f32.gmra.mrb[0].mxu0 %v309
      %v1037 = vpop.f32.mrb[0].mxu0
      %v1038 = vadd.f32 %v893, %v1037
      %v1039 = vpop.f32.mrb[0].mxu0
      %1040 = vmatprep.mubr.f32.mxu0 %v326
      %1041 = vmatmul.mubr.f32.gmra.mrb[0].mxu0 %v310
      %v1042 = vpop.f32.mrb[0].mxu0
      %v1043 = vadd.f32 %v898, %v1042
      %v1044 = vpop.f32.mrb[0].mxu0
      %1045 = vmatprep.mubr.f32.mxu0 %v327
      %1046 = vmatmul.mubr.f32.gmra.mrb[0].mxu0 %v311
      %v1047 = vpop.f32.mrb[0].mxu0
      %v1048 = vadd.f32 %v903, %v1047
      %v1049 = vpop.f32.mrb[0].mxu0
      %1050 = vmatprep.mubr.f32.mxu0 %v328
      %1051 = vmatmul.mubr.f32.gmra.mrb[0].mxu0 %v312
      %v1052 = vpop.f32.mrb[0].mxu0
      %v1053 = vadd.f32 %v908, %v1052
      %v1054 = vpop.f32.mrb[0].mxu0
      %1055 = vmatprep.mubr.f32.mxu0 %v329
      %1056 = vmatmul.mubr.f32.gmra.mrb[0].mxu0 %v313
      %v1057 = vpop.f32.mrb[0].mxu0
      %v1058 = vadd.f32 %v913, %v1057
      %v1059 = vpop.f32.mrb[0].mxu0
      %1060 = vmatprep.mubr.f32.mxu0 %v330
      %1061 = vmatmul.mubr.f32.gmra.mrb[0].mxu0 %v314
      %v1062 = vpop.f32.mrb[0].mxu0
      %v1063 = vadd.f32 %v918, %v1062
      %v1064 = vpop.f32.mrb[0].mxu0
      %1065 = vmatprep.mubr.f32.mxu0 %v331
      %1066 = vmatmul.mubr.f32.gmra.mrb[0].mxu0 %v315
      %v1067 = vpop.f32.mrb[0].mxu0
      %v1068 = vadd.f32 %v923, %v1067
      %v1069 = vpop.f32.mrb[0].mxu0
      %1070 = vmatprep.mubr.f32.mxu0 %v332
      %1071 = vmatmul.mubr.f32.gmra.mrb[0].mxu0 %v316
      %v1072 = vpop.f32.mrb[0].mxu0
      %v1073 = vadd.f32 %v928, %v1072
      %v1074 = vpop.f32.mrb[0].mxu0
      %1075 = vmatprep.mubr.f32.mxu0 %v333
      %1076 = vmatmul.mubr.f32.gmra.mrb[0].mxu0 %v317
      %v1077 = vpop.f32.mrb[0].mxu0
      %v1078 = vadd.f32 %v933, %v1077
      %v1079 = vpop.f32.mrb[0].mxu0
      %1080 = vdwg.mxu0
      %1081 = vmatprep.subr.mxu0 0.0
      %1082 = vmatpush1.msra.mxu0 %v478
      %1083 = vmatprep.subr.mxu0 0.0
      %1084 = vmatpush1.msra.mxu0 %v479
      %1085 = vmatprep.subr.mxu0 0.0
      %1086 = vmatpush1.msra.mxu0 %v480
      %1087 = vmatprep.subr.mxu0 0.0
      %1088 = vmatpush1.msra.mxu0 %v481
      %1089 = vmatprep.subr.mxu0 0.0
      %1090 = vmatpush1.msra.mxu0 %v482
      %1091 = vmatprep.subr.mxu0 0.0
      %1092 = vmatpush1.msra.mxu0 %v483
      %1093 = vmatprep.subr.mxu0 0.0
      %1094 = vmatpush1.msra.mxu0 %v484
      %1095 = vmatprep.subr.mxu0 0.0
      %1096 = vmatpush1.msra.mxu0 %v485
      %1097 = vmatprep.subr.mxu0 0.0
      %1098 = vmatpush1.msra.mxu0 %v486
      %1099 = vmatprep.subr.mxu0 0.0
      %1100 = vmatpush1.msra.mxu0 %v487
      %1101 = vmatprep.subr.mxu0 0.0
      %1102 = vmatpush1.msra.mxu0 %v488
      %1103 = vmatprep.subr.mxu0 0.0
      %1104 = vmatpush1.msra.mxu0 %v489
      %1105 = vmatprep.subr.mxu0 0.0
      %1106 = vmatpush1.msra.mxu0 %v490
      %1107 = vmatprep.subr.mxu0 0.0
      %1108 = vmatpush1.msra.mxu0 %v491
      %1109 = vmatprep.subr.mxu0 0.0
      %1110 = vmatpush1.msra.mxu0 %v492
      %1111 = vmatprep.subr.mxu0 0.0
      %1112 = vmatpush1.msra.mxu0 %v493
      %1113 = vmatprep.subr.mxu0 0.0
      %1114 = vmatpush1.msra.mxu0 0.0
      %1115 = vmatprep.subr.mxu0 0.0
      %1116 = vmatpush1.msra.mxu0 0.0
      %1117 = vmatprep.subr.mxu0 0.0
      %1118 = vmatpush1.msra.mxu0 0.0
      %1119 = vmatprep.subr.mxu0 0.0
      %1120 = vmatpush1.msra.mxu0 0.0
      %1121 = vmatprep.subr.mxu0 0.0
      %1122 = vmatpush1.msra.mxu0 0.0
      %1123 = vmatprep.subr.mxu0 0.0
      %1124 = vmatpush1.msra.mxu0 0.0
      %1125 = vmatprep.subr.mxu0 0.0
      %1126 = vmatpush1.msra.mxu0 0.0
      %1127 = vmatprep.subr.mxu0 0.0
      %1128 = vmatpush1.msra.mxu0 0.0
      %1129 = vmatprep.subr.mxu0 0.0
      %1130 = vmatpush1.msra.mxu0 0.0
      %1131 = vmatprep.subr.mxu0 0.0
      %1132 = vmatpush1.msra.mxu0 0.0
      %1133 = vmatprep.subr.mxu0 0.0
      %1134 = vmatpush1.msra.mxu0 0.0
      %1135 = vmatprep.subr.mxu0 0.0
      %1136 = vmatpush1.msra.mxu0 0.0
      %1137 = vmatprep.subr.mxu0 0.0
      %1138 = vmatpush1.msra.mxu0 0.0
      %1139 = vmatprep.subr.mxu0 0.0
      %1140 = vmatpush1.msra.mxu0 0.0
      %1141 = vmatprep.subr.mxu0 0.0
      %1142 = vmatpush1.msra.mxu0 0.0
      %1143 = vmatprep.subr.mxu0 0.0
      %1144 = vmatpush1.msra.mxu0 0.0
      %1145 = vmatprep.mubr.f32.mxu0 0.0
      %1146 = vmatmul.mubr.f32.gmra.mrb[0].mxu0 %v334
      %v1147 = vpop.f32.mrb[0].mxu0
      %v1148 = vadd.f32 %v1003, %v1147
      %v1149 = vpop.f32.mrb[0].mxu0
      %1150 = vmatprep.mubr.f32.mxu0 0.0
      %1151 = vmatmul.mubr.f32.gmra.mrb[0].mxu0 %v335
      %v1152 = vpop.f32.mrb[0].mxu0
      %v1153 = vadd.f32 %v1008, %v1152
      %v1154 = vpop.f32.mrb[0].mxu0
      %1155 = vmatprep.mubr.f32.mxu0 0.0
      %1156 = vmatmul.mubr.f32.gmra.mrb[0].mxu0 %v336
      %v1157 = vpop.f32.mrb[0].mxu0
      %v1158 = vadd.f32 %v1013, %v1157
      %v1159 = vpop.f32.mrb[0].mxu0
      %1160 = vmatprep.mubr.f32.mxu0 0.0
      %1161 = vmatmul.mubr.f32.gmra.mrb[0].mxu0 %v337
      %v1162 = vpop.f32.mrb[0].mxu0
      %v1163 = vadd.f32 %v1018, %v1162
      %v1164 = vpop.f32.mrb[0].mxu0
      %1165 = vmatprep.mubr.f32.mxu0 0.0
      %1166 = vmatmul.mubr.f32.gmra.mrb[0].mxu0 %v338
      %v1167 = vpop.f32.mrb[0].mxu0
      %v1168 = vadd.f32 %v1023, %v1167
      %v1169 = vpop.f32.mrb[0].mxu0
      %1170 = vmatprep.mubr.f32.mxu0 0.0
      %1171 = vmatmul.mubr.f32.gmra.mrb[0].mxu0 %v339
      %v1172 = vpop.f32.mrb[0].mxu0
      %v1173 = vadd.f32 %v1028, %v1172
      %v1174 = vpop.f32.mrb[0].mxu0
      %1175 = vmatprep.mubr.f32.mxu0 0.0
      %1176 = vmatmul.mubr.f32.gmra.mrb[0].mxu0 %v340
      %v1177 = vpop.f32.mrb[0].mxu0
      %v1178 = vadd.f32 %v1033, %v1177
      %v1179 = vpop.f32.mrb[0].mxu0
      %1180 = vmatprep.mubr.f32.mxu0 0.0
      %1181 = vmatmul.mubr.f32.gmra.mrb[0].mxu0 %v341
      %v1182 = vpop.f32.mrb[0].mxu0
      %v1183 = vadd.f32 %v1038, %v1182
      %v1184 = vpop.f32.mrb[0].mxu0
      %1185 = vmatprep.mubr.f32.mxu0 0.0
      %1186 = vmatmul.mubr.f32.gmra.mrb[0].mxu0 %v342
      %v1187 = vpop.f32.mrb[0].mxu0
      %v1188 = vadd.f32 %v1043, %v1187
      %v1189 = vpop.f32.mrb[0].mxu0
      %1190 = vmatprep.mubr.f32.mxu0 0.0
      %1191 = vmatmul.mubr.f32.gmra.mrb[0].mxu0 %v343
      %v1192 = vpop.f32.mrb[0].mxu0
      %v1193 = vadd.f32 %v1048, %v1192
      %v1194 = vpop.f32.mrb[0].mxu0
      %1195 = vmatprep.mubr.f32.mxu0 0.0
      %1196 = vmatmul.mubr.f32.gmra.mrb[0].mxu0 %v344
      %v1197 = vpop.f32.mrb[0].mxu0
      %v1198 = vadd.f32 %v1053, %v1197
      %v1199 = vpop.f32.mrb[0].mxu0
      %1200 = vmatprep.mubr.f32.mxu0 0.0
      %1201 = vmatmul.mubr.f32.gmra.mrb[0].mxu0 %v345
      %v1202 = vpop.f32.mrb[0].mxu0
      %v1203 = vadd.f32 %v1058, %v1202
      %v1204 = vpop.f32.mrb[0].mxu0
      %1205 = vmatprep.mubr.f32.mxu0 0.0
      %1206 = vmatmul.mubr.f32.gmra.mrb[0].mxu0 %v346
      %v1207 = vpop.f32.mrb[0].mxu0
      %v1208 = vadd.f32 %v1063, %v1207
      %v1209 = vpop.f32.mrb[0].mxu0
      %1210 = vmatprep.mubr.f32.mxu0 0.0
      %1211 = vmatmul.mubr.f32.gmra.mrb[0].mxu0 %v347
      %v1212 = vpop.f32.mrb[0].mxu0
      %v1213 = vadd.f32 %v1068, %v1212
      %v1214 = vpop.f32.mrb[0].mxu0
      %1215 = vmatprep.mubr.f32.mxu0 0.0
      %1216 = vmatmul.mubr.f32.gmra.mrb[0].mxu0 %v348
      %v1217 = vpop.f32.mrb[0].mxu0
      %v1218 = vadd.f32 %v1073, %v1217
      %v1219 = vpop.f32.mrb[0].mxu0
      %1220 = vmatprep.mubr.f32.mxu0 0.0
      %1221 = vmatmul.mubr.f32.gmra.mrb[0].mxu0 %v349
      %v1222 = vpop.f32.mrb[0].mxu0
      %v1223 = vadd.f32 %v1078, %v1222
      %v1224 = vpop.f32.mrb[0].mxu0
      %1225 = vdwg.mxu0
      %1226 = vst [vmem:[%s194] sm:$0xff] %v1148
      %1227 = vst [vmem:[%s194 + $0x8] sm:$0xff] %v1153
      %1228 = vst [vmem:[%s194 + $0x10] sm:$0xff] %v1158
      %1229 = vst [vmem:[%s194 + $0x18] sm:$0xff] %v1163
      %1230 = vst [vmem:[%s194 + $0x20] sm:$0xff] %v1168
      %1231 = vst [vmem:[%s194 + $0x28] sm:$0xff] %v1173
      %1232 = vst [vmem:[%s194 + $0x30] sm:$0xff] %v1178
      %1233 = vst [vmem:[%s194 + $0x38] sm:$0xff] %v1183
      %1234 = vst [vmem:[%s194 + $0x40] sm:$0xff] %v1188
      %1235 = vst [vmem:[%s194 + $0x48] sm:$0xff] %v1193
      %1236 = vst [vmem:[%s194 + $0x50] sm:$0xff] %v1198
      %1237 = vst [vmem:[%s194 + $0x58] sm:$0xff] %v1203
      %1238 = vst [vmem:[%s194 + $0x60] sm:$0xff] %v1208
      %1239 = vst [vmem:[%s194 + $0x68] sm:$0xff] %v1213
      %1240 = vst [vmem:[%s194 + $0x70] sm:$0xff] %v1218
      %1241 = vst [vmem:[%s194 + $0x78] sm:$0xff] %v1223
      %s1242 = smul.u32 8, %s19
      %p1243 = scmp.lt.s32.totalorder %s18, 1
      %s1244 = scalar_select %p1243, %s18, 1
      %p1245 = scmp.lt.s32.totalorder %s1242, 15
      %s1246 = scalar_select %p1245, %s1242, 15
      %s1247 = smul.addr %s1246, 2
      %s1248 = smul.addr %s1244, 32
      %s1249 = sadd.s32 %s1247, %s1248
      %s1250 = smul.addr %s1249, 8
      %s1251 = scalar_lea.vmem %s3, %s1250
      // Predicated region
      $region33: #{dac_block.3} parent=31 // pred_check
        %p1252 = pneg %p114
      $region34: #{dac_block.3} parent=31 // pred_check_branch
        %1254 = sbr.rel (%p1252) target = $region36
      $region35: #{dac_block.3} parent=31 // pred_region
        %s1255 = smul.u32 8, %s19
      $region36: #{dac_block.3} parent=31 // pred_fallthru
        _
    $region32: #{dac_block.3} parent=5 // pred_fallthru
      _
    %p1256 = scmp.le.s32.totalorder 2, %s9
    // Predicated region
    $region37: #{dac_block.3} parent=5 // pred_check
      %p1257 = pneg %p1256
    $region38: #{dac_block.3} parent=5 // pred_check_branch
      %1259 = sbr.rel (%p1257) target = $region40
    $region39: #{dac_block.3} parent=5 // pred_region
      %s1260 = ssub.s32 %s9, 2
      // Predicated region
      $region41: #{dac_block.3} parent=39 // pred_check
        %p1261 = pneg %p120
      $region42: #{dac_block.3} parent=39 // pred_check_branch
        %1263 = sbr.rel (%p1261) target = $region44
      $region43: #{dac_block.3} parent=39 // pred_region
        %s1264 = smul.u32 8, %s21
        %p1265 = scmp.lt.s32.totalorder %s20, 1
        %s1266 = scalar_select %p1265, %s20, 1
        %p1267 = scmp.lt.s32.totalorder %s1264, 15
        %s1268 = scalar_select %p1267, %s1264, 15
        %s1269 = smul.addr %s1268, 2
        %s1270 = smul.addr %s1266, 32
        %s1271 = sadd.s32 %s1269, %s1270
        %s1272 = smul.addr %s1271, 8
        %s1273 = scalar_lea.vmem %s3, %s1272
      $region44: #{dac_block.3} parent=39 // pred_fallthru
        _
    $region40: #{dac_block.3} parent=5 // pred_fallthru
      _
  $region6: #{dac_block.3} parent=0 // loop_footer
    %s13 = sadd.s32 1, %s9
  $region7: #{dac_block.3} parent=0 // loop_footer_branch
    %8 = sbr.rel target = $region3
  $region8: #{dac_block.3} parent=0 // loop_exit
    _

// kernel: dac_block.5
$region0: #{dac_block.5}
  #allocation0 [shape = 'u32[]', space=smem, size = 0x4, offset = 0x4, fixed_abs, tag = 'smem constant byte address 0x4 - core index']
  #allocation1 [shape = 'u32[144,128]{1,0:T(1,128)}', space=vmem, size = 0x12000, scoped, tag = 'internal scratch']
  %s0 = inlined_call_operand.vmem [shape: f32[2,22,22,128], index: 0, kind: input, shape index: {}]
  %s1 = inlined_call_operand.vmem [shape: f32[2,22,22,128], index: 1, kind: input, shape index: {}]
  %s2 = inlined_call_operand.vmem [shape: f32[2,26,26,128], index: 2, kind: input, shape index: {}]
  %s3 = inlined_call_operand.vmem [shape: f32[1152,128], index: 3, kind: input, shape index: {}]
  %s4 = inlined_call_operand.vmem [shape: f32[1152,128], index: 4, kind: input, shape index: {}]
  %s5 = inlined_call_operand.vmem [shape: f32[1,128], index: 5, kind: input, shape index: {}]
  %s6 = inlined_call_operand.vmem [shape: f32[1,128], index: 6, kind: input, shape index: {}]
  %s7 = inlined_call_operand.hbm [shape: f32[2,16,16,128], index: 7, kind: output, shape index: {}]
  %s8 = sld [smem:[#allocation0]]
  $region61: #{dac_block.5} parent=0
    _
  %s10 = ssub.s32 1, %s8
  %s11 = scalar_select 0, %s10, %s8
  $region1: #{dac_block.5} parent=0
    #allocation2 [shape = 'u8[131072]{0}', space=vmem, size = 0x20000, scoped, tag = 'output window, operand 0']
    #allocation3 [shape = 's32[2]{0}', space=sflag, size = 0x8, scoped, tag = 'scoped memory for dac_block.5']
    %12 = vsyncpa [#allocation3], 0
    %s13 = scalar_lea.sflag [#allocation3], 1
    %14 = vsyncpa %s13, 0
    loop: start=0, step=1, limit=6
    $region2: #{dac_block.5} parent=1 // loop_pre_header
      _
    $region3: #{dac_block.5} parent=1 // loop_header
      %s16 = sphi 0, %s20
      %p17 = scmp.ge.s32.totalorder %s16, 6
      %s23 = sphi 0, %s35
      %s24 = sphi 0, %s31
      %s25 = sphi 0, %s23
      %s26 = sphi 0, %s24
      %s27 = sphi 0, %s25
      %s28 = sphi 0, %s26
      %s38 = sphi 0, %s40
      %s41 = sphi 0, %s38
      %s42 = sphi 0, %s41
      %s58 = sphi 0, %s42
      %s64 = sphi 0, %s66
      %s67 = sphi 0, %s64
      %s68 = sphi 0, %s67
      %s84 = sphi 0, %s68
      %s90 = sphi 0, %s92
      %s93 = sphi 0, %s90
      %s94 = sphi 0, %s93
      %s110 = sphi 0, %s94
      %s114 = sphi 0, %s114
      %s116 = sphi 0, %s114
      %s117 = sphi 0, %s116
      %s131 = sphi 0, %s117
      %s135 = sphi 0, %s135
      %s137 = sphi 0, %s135
      %s138 = sphi 0, %s137
      %s152 = sphi 0, %s138
      %s156 = sphi 0, %s156
      %s158 = sphi 0, %s156
      %s159 = sphi 0, %s158
      %s173 = sphi 0, %s159
      %s177 = sphi 0, %s177
      %s179 = sphi 0, %s177
      %s180 = sphi 0, %s179
      %s194 = sphi 0, %s180
      %s202 = sphi 0, %s204
      %s205 = sphi 0, %s202
      %s206 = sphi 0, %s205
      %s222 = sphi 0, %s206
    $region4: #{dac_block.5} parent=1 // loop_header_branch
      %19 = sbr.rel (%p17) target = $region8
    $region5: #{dac_block.5} parent=1 // loop_body
      %s21 = ssub.s32 %s16, 1
      %s22 = ssub.s32 %s16, 2
      %s29 = sadd.s32 1, %s24
      %p30 = scmp.ge.s32.totalorder %s29, 2
      %s31 = scalar_select %p30, 0, %s29
      %s32 = sadd.s32 1, %s23
      %s33 = scalar_select %p30, %s32, %s23
      %p34 = scmp.ge.s32.totalorder %s33, 2
      %s35 = scalar_select %p34, 0, %s33
      %s36 = ssub.s32 %s23, %s35
      %p37 = scmp.eq.s32.totalorder %s36, 0
      %s39 = sadd.s32 %s38, 1
      %s40 = scalar_select %p37, %s38, %s39
      %p43 = pneg %p37
      %p44 = scmp.eq.s32.totalorder %s16, 3
      %p45 = por %p43, %p44
      %p46 = scmp.ne.s32.totalorder %s38, %s41
      %p47 = scmp.eq.s32.totalorder %s16, 0
      %p48 = por %p46, %p47
      %p49 = scmp.ne.s32.totalorder %s38, %s41
      %p50 = scmp.eq.s32.totalorder %s21, 3
      %p51 = por %p49, %p50
      %p52 = scmp.ne.s32.totalorder %s41, %s42
      %p53 = scmp.eq.s32.totalorder %s21, 0
      %p54 = por %p52, %p53
      %p55 = scmp.ne.s32.totalorder %s41, %s42
      %p56 = scmp.eq.s32.totalorder %s22, 3
      %p57 = por %p55, %p56
      %p59 = scmp.ne.s32.totalorder %s42, %s58
      %p60 = scmp.eq.s32.totalorder %s22, 0
      %p61 = por %p59, %p60
      %s62 = ssub.s32 %s23, %s35
      %p63 = scmp.eq.s32.totalorder %s62, 0
      %s65 = sadd.s32 %s64, 1
      %s66 = scalar_select %p63, %s64, %s65
      %p69 = pneg %p63
      %p70 = scmp.eq.s32.totalorder %s16, 3
      %p71 = por %p69, %p70
      %p72 = scmp.ne.s32.totalorder %s64, %s67
      %p73 = scmp.eq.s32.totalorder %s16, 0
      %p74 = por %p72, %p73
      %p75 = scmp.ne.s32.totalorder %s64, %s67
      %p76 = scmp.eq.s32.totalorder %s21, 3
      %p77 = por %p75, %p76
      %p78 = scmp.ne.s32.totalorder %s67, %s68
      %p79 = scmp.eq.s32.totalorder %s21, 0
      %p80 = por %p78, %p79
      %p81 = scmp.ne.s32.totalorder %s67, %s68
      %p82 = scmp.eq.s32.totalorder %s22, 3
      %p83 = por %p81, %p82
      %p85 = scmp.ne.s32.totalorder %s68, %s84
      %p86 = scmp.eq.s32.totalorder %s22, 0
      %p87 = por %p85, %p86
      %s88 = ssub.s32 %s23, %s35
      %p89 = scmp.eq.s32.totalorder %s88, 0
      %s91 = sadd.s32 %s90, 1
      %s92 = scalar_select %p89, %s90, %s91
      %p95 = pneg %p89
      %p96 = scmp.eq.s32.totalorder %s16, 3
      %p97 = por %p95, %p96
      %p98 = scmp.ne.s32.totalorder %s90, %s93
      %p99 = scmp.eq.s32.totalorder %s16, 0
      %p100 = por %p98, %p99
      %p101 = scmp.ne.s32.totalorder %s90, %s93
      %p102 = scmp.eq.s32.totalorder %s21, 3
      %p103 = por %p101, %p102
      %p104 = scmp.ne.s32.totalorder %s93, %s94
      %p105 = scmp.eq.s32.totalorder %s21, 0
      %p106 = por %p104, %p105
      %p107 = scmp.ne.s32.totalorder %s93, %s94
      %p108 = scmp.eq.s32.totalorder %s22, 3
      %p109 = por %p107, %p108
      %p111 = scmp.ne.s32.totalorder %s94, %s110
      %p112 = scmp.eq.s32.totalorder %s22, 0
      %p113 = por %p111, %p112
      %s115 = sadd.s32 %s114, 1
      %p118 = scmp.eq.s32.totalorder %s16, 3
      %p119 = scmp.ne.s32.totalorder %s114, %s116
      %p120 = scmp.eq.s32.totalorder %s16, 0
      %p121 = por %p119, %p120
      %p122 = scmp.ne.s32.totalorder %s114, %s116
      %p123 = scmp.eq.s32.totalorder %s21, 3
      %p124 = por %p122, %p123
      %p125 = scmp.ne.s32.totalorder %s116, %s117
      %p126 = scmp.eq.s32.totalorder %s21, 0
      %p127 = por %p125, %p126
      %p128 = scmp.ne.s32.totalorder %s116, %s117
      %p129 = scmp.eq.s32.totalorder %s22, 3
      %p130 = por %p128, %p129
      %p132 = scmp.ne.s32.totalorder %s117, %s131
      %p133 = scmp.eq.s32.totalorder %s22, 0
      %p134 = por %p132, %p133
      %s136 = sadd.s32 %s135, 1
      %p139 = scmp.eq.s32.totalorder %s16, 3
      %p140 = scmp.ne.s32.totalorder %s135, %s137
      %p141 = scmp.eq.s32.totalorder %s16, 0
      %p142 = por %p140, %p141
      %p143 = scmp.ne.s32.totalorder %s135, %s137
      %p144 = scmp.eq.s32.totalorder %s21, 3
      %p145 = por %p143, %p144
      %p146 = scmp.ne.s32.totalorder %s137, %s138
      %p147 = scmp.eq.s32.totalorder %s21, 0
      %p148 = por %p146, %p147
      %p149 = scmp.ne.s32.totalorder %s137, %s138
      %p150 = scmp.eq.s32.totalorder %s22, 3
      %p151 = por %p149, %p150
      %p153 = scmp.ne.s32.totalorder %s138, %s152
      %p154 = scmp.eq.s32.totalorder %s22, 0
      %p155 = por %p153, %p154
      %s157 = sadd.s32 %s156, 1
      %p160 = scmp.eq.s32.totalorder %s16, 3
      %p161 = scmp.ne.s32.totalorder %s156, %s158
      %p162 = scmp.eq.s32.totalorder %s16, 0
      %p163 = por %p161, %p162
      %p164 = scmp.ne.s32.totalorder %s156, %s158
      %p165 = scmp.eq.s32.totalorder %s21, 3
      %p166 = por %p164, %p165
      %p167 = scmp.ne.s32.totalorder %s158, %s159
      %p168 = scmp.eq.s32.totalorder %s21, 0
      %p169 = por %p167, %p168
      %p170 = scmp.ne.s32.totalorder %s158, %s159
      %p171 = scmp.eq.s32.totalorder %s22, 3
      %p172 = por %p170, %p171
      %p174 = scmp.ne.s32.totalorder %s159, %s173
      %p175 = scmp.eq.s32.totalorder %s22, 0
      %p176 = por %p174, %p175
      %s178 = sadd.s32 %s177, 1
      %p181 = scmp.eq.s32.totalorder %s16, 3
      %p182 = scmp.ne.s32.totalorder %s177, %s179
      %p183 = scmp.eq.s32.totalorder %s16, 0
      %p184 = por %p182, %p183
      %p185 = scmp.ne.s32.totalorder %s177, %s179
      %p186 = scmp.eq.s32.totalorder %s21, 3
      %p187 = por %p185, %p186
      %p188 = scmp.ne.s32.totalorder %s179, %s180
      %p189 = scmp.eq.s32.totalorder %s21, 0
      %p190 = por %p188, %p189
      %p191 = scmp.ne.s32.totalorder %s179, %s180
      %p192 = scmp.eq.s32.totalorder %s22, 3
      %p193 = por %p191, %p192
      %p195 = scmp.ne.s32.totalorder %s180, %s194
      %p196 = scmp.eq.s32.totalorder %s22, 0
      %p197 = por %p195, %p196
      %s198 = ssub.s32 %s23, %s35
      %s199 = ssub.s32 %s24, %s31
      %s200 = sor.u32 %s198, %s199
      %p201 = scmp.eq.s32.totalorder %s200, 0
      %s203 = sadd.s32 %s202, 1
      %s204 = scalar_select %p201, %s202, %s203
      %p207 = pneg %p201
      %p208 = scmp.eq.s32.totalorder %s16, 3
      %p209 = por %p207, %p208
      %p210 = scmp.ne.s32.totalorder %s202, %s205
      %p211 = scmp.eq.s32.totalorder %s16, 0
      %p212 = por %p210, %p211
      %p213 = scmp.ne.s32.totalorder %s202, %s205
      %p214 = scmp.eq.s32.totalorder %s21, 3
      %p215 = por %p213, %p214
      %p216 = scmp.ne.s32.totalorder %s205, %s206
      %p217 = scmp.eq.s32.totalorder %s21, 0
      %p218 = por %p216, %p217
      %p219 = scmp.ne.s32.totalorder %s205, %s206
      %p220 = scmp.eq.s32.totalorder %s22, 3
      %p221 = por %p219, %p220
      %p223 = scmp.ne.s32.totalorder %s206, %s222
      %p224 = scmp.eq.s32.totalorder %s22, 0
      %p225 = por %p223, %p224
      %p226 = scmp.le.s32.totalorder 1, %s16
      %p227 = scmp.lt.s32.totalorder %s16, 5
      %p228 = pnand %p226, %p227
      %p229 = pneg %p228
      // Predicated region
      $region9: #{dac_block.5} parent=5 // pred_check
        _
      $region10: #{dac_block.5} parent=5 // pred_check_branch
        %231 = sbr.rel (%p228) target = $region12
      $region11: #{dac_block.5} parent=5 // pred_region
        %s232 = ssub.s32 %s16, 1
        // Predicated region
        $region13: #{dac_block.5} parent=11 // pred_check
          %p233 = pneg %p127
        $region14: #{dac_block.5} parent=11 // pred_check_branch
          %235 = sbr.rel (%p233) target = $region16
        $region15: #{dac_block.5} parent=11 // pred_region
          _
        $region16: #{dac_block.5} parent=11 // pred_fallthru
          _
        // Predicated region
        $region17: #{dac_block.5} parent=11 // pred_check
          %p236 = pneg %p148
        $region18: #{dac_block.5} parent=11 // pred_check_branch
          %238 = sbr.rel (%p236) target = $region20
        $region19: #{dac_block.5} parent=11 // pred_region
          _
        $region20: #{dac_block.5} parent=11 // pred_fallthru
          _
        // Predicated region
        $region21: #{dac_block.5} parent=11 // pred_check
          %p239 = pneg %p169
        $region22: #{dac_block.5} parent=11 // pred_check_branch
          %241 = sbr.rel (%p239) target = $region24
        $region23: #{dac_block.5} parent=11 // pred_region
          _
        $region24: #{dac_block.5} parent=11 // pred_fallthru
          _
        // Predicated region
        $region25: #{dac_block.5} parent=11 // pred_check
          %p242 = pneg %p190
        $region26: #{dac_block.5} parent=11 // pred_check_branch
          %244 = sbr.rel (%p242) target = $region28
        $region27: #{dac_block.5} parent=11 // pred_region
          _
        $region28: #{dac_block.5} parent=11 // pred_fallthru
          _
      $region12: #{dac_block.5} parent=5 // pred_fallthru
        _
      %p245 = scmp.lt.s32.totalorder %s16, 4
      // Predicated region
      $region29: #{dac_block.5} parent=5 // pred_check
        %p246 = pneg %p245
      $region30: #{dac_block.5} parent=5 // pred_check_branch
        %248 = sbr.rel (%p246) target = $region32
      $region31: #{dac_block.5} parent=5 // pred_region
        // Predicated region
        $region33: #{dac_block.5} parent=31 // pred_check
          %p249 = pneg %p48
        $region34: #{dac_block.5} parent=31 // pred_check_branch
          %251 = sbr.rel (%p249) target = $region36
        $region35: #{dac_block.5} parent=31 // pred_region
          %p252 = scmp.lt.s32.totalorder %s23, 1
          %s253 = scalar_select %p252, %s23, 1
          %s254 = smul.addr %s253, 66
          %s255 = smul.addr %s254, 8
          %s256 = scalar_lea.vmem %s0, %s255
        $region36: #{dac_block.5} parent=31 // pred_fallthru
          _
        // Predicated region
        $region37: #{dac_block.5} parent=31 // pred_check
          %p257 = pneg %p74
        $region38: #{dac_block.5} parent=31 // pred_check_branch
          %259 = sbr.rel (%p257) target = $region40
        $region39: #{dac_block.5} parent=31 // pred_region
          %p260 = scmp.lt.s32.totalorder %s23, 1
          %s261 = scalar_select %p260, %s23, 1
          %s262 = smul.addr %s261, 66
          %s263 = smul.addr %s262, 8
          %s264 = scalar_lea.vmem %s1, %s263
        $region40: #{dac_block.5} parent=31 // pred_fallthru
          _
        // Predicated region
        $region41: #{dac_block.5} parent=31 // pred_check
          %p265 = pneg %p100
        $region42: #{dac_block.5} parent=31 // pred_check_branch
          %267 = sbr.rel (%p265) target = $region44
        $region43: #{dac_block.5} parent=31 // pred_region
          %p268 = scmp.lt.s32.totalorder %s23, 1
          %s269 = scalar_select %p268, %s23, 1
          %s270 = smul.addr %s269, 104
          %s271 = smul.addr %s270, 8
          %s272 = scalar_lea.vmem %s2, %s271
        $region44: #{dac_block.5} parent=31 // pred_fallthru
          _
      $region32: #{dac_block.5} parent=5 // pred_fallthru
        _
      %p273 = scmp.le.s32.totalorder 1, %s16
      %p274 = scmp.lt.s32.totalorder %s16, 5
      %p275 = pnand %p273, %p274
      %p276 = pneg %p275
      // Predicated region
      $region45: #{dac_block.5} parent=5 // pred_check
        _
      $region46: #{dac_block.5} parent=5 // pred_check_branch
        %278 = sbr.rel (%p275) target = $region48
      $region47: #{dac_block.5} parent=5 // pred_region
        %s279 = ssub.s32 %s16, 1
        %p280 = scmp.lt.s32.totalorder %s25, 1
        %s281 = scalar_select %p280, %s25, 1
        %s282 = smul.addr %s281, 66
        %s283 = smul.addr %s282, 8
        %s284 = scalar_lea.vmem %s0, %s283
        %p285 = pneg %p54
        %p286 = pneg %p51
        %p287 = scmp.lt.s32.totalorder %s25, 1
        %s288 = scalar_select %p287, %s25, 1
        %s289 = smul.addr %s288, 66
        %s290 = smul.addr %s289, 8
        %s291 = scalar_lea.vmem %s1, %s290
        %p292 = pneg %p80
        %p293 = pneg %p77
        %p294 = scmp.lt.s32.totalorder %s25, 1
        %s295 = scalar_select %p294, %s25, 1
        %s296 = smul.addr %s295, 104
        %s297 = smul.addr %s296, 8
        %s298 = scalar_lea.vmem %s2, %s297
        %p299 = pneg %p106
        %p300 = pneg %p103
        %p301 = pneg %p127
        %p302 = pneg %p124
        %p303 = pneg %p148
        %p304 = pneg %p145
        %p305 = pneg %p169
        %p306 = pneg %p166
        %p307 = pneg %p190
        %p308 = pneg %p187
        %p309 = pneg %p218
        %p310 = pneg %p215
        %s311 = sand.u32 %s205, 1
        %s312 = scalar_lea.sflag [#allocation3], %s311
        %s313 = sand.u32 %s205, 1
        %s314 = smul.addr %s313, 128
        %s315 = scalar_lea.vmem [#allocation2], %s314
        %p316 = scmp.lt.s32.totalorder %s25, 1
        %s317 = scalar_select %p316, %s25, 1
        %s318 = smul.addr %s317, 66
        %s319 = smul.addr %s318, 8
        %s320 = scalar_lea.vmem %s0, %s319
        %p321 = scmp.lt.s32.totalorder %s25, 1
        %s322 = scalar_select %p321, %s25, 1
        %s323 = smul.addr %s322, 66
        %s324 = smul.addr %s323, 8
        %s325 = scalar_lea.vmem %s1, %s324
        %p326 = scmp.lt.s32.totalorder %s25, 1
        %s327 = scalar_select %p326, %s25, 1
        %s328 = smul.addr %s327, 104
        %s329 = smul.addr %s328, 8
        %s330 = scalar_lea.vmem %s2, %s329
        %s331 = smul.u32 8, %s26
        %s332 = smul.u32 %s26, 8
        %v333 = vld [vmem:[%s5] sm:$0x1]
        %s334 = sadd.s32 %s332, 3
        %s335 = smul.u32 %s334, 24
        %s336 = scalar_lea.vmem %s320, %s335
        %v337 = vld [vmem:[%s336 + $0x3] sm:$0xff]
        %v338 = vld [vmem:[%s336 + $0xb] sm:$0xff]
        %v339 = vld [vmem:[%s336 + $0x1b] sm:$0xff]
        %v340 = vld [vmem:[%s336 + $0x23] sm:$0xff]
        %v341 = vld [vmem:[%s336 + $0x33] sm:$0xff]
        %v342 = vld [vmem:[%s336 + $0x3b] sm:$0xff]
        %v343 = vld [vmem:[%s336 + $0x4b] sm:$0xff]
        %v344 = vld [vmem:[%s336 + $0x53] sm:$0xff]
        %v345 = vld [vmem:[%s336 + $0x63] sm:$0xff]
        %v346 = vld [vmem:[%s336 + $0x6b] sm:$0xff]
        %v347 = vld [vmem:[%s336 + $0x7b] sm:$0xff]
        %v348 = vld [vmem:[%s336 + $0x83] sm:$0xff]
        %v349 = vld [vmem:[%s336 + $0x93] sm:$0xff]
        %v350 = vld [vmem:[%s336 + $0x9b] sm:$0xff]
        %v351 = vld [vmem:[%s336 + $0xab] sm:$0xff]
        %v352 = vld [vmem:[%s336 + $0xb3] sm:$0xff]
        %s353 = scalar_lea.vmem %s325, %s335
        %v354 = vld [vmem:[%s353 + $0x3] sm:$0xff]
        %v355 = vld [vmem:[%s353 + $0xb] sm:$0xff]
        %v356 = vld [vmem:[%s353 + $0x1b] sm:$0xff]
        %v357 = vld [vmem:[%s353 + $0x23] sm:$0xff]
        %v358 = vld [vmem:[%s353 + $0x33] sm:$0xff]
        %v359 = vld [vmem:[%s353 + $0x3b] sm:$0xff]
        %v360 = vld [vmem:[%s353 + $0x4b] sm:$0xff]
        %v361 = vld [vmem:[%s353 + $0x53] sm:$0xff]
        %v362 = vld [vmem:[%s353 + $0x63] sm:$0xff]
        %v363 = vld [vmem:[%s353 + $0x6b] sm:$0xff]
        %v364 = vld [vmem:[%s353 + $0x7b] sm:$0xff]
        %v365 = vld [vmem:[%s353 + $0x83] sm:$0xff]
        %v366 = vld [vmem:[%s353 + $0x93] sm:$0xff]
        %v367 = vld [vmem:[%s353 + $0x9b] sm:$0xff]
        %v368 = vld [vmem:[%s353 + $0xab] sm:$0xff]
        %v369 = vld [vmem:[%s353 + $0xb3] sm:$0xff]
        %v370 = vmax.f32 %v354, 0.0
        %v371 = vmax.f32 %v355, 0.0
        %v372 = vmax.f32 %v356, 0.0
        %v373 = vmax.f32 %v357, 0.0
        %v374 = vmax.f32 %v358, 0.0
        %v375 = vmax.f32 %v359, 0.0
        %v376 = vmax.f32 %v360, 0.0
        %v377 = vmax.f32 %v361, 0.0
        %v378 = vmax.f32 %v362, 0.0
        %v379 = vmax.f32 %v363, 0.0
        %v380 = vmax.f32 %v364, 0.0
        %v381 = vmax.f32 %v365, 0.0
        %v382 = vmax.f32 %v366, 0.0
        %v383 = vmax.f32 %v367, 0.0
        %v384 = vmax.f32 %v368, 0.0
        %v385 = vmax.f32 %v369, 0.0
        %v386 = vadd.f32 %v337, %v370
        %v387 = vadd.f32 %v338, %v371
        %v388 = vadd.f32 %v339, %v372
        %v389 = vadd.f32 %v340, %v373
        %v390 = vadd.f32 %v341, %v374
        %v391 = vadd.f32 %v342, %v375
        %v392 = vadd.f32 %v343, %v376
        %v393 = vadd.f32 %v344, %v377
        %v394 = vadd.f32 %v345, %v378
        %v395 = vadd.f32 %v346, %v379
        %v396 = vadd.f32 %v347, %v380
        %v397 = vadd.f32 %v348, %v381
        %v398 = vadd.f32 %v349, %v382
        %v399 = vadd.f32 %v350, %v383
        %v400 = vadd.f32 %v351, %v384
        %v401 = vadd.f32 %v352, %v385
        %s402 = smul.u32 %s332, 24
        %s403 = scalar_lea.vmem %s320, %s402
        %v404 = vld [vmem:[%s403] sm:$0xff]
        %v405 = vld [vmem:[%s403 + $0x8] sm:$0xff]
        %v406 = vld [vmem:[%s403 + $0x18] sm:$0xff]
        %v407 = vld [vmem:[%s403 + $0x20] sm:$0xff]
        %v408 = vld [vmem:[%s403 + $0x30] sm:$0xff]
        %v409 = vld [vmem:[%s403 + $0x38] sm:$0xff]
        %v410 = vld [vmem:[%s403 + $0x48] sm:$0xff]
        %v411 = vld [vmem:[%s403 + $0x50] sm:$0xff]
        %v412 = vld [vmem:[%s403 + $0x60] sm:$0xff]
        %v413 = vld [vmem:[%s403 + $0x68] sm:$0xff]
        %v414 = vld [vmem:[%s403 + $0x78] sm:$0xff]
        %v415 = vld [vmem:[%s403 + $0x80] sm:$0xff]
        %v416 = vld [vmem:[%s403 + $0x90] sm:$0xff]
        %v417 = vld [vmem:[%s403 + $0x98] sm:$0xff]
        %v418 = vld [vmem:[%s403 + $0xa8] sm:$0xff]
        %v419 = vld [vmem:[%s403 + $0xb0] sm:$0xff]
        %v420 = vld [vmem:[%s403 + $0x3] sm:$0xff]
        %v421 = vld [vmem:[%s403 + $0xb] sm:$0xff]
        %v422 = vld [vmem:[%s403 + $0x1b] sm:$0xff]
        %v423 = vld [vmem:[%s403 + $0x23] sm:$0xff]
        %v424 = vld [vmem:[%s403 + $0x33] sm:$0xff]
        %v425 = vld [vmem:[%s403 + $0x3b] sm:$0xff]
        %v426 = vld [vmem:[%s403 + $0x4b] sm:$0xff]
        %v427 = vld [vmem:[%s403 + $0x53] sm:$0xff]
        %v428 = vld [vmem:[%s403 + $0x63] sm:$0xff]
        %v429 = vld [vmem:[%s403 + $0x6b] sm:$0xff]
        %v430 = vld [vmem:[%s403 + $0x7b] sm:$0xff]
        %v431 = vld [vmem:[%s403 + $0x83] sm:$0xff]
        %v432 = vld [vmem:[%s403 + $0x93] sm:$0xff]
        %v433 = vld [vmem:[%s403 + $0x9b] sm:$0xff]
        %v434 = vld [vmem:[%s403 + $0xab] sm:$0xff]
        %v435 = vld [vmem:[%s403 + $0xb3] sm:$0xff]
        %v436 = vld [vmem:[%s403 + $0x6] sm:$0xff]
        %v437 = vld [vmem:[%s403 + $0xe] sm:$0xff]
        %v438 = vld [vmem:[%s403 + $0x1e] sm:$0xff]
        %v439 = vld [vmem:[%s403 + $0x26] sm:$0xff]
        %v440 = vld [vmem:[%s403 + $0x36] sm:$0xff]
        %v441 = vld [vmem:[%s403 + $0x3e] sm:$0xff]
        %v442 = vld [vmem:[%s403 + $0x4e] sm:$0xff]
        %v443 = vld [vmem:[%s403 + $0x56] sm:$0xff]
        %v444 = vld [vmem:[%s403 + $0x66] sm:$0xff]
        %v445 = vld [vmem:[%s403 + $0x6e] sm:$0xff]
        %v446 = vld [vmem:[%s403 + $0x7e] sm:$0xff]
        %v447 = vld [vmem:[%s403 + $0x86] sm:$0xff]
        %v448 = vld [vmem:[%s403 + $0x96] sm:$0xff]
        %v449 = vld [vmem:[%s403 + $0x9e] sm:$0xff]
        %v450 = vld [vmem:[%s403 + $0xae] sm:$0xff]
        %v451 = vld [vmem:[%s403 + $0xb6] sm:$0xff]
        %v452 = vld [vmem:[%s336] sm:$0xff]
        %v453 = vld [vmem:[%s336 + $0x8] sm:$0xff]
        %v454 = vld [vmem:[%s336 + $0x18] sm:$0xff]
        %v455 = vld [vmem:[%s336 + $0x20] sm:$0xff]
        %v456 = vld [vmem:[%s336 + $0x30] sm:$0xff]
        %v457 = vld [vmem:[%s336 + $0x38] sm:$0xff]
        %v458 = vld [vmem:[%s336 + $0x48] sm:$0xff]
        %v459 = vld [vmem:[%s336 + $0x50] sm:$0xff]
        %v460 = vld [vmem:[%s336 + $0x60] sm:$0xff]
        %v461 = vld [vmem:[%s336 + $0x68] sm:$0xff]
        %v462 = vld [vmem:[%s336 + $0x78] sm:$0xff]
        %v463 = vld [vmem:[%s336 + $0x80] sm:$0xff]
        %v464 = vld [vmem:[%s336 + $0x90] sm:$0xff]
        %v465 = vld [vmem:[%s336 + $0x98] sm:$0xff]
        %v466 = vld [vmem:[%s336 + $0xa8] sm:$0xff]
        %v467 = vld [vmem:[%s336 + $0xb0] sm:$0xff]
        %v468 = vld [vmem:[%s336 + $0x6] sm:$0xff]
        %v469 = vld [vmem:[%s336 + $0xe] sm:$0xff]
        %v470 = vld [vmem:[%s336 + $0x1e] sm:$0xff]
        %v471 = vld [vmem:[%s336 + $0x26] sm:$0xff]
        %v472 = vld [vmem:[%s336 + $0x36] sm:$0xff]
        %v473 = vld [vmem:[%s336 + $0x3e] sm:$0xff]
        %v474 = vld [vmem:[%s336 + $0x4e] sm:$0xff]
        %v475 = vld [vmem:[%s336 + $0x56] sm:$0xff]
        %v476 = vld [vmem:[%s336 + $0x66] sm:$0xff]
        %v477 = vld [vmem:[%s336 + $0x6e] sm:$0xff]
        %v478 = vld [vmem:[%s336 + $0x7e] sm:$0xff]
        %v479 = vld [vmem:[%s336 + $0x86] sm:$0xff]
        %v480 = vld [vmem:[%s336 + $0x96] sm:$0xff]
        %v481 = vld [vmem:[%s336 + $0x9e] sm:$0xff]
        %v482 = vld [vmem:[%s336 + $0xae] sm:$0xff]
        %v483 = vld [vmem:[%s336 + $0xb6] sm:$0xff]
        %s484 = sadd.s32 %s332, 6
        %s485 = smul.u32 %s484, 24
        %s486 = scalar_lea.vmem %s320, %s485
        %v487 = vld [vmem:[%s486] sm:$0xff]
        %v488 = vld [vmem:[%s486 + $0x8] sm:$0xff]
        %v489 = vld [vmem:[%s486 + $0x18] sm:$0xff]
        %v490 = vld [vmem:[%s486 + $0x20] sm:$0xff]
        %v491 = vld [vmem:[%s486 + $0x30] sm:$0xff]
        %v492 = vld [vmem:[%s486 + $0x38] sm:$0xff]
        %v493 = vld [vmem:[%s486 + $0x48] sm:$0xff]
        %v494 = vld [vmem:[%s486 + $0x50] sm:$0xff]
        %v495 = vld [vmem:[%s486 + $0x60] sm:$0xff]
        %v496 = vld [vmem:[%s486 + $0x68] sm:$0xff]
        %v497 = vld [vmem:[%s486 + $0x78] sm:$0xff]
        %v498 = vld [vmem:[%s486 + $0x80] sm:$0xff]
        %v499 = vld [vmem:[%s486 + $0x90] sm:$0xff]
        %v500 = vld [vmem:[%s486 + $0x98] sm:$0xff]
        %v501 = vld [vmem:[%s486 + $0xa8] sm:$0xff]
        %v502 = vld [vmem:[%s486 + $0xb0] sm:$0xff]
        %v503 = vld [vmem:[%s486 + $0x3] sm:$0xff]
        %v504 = vld [vmem:[%s486 + $0xb] sm:$0xff]
        %v505 = vld [vmem:[%s486 + $0x1b] sm:$0xff]
        %v506 = vld [vmem:[%s486 + $0x23] sm:$0xff]
        %v507 = vld [vmem:[%s486 + $0x33] sm:$0xff]
        %v508 = vld [vmem:[%s486 + $0x3b] sm:$0xff]
        %v509 = vld [vmem:[%s486 + $0x4b] sm:$0xff]
        %v510 = vld [vmem:[%s486 + $0x53] sm:$0xff]
        %v511 = vld [vmem:[%s486 + $0x63] sm:$0xff]
        %v512 = vld [vmem:[%s486 + $0x6b] sm:$0xff]
        %v513 = vld [vmem:[%s486 + $0x7b] sm:$0xff]
        %v514 = vld [vmem:[%s486 + $0x83] sm:$0xff]
        %v515 = vld [vmem:[%s486 + $0x93] sm:$0xff]
        %v516 = vld [vmem:[%s486 + $0x9b] sm:$0xff]
        %v517 = vld [vmem:[%s486 + $0xab] sm:$0xff]
        %v518 = vld [vmem:[%s486 + $0xb3] sm:$0xff]
        %v519 = vld [vmem:[%s486 + $0x6] sm:$0xff]
        %v520 = vld [vmem:[%s486 + $0xe] sm:$0xff]
        %v521 = vld [vmem:[%s486 + $0x1e] sm:$0xff]
        %v522 = vld [vmem:[%s486 + $0x26] sm:$0xff]
        %v523 = vld [vmem:[%s486 + $0x36] sm:$0xff]
        %v524 = vld [vmem:[%s486 + $0x3e] sm:$0xff]
        %v525 = vld [vmem:[%s486 + $0x4e] sm:$0xff]
        %v526 = vld [vmem:[%s486 + $0x56] sm:$0xff]
        %v527 = vld [vmem:[%s486 + $0x66] sm:$0xff]
        %v528 = vld [vmem:[%s486 + $0x6e] sm:$0xff]
        %v529 = vld [vmem:[%s486 + $0x7e] sm:$0xff]
        %v530 = vld [vmem:[%s486 + $0x86] sm:$0xff]
        %v531 = vld [vmem:[%s486 + $0x96] sm:$0xff]
        %v532 = vld [vmem:[%s486 + $0x9e] sm:$0xff]
        %v533 = vld [vmem:[%s486 + $0xae] sm:$0xff]
        %v534 = vld [vmem:[%s486 + $0xb6] sm:$0xff]
        %v535 = vld [vmem:[%s3] sm:$0xff]
        %v536 = vld [vmem:[%s3 + $0x8] sm:$0xff]
        %v537 = vld [vmem:[%s3 + $0x10] sm:$0xff]
        %v538 = vld [vmem:[%s3 + $0x18] sm:$0xff]
        %v539 = vld [vmem:[%s3 + $0x20] sm:$0xff]
        %v540 = vld [vmem:[%s3 + $0x28] sm:$0xff]
        %v541 = vld [vmem:[%s3 + $0x30] sm:$0xff]
        %v542 = vld [vmem:[%s3 + $0x38] sm:$0xff]
        %v543 = vld [vmem:[%s3 + $0x40] sm:$0xff]
        %v544 = vld [vmem:[%s3 + $0x48] sm:$0xff]
        %v545 = vld [vmem:[%s3 + $0x50] sm:$0xff]
        %v546 = vld [vmem:[%s3 + $0x58] sm:$0xff]
        %v547 = vld [vmem:[%s3 + $0x60] sm:$0xff]
        %v548 = vld [vmem:[%s3 + $0x68] sm:$0xff]
        %v549 = vld [vmem:[%s3 + $0x70] sm:$0xff]
        %v550 = vld [vmem:[%s3 + $0x78] sm:$0xff]
        %v551 = vld [vmem:[%s3 + $0x80] sm:$0xff]
        %v552 = vld [vmem:[%s3 + $0x88] sm:$0xff]
        %v553 = vld [vmem:[%s3 + $0x90] sm:$0xff]
        %v554 = vld [vmem:[%s3 + $0x98] sm:$0xff]
        %v555 = vld [vmem:[%s3 + $0xa0] sm:$0xff]
        %v556 = vld [vmem:[%s3 + $0xa8] sm:$0xff]
        %v557 = vld [vmem:[%s3 + $0xb0] sm:$0xff]
        %v558 = vld [vmem:[%s3 + $0xb8] sm:$0xff]
        %v559 = vld [vmem:[%s3 + $0xc0] sm:$0xff]
        %v560 = vld [vmem:[%s3 + $0xc8] sm:$0xff]
        %v561 = vld [vmem:[%s3 + $0xd0] sm:$0xff]
        %v562 = vld [vmem:[%s3 + $0xd8] sm:$0xff]
        %v563 = vld [vmem:[%s3 + $0xe0] sm:$0xff]
        %v564 = vld [vmem:[%s3 + $0xe8] sm:$0xff]
        %v565 = vld [vmem:[%s3 + $0xf0] sm:$0xff]
        %v566 = vld [vmem:[%s3 + $0xf8] sm:$0xff]
        %v567 = vld [vmem:[%s3 + $0x100] sm:$0xff]
        %v568 = vld [vmem:[%s3 + $0x108] sm:$0xff]
        %v569 = vld [vmem:[%s3 + $0x110] sm:$0xff]
        %v570 = vld [vmem:[%s3 + $0x118] sm:$0xff]
        %v571 = vld [vmem:[%s3 + $0x120] sm:$0xff]
        %v572 = vld [vmem:[%s3 + $0x128] sm:$0xff]
        %v573 = vld [vmem:[%s3 + $0x130] sm:$0xff]
        %v574 = vld [vmem:[%s3 + $0x138] sm:$0xff]
        %v575 = vld [vmem:[%s3 + $0x140] sm:$0xff]
        %v576 = vld [vmem:[%s3 + $0x148] sm:$0xff]
        %v577 = vld [vmem:[%s3 + $0x150] sm:$0xff]
        %v578 = vld [vmem:[%s3 + $0x158] sm:$0xff]
        %v579 = vld [vmem:[%s3 + $0x160] sm:$0xff]
        %v580 = vld [vmem:[%s3 + $0x168] sm:$0xff]
        %v581 = vld [vmem:[%s3 + $0x170] sm:$0xff]
        %v582 = vld [vmem:[%s3 + $0x178] sm:$0xff]
        %v583 = vld [vmem:[%s3 + $0x180] sm:$0xff]
        %v584 = vld [vmem:[%s3 + $0x188] sm:$0xff]
        %v585 = vld [vmem:[%s3 + $0x190] sm:$0xff]
        %v586 = vld [vmem:[%s3 + $0x198] sm:$0xff]
        %v587 = vld [vmem:[%s3 + $0x1a0] sm:$0xff]
        %v588 = vld [vmem:[%s3 + $0x1a8] sm:$0xff]
        %v589 = vld [vmem:[%s3 + $0x1b0] sm:$0xff]
        %v590 = vld [vmem:[%s3 + $0x1b8] sm:$0xff]
        %v591 = vld [vmem:[%s3 + $0x1c0] sm:$0xff]
        %v592 = vld [vmem:[%s3 + $0x1c8] sm:$0xff]
        %v593 = vld [vmem:[%s3 + $0x1d0] sm:$0xff]
        %v594 = vld [vmem:[%s3 + $0x1d8] sm:$0xff]
        %v595 = vld [vmem:[%s3 + $0x1e0] sm:$0xff]
        %v596 = vld [vmem:[%s3 + $0x1e8] sm:$0xff]
        %v597 = vld [vmem:[%s3 + $0x1f0] sm:$0xff]
        %v598 = vld [vmem:[%s3 + $0x1f8] sm:$0xff]
        %v599 = vld [vmem:[%s3 + $0x200] sm:$0xff]
        %v600 = vld [vmem:[%s3 + $0x208] sm:$0xff]
        %v601 = vld [vmem:[%s3 + $0x210] sm:$0xff]
        %v602 = vld [vmem:[%s3 + $0x218] sm:$0xff]
        %v603 = vld [vmem:[%s3 + $0x220] sm:$0xff]
        %v604 = vld [vmem:[%s3 + $0x228] sm:$0xff]
        %v605 = vld [vmem:[%s3 + $0x230] sm:$0xff]
        %v606 = vld [vmem:[%s3 + $0x238] sm:$0xff]
        %v607 = vld [vmem:[%s3 + $0x240] sm:$0xff]
        %v608 = vld [vmem:[%s3 + $0x248] sm:$0xff]
        %v609 = vld [vmem:[%s3 + $0x250] sm:$0xff]
        %v610 = vld [vmem:[%s3 + $0x258] sm:$0xff]
        %v611 = vld [vmem:[%s3 + $0x260] sm:$0xff]
        %v612 = vld [vmem:[%s3 + $0x268] sm:$0xff]
        %v613 = vld [vmem:[%s3 + $0x270] sm:$0xff]
        %v614 = vld [vmem:[%s3 + $0x278] sm:$0xff]
        %v615 = vld [vmem:[%s3 + $0x280] sm:$0xff]
        %v616 = vld [vmem:[%s3 + $0x288] sm:$0xff]
        %v617 = vld [vmem:[%s3 + $0x290] sm:$0xff]
        %v618 = vld [vmem:[%s3 + $0x298] sm:$0xff]
        %v619 = vld [vmem:[%s3 + $0x2a0] sm:$0xff]
        %v620 = vld [vmem:[%s3 + $0x2a8] sm:$0xff]
        %v621 = vld [vmem:[%s3 + $0x2b0] sm:$0xff]
        %v622 = vld [vmem:[%s3 + $0x2b8] sm:$0xff]
        %v623 = vld [vmem:[%s3 + $0x2c0] sm:$0xff]
        %v624 = vld [vmem:[%s3 + $0x2c8] sm:$0xff]
        %v625 = vld [vmem:[%s3 + $0x2d0] sm:$0xff]
        %v626 = vld [vmem:[%s3 + $0x2d8] sm:$0xff]
        %v627 = vld [vmem:[%s3 + $0x2e0] sm:$0xff]
        %v628 = vld [vmem:[%s3 + $0x2e8] sm:$0xff]
        %v629 = vld [vmem:[%s3 + $0x2f0] sm:$0xff]
        %v630 = vld [vmem:[%s3 + $0x2f8] sm:$0xff]
        %v631 = vld [vmem:[%s3 + $0x300] sm:$0xff]
        %v632 = vld [vmem:[%s3 + $0x308] sm:$0xff]
        %v633 = vld [vmem:[%s3 + $0x310] sm:$0xff]
        %v634 = vld [vmem:[%s3 + $0x318] sm:$0xff]
        %v635 = vld [vmem:[%s3 + $0x320] sm:$0xff]
        %v636 = vld [vmem:[%s3 + $0x328] sm:$0xff]
        %v637 = vld [vmem:[%s3 + $0x330] sm:$0xff]
        %v638 = vld [vmem:[%s3 + $0x338] sm:$0xff]
        %v639 = vld [vmem:[%s3 + $0x340] sm:$0xff]
        %v640 = vld [vmem:[%s3 + $0x348] sm:$0xff]
        %v641 = vld [vmem:[%s3 + $0x350] sm:$0xff]
        %v642 = vld [vmem:[%s3 + $0x358] sm:$0xff]
        %v643 = vld [vmem:[%s3 + $0x360] sm:$0xff]
        %v644 = vld [vmem:[%s3 + $0x368] sm:$0xff]
        %v645 = vld [vmem:[%s3 + $0x370] sm:$0xff]
        %v646 = vld [vmem:[%s3 + $0x378] sm:$0xff]
        %v647 = vld [vmem:[%s3 + $0x380] sm:$0xff]
        %v648 = vld [vmem:[%s3 + $0x388] sm:$0xff]
        %v649 = vld [vmem:[%s3 + $0x390] sm:$0xff]
        %v650 = vld [vmem:[%s3 + $0x398] sm:$0xff]
        %v651 = vld [vmem:[%s3 + $0x3a0] sm:$0xff]
        %v652 = vld [vmem:[%s3 + $0x3a8] sm:$0xff]
        %v653 = vld [vmem:[%s3 + $0x3b0] sm:$0xff]
        %v654 = vld [vmem:[%s3 + $0x3b8] sm:$0xff]
        %v655 = vld [vmem:[%s3 + $0x3c0] sm:$0xff]
        %v656 = vld [vmem:[%s3 + $0x3c8] sm:$0xff]
        %v657 = vld [vmem:[%s3 + $0x3d0] sm:$0xff]
        %v658 = vld [vmem:[%s3 + $0x3d8] sm:$0xff]
        %v659 = vld [vmem:[%s3 + $0x3e0] sm:$0xff]
        %v660 = vld [vmem:[%s3 + $0x3e8] sm:$0xff]
        %v661 = vld [vmem:[%s3 + $0x3f0] sm:$0xff]
        %v662 = vld [vmem:[%s3 + $0x3f8] sm:$0xff]
        %v663 = vld [vmem:[%s3 + $0x400] sm:$0xff]
        %v664 = vld [vmem:[%s3 + $0x408] sm:$0xff]
        %v665 = vld [vmem:[%s3 + $0x410] sm:$0xff]
        %v666 = vld [vmem:[%s3 + $0x418] sm:$0xff]
        %v667 = vld [vmem:[%s3 + $0x420] sm:$0xff]
        %v668 = vld [vmem:[%s3 + $0x428] sm:$0xff]
        %v669 = vld [vmem:[%s3 + $0x430] sm:$0xff]
        %v670 = vld [vmem:[%s3 + $0x438] sm:$0xff]
        %v671 = vld [vmem:[%s3 + $0x440] sm:$0xff]
        %v672 = vld [vmem:[%s3 + $0x448] sm:$0xff]
        %v673 = vld [vmem:[%s3 + $0x450] sm:$0xff]
        %v674 = vld [vmem:[%s3 + $0x458] sm:$0xff]
        %v675 = vld [vmem:[%s3 + $0x460] sm:$0xff]
        %v676 = vld [vmem:[%s3 + $0x468] sm:$0xff]
        %v677 = vld [vmem:[%s3 + $0x470] sm:$0xff]
        %v678 = vld [vmem:[%s3 + $0x478] sm:$0xff]
        %v680 = vlaneseq
        %v681 = vshrl.u32 %v680, 7
        %v682 = vsub.s32 0, %v681
        %v683 = vrot.slane %v333, %v682
        %685 = vmatprep.subr.mxu0 0.0
        %686 = vmatpush1.msra.mxu0 %v535
        %687 = vmatprep.subr.mxu0 0.0
        %688 = vmatpush1.msra.mxu0 %v536
        %689 = vmatprep.subr.mxu0 0.0
        %690 = vmatpush1.msra.mxu0 %v537
        %691 = vmatprep.subr.mxu0 0.0
        %692 = vmatpush1.msra.mxu0 %v538
        %693 = vmatprep.subr.mxu0 0.0
        %694 = vmatpush1.msra.mxu0 %v539
        %695 = vmatprep.subr.mxu0 0.0
        %696 = vmatpush1.msra.mxu0 %v540
        %697 = vmatprep.subr.mxu0 0.0
        %698 = vmatpush1.msra.mxu0 %v541
        %699 = vmatprep.subr.mxu0 0.0
        %700 = vmatpush1.msra.mxu0 %v542
        %701 = vmatprep.subr.mxu0 0.0
        %702 = vmatpush1.msra.mxu0 %v543
        %703 = vmatprep.subr.mxu0 0.0
        %704 = vmatpush1.msra.mxu0 %v544
        %705 = vmatprep.subr.mxu0 0.0
        %706 = vmatpush1.msra.mxu0 %v545
        %707 = vmatprep.subr.mxu0 0.0
        %708 = vmatpush1.msra.mxu0 %v546
        %709 = vmatprep.subr.mxu0 0.0
        %710 = vmatpush1.msra.mxu0 %v547
        %711 = vmatprep.subr.mxu0 0.0
        %712 = vmatpush1.msra.mxu0 %v548
        %713 = vmatprep.subr.mxu0 0.0
        %714 = vmatpush1.msra.mxu0 %v549
        %715 = vmatprep.subr.mxu0 0.0
        %716 = vmatpush1.msra.mxu0 %v550
        %717 = vmatprep.subr.mxu0 0.0
        %718 = vmatpush1.msra.mxu0 %v551
        %719 = vmatprep.subr.mxu0 0.0
        %720 = vmatpush1.msra.mxu0 %v552
        %721 = vmatprep.subr.mxu0 0.0
        %722 = vmatpush1.msra.mxu0 %v553
        %723 = vmatprep.subr.mxu0 0.0
        %724 = vmatpush1.msra.mxu0 %v554
        %725 = vmatprep.subr.mxu0 0.0
        %726 = vmatpush1.msra.mxu0 %v555
        %727 = vmatprep.subr.mxu0 0.0
        %728 = vmatpush1.msra.mxu0 %v556
        %729 = vmatprep.subr.mxu0 0.0
        %730 = vmatpush1.msra.mxu0 %v557
        %731 = vmatprep.subr.mxu0 0.0
        %732 = vmatpush1.msra.mxu0 %v558
        %733 = vmatprep.subr.mxu0 0.0
        %734 = vmatpush1.msra.mxu0 %v559
        %735 = vmatprep.subr.mxu0 0.0
        %736 = vmatpush1.msra.mxu0 %v560
        %737 = vmatprep.subr.mxu0 0.0
        %738 = vmatpush1.msra.mxu0 %v561
        %739 = vmatprep.subr.mxu0 0.0
        %740 = vmatpush1.msra.mxu0 %v562
        %741 = vmatprep.subr.mxu0 0.0
        %742 = vmatpush1.msra.mxu0 %v563
        %743 = vmatprep.subr.mxu0 0.0
        %744 = vmatpush1.msra.mxu0 %v564
        %745 = vmatprep.subr.mxu0 0.0
        %746 = vmatpush1.msra.mxu0 %v565
        %747 = vmatprep.subr.mxu0 0.0
        %748 = vmatpush1.msra.mxu0 %v566
        %749 = vmatprep.mubr.f32.mxu0 %v420
        %750 = vmatmul.mubr.f32.gmra.mrb[0].mxu0 %v404
        %v751 = vpop.f32.mrb[0].mxu0
        %v752 = vadd.f32 %v683, %v751
        %v753 = vpop.f32.mrb[0].mxu0
        %754 = vmatprep.mubr.f32.mxu0 %v421
        %755 = vmatmul.mubr.f32.gmra.mrb[0].mxu0 %v405
        %v756 = vpop.f32.mrb[0].mxu0
        %v757 = vadd.f32 %v683, %v756
        %v758 = vpop.f32.mrb[0].mxu0
        %759 = vmatprep.mubr.f32.mxu0 %v422
        %760 = vmatmul.mubr.f32.gmra.mrb[0].mxu0 %v406
        %v761 = vpop.f32.mrb[0].mxu0
        %v762 = vadd.f32 %v683, %v761
        %v763 = vpop.f32.mrb[0].mxu0
        %764 = vmatprep.mubr.f32.mxu0 %v423
        %765 = vmatmul.mubr.f32.gmra.mrb[0].mxu0 %v407
        %v766 = vpop.f32.mrb[0].mxu0
        %v767 = vadd.f32 %v683, %v766
        %v768 = vpop.f32.mrb[0].mxu0
        %769 = vmatprep.mubr.f32.mxu0 %v424
        %770 = vmatmul.mubr.f32.gmra.mrb[0].mxu0 %v408
        %v771 = vpop.f32.mrb[0].mxu0
        %v772 = vadd.f32 %v683, %v771
        %v773 = vpop.f32.mrb[0].mxu0
        %774 = vmatprep.mubr.f32.mxu0 %v425
        %775 = vmatmul.mubr.f32.gmra.mrb[0].mxu0 %v409
        %v776 = vpop.f32.mrb[0].mxu0
        %v777 = vadd.f32 %v683, %v776
        %v778 = vpop.f32.mrb[0].mxu0
        %779 = vmatprep.mubr.f32.mxu0 %v426
        %780 = vmatmul.mubr.f32.gmra.mrb[0].mxu0 %v410
        %v781 = vpop.f32.mrb[0].mxu0
        %v782 = vadd.f32 %v683, %v781
        %v783 = vpop.f32.mrb[0].mxu0
        %784 = vmatprep.mubr.f32.mxu0 %v427
        %785 = vmatmul.mubr.f32.gmra.mrb[0].mxu0 %v411
        %v786 = vpop.f32.mrb[0].mxu0
        %v787 = vadd.f32 %v683, %v786
        %v788 = vpop.f32.mrb[0].mxu0
        %789 = vmatprep.mubr.f32.mxu0 %v428
        %790 = vmatmul.mubr.f32.gmra.mrb[0].mxu0 %v412
        %v791 = vpop.f32.mrb[0].mxu0
        %v792 = vadd.f32 %v683, %v791
        %v793 = vpop.f32.mrb[0].mxu0
        %794 = vmatprep.mubr.f32.mxu0 %v429
        %795 = vmatmul.mubr.f32.gmra.mrb[0].mxu0 %v413
        %v796 = vpop.f32.mrb[0].mxu0
        %v797 = vadd.f32 %v683, %v796
        %v798 = vpop.f32.mrb[0].mxu0
        %799 = vmatprep.mubr.f32.mxu0 %v430
        %800 = vmatmul.mubr.f32.gmra.mrb[0].mxu0 %v414
        %v801 = vpop.f32.mrb[0].mxu0
        %v802 = vadd.f32 %v683, %v801
        %v803 = vpop.f32.mrb[0].mxu0
        %804 = vmatprep.mubr.f32.mxu0 %v431
        %805 = vmatmul.mubr.f32.gmra.mrb[0].mxu0 %v415
        %v806 = vpop.f32.mrb[0].mxu0
        %v807 = vadd.f32 %v683, %v806
        %v808 = vpop.f32.mrb[0].mxu0
        %809 = vmatprep.mubr.f32.mxu0 %v432
        %810 = vmatmul.mubr.f32.gmra.mrb[0].mxu0 %v416
        %v811 = vpop.f32.mrb[0].mxu0
        %v812 = vadd.f32 %v683, %v811
        %v813 = vpop.f32.mrb[0].mxu0
        %814 = vmatprep.mubr.f32.mxu0 %v433
        %815 = vmatmul.mubr.f32.gmra.mrb[0].mxu0 %v417
        %v816 = vpop.f32.mrb[0].mxu0
        %v817 = vadd.f32 %v683, %v816
        %v818 = vpop.f32.mrb[0].mxu0
        %819 = vmatprep.mubr.f32.mxu0 %v434
        %820 = vmatmul.mubr.f32.gmra.mrb[0].mxu0 %v418
        %v821 = vpop.f32.mrb[0].mxu0
        %v822 = vadd.f32 %v683, %v821
        %v823 = vpop.f32.mrb[0].mxu0
        %824 = vmatprep.mubr.f32.mxu0 %v435
        %825 = vmatmul.mubr.f32.gmra.mrb[0].mxu0 %v419
        %v826 = vpop.f32.mrb[0].mxu0
        %v827 = vadd.f32 %v683, %v826
        %v828 = vpop.f32.mrb[0].mxu0
        %829 = vdwg.mxu0
        %830 = vmatprep.subr.mxu0 0.0
        %831 = vmatpush1.msra.mxu0 %v567
        %832 = vmatprep.subr.mxu0 0.0
        %833 = vmatpush1.msra.mxu0 %v568
        %834 = vmatprep.subr.mxu0 0.0
        %835 = vmatpush1.msra.mxu0 %v569
        %836 = vmatprep.subr.mxu0 0.0
        %837 = vmatpush1.msra.mxu0 %v570
        %838 = vmatprep.subr.mxu0 0.0
        %839 = vmatpush1.msra.mxu0 %v571
        %840 = vmatprep.subr.mxu0 0.0
        %841 = vmatpush1.msra.mxu0 %v572
        %842 = vmatprep.subr.mxu0 0.0
        %843 = vmatpush1.msra.mxu0 %v573
        %844 = vmatprep.subr.mxu0 0.0
        %845 = vmatpush1.msra.mxu0 %v574
        %846 = vmatprep.subr.mxu0 0.0
        %847 = vmatpush1.msra.mxu0 %v575
        %848 = vmatprep.subr.mxu0 0.0
        %849 = vmatpush1.msra.mxu0 %v576
        %850 = vmatprep.subr.mxu0 0.0
        %851 = vmatpush1.msra.mxu0 %v577
        %852 = vmatprep.subr.mxu0 0.0
        %853 = vmatpush1.msra.mxu0 %v578
        %854 = vmatprep.subr.mxu0 0.0
        %855 = vmatpush1.msra.mxu0 %v579
        %856 = vmatprep.subr.mxu0 0.0
        %857 = vmatpush1.msra.mxu0 %v580
        %858 = vmatprep.subr.mxu0 0.0
        %859 = vmatpush1.msra.mxu0 %v581
        %860 = vmatprep.subr.mxu0 0.0
        %861 = vmatpush1.msra.mxu0 %v582
        %862 = vmatprep.subr.mxu0 0.0
        %863 = vmatpush1.msra.mxu0 %v583
        %864 = vmatprep.subr.mxu0 0.0
        %865 = vmatpush1.msra.mxu0 %v584
        %866 = vmatprep.subr.mxu0 0.0
        %867 = vmatpush1.msra.mxu0 %v585
        %868 = vmatprep.subr.mxu0 0.0
        %869 = vmatpush1.msra.mxu0 %v586
        %870 = vmatprep.subr.mxu0 0.0
        %871 = vmatpush1.msra.mxu0 %v587
        %872 = vmatprep.subr.mxu0 0.0
        %873 = vmatpush1.msra.mxu0 %v588
        %874 = vmatprep.subr.mxu0 0.0
        %875 = vmatpush1.msra.mxu0 %v589
        %876 = vmatprep.subr.mxu0 0.0
        %877 = vmatpush1.msra.mxu0 %v590
        %878 = vmatprep.subr.mxu0 0.0
        %879 = vmatpush1.msra.mxu0 %v591
        %880 = vmatprep.subr.mxu0 0.0
        %881 = vmatpush1.msra.mxu0 %v592
        %882 = vmatprep.subr.mxu0 0.0
        %883 = vmatpush1.msra.mxu0 %v593
        %884 = vmatprep.subr.mxu0 0.0
        %885 = vmatpush1.msra.mxu0 %v594
        %886 = vmatprep.subr.mxu0 0.0
        %887 = vmatpush1.msra.mxu0 %v595
        %888 = vmatprep.subr.mxu0 0.0
        %889 = vmatpush1.msra.mxu0 %v596
        %890 = vmatprep.subr.mxu0 0.0
        %891 = vmatpush1.msra.mxu0 %v597
        %892 = vmatprep.subr.mxu0 0.0
        %893 = vmatpush1.msra.mxu0 %v598
        %894 = vmatprep.mubr.f32.mxu0 %v452
        %895 = vmatmul.mubr.f32.gmra.mrb[0].mxu0 %v436
        %v896 = vpop.f32.mrb[0].mxu0
        %v897 = vadd.f32 %v752, %v896
        %v898 = vpop.f32.mrb[0].mxu0
        %899 = vmatprep.mubr.f32.mxu0 %v453
        %900 = vmatmul.mubr.f32.gmra.mrb[0].mxu0 %v437
        %v901 = vpop.f32.mrb[0].mxu0
        %v902 = vadd.f32 %v757, %v901
        %v903 = vpop.f32.mrb[0].mxu0
        %904 = vmatprep.mubr.f32.mxu0 %v454
        %905 = vmatmul.mubr.f32.gmra.mrb[0].mxu0 %v438
        %v906 = vpop.f32.mrb[0].mxu0
        %v907 = vadd.f32 %v762, %v906
        %v908 = vpop.f32.mrb[0].mxu0
        %909 = vmatprep.mubr.f32.mxu0 %v455
        %910 = vmatmul.mubr.f32.gmra.mrb[0].mxu0 %v439
        %v911 = vpop.f32.mrb[0].mxu0
        %v912 = vadd.f32 %v767, %v911
        %v913 = vpop.f32.mrb[0].mxu0
        %914 = vmatprep.mubr.f32.mxu0 %v456
        %915 = vmatmul.mubr.f32.gmra.mrb[0].mxu0 %v440
        %v916 = vpop.f32.mrb[0].mxu0
        %v917 = vadd.f32 %v772, %v916
        %v918 = vpop.f32.mrb[0].mxu0
        %919 = vmatprep.mubr.f32.mxu0 %v457
        %920 = vmatmul.mubr.f32.gmra.mrb[0].mxu0 %v441
        %v921 = vpop.f32.mrb[0].mxu0
        %v922 = vadd.f32 %v777, %v921
        %v923 = vpop.f32.mrb[0].mxu0
        %924 = vmatprep.mubr.f32.mxu0 %v458
        %925 = vmatmul.mubr.f32.gmra.mrb[0].mxu0 %v442
        %v926 = vpop.f32.mrb[0].mxu0
        %v927 = vadd.f32 %v782, %v926
        %v928 = vpop.f32.mrb[0].mxu0
        %929 = vmatprep.mubr.f32.mxu0 %v459
        %930 = vmatmul.mubr.f32.gmra.mrb[0].mxu0 %v443
        %v931 = vpop.f32.mrb[0].mxu0
        %v932 = vadd.f32 %v787, %v931
        %v933 = vpop.f32.mrb[0].mxu0
        %934 = vmatprep.mubr.f32.mxu0 %v460
        %935 = vmatmul.mubr.f32.gmra.mrb[0].mxu0 %v444
        %v936 = vpop.f32.mrb[0].mxu0
        %v937 = vadd.f32 %v792, %v936
        %v938 = vpop.f32.mrb[0].mxu0
        %939 = vmatprep.mubr.f32.mxu0 %v461
        %940 = vmatmul.mubr.f32.gmra.mrb[0].mxu0 %v445
        %v941 = vpop.f32.mrb[0].mxu0
        %v942 = vadd.f32 %v797, %v941
        %v943 = vpop.f32.mrb[0].mxu0
        %944 = vmatprep.mubr.f32.mxu0 %v462
        %945 = vmatmul.mubr.f32.gmra.mrb[0].mxu0 %v446
        %v946 = vpop.f32.mrb[0].mxu0
        %v947 = vadd.f32 %v802, %v946
        %v948 = vpop.f32.mrb[0].mxu0
        %949 = vmatprep.mubr.f32.mxu0 %v463
        %950 = vmatmul.mubr.f32.gmra.mrb[0].mxu0 %v447
        %v951 = vpop.f32.mrb[0].mxu0
        %v952 = vadd.f32 %v807, %v951
        %v953 = vpop.f32.mrb[0].mxu0
        %954 = vmatprep.mubr.f32.mxu0 %v464
        %955 = vmatmul.mubr.f32.gmra.mrb[0].mxu0 %v448
        %v956 = vpop.f32.mrb[0].mxu0
        %v957 = vadd.f32 %v812, %v956
        %v958 = vpop.f32.mrb[0].mxu0
        %959 = vmatprep.mubr.f32.mxu0 %v465
        %960 = vmatmul.mubr.f32.gmra.mrb[0].mxu0 %v449
        %v961 = vpop.f32.mrb[0].mxu0
        %v962 = vadd.f32 %v817, %v961
        %v963 = vpop.f32.mrb[0].mxu0
        %964 = vmatprep.mubr.f32.mxu0 %v466
        %965 = vmatmul.mubr.f32.gmra.mrb[0].mxu0 %v450
        %v966 = vpop.f32.mrb[0].mxu0
        %v967 = vadd.f32 %v822, %v966
        %v968 = vpop.f32.mrb[0].mxu0
        %969 = vmatprep.mubr.f32.mxu0 %v467
        %970 = vmatmul.mubr.f32.gmra.mrb[0].mxu0 %v451
        %v971 = vpop.f32.mrb[0].mxu0
        %v972 = vadd.f32 %v827, %v971
        %v973 = vpop.f32.mrb[0].mxu0
        %974 = vdwg.mxu0
        %975 = vmatprep.subr.mxu0 0.0
        %976 = vmatpush1.msra.mxu0 %v599
        %977 = vmatprep.subr.mxu0 0.0
        %978 = vmatpush1.msra.mxu0 %v600
        %979 = vmatprep.subr.mxu0 0.0
        %980 = vmatpush1.msra.mxu0 %v601
        %981 = vmatprep.subr.mxu0 0.0
        %982 = vmatpush1.msra.mxu0 %v602
        %983 = vmatprep.subr.mxu0 0.0
        %984 = vmatpush1.msra.mxu0 %v603
        %985 = vmatprep.subr.mxu0 0.0
        %986 = vmatpush1.msra.mxu0 %v604
        %987 = vmatprep.subr.mxu0 0.0
        %988 = vmatpush1.msra.mxu0 %v605
        %989 = vmatprep.subr.mxu0 0.0
        %990 = vmatpush1.msra.mxu0 %v606
        %991 = vmatprep.subr.mxu0 0.0
        %992 = vmatpush1.msra.mxu0 %v607
        %993 = vmatprep.subr.mxu0 0.0
        %994 = vmatpush1.msra.mxu0 %v608
        %995 = vmatprep.subr.mxu0 0.0
        %996 = vmatpush1.msra.mxu0 %v609
        %997 = vmatprep.subr.mxu0 0.0
        %998 = vmatpush1.msra.mxu0 %v610
        %999 = vmatprep.subr.mxu0 0.0
        %1000 = vmatpush1.msra.mxu0 %v611
        %1001 = vmatprep.subr.mxu0 0.0
        %1002 = vmatpush1.msra.mxu0 %v612
        %1003 = vmatprep.subr.mxu0 0.0
        %1004 = vmatpush1.msra.mxu0 %v613
        %1005 = vmatprep.subr.mxu0 0.0
        %1006 = vmatpush1.msra.mxu0 %v614
        %1007 = vmatprep.subr.mxu0 0.0
        %1008 = vmatpush1.msra.mxu0 %v615
        %1009 = vmatprep.subr.mxu0 0.0
        %1010 = vmatpush1.msra.mxu0 %v616
        %1011 = vmatprep.subr.mxu0 0.0
        %1012 = vmatpush1.msra.mxu0 %v617
        %1013 = vmatprep.subr.mxu0 0.0
        %1014 = vmatpush1.msra.mxu0 %v618
        %1015 = vmatprep.subr.mxu0 0.0
        %1016 = vmatpush1.msra.mxu0 %v619
        %1017 = vmatprep.subr.mxu0 0.0
        %1018 = vmatpush1.msra.mxu0 %v620
        %1019 = vmatprep.subr.mxu0 0.0
        %1020 = vmatpush1.msra.mxu0 %v621
        %1021 = vmatprep.subr.mxu0 0.0
        %1022 = vmatpush1.msra.mxu0 %v622
        %1023 = vmatprep.subr.mxu0 0.0
        %1024 = vmatpush1.msra.mxu0 %v623
        %1025 = vmatprep.subr.mxu0 0.0
        %1026 = vmatpush1.msra.mxu0 %v624
        %1027 = vmatprep.subr.mxu0 0.0
        %1028 = vmatpush1.msra.mxu0 %v625
        %1029 = vmatprep.subr.mxu0 0.0
        %1030 = vmatpush1.msra.mxu0 %v626
        %1031 = vmatprep.subr.mxu0 0.0
        %1032 = vmatpush1.msra.mxu0 %v627
        %1033 = vmatprep.subr.mxu0 0.0
        %1034 = vmatpush1.msra.mxu0 %v628
        %1035 = vmatprep.subr.mxu0 0.0
        %1036 = vmatpush1.msra.mxu0 %v629
        %1037 = vmatprep.subr.mxu0 0.0
        %1038 = vmatpush1.msra.mxu0 %v630
        %1039 = vmatprep.mubr.f32.mxu0 %v468
        %1040 = vmatmul.mubr.f32.gmra.mrb[0].mxu0 %v337
        %v1041 = vpop.f32.mrb[0].mxu0
        %v1042 = vadd.f32 %v897, %v1041
        %v1043 = vpop.f32.mrb[0].mxu0
        %1044 = vmatprep.mubr.f32.mxu0 %v469
        %1045 = vmatmul.mubr.f32.gmra.mrb[0].mxu0 %v338
        %v1046 = vpop.f32.mrb[0].mxu0
        %v1047 = vadd.f32 %v902, %v1046
        %v1048 = vpop.f32.mrb[0].mxu0
        %1049 = vmatprep.mubr.f32.mxu0 %v470
        %1050 = vmatmul.mubr.f32.gmra.mrb[0].mxu0 %v339
        %v1051 = vpop.f32.mrb[0].mxu0
        %v1052 = vadd.f32 %v907, %v1051
        %v1053 = vpop.f32.mrb[0].mxu0
        %1054 = vmatprep.mubr.f32.mxu0 %v471
        %1055 = vmatmul.mubr.f32.gmra.mrb[0].mxu0 %v340
        %v1056 = vpop.f32.mrb[0].mxu0
        %v1057 = vadd.f32 %v912, %v1056
        %v1058 = vpop.f32.mrb[0].mxu0
        %1059 = vmatprep.mubr.f32.mxu0 %v472
        %1060 = vmatmul.mubr.f32.gmra.mrb[0].mxu0 %v341
        %v1061 = vpop.f32.mrb[0].mxu0
        %v1062 = vadd.f32 %v917, %v1061
        %v1063 = vpop.f32.mrb[0].mxu0
        %1064 = vmatprep.mubr.f32.mxu0 %v473
        %1065 = vmatmul.mubr.f32.gmra.mrb[0].mxu0 %v342
        %v1066 = vpop.f32.mrb[0].mxu0
        %v1067 = vadd.f32 %v922, %v1066
        %v1068 = vpop.f32.mrb[0].mxu0
        %1069 = vmatprep.mubr.f32.mxu0 %v474
        %1070 = vmatmul.mubr.f32.gmra.mrb[0].mxu0 %v343
        %v1071 = vpop.f32.mrb[0].mxu0
        %v1072 = vadd.f32 %v927, %v1071
        %v1073 = vpop.f32.mrb[0].mxu0
        %1074 = vmatprep.mubr.f32.mxu0 %v475
        %1075 = vmatmul.mubr.f32.gmra.mrb[0].mxu0 %v344
        %v1076 = vpop.f32.mrb[0].mxu0
        %v1077 = vadd.f32 %v932, %v1076
        %v1078 = vpop.f32.mrb[0].mxu0
        %1079 = vmatprep.mubr.f32.mxu0 %v476
        %1080 = vmatmul.mubr.f32.gmra.mrb[0].mxu0 %v345
        %v1081 = vpop.f32.mrb[0].mxu0
        %v1082 = vadd.f32 %v937, %v1081
        %v1083 = vpop.f32.mrb[0].mxu0
        %1084 = vmatprep.mubr.f32.mxu0 %v477
        %1085 = vmatmul.mubr.f32.gmra.mrb[0].mxu0 %v346
        %v1086 = vpop.f32.mrb[0].mxu0
        %v1087 = vadd.f32 %v942, %v1086
        %v1088 = vpop.f32.mrb[0].mxu0
        %1089 = vmatprep.mubr.f32.mxu0 %v478
        %1090 = vmatmul.mubr.f32.gmra.mrb[0].mxu0 %v347
        %v1091 = vpop.f32.mrb[0].mxu0
        %v1092 = vadd.f32 %v947, %v1091
        %v1093 = vpop.f32.mrb[0].mxu0
        %1094 = vmatprep.mubr.f32.mxu0 %v479
        %1095 = vmatmul.mubr.f32.gmra.mrb[0].mxu0 %v348
        %v1096 = vpop.f32.mrb[0].mxu0
        %v1097 = vadd.f32 %v952, %v1096
        %v1098 = vpop.f32.mrb[0].mxu0
        %1099 = vmatprep.mubr.f32.mxu0 %v480
        %1100 = vmatmul.mubr.f32.gmra.mrb[0].mxu0 %v349
        %v1101 = vpop.f32.mrb[0].mxu0
        %v1102 = vadd.f32 %v957, %v1101
        %v1103 = vpop.f32.mrb[0].mxu0
        %1104 = vmatprep.mubr.f32.mxu0 %v481
        %1105 = vmatmul.mubr.f32.gmra.mrb[0].mxu0 %v350
        %v1106 = vpop.f32.mrb[0].mxu0
        %v1107 = vadd.f32 %v962, %v1106
        %v1108 = vpop.f32.mrb[0].mxu0
        %1109 = vmatprep.mubr.f32.mxu0 %v482
        %1110 = vmatmul.mubr.f32.gmra.mrb[0].mxu0 %v351
        %v1111 = vpop.f32.mrb[0].mxu0
        %v1112 = vadd.f32 %v967, %v1111
        %v1113 = vpop.f32.mrb[0].mxu0
        %1114 = vmatprep.mubr.f32.mxu0 %v483
        %1115 = vmatmul.mubr.f32.gmra.mrb[0].mxu0 %v352
        %v1116 = vpop.f32.mrb[0].mxu0
        %v1117 = vadd.f32 %v972, %v1116
        %v1118 = vpop.f32.mrb[0].mxu0
        %1119 = vdwg.mxu0
        %1120 = vmatprep.subr.mxu0 0.0
        %1121 = vmatpush1.msra.mxu0 %v631
        %1122 = vmatprep.subr.mxu0 0.0
        %1123 = vmatpush1.msra.mxu0 %v632
        %1124 = vmatprep.subr.mxu0 0.0
        %1125 = vmatpush1.msra.mxu0 %v633
        %1126 = vmatprep.subr.mxu0 0.0
        %1127 = vmatpush1.msra.mxu0 %v634
        %1128 = vmatprep.subr.mxu0 0.0
        %1129 = vmatpush1.msra.mxu0 %v635
        %1130 = vmatprep.subr.mxu0 0.0
        %1131 = vmatpush1.msra.mxu0 %v636
        %1132 = vmatprep.subr.mxu0 0.0
        %1133 = vmatpush1.msra.mxu0 %v637
        %1134 = vmatprep.subr.mxu0 0.0
        %1135 = vmatpush1.msra.mxu0 %v638
        %1136 = vmatprep.subr.mxu0 0.0
        %1137 = vmatpush1.msra.mxu0 %v639
        %1138 = vmatprep.subr.mxu0 0.0
        %1139 = vmatpush1.msra.mxu0 %v640
        %1140 = vmatprep.subr.mxu0 0.0
        %1141 = vmatpush1.msra.mxu0 %v641
        %1142 = vmatprep.subr.mxu0 0.0
        %1143 = vmatpush1.msra.mxu0 %v642
        %1144 = vmatprep.subr.mxu0 0.0
        %1145 = vmatpush1.msra.mxu0 %v643
        %1146 = vmatprep.subr.mxu0 0.0
        %1147 = vmatpush1.msra.mxu0 %v644
        %1148 = vmatprep.subr.mxu0 0.0
        %1149 = vmatpush1.msra.mxu0 %v645
        %1150 = vmatprep.subr.mxu0 0.0
        %1151 = vmatpush1.msra.mxu0 %v646
        %1152 = vmatprep.subr.mxu0 0.0
        %1153 = vmatpush1.msra.mxu0 %v647
        %1154 = vmatprep.subr.mxu0 0.0
        %1155 = vmatpush1.msra.mxu0 %v648
        %1156 = vmatprep.subr.mxu0 0.0
        %1157 = vmatpush1.msra.mxu0 %v649
        %1158 = vmatprep.subr.mxu0 0.0
        %1159 = vmatpush1.msra.mxu0 %v650
        %1160 = vmatprep.subr.mxu0 0.0
        %1161 = vmatpush1.msra.mxu0 %v651
        %1162 = vmatprep.subr.mxu0 0.0
        %1163 = vmatpush1.msra.mxu0 %v652
        %1164 = vmatprep.subr.mxu0 0.0
        %1165 = vmatpush1.msra.mxu0 %v653
        %1166 = vmatprep.subr.mxu0 0.0
        %1167 = vmatpush1.msra.mxu0 %v654
        %1168 = vmatprep.subr.mxu0 0.0
        %1169 = vmatpush1.msra.mxu0 %v655
        %1170 = vmatprep.subr.mxu0 0.0
        %1171 = vmatpush1.msra.mxu0 %v656
        %1172 = vmatprep.subr.mxu0 0.0
        %1173 = vmatpush1.msra.mxu0 %v657
        %1174 = vmatprep.subr.mxu0 0.0
        %1175 = vmatpush1.msra.mxu0 %v658
        %1176 = vmatprep.subr.mxu0 0.0
        %1177 = vmatpush1.msra.mxu0 %v659
        %1178 = vmatprep.subr.mxu0 0.0
        %1179 = vmatpush1.msra.mxu0 %v660
        %1180 = vmatprep.subr.mxu0 0.0
        %1181 = vmatpush1.msra.mxu0 %v661
        %1182 = vmatprep.subr.mxu0 0.0
        %1183 = vmatpush1.msra.mxu0 %v662
        %1184 = vmatprep.mubr.f32.mxu0 %v503
        %1185 = vmatmul.mubr.f32.gmra.mrb[0].mxu0 %v487
        %v1186 = vpop.f32.mrb[0].mxu0
        %v1187 = vadd.f32 %v1042, %v1186
        %v1188 = vpop.f32.mrb[0].mxu0
        %1189 = vmatprep.mubr.f32.mxu0 %v504
        %1190 = vmatmul.mubr.f32.gmra.mrb[0].mxu0 %v488
        %v1191 = vpop.f32.mrb[0].mxu0
        %v1192 = vadd.f32 %v1047, %v1191
        %v1193 = vpop.f32.mrb[0].mxu0
        %1194 = vmatprep.mubr.f32.mxu0 %v505
        %1195 = vmatmul.mubr.f32.gmra.mrb[0].mxu0 %v489
        %v1196 = vpop.f32.mrb[0].mxu0
        %v1197 = vadd.f32 %v1052, %v1196
        %v1198 = vpop.f32.mrb[0].mxu0
        %1199 = vmatprep.mubr.f32.mxu0 %v506
        %1200 = vmatmul.mubr.f32.gmra.mrb[0].mxu0 %v490
        %v1201 = vpop.f32.mrb[0].mxu0
        %v1202 = vadd.f32 %v1057, %v1201
        %v1203 = vpop.f32.mrb[0].mxu0
        %1204 = vmatprep.mubr.f32.mxu0 %v507
        %1205 = vmatmul.mubr.f32.gmra.mrb[0].mxu0 %v491
        %v1206 = vpop.f32.mrb[0].mxu0
        %v1207 = vadd.f32 %v1062, %v1206
        %v1208 = vpop.f32.mrb[0].mxu0
        %1209 = vmatprep.mubr.f32.mxu0 %v508
        %1210 = vmatmul.mubr.f32.gmra.mrb[0].mxu0 %v492
        %v1211 = vpop.f32.mrb[0].mxu0
        %v1212 = vadd.f32 %v1067, %v1211
        %v1213 = vpop.f32.mrb[0].mxu0
        %1214 = vmatprep.mubr.f32.mxu0 %v509
        %1215 = vmatmul.mubr.f32.gmra.mrb[0].mxu0 %v493
        %v1216 = vpop.f32.mrb[0].mxu0
        %v1217 = vadd.f32 %v1072, %v1216
        %v1218 = vpop.f32.mrb[0].mxu0
        %1219 = vmatprep.mubr.f32.mxu0 %v510
        %1220 = vmatmul.mubr.f32.gmra.mrb[0].mxu0 %v494
        %v1221 = vpop.f32.mrb[0].mxu0
        %v1222 = vadd.f32 %v1077, %v1221
        %v1223 = vpop.f32.mrb[0].mxu0
        %1224 = vmatprep.mubr.f32.mxu0 %v511
        %1225 = vmatmul.mubr.f32.gmra.mrb[0].mxu0 %v495
        %v1226 = vpop.f32.mrb[0].mxu0
        %v1227 = vadd.f32 %v1082, %v1226
        %v1228 = vpop.f32.mrb[0].mxu0
        %1229 = vmatprep.mubr.f32.mxu0 %v512
        %1230 = vmatmul.mubr.f32.gmra.mrb[0].mxu0 %v496
        %v1231 = vpop.f32.mrb[0].mxu0
        %v1232 = vadd.f32 %v1087, %v1231
        %v1233 = vpop.f32.mrb[0].mxu0
        %1234 = vmatprep.mubr.f32.mxu0 %v513
        %1235 = vmatmul.mubr.f32.gmra.mrb[0].mxu0 %v497
        %v1236 = vpop.f32.mrb[0].mxu0
        %v1237 = vadd.f32 %v1092, %v1236
        %v1238 = vpop.f32.mrb[0].mxu0
        %1239 = vmatprep.mubr.f32.mxu0 %v514
        %1240 = vmatmul.mubr.f32.gmra.mrb[0].mxu0 %v498
        %v1241 = vpop.f32.mrb[0].mxu0
        %v1242 = vadd.f32 %v1097, %v1241
        %v1243 = vpop.f32.mrb[0].mxu0
        %1244 = vmatprep.mubr.f32.mxu0 %v515
        %1245 = vmatmul.mubr.f32.gmra.mrb[0].mxu0 %v499
        %v1246 = vpop.f32.mrb[0].mxu0
        %v1247 = vadd.f32 %v1102, %v1246
        %v1248 = vpop.f32.mrb[0].mxu0
        %1249 = vmatprep.mubr.f32.mxu0 %v516
        %1250 = vmatmul.mubr.f32.gmra.mrb[0].mxu0 %v500
        %v1251 = vpop.f32.mrb[0].mxu0
        %v1252 = vadd.f32 %v1107, %v1251
        %v1253 = vpop.f32.mrb[0].mxu0
        %1254 = vmatprep.mubr.f32.mxu0 %v517
        %1255 = vmatmul.mubr.f32.gmra.mrb[0].mxu0 %v501
        %v1256 = vpop.f32.mrb[0].mxu0
        %v1257 = vadd.f32 %v1112, %v1256
        %v1258 = vpop.f32.mrb[0].mxu0
        %1259 = vmatprep.mubr.f32.mxu0 %v518
        %1260 = vmatmul.mubr.f32.gmra.mrb[0].mxu0 %v502
        %v1261 = vpop.f32.mrb[0].mxu0
        %v1262 = vadd.f32 %v1117, %v1261
        %v1263 = vpop.f32.mrb[0].mxu0
        %1264 = vdwg.mxu0
        %1265 = vmatprep.subr.mxu0 0.0
        %1266 = vmatpush1.msra.mxu0 %v663
        %1267 = vmatprep.subr.mxu0 0.0
        %1268 = vmatpush1.msra.mxu0 %v664
        %1269 = vmatprep.subr.mxu0 0.0
        %1270 = vmatpush1.msra.mxu0 %v665
        %1271 = vmatprep.subr.mxu0 0.0
        %1272 = vmatpush1.msra.mxu0 %v666
        %1273 = vmatprep.subr.mxu0 0.0
        %1274 = vmatpush1.msra.mxu0 %v667
        %1275 = vmatprep.subr.mxu0 0.0
        %1276 = vmatpush1.msra.mxu0 %v668
        %1277 = vmatprep.subr.mxu0 0.0
        %1278 = vmatpush1.msra.mxu0 %v669
        %1279 = vmatprep.subr.mxu0 0.0
        %1280 = vmatpush1.msra.mxu0 %v670
        %1281 = vmatprep.subr.mxu0 0.0
        %1282 = vmatpush1.msra.mxu0 %v671
        %1283 = vmatprep.subr.mxu0 0.0
        %1284 = vmatpush1.msra.mxu0 %v672
        %1285 = vmatprep.subr.mxu0 0.0
        %1286 = vmatpush1.msra.mxu0 %v673
        %1287 = vmatprep.subr.mxu0 0.0
        %1288 = vmatpush1.msra.mxu0 %v674
        %1289 = vmatprep.subr.mxu0 0.0
        %1290 = vmatpush1.msra.mxu0 %v675
        %1291 = vmatprep.subr.mxu0 0.0
        %1292 = vmatpush1.msra.mxu0 %v676
        %1293 = vmatprep.subr.mxu0 0.0
        %1294 = vmatpush1.msra.mxu0 %v677
        %1295 = vmatprep.subr.mxu0 0.0
        %1296 = vmatpush1.msra.mxu0 %v678
        %1297 = vmatprep.subr.mxu0 0.0
        %1298 = vmatpush1.msra.mxu0 0.0
        %1299 = vmatprep.subr.mxu0 0.0
        %1300 = vmatpush1.msra.mxu0 0.0
        %1301 = vmatprep.subr.mxu0 0.0
        %1302 = vmatpush1.msra.mxu0 0.0
        %1303 = vmatprep.subr.mxu0 0.0
        %1304 = vmatpush1.msra.mxu0 0.0
        %1305 = vmatprep.subr.mxu0 0.0
        %1306 = vmatpush1.msra.mxu0 0.0
        %1307 = vmatprep.subr.mxu0 0.0
        %1308 = vmatpush1.msra.mxu0 0.0
        %1309 = vmatprep.subr.mxu0 0.0
        %1310 = vmatpush1.msra.mxu0 0.0
        %1311 = vmatprep.subr.mxu0 0.0
        %1312 = vmatpush1.msra.mxu0 0.0
        %1313 = vmatprep.subr.mxu0 0.0
        %1314 = vmatpush1.msra.mxu0 0.0
        %1315 = vmatprep.subr.mxu0 0.0
        %1316 = vmatpush1.msra.mxu0 0.0
        %1317 = vmatprep.subr.mxu0 0.0
        %1318 = vmatpush1.msra.mxu0 0.0
        %1319 = vmatprep.subr.mxu0 0.0
        %1320 = vmatpush1.msra.mxu0 0.0
        %1321 = vmatprep.subr.mxu0 0.0
        %1322 = vmatpush1.msra.mxu0 0.0
        %1323 = vmatprep.subr.mxu0 0.0
        %1324 = vmatpush1.msra.mxu0 0.0
        %1325 = vmatprep.subr.mxu0 0.0
        %1326 = vmatpush1.msra.mxu0 0.0
        %1327 = vmatprep.subr.mxu0 0.0
        %1328 = vmatpush1.msra.mxu0 0.0
        %1329 = vmatprep.mubr.f32.mxu0 0.0
        %1330 = vmatmul.mubr.f32.gmra.mrb[0].mxu0 %v519
        %v1331 = vpop.f32.mrb[0].mxu0
        %v1332 = vadd.f32 %v1187, %v1331
        %v1333 = vpop.f32.mrb[0].mxu0
        %1334 = vmatprep.mubr.f32.mxu0 0.0
        %1335 = vmatmul.mubr.f32.gmra.mrb[0].mxu0 %v520
        %v1336 = vpop.f32.mrb[0].mxu0
        %v1337 = vadd.f32 %v1192, %v1336
        %v1338 = vpop.f32.mrb[0].mxu0
        %1339 = vmatprep.mubr.f32.mxu0 0.0
        %1340 = vmatmul.mubr.f32.gmra.mrb[0].mxu0 %v521
        %v1341 = vpop.f32.mrb[0].mxu0
        %v1342 = vadd.f32 %v1197, %v1341
        %v1343 = vpop.f32.mrb[0].mxu0
        %1344 = vmatprep.mubr.f32.mxu0 0.0
        %1345 = vmatmul.mubr.f32.gmra.mrb[0].mxu0 %v522
        %v1346 = vpop.f32.mrb[0].mxu0
        %v1347 = vadd.f32 %v1202, %v1346
        %v1348 = vpop.f32.mrb[0].mxu0
        %1349 = vmatprep.mubr.f32.mxu0 0.0
        %1350 = vmatmul.mubr.f32.gmra.mrb[0].mxu0 %v523
        %v1351 = vpop.f32.mrb[0].mxu0
        %v1352 = vadd.f32 %v1207, %v1351
        %v1353 = vpop.f32.mrb[0].mxu0
        %1354 = vmatprep.mubr.f32.mxu0 0.0
        %1355 = vmatmul.mubr.f32.gmra.mrb[0].mxu0 %v524
        %v1356 = vpop.f32.mrb[0].mxu0
        %v1357 = vadd.f32 %v1212, %v1356
        %v1358 = vpop.f32.mrb[0].mxu0
        %1359 = vmatprep.mubr.f32.mxu0 0.0
        %1360 = vmatmul.mubr.f32.gmra.mrb[0].mxu0 %v525
        %v1361 = vpop.f32.mrb[0].mxu0
        %v1362 = vadd.f32 %v1217, %v1361
        %v1363 = vpop.f32.mrb[0].mxu0
        %1364 = vmatprep.mubr.f32.mxu0 0.0
        %1365 = vmatmul.mubr.f32.gmra.mrb[0].mxu0 %v526
        %v1366 = vpop.f32.mrb[0].mxu0
        %v1367 = vadd.f32 %v1222, %v1366
        %v1368 = vpop.f32.mrb[0].mxu0
        %1369 = vmatprep.mubr.f32.mxu0 0.0
        %1370 = vmatmul.mubr.f32.gmra.mrb[0].mxu0 %v527
        %v1371 = vpop.f32.mrb[0].mxu0
        %v1372 = vadd.f32 %v1227, %v1371
        %v1373 = vpop.f32.mrb[0].mxu0
        %1374 = vmatprep.mubr.f32.mxu0 0.0
        %1375 = vmatmul.mubr.f32.gmra.mrb[0].mxu0 %v528
        %v1376 = vpop.f32.mrb[0].mxu0
        %v1377 = vadd.f32 %v1232, %v1376
        %v1378 = vpop.f32.mrb[0].mxu0
        %1379 = vmatprep.mubr.f32.mxu0 0.0
        %1380 = vmatmul.mubr.f32.gmra.mrb[0].mxu0 %v529
        %v1381 = vpop.f32.mrb[0].mxu0
        %v1382 = vadd.f32 %v1237, %v1381
        %v1383 = vpop.f32.mrb[0].mxu0
        %1384 = vmatprep.mubr.f32.mxu0 0.0
        %1385 = vmatmul.mubr.f32.gmra.mrb[0].mxu0 %v530
        %v1386 = vpop.f32.mrb[0].mxu0
        %v1387 = vadd.f32 %v1242, %v1386
        %v1388 = vpop.f32.mrb[0].mxu0
        %1389 = vmatprep.mubr.f32.mxu0 0.0
        %1390 = vmatmul.mubr.f32.gmra.mrb[0].mxu0 %v531
        %v1391 = vpop.f32.mrb[0].mxu0
        %v1392 = vadd.f32 %v1247, %v1391
        %v1393 = vpop.f32.mrb[0].mxu0
        %1394 = vmatprep.mubr.f32.mxu0 0.0
        %1395 = vmatmul.mubr.f32.gmra.mrb[0].mxu0 %v532
        %v1396 = vpop.f32.mrb[0].mxu0
        %v1397 = vadd.f32 %v1252, %v1396
        %v1398 = vpop.f32.mrb[0].mxu0
        %1399 = vmatprep.mubr.f32.mxu0 0.0
        %1400 = vmatmul.mubr.f32.gmra.mrb[0].mxu0 %v533
        %v1401 = vpop.f32.mrb[0].mxu0
        %v1402 = vadd.f32 %v1257, %v1401
        %v1403 = vpop.f32.mrb[0].mxu0
        %1404 = vmatprep.mubr.f32.mxu0 0.0
        %1405 = vmatmul.mubr.f32.gmra.mrb[0].mxu0 %v534
        %v1406 = vpop.f32.mrb[0].mxu0
        %v1407 = vadd.f32 %v1262, %v1406
        %v1408 = vpop.f32.mrb[0].mxu0
        %1409 = vdwg.mxu0
        %v1410 = vmax.f32 %v1332, 0.0
        %v1411 = vmax.f32 %v1337, 0.0
        %v1412 = vmax.f32 %v1342, 0.0
        %v1413 = vmax.f32 %v1347, 0.0
        %v1414 = vmax.f32 %v1352, 0.0
        %v1415 = vmax.f32 %v1357, 0.0
        %v1416 = vmax.f32 %v1362, 0.0
        %v1417 = vmax.f32 %v1367, 0.0
        %v1418 = vmax.f32 %v1372, 0.0
        %v1419 = vmax.f32 %v1377, 0.0
        %v1420 = vmax.f32 %v1382, 0.0
        %v1421 = vmax.f32 %v1387, 0.0
        %v1422 = vmax.f32 %v1392, 0.0
        %v1423 = vmax.f32 %v1397, 0.0
        %v1424 = vmax.f32 %v1402, 0.0
        %v1425 = vmax.f32 %v1407, 0.0
        %v1426 = vadd.f32 %v386, %v1410
        %v1427 = vadd.f32 %v387, %v1411
        %v1428 = vadd.f32 %v388, %v1412
        %v1429 = vadd.f32 %v389, %v1413
        %v1430 = vadd.f32 %v390, %v1414
        %v1431 = vadd.f32 %v391, %v1415
        %v1432 = vadd.f32 %v392, %v1416
        %v1433 = vadd.f32 %v393, %v1417
        %v1434 = vadd.f32 %v394, %v1418
        %v1435 = vadd.f32 %v395, %v1419
        %v1436 = vadd.f32 %v396, %v1420
        %v1437 = vadd.f32 %v397, %v1421
        %v1438 = vadd.f32 %v398, %v1422
        %v1439 = vadd.f32 %v399, %v1423
        %v1440 = vadd.f32 %v400, %v1424
        %v1441 = vadd.f32 %v401, %v1425
        %s1442 = scalar_lea.vmem %s325, %s402
        %v1443 = vld [vmem:[%s1442] sm:$0xff]
        %v1444 = vld [vmem:[%s1442 + $0x8] sm:$0xff]
        %v1445 = vld [vmem:[%s1442 + $0x18] sm:$0xff]
        %v1446 = vld [vmem:[%s1442 + $0x20] sm:$0xff]
        %v1447 = vld [vmem:[%s1442 + $0x30] sm:$0xff]
        %v1448 = vld [vmem:[%s1442 + $0x38] sm:$0xff]
        %v1449 = vld [vmem:[%s1442 + $0x48] sm:$0xff]
        %v1450 = vld [vmem:[%s1442 + $0x50] sm:$0xff]
        %v1451 = vld [vmem:[%s1442 + $0x60] sm:$0xff]
        %v1452 = vld [vmem:[%s1442 + $0x68] sm:$0xff]
        %v1453 = vld [vmem:[%s1442 + $0x78] sm:$0xff]
        %v1454 = vld [vmem:[%s1442 + $0x80] sm:$0xff]
        %v1455 = vld [vmem:[%s1442 + $0x90] sm:$0xff]
        %v1456 = vld [vmem:[%s1442 + $0x98] sm:$0xff]
        %v1457 = vld [vmem:[%s1442 + $0xa8] sm:$0xff]
        %v1458 = vld [vmem:[%s1442 + $0xb0] sm:$0xff]
        %v1459 = vld [vmem:[%s1442 + $0x3] sm:$0xff]
        %v1460 = vld [vmem:[%s1442 + $0xb] sm:$0xff]
        %v1461 = vld [vmem:[%s1442 + $0x1b] sm:$0xff]
        %v1462 = vld [vmem:[%s1442 + $0x23] sm:$0xff]
        %v1463 = vld [vmem:[%s1442 + $0x33] sm:$0xff]
        %v1464 = vld [vmem:[%s1442 + $0x3b] sm:$0xff]
        %v1465 = vld [vmem:[%s1442 + $0x4b] sm:$0xff]
        %v1466 = vld [vmem:[%s1442 + $0x53] sm:$0xff]
        %v1467 = vld [vmem:[%s1442 + $0x63] sm:$0xff]
        %v1468 = vld [vmem:[%s1442 + $0x6b] sm:$0xff]
        %v1469 = vld [vmem:[%s1442 + $0x7b] sm:$0xff]
        %v1470 = vld [vmem:[%s1442 + $0x83] sm:$0xff]
        %v1471 = vld [vmem:[%s1442 + $0x93] sm:$0xff]
        %v1472 = vld [vmem:[%s1442 + $0x9b] sm:$0xff]
        %v1473 = vld [vmem:[%s1442 + $0xab] sm:$0xff]
        %v1474 = vld [vmem:[%s1442 + $0xb3] sm:$0xff]
        %v1475 = vld [vmem:[%s1442 + $0x6] sm:$0xff]
        %v1476 = vld [vmem:[%s1442 + $0xe] sm:$0xff]
        %v1477 = vld [vmem:[%s1442 + $0x1e] sm:$0xff]
        %v1478 = vld [vmem:[%s1442 + $0x26] sm:$0xff]
        %v1479 = vld [vmem:[%s1442 + $0x36] sm:$0xff]
        %v1480 = vld [vmem:[%s1442 + $0x3e] sm:$0xff]
        %v1481 = vld [vmem:[%s1442 + $0x4e] sm:$0xff]
        %v1482 = vld [vmem:[%s1442 + $0x56] sm:$0xff]
        %v1483 = vld [vmem:[%s1442 + $0x66] sm:$0xff]
        %v1484 = vld [vmem:[%s1442 + $0x6e] sm:$0xff]
        %v1485 = vld [vmem:[%s1442 + $0x7e] sm:$0xff]
        %v1486 = vld [vmem:[%s1442 + $0x86] sm:$0xff]
        %v1487 = vld [vmem:[%s1442 + $0x96] sm:$0xff]
        %v1488 = vld [vmem:[%s1442 + $0x9e] sm:$0xff]
        %v1489 = vld [vmem:[%s1442 + $0xae] sm:$0xff]
        %v1490 = vld [vmem:[%s1442 + $0xb6] sm:$0xff]
        %v1491 = vld [vmem:[%s353] sm:$0xff]
        %v1492 = vld [vmem:[%s353 + $0x8] sm:$0xff]
        %v1493 = vld [vmem:[%s353 + $0x18] sm:$0xff]
        %v1494 = vld [vmem:[%s353 + $0x20] sm:$0xff]
        %v1495 = vld [vmem:[%s353 + $0x30] sm:$0xff]
        %v1496 = vld [vmem:[%s353 + $0x38] sm:$0xff]
        %v1497 = vld [vmem:[%s353 + $0x48] sm:$0xff]
        %v1498 = vld [vmem:[%s353 + $0x50] sm:$0xff]
        %v1499 = vld [vmem:[%s353 + $0x60] sm:$0xff]
        %v1500 = vld [vmem:[%s353 + $0x68] sm:$0xff]
        %v1501 = vld [vmem:[%s353 + $0x78] sm:$0xff]
        %v1502 = vld [vmem:[%s353 + $0x80] sm:$0xff]
        %v1503 = vld [vmem:[%s353 + $0x90] sm:$0xff]
        %v1504 = vld [vmem:[%s353 + $0x98] sm:$0xff]
        %v1505 = vld [vmem:[%s353 + $0xa8] sm:$0xff]
        %v1506 = vld [vmem:[%s353 + $0xb0] sm:$0xff]
        %v1507 = vld [vmem:[%s353 + $0x6] sm:$0xff]
        %v1508 = vld [vmem:[%s353 + $0xe] sm:$0xff]
        %v1509 = vld [vmem:[%s353 + $0x1e] sm:$0xff]
        %v1510 = vld [vmem:[%s353 + $0x26] sm:$0xff]
        %v1511 = vld [vmem:[%s353 + $0x36] sm:$0xff]
        %v1512 = vld [vmem:[%s353 + $0x3e] sm:$0xff]
        %v1513 = vld [vmem:[%s353 + $0x4e] sm:$0xff]
        %v1514 = vld [vmem:[%s353 + $0x56] sm:$0xff]
        %v1515 = vld [vmem:[%s353 + $0x66] sm:$0xff]
        %v1516 = vld [vmem:[%s353 + $0x6e] sm:$0xff]
        %v1517 = vld [vmem:[%s353 + $0x7e] sm:$0xff]
        %v1518 = vld [vmem:[%s353 + $0x86] sm:$0xff]
        %v1519 = vld [vmem:[%s353 + $0x96] sm:$0xff]
        %v1520 = vld [vmem:[%s353 + $0x9e] sm:$0xff]
        %v1521 = vld [vmem:[%s353 + $0xae] sm:$0xff]
        %v1522 = vld [vmem:[%s353 + $0xb6] sm:$0xff]
        %s1523 = scalar_lea.vmem %s325, %s485
        %v1524 = vld [vmem:[%s1523] sm:$0xff]
        %v1525 = vld [vmem:[%s1523 + $0x8] sm:$0xff]
        %v1526 = vld [vmem:[%s1523 + $0x18] sm:$0xff]
        %v1527 = vld [vmem:[%s1523 + $0x20] sm:$0xff]
        %v1528 = vld [vmem:[%s1523 + $0x30] sm:$0xff]
        %v1529 = vld [vmem:[%s1523 + $0x38] sm:$0xff]
        %v1530 = vld [vmem:[%s1523 + $0x48] sm:$0xff]
        %v1531 = vld [vmem:[%s1523 + $0x50] sm:$0xff]
        %v1532 = vld [vmem:[%s1523 + $0x60] sm:$0xff]
        %v1533 = vld [vmem:[%s1523 + $0x68] sm:$0xff]
        %v1534 = vld [vmem:[%s1523 + $0x78] sm:$0xff]
        %v1535 = vld [vmem:[%s1523 + $0x80] sm:$0xff]
        %v1536 = vld [vmem:[%s1523 + $0x90] sm:$0xff]
        %v1537 = vld [vmem:[%s1523 + $0x98] sm:$0xff]
        %v1538 = vld [vmem:[%s1523 + $0xa8] sm:$0xff]
        %v1539 = vld [vmem:[%s1523 + $0xb0] sm:$0xff]
        %v1540 = vld [vmem:[%s1523 + $0x3] sm:$0xff]
        %v1541 = vld [vmem:[%s1523 + $0xb] sm:$0xff]
        %v1542 = vld [vmem:[%s1523 + $0x1b] sm:$0xff]
        %v1543 = vld [vmem:[%s1523 + $0x23] sm:$0xff]
        %v1544 = vld [vmem:[%s1523 + $0x33] sm:$0xff]
        %v1545 = vld [vmem:[%s1523 + $0x3b] sm:$0xff]
        %v1546 = vld [vmem:[%s1523 + $0x4b] sm:$0xff]
        %v1547 = vld [vmem:[%s1523 + $0x53] sm:$0xff]
        %v1548 = vld [vmem:[%s1523 + $0x63] sm:$0xff]
        %v1549 = vld [vmem:[%s1523 + $0x6b] sm:$0xff]
        %v1550 = vld [vmem:[%s1523 + $0x7b] sm:$0xff]
        %v1551 = vld [vmem:[%s1523 + $0x83] sm:$0xff]
        %v1552 = vld [vmem:[%s1523 + $0x93] sm:$0xff]
        %v1553 = vld [vmem:[%s1523 + $0x9b] sm:$0xff]
        %v1554 = vld [vmem:[%s1523 + $0xab] sm:$0xff]
        %v1555 = vld [vmem:[%s1523 + $0xb3] sm:$0xff]
        %v1556 = vld [vmem:[%s1523 + $0x6] sm:$0xff]
        %v1557 = vld [vmem:[%s1523 + $0xe] sm:$0xff]
        %v1558 = vld [vmem:[%s1523 + $0x1e] sm:$0xff]
        %v1559 = vld [vmem:[%s1523 + $0x26] sm:$0xff]
        %v1560 = vld [vmem:[%s1523 + $0x36] sm:$0xff]
        %v1561 = vld [vmem:[%s1523 + $0x3e] sm:$0xff]
        %v1562 = vld [vmem:[%s1523 + $0x4e] sm:$0xff]
        %v1563 = vld [vmem:[%s1523 + $0x56] sm:$0xff]
        %v1564 = vld [vmem:[%s1523 + $0x66] sm:$0xff]
        %v1565 = vld [vmem:[%s1523 + $0x6e] sm:$0xff]
        %v1566 = vld [vmem:[%s1523 + $0x7e] sm:$0xff]
        %v1567 = vld [vmem:[%s1523 + $0x86] sm:$0xff]
        %v1568 = vld [vmem:[%s1523 + $0x96] sm:$0xff]
        %v1569 = vld [vmem:[%s1523 + $0x9e] sm:$0xff]
        %v1570 = vld [vmem:[%s1523 + $0xae] sm:$0xff]
        %v1571 = vld [vmem:[%s1523 + $0xb6] sm:$0xff]
        %1572 = vmatprep.subr.mxu0 0.0
        %1573 = vmatpush1.msra.mxu0 %v535
        %1574 = vmatprep.subr.mxu0 0.0
        %1575 = vmatpush1.msra.mxu0 %v536
        %1576 = vmatprep.subr.mxu0 0.0
        %1577 = vmatpush1.msra.mxu0 %v537
        %1578 = vmatprep.subr.mxu0 0.0
        %1579 = vmatpush1.msra.mxu0 %v538
        %1580 = vmatprep.subr.mxu0 0.0
        %1581 = vmatpush1.msra.mxu0 %v539
        %1582 = vmatprep.subr.mxu0 0.0
        %1583 = vmatpush1.msra.mxu0 %v540
        %1584 = vmatprep.subr.mxu0 0.0
        %1585 = vmatpush1.msra.mxu0 %v541
        %1586 = vmatprep.subr.mxu0 0.0
        %1587 = vmatpush1.msra.mxu0 %v542
        %1588 = vmatprep.subr.mxu0 0.0
        %1589 = vmatpush1.msra.mxu0 %v543
        %1590 = vmatprep.subr.mxu0 0.0
        %1591 = vmatpush1.msra.mxu0 %v544
        %1592 = vmatprep.subr.mxu0 0.0
        %1593 = vmatpush1.msra.mxu0 %v545
        %1594 = vmatprep.subr.mxu0 0.0
        %1595 = vmatpush1.msra.mxu0 %v546
        %1596 = vmatprep.subr.mxu0 0.0
        %1597 = vmatpush1.msra.mxu0 %v547
        %1598 = vmatprep.subr.mxu0 0.0
        %1599 = vmatpush1.msra.mxu0 %v548
        %1600 = vmatprep.subr.mxu0 0.0
        %1601 = vmatpush1.msra.mxu0 %v549
        %1602 = vmatprep.subr.mxu0 0.0
        %1603 = vmatpush1.msra.mxu0 %v550
        %1604 = vmatprep.subr.mxu0 0.0
        %1605 = vmatpush1.msra.mxu0 %v551
        %1606 = vmatprep.subr.mxu0 0.0
        %1607 = vmatpush1.msra.mxu0 %v552
        %1608 = vmatprep.subr.mxu0 0.0
        %1609 = vmatpush1.msra.mxu0 %v553
        %1610 = vmatprep.subr.mxu0 0.0
        %1611 = vmatpush1.msra.mxu0 %v554
        %1612 = vmatprep.subr.mxu0 0.0
        %1613 = vmatpush1.msra.mxu0 %v555
        %1614 = vmatprep.subr.mxu0 0.0
        %1615 = vmatpush1.msra.mxu0 %v556
        %1616 = vmatprep.subr.mxu0 0.0
        %1617 = vmatpush1.msra.mxu0 %v557
        %1618 = vmatprep.subr.mxu0 0.0
        %1619 = vmatpush1.msra.mxu0 %v558
        %1620 = vmatprep.subr.mxu0 0.0
        %1621 = vmatpush1.msra.mxu0 %v559
        %1622 = vmatprep.subr.mxu0 0.0
        %1623 = vmatpush1.msra.mxu0 %v560
        %1624 = vmatprep.subr.mxu0 0.0
        %1625 = vmatpush1.msra.mxu0 %v561
        %1626 = vmatprep.subr.mxu0 0.0
        %1627 = vmatpush1.msra.mxu0 %v562
        %1628 = vmatprep.subr.mxu0 0.0
        %1629 = vmatpush1.msra.mxu0 %v563
        %1630 = vmatprep.subr.mxu0 0.0
        %1631 = vmatpush1.msra.mxu0 %v564
        %1632 = vmatprep.subr.mxu0 0.0
        %1633 = vmatpush1.msra.mxu0 %v565
        %1634 = vmatprep.subr.mxu0 0.0
        %1635 = vmatpush1.msra.mxu0 %v566
        %1636 = vmatprep.mubr.f32.mxu0 %v1459
        %1637 = vmatmul.mubr.f32.gmra.mrb[0].mxu0 %v1443
        %v1638 = vpop.f32.mrb[0].mxu0
        %v1639 = vadd.f32 %v683, %v1638
        %v1640 = vpop.f32.mrb[0].mxu0
        %1641 = vmatprep.mubr.f32.mxu0 %v1460
        %1642 = vmatmul.mubr.f32.gmra.mrb[0].mxu0 %v1444
        %v1643 = vpop.f32.mrb[0].mxu0
        %v1644 = vadd.f32 %v683, %v1643
        %v1645 = vpop.f32.mrb[0].mxu0
        %1646 = vmatprep.mubr.f32.mxu0 %v1461
        %1647 = vmatmul.mubr.f32.gmra.mrb[0].mxu0 %v1445
        %v1648 = vpop.f32.mrb[0].mxu0
        %v1649 = vadd.f32 %v683, %v1648
        %v1650 = vpop.f32.mrb[0].mxu0
        %1651 = vmatprep.mubr.f32.mxu0 %v1462
        %1652 = vmatmul.mubr.f32.gmra.mrb[0].mxu0 %v1446
        %v1653 = vpop.f32.mrb[0].mxu0
        %v1654 = vadd.f32 %v683, %v1653
        %v1655 = vpop.f32.mrb[0].mxu0
        %1656 = vmatprep.mubr.f32.mxu0 %v1463
        %1657 = vmatmul.mubr.f32.gmra.mrb[0].mxu0 %v1447
        %v1658 = vpop.f32.mrb[0].mxu0
        %v1659 = vadd.f32 %v683, %v1658
        %v1660 = vpop.f32.mrb[0].mxu0
        %1661 = vmatprep.mubr.f32.mxu0 %v1464
        %1662 = vmatmul.mubr.f32.gmra.mrb[0].mxu0 %v1448
        %v1663 = vpop.f32.mrb[0].mxu0
        %v1664 = vadd.f32 %v683, %v1663
        %v1665 = vpop.f32.mrb[0].mxu0
        %1666 = vmatprep.mubr.f32.mxu0 %v1465
        %1667 = vmatmul.mubr.f32.gmra.mrb[0].mxu0 %v1449
        %v1668 = vpop.f32.mrb[0].mxu0
        %v1669 = vadd.f32 %v683, %v1668
        %v1670 = vpop.f32.mrb[0].mxu0
        %1671 = vmatprep.mubr.f32.mxu0 %v1466
        %1672 = vmatmul.mubr.f32.gmra.mrb[0].mxu0 %v1450
        %v1673 = vpop.f32.mrb[0].mxu0
        %v1674 = vadd.f32 %v683, %v1673
        %v1675 = vpop.f32.mrb[0].mxu0
        %1676 = vmatprep.mubr.f32.mxu0 %v1467
        %1677 = vmatmul.mubr.f32.gmra.mrb[0].mxu0 %v1451
        %v1678 = vpop.f32.mrb[0].mxu0
        %v1679 = vadd.f32 %v683, %v1678
        %v1680 = vpop.f32.mrb[0].mxu0
        %1681 = vmatprep.mubr.f32.mxu0 %v1468
        %1682 = vmatmul.mubr.f32.gmra.mrb[0].mxu0 %v1452
        %v1683 = vpop.f32.mrb[0].mxu0
        %v1684 = vadd.f32 %v683, %v1683
        %v1685 = vpop.f32.mrb[0].mxu0
        %1686 = vmatprep.mubr.f32.mxu0 %v1469
        %1687 = vmatmul.mubr.f32.gmra.mrb[0].mxu0 %v1453
        %v1688 = vpop.f32.mrb[0].mxu0
        %v1689 = vadd.f32 %v683, %v1688
        %v1690 = vpop.f32.mrb[0].mxu0
        %1691 = vmatprep.mubr.f32.mxu0 %v1470
        %1692 = vmatmul.mubr.f32.gmra.mrb[0].mxu0 %v1454
        %v1693 = vpop.f32.mrb[0].mxu0
        %v1694 = vadd.f32 %v683, %v1693
        %v1695 = vpop.f32.mrb[0].mxu0
        %1696 = vmatprep.mubr.f32.mxu0 %v1471
        %1697 = vmatmul.mubr.f32.gmra.mrb[0].mxu0 %v1455
        %v1698 = vpop.f32.mrb[0].mxu0
        %v1699 = vadd.f32 %v683, %v1698
        %v1700 = vpop.f32.mrb[0].mxu0
        %1701 = vmatprep.mubr.f32.mxu0 %v1472
        %1702 = vmatmul.mubr.f32.gmra.mrb[0].mxu0 %v1456
        %v1703 = vpop.f32.mrb[0].mxu0
        %v1704 = vadd.f32 %v683, %v1703
        %v1705 = vpop.f32.mrb[0].mxu0
        %1706 = vmatprep.mubr.f32.mxu0 %v1473
        %1707 = vmatmul.mubr.f32.gmra.mrb[0].mxu0 %v1457
        %v1708 = vpop.f32.mrb[0].mxu0
        %v1709 = vadd.f32 %v683, %v1708
        %v1710 = vpop.f32.mrb[0].mxu0
        %1711 = vmatprep.mubr.f32.mxu0 %v1474
        %1712 = vmatmul.mubr.f32.gmra.mrb[0].mxu0 %v1458
        %v1713 = vpop.f32.mrb[0].mxu0
        %v1714 = vadd.f32 %v683, %v1713
        %v1715 = vpop.f32.mrb[0].mxu0
        %1716 = vdwg.mxu0
        %1717 = vmatprep.subr.mxu0 0.0
        %1718 = vmatpush1.msra.mxu0 %v567
        %1719 = vmatprep.subr.mxu0 0.0
        %1720 = vmatpush1.msra.mxu0 %v568
        %1721 = vmatprep.subr.mxu0 0.0
        %1722 = vmatpush1.msra.mxu0 %v569
        %1723 = vmatprep.subr.mxu0 0.0
        %1724 = vmatpush1.msra.mxu0 %v570
        %1725 = vmatprep.subr.mxu0 0.0
        %1726 = vmatpush1.msra.mxu0 %v571
        %1727 = vmatprep.subr.mxu0 0.0
        %1728 = vmatpush1.msra.mxu0 %v572
        %1729 = vmatprep.subr.mxu0 0.0
        %1730 = vmatpush1.msra.mxu0 %v573
        %1731 = vmatprep.subr.mxu0 0.0
        %1732 = vmatpush1.msra.mxu0 %v574
        %1733 = vmatprep.subr.mxu0 0.0
        %1734 = vmatpush1.msra.mxu0 %v575
        %1735 = vmatprep.subr.mxu0 0.0
        %1736 = vmatpush1.msra.mxu0 %v576
        %1737 = vmatprep.subr.mxu0 0.0
        %1738 = vmatpush1.msra.mxu0 %v577
        %1739 = vmatprep.subr.mxu0 0.0
        %1740 = vmatpush1.msra.mxu0 %v578
        %1741 = vmatprep.subr.mxu0 0.0
        %1742 = vmatpush1.msra.mxu0 %v579
        %1743 = vmatprep.subr.mxu0 0.0
        %1744 = vmatpush1.msra.mxu0 %v580
        %1745 = vmatprep.subr.mxu0 0.0
        %1746 = vmatpush1.msra.mxu0 %v581
        %1747 = vmatprep.subr.mxu0 0.0
        %1748 = vmatpush1.msra.mxu0 %v582
        %1749 = vmatprep.subr.mxu0 0.0
        %1750 = vmatpush1.msra.mxu0 %v583
        %1751 = vmatprep.subr.mxu0 0.0
        %1752 = vmatpush1.msra.mxu0 %v584
        %1753 = vmatprep.subr.mxu0 0.0
        %1754 = vmatpush1.msra.mxu0 %v585
        %1755 = vmatprep.subr.mxu0 0.0
        %1756 = vmatpush1.msra.mxu0 %v586
        %1757 = vmatprep.subr.mxu0 0.0
        %1758 = vmatpush1.msra.mxu0 %v587
        %1759 = vmatprep.subr.mxu0 0.0
        %1760 = vmatpush1.msra.mxu0 %v588
        %1761 = vmatprep.subr.mxu0 0.0
        %1762 = vmatpush1.msra.mxu0 %v589
        %1763 = vmatprep.subr.mxu0 0.0
        %1764 = vmatpush1.msra.mxu0 %v590
        %1765 = vmatprep.subr.mxu0 0.0
        %1766 = vmatpush1.msra.mxu0 %v591
        %1767 = vmatprep.subr.mxu0 0.0
        %1768 = vmatpush1.msra.mxu0 %v592
        %1769 = vmatprep.subr.mxu0 0.0
        %1770 = vmatpush1.msra.mxu0 %v593
        %1771 = vmatprep.subr.mxu0 0.0
        %1772 = vmatpush1.msra.mxu0 %v594
        %1773 = vmatprep.subr.mxu0 0.0
        %1774 = vmatpush1.msra.mxu0 %v595
        %1775 = vmatprep.subr.mxu0 0.0
        %1776 = vmatpush1.msra.mxu0 %v596
        %1777 = vmatprep.subr.mxu0 0.0
        %1778 = vmatpush1.msra.mxu0 %v597
        %1779 = vmatprep.subr.mxu0 0.0
        %1780 = vmatpush1.msra.mxu0 %v598
        %1781 = vmatprep.mubr.f32.mxu0 %v1491
        %1782 = vmatmul.mubr.f32.gmra.mrb[0].mxu0 %v1475
        %v1783 = vpop.f32.mrb[0].mxu0
        %v1784 = vadd.f32 %v1639, %v1783
        %v1785 = vpop.f32.mrb[0].mxu0
        %1786 = vmatprep.mubr.f32.mxu0 %v1492
        %1787 = vmatmul.mubr.f32.gmra.mrb[0].mxu0 %v1476
        %v1788 = vpop.f32.mrb[0].mxu0
        %v1789 = vadd.f32 %v1644, %v1788
        %v1790 = vpop.f32.mrb[0].mxu0
        %1791 = vmatprep.mubr.f32.mxu0 %v1493
        %1792 = vmatmul.mubr.f32.gmra.mrb[0].mxu0 %v1477
        %v1793 = vpop.f32.mrb[0].mxu0
        %v1794 = vadd.f32 %v1649, %v1793
        %v1795 = vpop.f32.mrb[0].mxu0
        %1796 = vmatprep.mubr.f32.mxu0 %v1494
        %1797 = vmatmul.mubr.f32.gmra.mrb[0].mxu0 %v1478
        %v1798 = vpop.f32.mrb[0].mxu0
        %v1799 = vadd.f32 %v1654, %v1798
        %v1800 = vpop.f32.mrb[0].mxu0
        %1801 = vmatprep.mubr.f32.mxu0 %v1495
        %1802 = vmatmul.mubr.f32.gmra.mrb[0].mxu0 %v1479
        %v1803 = vpop.f32.mrb[0].mxu0
        %v1804 = vadd.f32 %v1659, %v1803
        %v1805 = vpop.f32.mrb[0].mxu0
        %1806 = vmatprep.mubr.f32.mxu0 %v1496
        %1807 = vmatmul.mubr.f32.gmra.mrb[0].mxu0 %v1480
        %v1808 = vpop.f32.mrb[0].mxu0
        %v1809 = vadd.f32 %v1664, %v1808
        %v1810 = vpop.f32.mrb[0].mxu0
        %1811 = vmatprep.mubr.f32.mxu0 %v1497
        %1812 = vmatmul.mubr.f32.gmra.mrb[0].mxu0 %v1481
        %v1813 = vpop.f32.mrb[0].mxu0
        %v1814 = vadd.f32 %v1669, %v1813
        %v1815 = vpop.f32.mrb[0].mxu0
        %1816 = vmatprep.mubr.f32.mxu0 %v1498
        %1817 = vmatmul.mubr.f32.gmra.mrb[0].mxu0 %v1482
        %v1818 = vpop.f32.mrb[0].mxu0
        %v1819 = vadd.f32 %v1674, %v1818
        %v1820 = vpop.f32.mrb[0].mxu0
        %1821 = vmatprep.mubr.f32.mxu0 %v1499
        %1822 = vmatmul.mubr.f32.gmra.mrb[0].mxu0 %v1483
        %v1823 = vpop.f32.mrb[0].mxu0
        %v1824 = vadd.f32 %v1679, %v1823
        %v1825 = vpop.f32.mrb[0].mxu0
        %1826 = vmatprep.mubr.f32.mxu0 %v1500
        %1827 = vmatmul.mubr.f32.gmra.mrb[0].mxu0 %v1484
        %v1828 = vpop.f32.mrb[0].mxu0
        %v1829 = vadd.f32 %v1684, %v1828
        %v1830 = vpop.f32.mrb[0].mxu0
        %1831 = vmatprep.mubr.f32.mxu0 %v1501
        %1832 = vmatmul.mubr.f32.gmra.mrb[0].mxu0 %v1485
        %v1833 = vpop.f32.mrb[0].mxu0
        %v1834 = vadd.f32 %v1689, %v1833
        %v1835 = vpop.f32.mrb[0].mxu0
        %1836 = vmatprep.mubr.f32.mxu0 %v1502
        %1837 = vmatmul.mubr.f32.gmra.mrb[0].mxu0 %v1486
        %v1838 = vpop.f32.mrb[0].mxu0
        %v1839 = vadd.f32 %v1694, %v1838
        %v1840 = vpop.f32.mrb[0].mxu0
        %1841 = vmatprep.mubr.f32.mxu0 %v1503
        %1842 = vmatmul.mubr.f32.gmra.mrb[0].mxu0 %v1487
        %v1843 = vpop.f32.mrb[0].mxu0
        %v1844 = vadd.f32 %v1699, %v1843
        %v1845 = vpop.f32.mrb[0].mxu0
        %1846 = vmatprep.mubr.f32.mxu0 %v1504
        %1847 = vmatmul.mubr.f32.gmra.mrb[0].mxu0 %v1488
        %v1848 = vpop.f32.mrb[0].mxu0
        %v1849 = vadd.f32 %v1704, %v1848
        %v1850 = vpop.f32.mrb[0].mxu0
        %1851 = vmatprep.mubr.f32.mxu0 %v1505
        %1852 = vmatmul.mubr.f32.gmra.mrb[0].mxu0 %v1489
        %v1853 = vpop.f32.mrb[0].mxu0
        %v1854 = vadd.f32 %v1709, %v1853
        %v1855 = vpop.f32.mrb[0].mxu0
        %1856 = vmatprep.mubr.f32.mxu0 %v1506
        %1857 = vmatmul.mubr.f32.gmra.mrb[0].mxu0 %v1490
        %v1858 = vpop.f32.mrb[0].mxu0
        %v1859 = vadd.f32 %v1714, %v1858
        %v1860 = vpop.f32.mrb[0].mxu0
        %1861 = vdwg.mxu0
        %1862 = vmatprep.subr.mxu0 0.0
        %1863 = vmatpush1.msra.mxu0 %v599
        %1864 = vmatprep.subr.mxu0 0.0
        %1865 = vmatpush1.msra.mxu0 %v600
        %1866 = vmatprep.subr.mxu0 0.0
        %1867 = vmatpush1.msra.mxu0 %v601
        %1868 = vmatprep.subr.mxu0 0.0
        %1869 = vmatpush1.msra.mxu0 %v602
        %1870 = vmatprep.subr.mxu0 0.0
        %1871 = vmatpush1.msra.mxu0 %v603
        %1872 = vmatprep.subr.mxu0 0.0
        %1873 = vmatpush1.msra.mxu0 %v604
        %1874 = vmatprep.subr.mxu0 0.0
        %1875 = vmatpush1.msra.mxu0 %v605
        %1876 = vmatprep.subr.mxu0 0.0
        %1877 = vmatpush1.msra.mxu0 %v606
        %1878 = vmatprep.subr.mxu0 0.0
        %1879 = vmatpush1.msra.mxu0 %v607
        %1880 = vmatprep.subr.mxu0 0.0
        %1881 = vmatpush1.msra.mxu0 %v608
        %1882 = vmatprep.subr.mxu0 0.0
        %1883 = vmatpush1.msra.mxu0 %v609
        %1884 = vmatprep.subr.mxu0 0.0
        %1885 = vmatpush1.msra.mxu0 %v610
        %1886 = vmatprep.subr.mxu0 0.0
        %1887 = vmatpush1.msra.mxu0 %v611
        %1888 = vmatprep.subr.mxu0 0.0
        %1889 = vmatpush1.msra.mxu0 %v612
        %1890 = vmatprep.subr.mxu0 0.0
        %1891 = vmatpush1.msra.mxu0 %v613
        %1892 = vmatprep.subr.mxu0 0.0
        %1893 = vmatpush1.msra.mxu0 %v614
        %1894 = vmatprep.subr.mxu0 0.0
        %1895 = vmatpush1.msra.mxu0 %v615
        %1896 = vmatprep.subr.mxu0 0.0
        %1897 = vmatpush1.msra.mxu0 %v616
        %1898 = vmatprep.subr.mxu0 0.0
        %1899 = vmatpush1.msra.mxu0 %v617
        %1900 = vmatprep.subr.mxu0 0.0
        %1901 = vmatpush1.msra.mxu0 %v618
        %1902 = vmatprep.subr.mxu0 0.0
        %1903 = vmatpush1.msra.mxu0 %v619
        %1904 = vmatprep.subr.mxu0 0.0
        %1905 = vmatpush1.msra.mxu0 %v620
        %1906 = vmatprep.subr.mxu0 0.0
        %1907 = vmatpush1.msra.mxu0 %v621
        %1908 = vmatprep.subr.mxu0 0.0
        %1909 = vmatpush1.msra.mxu0 %v622
        %1910 = vmatprep.subr.mxu0 0.0
        %1911 = vmatpush1.msra.mxu0 %v623
        %1912 = vmatprep.subr.mxu0 0.0
        %1913 = vmatpush1.msra.mxu0 %v624
        %1914 = vmatprep.subr.mxu0 0.0
        %1915 = vmatpush1.msra.mxu0 %v625
        %1916 = vmatprep.subr.mxu0 0.0
        %1917 = vmatpush1.msra.mxu0 %v626
        %1918 = vmatprep.subr.mxu0 0.0
        %1919 = vmatpush1.msra.mxu0 %v627
        %1920 = vmatprep.subr.mxu0 0.0
        %1921 = vmatpush1.msra.mxu0 %v628
        %1922 = vmatprep.subr.mxu0 0.0
        %1923 = vmatpush1.msra.mxu0 %v629
        %1924 = vmatprep.subr.mxu0 0.0
        %1925 = vmatpush1.msra.mxu0 %v630
        %1926 = vmatprep.mubr.f32.mxu0 %v1507
        %1927 = vmatmul.mubr.f32.gmra.mrb[0].mxu0 %v354
        %v1928 = vpop.f32.mrb[0].mxu0
        %v1929 = vadd.f32 %v1784, %v1928
        %v1930 = vpop.f32.mrb[0].mxu0
        %1931 = vmatprep.mubr.f32.mxu0 %v1508
        %1932 = vmatmul.mubr.f32.gmra.mrb[0].mxu0 %v355
        %v1933 = vpop.f32.mrb[0].mxu0
        %v1934 = vadd.f32 %v1789, %v1933
        %v1935 = vpop.f32.mrb[0].mxu0
        %1936 = vmatprep.mubr.f32.mxu0 %v1509
        %1937 = vmatmul.mubr.f32.gmra.mrb[0].mxu0 %v356
        %v1938 = vpop.f32.mrb[0].mxu0
        %v1939 = vadd.f32 %v1794, %v1938
        %v1940 = vpop.f32.mrb[0].mxu0
        %1941 = vmatprep.mubr.f32.mxu0 %v1510
        %1942 = vmatmul.mubr.f32.gmra.mrb[0].mxu0 %v357
        %v1943 = vpop.f32.mrb[0].mxu0
        %v1944 = vadd.f32 %v1799, %v1943
        %v1945 = vpop.f32.mrb[0].mxu0
        %1946 = vmatprep.mubr.f32.mxu0 %v1511
        %1947 = vmatmul.mubr.f32.gmra.mrb[0].mxu0 %v358
        %v1948 = vpop.f32.mrb[0].mxu0
        %v1949 = vadd.f32 %v1804, %v1948
        %v1950 = vpop.f32.mrb[0].mxu0
        %1951 = vmatprep.mubr.f32.mxu0 %v1512
        %1952 = vmatmul.mubr.f32.gmra.mrb[0].mxu0 %v359
        %v1953 = vpop.f32.mrb[0].mxu0
        %v1954 = vadd.f32 %v1809, %v1953
        %v1955 = vpop.f32.mrb[0].mxu0
        %1956 = vmatprep.mubr.f32.mxu0 %v1513
        %1957 = vmatmul.mubr.f32.gmra.mrb[0].mxu0 %v360
        %v1958 = vpop.f32.mrb[0].mxu0
        %v1959 = vadd.f32 %v1814, %v1958
        %v1960 = vpop.f32.mrb[0].mxu0
        %1961 = vmatprep.mubr.f32.mxu0 %v1514
        %1962 = vmatmul.mubr.f32.gmra.mrb[0].mxu0 %v361
        %v1963 = vpop.f32.mrb[0].mxu0
        %v1964 = vadd.f32 %v1819, %v1963
        %v1965 = vpop.f32.mrb[0].mxu0
        %1966 = vmatprep.mubr.f32.mxu0 %v1515
        %1967 = vmatmul.mubr.f32.gmra.mrb[0].mxu0 %v362
        %v1968 = vpop.f32.mrb[0].mxu0
        %v1969 = vadd.f32 %v1824, %v1968
        %v1970 = vpop.f32.mrb[0].mxu0
        %1971 = vmatprep.mubr.f32.mxu0 %v1516
        %1972 = vmatmul.mubr.f32.gmra.mrb[0].mxu0 %v363
        %v1973 = vpop.f32.mrb[0].mxu0
        %v1974 = vadd.f32 %v1829, %v1973
        %v1975 = vpop.f32.mrb[0].mxu0
        %1976 = vmatprep.mubr.f32.mxu0 %v1517
        %1977 = vmatmul.mubr.f32.gmra.mrb[0].mxu0 %v364
        %v1978 = vpop.f32.mrb[0].mxu0
        %v1979 = vadd.f32 %v1834, %v1978
        %v1980 = vpop.f32.mrb[0].mxu0
        %1981 = vmatprep.mubr.f32.mxu0 %v1518
        %1982 = vmatmul.mubr.f32.gmra.mrb[0].mxu0 %v365
        %v1983 = vpop.f32.mrb[0].mxu0
        %v1984 = vadd.f32 %v1839, %v1983
        %v1985 = vpop.f32.mrb[0].mxu0
        %1986 = vmatprep.mubr.f32.mxu0 %v1519
        %1987 = vmatmul.mubr.f32.gmra.mrb[0].mxu0 %v366
        %v1988 = vpop.f32.mrb[0].mxu0
        %v1989 = vadd.f32 %v1844, %v1988
        %v1990 = vpop.f32.mrb[0].mxu0
        %1991 = vmatprep.mubr.f32.mxu0 %v1520
        %1992 = vmatmul.mubr.f32.gmra.mrb[0].mxu0 %v367
        %v1993 = vpop.f32.mrb[0].mxu0
        %v1994 = vadd.f32 %v1849, %v1993
        %v1995 = vpop.f32.mrb[0].mxu0
        %1996 = vmatprep.mubr.f32.mxu0 %v1521
        %1997 = vmatmul.mubr.f32.gmra.mrb[0].mxu0 %v368
        %v1998 = vpop.f32.mrb[0].mxu0
        %v1999 = vadd.f32 %v1854, %v1998
        %v2000 = vpop.f32.mrb[0].mxu0
        %2001 = vmatprep.mubr.f32.mxu0 %v1522
        %2002 = vmatmul.mubr.f32.gmra.mrb[0].mxu0 %v369
        %v2003 = vpop.f32.mrb[0].mxu0
        %v2004 = vadd.f32 %v1859, %v2003
        %v2005 = vpop.f32.mrb[0].mxu0
        %2006 = vdwg.mxu0
        %2007 = vmatprep.subr.mxu0 0.0
        %2008 = vmatpush1.msra.mxu0 %v631
        %2009 = vmatprep.subr.mxu0 0.0
        %2010 = vmatpush1.msra.mxu0 %v632
        %2011 = vmatprep.subr.mxu0 0.0
        %2012 = vmatpush1.msra.mxu0 %v633
        %2013 = vmatprep.subr.mxu0 0.0
        %2014 = vmatpush1.msra.mxu0 %v634
        %2015 = vmatprep.subr.mxu0 0.0
        %2016 = vmatpush1.msra.mxu0 %v635
        %2017 = vmatprep.subr.mxu0 0.0
        %2018 = vmatpush1.msra.mxu0 %v636
        %2019 = vmatprep.subr.mxu0 0.0
        %2020 = vmatpush1.msra.mxu0 %v637
        %2021 = vmatprep.subr.mxu0 0.0
        %2022 = vmatpush1.msra.mxu0 %v638
        %2023 = vmatprep.subr.mxu0 0.0
        %2024 = vmatpush1.msra.mxu0 %v639
        %2025 = vmatprep.subr.mxu0 0.0
        %2026 = vmatpush1.msra.mxu0 %v640
        %2027 = vmatprep.subr.mxu0 0.0
        %2028 = vmatpush1.msra.mxu0 %v641
        %2029 = vmatprep.subr.mxu0 0.0
        %2030 = vmatpush1.msra.mxu0 %v642
        %2031 = vmatprep.subr.mxu0 0.0
        %2032 = vmatpush1.msra.mxu0 %v643
        %2033 = vmatprep.subr.mxu0 0.0
        %2034 = vmatpush1.msra.mxu0 %v644
        %2035 = vmatprep.subr.mxu0 0.0
        %2036 = vmatpush1.msra.mxu0 %v645
        %2037 = vmatprep.subr.mxu0 0.0
        %2038 = vmatpush1.msra.mxu0 %v646
        %2039 = vmatprep.subr.mxu0 0.0
        %2040 = vmatpush1.msra.mxu0 %v647
        %2041 = vmatprep.subr.mxu0 0.0
        %2042 = vmatpush1.msra.mxu0 %v648
        %2043 = vmatprep.subr.mxu0 0.0
        %2044 = vmatpush1.msra.mxu0 %v649
        %2045 = vmatprep.subr.mxu0 0.0
        %2046 = vmatpush1.msra.mxu0 %v650
        %2047 = vmatprep.subr.mxu0 0.0
        %2048 = vmatpush1.msra.mxu0 %v651
        %2049 = vmatprep.subr.mxu0 0.0
        %2050 = vmatpush1.msra.mxu0 %v652
        %2051 = vmatprep.subr.mxu0 0.0
        %2052 = vmatpush1.msra.mxu0 %v653
        %2053 = vmatprep.subr.mxu0 0.0
        %2054 = vmatpush1.msra.mxu0 %v654
        %2055 = vmatprep.subr.mxu0 0.0
        %2056 = vmatpush1.msra.mxu0 %v655
        %2057 = vmatprep.subr.mxu0 0.0
        %2058 = vmatpush1.msra.mxu0 %v656
        %2059 = vmatprep.subr.mxu0 0.0
        %2060 = vmatpush1.msra.mxu0 %v657
        %2061 = vmatprep.subr.mxu0 0.0
        %2062 = vmatpush1.msra.mxu0 %v658
        %2063 = vmatprep.subr.mxu0 0.0
        %2064 = vmatpush1.msra.mxu0 %v659
        %2065 = vmatprep.subr.mxu0 0.0
        %2066 = vmatpush1.msra.mxu0 %v660
        %2067 = vmatprep.subr.mxu0 0.0
        %2068 = vmatpush1.msra.mxu0 %v661
        %2069 = vmatprep.subr.mxu0 0.0
        %2070 = vmatpush1.msra.mxu0 %v662
        %2071 = vmatprep.mubr.f32.mxu0 %v1540
        %2072 = vmatmul.mubr.f32.gmra.mrb[0].mxu0 %v1524
        %v2073 = vpop.f32.mrb[0].mxu0
        %v2074 = vadd.f32 %v1929, %v2073
        %v2075 = vpop.f32.mrb[0].mxu0
        %2076 = vmatprep.mubr.f32.mxu0 %v1541
        %2077 = vmatmul.mubr.f32.gmra.mrb[0].mxu0 %v1525
        %v2078 = vpop.f32.mrb[0].mxu0
        %v2079 = vadd.f32 %v1934, %v2078
        %v2080 = vpop.f32.mrb[0].mxu0
        %2081 = vmatprep.mubr.f32.mxu0 %v1542
        %2082 = vmatmul.mubr.f32.gmra.mrb[0].mxu0 %v1526
        %v2083 = vpop.f32.mrb[0].mxu0
        %v2084 = vadd.f32 %v1939, %v2083
        %v2085 = vpop.f32.mrb[0].mxu0
        %2086 = vmatprep.mubr.f32.mxu0 %v1543
        %2087 = vmatmul.mubr.f32.gmra.mrb[0].mxu0 %v1527
        %v2088 = vpop.f32.mrb[0].mxu0
        %v2089 = vadd.f32 %v1944, %v2088
        %v2090 = vpop.f32.mrb[0].mxu0
        %2091 = vmatprep.mubr.f32.mxu0 %v1544
        %2092 = vmatmul.mubr.f32.gmra.mrb[0].mxu0 %v1528
        %v2093 = vpop.f32.mrb[0].mxu0
        %v2094 = vadd.f32 %v1949, %v2093
        %v2095 = vpop.f32.mrb[0].mxu0
        %2096 = vmatprep.mubr.f32.mxu0 %v1545
        %2097 = vmatmul.mubr.f32.gmra.mrb[0].mxu0 %v1529
        %v2098 = vpop.f32.mrb[0].mxu0
        %v2099 = vadd.f32 %v1954, %v2098
        %v2100 = vpop.f32.mrb[0].mxu0
        %2101 = vmatprep.mubr.f32.mxu0 %v1546
        %2102 = vmatmul.mubr.f32.gmra.mrb[0].mxu0 %v1530
        %v2103 = vpop.f32.mrb[0].mxu0
        %v2104 = vadd.f32 %v1959, %v2103
        %v2105 = vpop.f32.mrb[0].mxu0
        %2106 = vmatprep.mubr.f32.mxu0 %v1547
        %2107 = vmatmul.mubr.f32.gmra.mrb[0].mxu0 %v1531
        %v2108 = vpop.f32.mrb[0].mxu0
        %v2109 = vadd.f32 %v1964, %v2108
        %v2110 = vpop.f32.mrb[0].mxu0
        %2111 = vmatprep.mubr.f32.mxu0 %v1548
        %2112 = vmatmul.mubr.f32.gmra.mrb[0].mxu0 %v1532
        %v2113 = vpop.f32.mrb[0].mxu0
        %v2114 = vadd.f32 %v1969, %v2113
        %v2115 = vpop.f32.mrb[0].mxu0
        %2116 = vmatprep.mubr.f32.mxu0 %v1549
        %2117 = vmatmul.mubr.f32.gmra.mrb[0].mxu0 %v1533
        %v2118 = vpop.f32.mrb[0].mxu0
        %v2119 = vadd.f32 %v1974, %v2118
        %v2120 = vpop.f32.mrb[0].mxu0
        %2121 = vmatprep.mubr.f32.mxu0 %v1550
        %2122 = vmatmul.mubr.f32.gmra.mrb[0].mxu0 %v1534
        %v2123 = vpop.f32.mrb[0].mxu0
        %v2124 = vadd.f32 %v1979, %v2123
        %v2125 = vpop.f32.mrb[0].mxu0
        %2126 = vmatprep.mubr.f32.mxu0 %v1551
        %2127 = vmatmul.mubr.f32.gmra.mrb[0].mxu0 %v1535
        %v2128 = vpop.f32.mrb[0].mxu0
        %v2129 = vadd.f32 %v1984, %v2128
        %v2130 = vpop.f32.mrb[0].mxu0
        %2131 = vmatprep.mubr.f32.mxu0 %v1552
        %2132 = vmatmul.mubr.f32.gmra.mrb[0].mxu0 %v1536
        %v2133 = vpop.f32.mrb[0].mxu0
        %v2134 = vadd.f32 %v1989, %v2133
        %v2135 = vpop.f32.mrb[0].mxu0
        %2136 = vmatprep.mubr.f32.mxu0 %v1553
        %2137 = vmatmul.mubr.f32.gmra.mrb[0].mxu0 %v1537
        %v2138 = vpop.f32.mrb[0].mxu0
        %v2139 = vadd.f32 %v1994, %v2138
        %v2140 = vpop.f32.mrb[0].mxu0
        %2141 = vmatprep.mubr.f32.mxu0 %v1554
        %2142 = vmatmul.mubr.f32.gmra.mrb[0].mxu0 %v1538
        %v2143 = vpop.f32.mrb[0].mxu0
        %v2144 = vadd.f32 %v1999, %v2143
        %v2145 = vpop.f32.mrb[0].mxu0
        %2146 = vmatprep.mubr.f32.mxu0 %v1555
        %2147 = vmatmul.mubr.f32.gmra.mrb[0].mxu0 %v1539
        %v2148 = vpop.f32.mrb[0].mxu0
        %v2149 = vadd.f32 %v2004, %v2148
        %v2150 = vpop.f32.mrb[0].mxu0
        %2151 = vdwg.mxu0
        %2152 = vmatprep.subr.mxu0 0.0
        %2153 = vmatpush1.msra.mxu0 %v663
        %2154 = vmatprep.subr.mxu0 0.0
        %2155 = vmatpush1.msra.mxu0 %v664
        %2156 = vmatprep.subr.mxu0 0.0
        %2157 = vmatpush1.msra.mxu0 %v665
        %2158 = vmatprep.subr.mxu0 0.0
        %2159 = vmatpush1.msra.mxu0 %v666
        %2160 = vmatprep.subr.mxu0 0.0
        %2161 = vmatpush1.msra.mxu0 %v667
        %2162 = vmatprep.subr.mxu0 0.0
        %2163 = vmatpush1.msra.mxu0 %v668
        %2164 = vmatprep.subr.mxu0 0.0
        %2165 = vmatpush1.msra.mxu0 %v669
        %2166 = vmatprep.subr.mxu0 0.0
        %2167 = vmatpush1.msra.mxu0 %v670
        %2168 = vmatprep.subr.mxu0 0.0
        %2169 = vmatpush1.msra.mxu0 %v671
        %2170 = vmatprep.subr.mxu0 0.0
        %2171 = vmatpush1.msra.mxu0 %v672
        %2172 = vmatprep.subr.mxu0 0.0
        %2173 = vmatpush1.msra.mxu0 %v673
        %2174 = vmatprep.subr.mxu0 0.0
        %2175 = vmatpush1.msra.mxu0 %v674
        %2176 = vmatprep.subr.mxu0 0.0
        %2177 = vmatpush1.msra.mxu0 %v675
        %2178 = vmatprep.subr.mxu0 0.0
        %2179 = vmatpush1.msra.mxu0 %v676
        %2180 = vmatprep.subr.mxu0 0.0
        %2181 = vmatpush1.msra.mxu0 %v677
        %2182 = vmatprep.subr.mxu0 0.0
        %2183 = vmatpush1.msra.mxu0 %v678
        %2184 = vmatprep.subr.mxu0 0.0
        %2185 = vmatpush1.msra.mxu0 0.0
        %2186 = vmatprep.subr.mxu0 0.0
        %2187 = vmatpush1.msra.mxu0 0.0
        %2188 = vmatprep.subr.mxu0 0.0
        %2189 = vmatpush1.msra.mxu0 0.0
        %2190 = vmatprep.subr.mxu0 0.0
        %2191 = vmatpush1.msra.mxu0 0.0
        %2192 = vmatprep.subr.mxu0 0.0
        %2193 = vmatpush1.msra.mxu0 0.0
        %2194 = vmatprep.subr.mxu0 0.0
        %2195 = vmatpush1.msra.mxu0 0.0
        %2196 = vmatprep.subr.mxu0 0.0
        %2197 = vmatpush1.msra.mxu0 0.0
        %2198 = vmatprep.subr.mxu0 0.0
        %2199 = vmatpush1.msra.mxu0 0.0
        %2200 = vmatprep.subr.mxu0 0.0
        %2201 = vmatpush1.msra.mxu0 0.0
        %2202 = vmatprep.subr.mxu0 0.0
        %2203 = vmatpush1.msra.mxu0 0.0
        %2204 = vmatprep.subr.mxu0 0.0
        %2205 = vmatpush1.msra.mxu0 0.0
        %2206 = vmatprep.subr.mxu0 0.0
        %2207 = vmatpush1.msra.mxu0 0.0
        %2208 = vmatprep.subr.mxu0 0.0
        %2209 = vmatpush1.msra.mxu0 0.0
        %2210 = vmatprep.subr.mxu0 0.0
        %2211 = vmatpush1.msra.mxu0 0.0
        %2212 = vmatprep.subr.mxu0 0.0
        %2213 = vmatpush1.msra.mxu0 0.0
        %2214 = vmatprep.subr.mxu0 0.0
        %2215 = vmatpush1.msra.mxu0 0.0
        %2216 = vmatprep.mubr.f32.mxu0 0.0
        %2217 = vmatmul.mubr.f32.gmra.mrb[0].mxu0 %v1556
        %v2218 = vpop.f32.mrb[0].mxu0
        %v2219 = vadd.f32 %v2074, %v2218
        %v2220 = vpop.f32.mrb[0].mxu0
        %2221 = vmatprep.mubr.f32.mxu0 0.0
        %2222 = vmatmul.mubr.f32.gmra.mrb[0].mxu0 %v1557
        %v2223 = vpop.f32.mrb[0].mxu0
        %v2224 = vadd.f32 %v2079, %v2223
        %v2225 = vpop.f32.mrb[0].mxu0
        %2226 = vmatprep.mubr.f32.mxu0 0.0
        %2227 = vmatmul.mubr.f32.gmra.mrb[0].mxu0 %v1558
        %v2228 = vpop.f32.mrb[0].mxu0
        %v2229 = vadd.f32 %v2084, %v2228
        %v2230 = vpop.f32.mrb[0].mxu0
        %2231 = vmatprep.mubr.f32.mxu0 0.0
        %2232 = vmatmul.mubr.f32.gmra.mrb[0].mxu0 %v1559
        %v2233 = vpop.f32.mrb[0].mxu0
        %v2234 = vadd.f32 %v2089, %v2233
        %v2235 = vpop.f32.mrb[0].mxu0
        %2236 = vmatprep.mubr.f32.mxu0 0.0
        %2237 = vmatmul.mubr.f32.gmra.mrb[0].mxu0 %v1560
        %v2238 = vpop.f32.mrb[0].mxu0
        %v2239 = vadd.f32 %v2094, %v2238
        %v2240 = vpop.f32.mrb[0].mxu0
        %2241 = vmatprep.mubr.f32.mxu0 0.0
        %2242 = vmatmul.mubr.f32.gmra.mrb[0].mxu0 %v1561
        %v2243 = vpop.f32.mrb[0].mxu0
        %v2244 = vadd.f32 %v2099, %v2243
        %v2245 = vpop.f32.mrb[0].mxu0
        %2246 = vmatprep.mubr.f32.mxu0 0.0
        %2247 = vmatmul.mubr.f32.gmra.mrb[0].mxu0 %v1562
        %v2248 = vpop.f32.mrb[0].mxu0
        %v2249 = vadd.f32 %v2104, %v2248
        %v2250 = vpop.f32.mrb[0].mxu0
        %2251 = vmatprep.mubr.f32.mxu0 0.0
        %2252 = vmatmul.mubr.f32.gmra.mrb[0].mxu0 %v1563
        %v2253 = vpop.f32.mrb[0].mxu0
        %v2254 = vadd.f32 %v2109, %v2253
        %v2255 = vpop.f32.mrb[0].mxu0
        %2256 = vmatprep.mubr.f32.mxu0 0.0
        %2257 = vmatmul.mubr.f32.gmra.mrb[0].mxu0 %v1564
        %v2258 = vpop.f32.mrb[0].mxu0
        %v2259 = vadd.f32 %v2114, %v2258
        %v2260 = vpop.f32.mrb[0].mxu0
        %2261 = vmatprep.mubr.f32.mxu0 0.0
        %2262 = vmatmul.mubr.f32.gmra.mrb[0].mxu0 %v1565
        %v2263 = vpop.f32.mrb[0].mxu0
        %v2264 = vadd.f32 %v2119, %v2263
        %v2265 = vpop.f32.mrb[0].mxu0
        %2266 = vmatprep.mubr.f32.mxu0 0.0
        %2267 = vmatmul.mubr.f32.gmra.mrb[0].mxu0 %v1566
        %v2268 = vpop.f32.mrb[0].mxu0
        %v2269 = vadd.f32 %v2124, %v2268
        %v2270 = vpop.f32.mrb[0].mxu0
        %2271 = vmatprep.mubr.f32.mxu0 0.0
        %2272 = vmatmul.mubr.f32.gmra.mrb[0].mxu0 %v1567
        %v2273 = vpop.f32.mrb[0].mxu0
        %v2274 = vadd.f32 %v2129, %v2273
        %v2275 = vpop.f32.mrb[0].mxu0
        %2276 = vmatprep.mubr.f32.mxu0 0.0
        %2277 = vmatmul.mubr.f32.gmra.mrb[0].mxu0 %v1568
        %v2278 = vpop.f32.mrb[0].mxu0
        %v2279 = vadd.f32 %v2134, %v2278
        %v2280 = vpop.f32.mrb[0].mxu0
        %2281 = vmatprep.mubr.f32.mxu0 0.0
        %2282 = vmatmul.mubr.f32.gmra.mrb[0].mxu0 %v1569
        %v2283 = vpop.f32.mrb[0].mxu0
        %v2284 = vadd.f32 %v2139, %v2283
        %v2285 = vpop.f32.mrb[0].mxu0
        %2286 = vmatprep.mubr.f32.mxu0 0.0
        %2287 = vmatmul.mubr.f32.gmra.mrb[0].mxu0 %v1570
        %v2288 = vpop.f32.mrb[0].mxu0
        %v2289 = vadd.f32 %v2144, %v2288
        %v2290 = vpop.f32.mrb[0].mxu0
        %2291 = vmatprep.mubr.f32.mxu0 0.0
        %2292 = vmatmul.mubr.f32.gmra.mrb[0].mxu0 %v1571
        %v2293 = vpop.f32.mrb[0].mxu0
        %v2294 = vadd.f32 %v2149, %v2293
        %v2295 = vpop.f32.mrb[0].mxu0
        %2296 = vdwg.mxu0
        %v2297 = vmax.f32 %v2219, 0.0
        %v2298 = vmax.f32 %v2224, 0.0
        %v2299 = vmax.f32 %v2229, 0.0
        %v2300 = vmax.f32 %v2234, 0.0
        %v2301 = vmax.f32 %v2239, 0.0
        %v2302 = vmax.f32 %v2244, 0.0
        %v2303 = vmax.f32 %v2249, 0.0
        %v2304 = vmax.f32 %v2254, 0.0
        %v2305 = vmax.f32 %v2259, 0.0
        %v2306 = vmax.f32 %v2264, 0.0
        %v2307 = vmax.f32 %v2269, 0.0
        %v2308 = vmax.f32 %v2274, 0.0
        %v2309 = vmax.f32 %v2279, 0.0
        %v2310 = vmax.f32 %v2284, 0.0
        %v2311 = vmax.f32 %v2289, 0.0
        %v2312 = vmax.f32 %v2294, 0.0
        %v2313 = vadd.f32 %v1426, %v2297
        %v2314 = vadd.f32 %v1427, %v2298
        %v2315 = vadd.f32 %v1428, %v2299
        %v2316 = vadd.f32 %v1429, %v2300
        %v2317 = vadd.f32 %v1430, %v2301
        %v2318 = vadd.f32 %v1431, %v2302
        %v2319 = vadd.f32 %v1432, %v2303
        %v2320 = vadd.f32 %v1433, %v2304
        %v2321 = vadd.f32 %v1434, %v2305
        %v2322 = vadd.f32 %v1435, %v2306
        %v2323 = vadd.f32 %v1436, %v2307
        %v2324 = vadd.f32 %v1437, %v2308
        %v2325 = vadd.f32 %v1438, %v2309
        %v2326 = vadd.f32 %v1439, %v2310
        %v2327 = vadd.f32 %v1440, %v2311
        %v2328 = vadd.f32 %v1441, %v2312
        %s2329 = smul.u32 %s332, 32
        %s2330 = scalar_lea.vmem %s330, %s2329
        %v2331 = vld [vmem:[%s2330] sm:$0xff]
        %v2332 = vld [vmem:[%s2330 + $0x8] sm:$0xff]
        %v2333 = vld [vmem:[%s2330 + $0x20] sm:$0xff]
        %v2334 = vld [vmem:[%s2330 + $0x28] sm:$0xff]
        %v2335 = vld [vmem:[%s2330 + $0x40] sm:$0xff]
        %v2336 = vld [vmem:[%s2330 + $0x48] sm:$0xff]
        %v2337 = vld [vmem:[%s2330 + $0x60] sm:$0xff]
        %v2338 = vld [vmem:[%s2330 + $0x68] sm:$0xff]
        %v2339 = vld [vmem:[%s2330 + $0x80] sm:$0xff]
        %v2340 = vld [vmem:[%s2330 + $0x88] sm:$0xff]
        %v2341 = vld [vmem:[%s2330 + $0xa0] sm:$0xff]
        %v2342 = vld [vmem:[%s2330 + $0xa8] sm:$0xff]
        %v2343 = vld [vmem:[%s2330 + $0xc0] sm:$0xff]
        %v2344 = vld [vmem:[%s2330 + $0xc8] sm:$0xff]
        %v2345 = vld [vmem:[%s2330 + $0xe0] sm:$0xff]
        %v2346 = vld [vmem:[%s2330 + $0xe8] sm:$0xff]
        %v2347 = vld [vmem:[%s2330 + $0x5] sm:$0xff]
        %v2348 = vld [vmem:[%s2330 + $0xd] sm:$0xff]
        %v2349 = vld [vmem:[%s2330 + $0x25] sm:$0xff]
        %v2350 = vld [vmem:[%s2330 + $0x2d] sm:$0xff]
        %v2351 = vld [vmem:[%s2330 + $0x45] sm:$0xff]
        %v2352 = vld [vmem:[%s2330 + $0x4d] sm:$0xff]
        %v2353 = vld [vmem:[%s2330 + $0x65] sm:$0xff]
        %v2354 = vld [vmem:[%s2330 + $0x6d] sm:$0xff]
        %v2355 = vld [vmem:[%s2330 + $0x85] sm:$0xff]
        %v2356 = vld [vmem:[%s2330 + $0x8d] sm:$0xff]
        %v2357 = vld [vmem:[%s2330 + $0xa5] sm:$0xff]
        %v2358 = vld [vmem:[%s2330 + $0xad] sm:$0xff]
        %v2359 = vld [vmem:[%s2330 + $0xc5] sm:$0xff]
        %v2360 = vld [vmem:[%s2330 + $0xcd] sm:$0xff]
        %v2361 = vld [vmem:[%s2330 + $0xe5] sm:$0xff]
        %v2362 = vld [vmem:[%s2330 + $0xed] sm:$0xff]
        %v2363 = vld [vmem:[%s2330 + $0xa] sm:$0xff]
        %v2364 = vld [vmem:[%s2330 + $0x12] sm:$0xff]
        %v2365 = vld [vmem:[%s2330 + $0x2a] sm:$0xff]
        %v2366 = vld [vmem:[%s2330 + $0x32] sm:$0xff]
        %v2367 = vld [vmem:[%s2330 + $0x4a] sm:$0xff]
        %v2368 = vld [vmem:[%s2330 + $0x52] sm:$0xff]
        %v2369 = vld [vmem:[%s2330 + $0x6a] sm:$0xff]
        %v2370 = vld [vmem:[%s2330 + $0x72] sm:$0xff]
        %v2371 = vld [vmem:[%s2330 + $0x8a] sm:$0xff]
        %v2372 = vld [vmem:[%s2330 + $0x92] sm:$0xff]
        %v2373 = vld [vmem:[%s2330 + $0xaa] sm:$0xff]
        %v2374 = vld [vmem:[%s2330 + $0xb2] sm:$0xff]
        %v2375 = vld [vmem:[%s2330 + $0xca] sm:$0xff]
        %v2376 = vld [vmem:[%s2330 + $0xd2] sm:$0xff]
        %v2377 = vld [vmem:[%s2330 + $0xea] sm:$0xff]
        %v2378 = vld [vmem:[%s2330 + $0xf2] sm:$0xff]
        %s2379 = sadd.s32 %s332, 5
        %s2380 = smul.u32 %s2379, 32
        %s2381 = scalar_lea.vmem %s330, %s2380
        %v2382 = vld [vmem:[%s2381] sm:$0xff]
        %v2383 = vld [vmem:[%s2381 + $0x8] sm:$0xff]
        %v2384 = vld [vmem:[%s2381 + $0x20] sm:$0xff]
        %v2385 = vld [vmem:[%s2381 + $0x28] sm:$0xff]
        %v2386 = vld [vmem:[%s2381 + $0x40] sm:$0xff]
        %v2387 = vld [vmem:[%s2381 + $0x48] sm:$0xff]
        %v2388 = vld [vmem:[%s2381 + $0x60] sm:$0xff]
        %v2389 = vld [vmem:[%s2381 + $0x68] sm:$0xff]
        %v2390 = vld [vmem:[%s2381 + $0x80] sm:$0xff]
        %v2391 = vld [vmem:[%s2381 + $0x88] sm:$0xff]
        %v2392 = vld [vmem:[%s2381 + $0xa0] sm:$0xff]
        %v2393 = vld [vmem:[%s2381 + $0xa8] sm:$0xff]
        %v2394 = vld [vmem:[%s2381 + $0xc0] sm:$0xff]
        %v2395 = vld [vmem:[%s2381 + $0xc8] sm:$0xff]
        %v2396 = vld [vmem:[%s2381 + $0xe0] sm:$0xff]
        %v2397 = vld [vmem:[%s2381 + $0xe8] sm:$0xff]
        %v2398 = vld [vmem:[%s2381 + $0x5] sm:$0xff]
        %v2399 = vld [vmem:[%s2381 + $0xd] sm:$0xff]
        %v2400 = vld [vmem:[%s2381 + $0x25] sm:$0xff]
        %v2401 = vld [vmem:[%s2381 + $0x2d] sm:$0xff]
        %v2402 = vld [vmem:[%s2381 + $0x45] sm:$0xff]
        %v2403 = vld [vmem:[%s2381 + $0x4d] sm:$0xff]
        %v2404 = vld [vmem:[%s2381 + $0x65] sm:$0xff]
        %v2405 = vld [vmem:[%s2381 + $0x6d] sm:$0xff]
        %v2406 = vld [vmem:[%s2381 + $0x85] sm:$0xff]
        %v2407 = vld [vmem:[%s2381 + $0x8d] sm:$0xff]
        %v2408 = vld [vmem:[%s2381 + $0xa5] sm:$0xff]
        %v2409 = vld [vmem:[%s2381 + $0xad] sm:$0xff]
        %v2410 = vld [vmem:[%s2381 + $0xc5] sm:$0xff]
        %v2411 = vld [vmem:[%s2381 + $0xcd] sm:$0xff]
        %v2412 = vld [vmem:[%s2381 + $0xe5] sm:$0xff]
        %v2413 = vld [vmem:[%s2381 + $0xed] sm:$0xff]
        %v2414 = vld [vmem:[%s2381 + $0xa] sm:$0xff]
        %v2415 = vld [vmem:[%s2381 + $0x12] sm:$0xff]
        %v2416 = vld [vmem:[%s2381 + $0x2a] sm:$0xff]
        %v2417 = vld [vmem:[%s2381 + $0x32] sm:$0xff]
        %v2418 = vld [vmem:[%s2381 + $0x4a] sm:$0xff]
        %v2419 = vld [vmem:[%s2381 + $0x52] sm:$0xff]
        %v2420 = vld [vmem:[%s2381 + $0x6a] sm:$0xff]
        %v2421 = vld [vmem:[%s2381 + $0x72] sm:$0xff]
        %v2422 = vld [vmem:[%s2381 + $0x8a] sm:$0xff]
        %v2423 = vld [vmem:[%s2381 + $0x92] sm:$0xff]
        %v2424 = vld [vmem:[%s2381 + $0xaa] sm:$0xff]
        %v2425 = vld [vmem:[%s2381 + $0xb2] sm:$0xff]
        %v2426 = vld [vmem:[%s2381 + $0xca] sm:$0xff]
        %v2427 = vld [vmem:[%s2381 + $0xd2] sm:$0xff]
        %v2428 = vld [vmem:[%s2381 + $0xea] sm:$0xff]
        %v2429 = vld [vmem:[%s2381 + $0xf2] sm:$0xff]
        %s2430 = sadd.s32 %s332, 10
        %s2431 = smul.u32 %s2430, 32
        %s2432 = scalar_lea.vmem %s330, %s2431
        %v2433 = vld [vmem:[%s2432] sm:$0xff]
        %v2434 = vld [vmem:[%s2432 + $0x8] sm:$0xff]
        %v2435 = vld [vmem:[%s2432 + $0x20] sm:$0xff]
        %v2436 = vld [vmem:[%s2432 + $0x28] sm:$0xff]
        %v2437 = vld [vmem:[%s2432 + $0x40] sm:$0xff]
        %v2438 = vld [vmem:[%s2432 + $0x48] sm:$0xff]
        %v2439 = vld [vmem:[%s2432 + $0x60] sm:$0xff]
        %v2440 = vld [vmem:[%s2432 + $0x68] sm:$0xff]
        %v2441 = vld [vmem:[%s2432 + $0x80] sm:$0xff]
        %v2442 = vld [vmem:[%s2432 + $0x88] sm:$0xff]
        %v2443 = vld [vmem:[%s2432 + $0xa0] sm:$0xff]
        %v2444 = vld [vmem:[%s2432 + $0xa8] sm:$0xff]
        %v2445 = vld [vmem:[%s2432 + $0xc0] sm:$0xff]
        %v2446 = vld [vmem:[%s2432 + $0xc8] sm:$0xff]
        %v2447 = vld [vmem:[%s2432 + $0xe0] sm:$0xff]
        %v2448 = vld [vmem:[%s2432 + $0xe8] sm:$0xff]
        %v2449 = vld [vmem:[%s2432 + $0x5] sm:$0xff]
        %v2450 = vld [vmem:[%s2432 + $0xd] sm:$0xff]
        %v2451 = vld [vmem:[%s2432 + $0x25] sm:$0xff]
        %v2452 = vld [vmem:[%s2432 + $0x2d] sm:$0xff]
        %v2453 = vld [vmem:[%s2432 + $0x45] sm:$0xff]
        %v2454 = vld [vmem:[%s2432 + $0x4d] sm:$0xff]
        %v2455 = vld [vmem:[%s2432 + $0x65] sm:$0xff]
        %v2456 = vld [vmem:[%s2432 + $0x6d] sm:$0xff]
        %v2457 = vld [vmem:[%s2432 + $0x85] sm:$0xff]
        %v2458 = vld [vmem:[%s2432 + $0x8d] sm:$0xff]
        %v2459 = vld [vmem:[%s2432 + $0xa5] sm:$0xff]
        %v2460 = vld [vmem:[%s2432 + $0xad] sm:$0xff]
        %v2461 = vld [vmem:[%s2432 + $0xc5] sm:$0xff]
        %v2462 = vld [vmem:[%s2432 + $0xcd] sm:$0xff]
        %v2463 = vld [vmem:[%s2432 + $0xe5] sm:$0xff]
        %v2464 = vld [vmem:[%s2432 + $0xed] sm:$0xff]
        %v2465 = vld [vmem:[%s2432 + $0xa] sm:$0xff]
        %v2466 = vld [vmem:[%s2432 + $0x12] sm:$0xff]
        %v2467 = vld [vmem:[%s2432 + $0x2a] sm:$0xff]
        %v2468 = vld [vmem:[%s2432 + $0x32] sm:$0xff]
        %v2469 = vld [vmem:[%s2432 + $0x4a] sm:$0xff]
        %v2470 = vld [vmem:[%s2432 + $0x52] sm:$0xff]
        %v2471 = vld [vmem:[%s2432 + $0x6a] sm:$0xff]
        %v2472 = vld [vmem:[%s2432 + $0x72] sm:$0xff]
        %v2473 = vld [vmem:[%s2432 + $0x8a] sm:$0xff]
        %v2474 = vld [vmem:[%s2432 + $0x92] sm:$0xff]
        %v2475 = vld [vmem:[%s2432 + $0xaa] sm:$0xff]
        %v2476 = vld [vmem:[%s2432 + $0xb2] sm:$0xff]
        %v2477 = vld [vmem:[%s2432 + $0xca] sm:$0xff]
        %v2478 = vld [vmem:[%s2432 + $0xd2] sm:$0xff]
        %v2479 = vld [vmem:[%s2432 + $0xea] sm:$0xff]
        %v2480 = vld [vmem:[%s2432 + $0xf2] sm:$0xff]
        %v2481 = vld [vmem:[%s4] sm:$0xff]
        %v2482 = vld [vmem:[%s4 + $0x8] sm:$0xff]
        %v2483 = vld [vmem:[%s4 + $0x10] sm:$0xff]
        %v2484 = vld [vmem:[%s4 + $0x18] sm:$0xff]
        %v2485 = vld [vmem:[%s4 + $0x20] sm:$0xff]
        %v2486 = vld [vmem:[%s4 + $0x28] sm:$0xff]
        %v2487 = vld [vmem:[%s4 + $0x30] sm:$0xff]
        %v2488 = vld [vmem:[%s4 + $0x38] sm:$0xff]
        %v2489 = vld [vmem:[%s4 + $0x40] sm:$0xff]
        %v2490 = vld [vmem:[%s4 + $0x48] sm:$0xff]
        %v2491 = vld [vmem:[%s4 + $0x50] sm:$0xff]
        %v2492 = vld [vmem:[%s4 + $0x58] sm:$0xff]
        %v2493 = vld [vmem:[%s4 + $0x60] sm:$0xff]
        %v2494 = vld [vmem:[%s4 + $0x68] sm:$0xff]
        %v2495 = vld [vmem:[%s4 + $0x70] sm:$0xff]
        %v2496 = vld [vmem:[%s4 + $0x78] sm:$0xff]
        %v2497 = vld [vmem:[%s4 + $0x80] sm:$0xff]
        %v2498 = vld [vmem:[%s4 + $0x88] sm:$0xff]
        %v2499 = vld [vmem:[%s4 + $0x90] sm:$0xff]
        %v2500 = vld [vmem:[%s4 + $0x98] sm:$0xff]
        %v2501 = vld [vmem:[%s4 + $0xa0] sm:$0xff]
        %v2502 = vld [vmem:[%s4 + $0xa8] sm:$0xff]
        %v2503 = vld [vmem:[%s4 + $0xb0] sm:$0xff]
        %v2504 = vld [vmem:[%s4 + $0xb8] sm:$0xff]
        %v2505 = vld [vmem:[%s4 + $0xc0] sm:$0xff]
        %v2506 = vld [vmem:[%s4 + $0xc8] sm:$0xff]
        %v2507 = vld [vmem:[%s4 + $0xd0] sm:$0xff]
        %v2508 = vld [vmem:[%s4 + $0xd8] sm:$0xff]
        %v2509 = vld [vmem:[%s4 + $0xe0] sm:$0xff]
        %v2510 = vld [vmem:[%s4 + $0xe8] sm:$0xff]
        %v2511 = vld [vmem:[%s4 + $0xf0] sm:$0xff]
        %v2512 = vld [vmem:[%s4 + $0xf8] sm:$0xff]
        %v2513 = vld [vmem:[%s4 + $0x100] sm:$0xff]
        %v2514 = vld [vmem:[%s4 + $0x108] sm:$0xff]
        %v2515 = vld [vmem:[%s4 + $0x110] sm:$0xff]
        %v2516 = vld [vmem:[%s4 + $0x118] sm:$0xff]
        %v2517 = vld [vmem:[%s4 + $0x120] sm:$0xff]
        %v2518 = vld [vmem:[%s4 + $0x128] sm:$0xff]
        %v2519 = vld [vmem:[%s4 + $0x130] sm:$0xff]
        %v2520 = vld [vmem:[%s4 + $0x138] sm:$0xff]
        %v2521 = vld [vmem:[%s4 + $0x140] sm:$0xff]
        %v2522 = vld [vmem:[%s4 + $0x148] sm:$0xff]
        %v2523 = vld [vmem:[%s4 + $0x150] sm:$0xff]
        %v2524 = vld [vmem:[%s4 + $0x158] sm:$0xff]
        %v2525 = vld [vmem:[%s4 + $0x160] sm:$0xff]
        %v2526 = vld [vmem:[%s4 + $0x168] sm:$0xff]
        %v2527 = vld [vmem:[%s4 + $0x170] sm:$0xff]
        %v2528 = vld [vmem:[%s4 + $0x178] sm:$0xff]
        %v2529 = vld [vmem:[%s4 + $0x180] sm:$0xff]
        %v2530 = vld [vmem:[%s4 + $0x188] sm:$0xff]
        %v2531 = vld [vmem:[%s4 + $0x190] sm:$0xff]
        %v2532 = vld [vmem:[%s4 + $0x198] sm:$0xff]
        %v2533 = vld [vmem:[%s4 + $0x1a0] sm:$0xff]
        %v2534 = vld [vmem:[%s4 + $0x1a8] sm:$0xff]
        %v2535 = vld [vmem:[%s4 + $0x1b0] sm:$0xff]
        %v2536 = vld [vmem:[%s4 + $0x1b8] sm:$0xff]
        %v2537 = vld [vmem:[%s4 + $0x1c0] sm:$0xff]
        %v2538 = vld [vmem:[%s4 + $0x1c8] sm:$0xff]
        %v2539 = vld [vmem:[%s4 + $0x1d0] sm:$0xff]
        %v2540 = vld [vmem:[%s4 + $0x1d8] sm:$0xff]
        %v2541 = vld [vmem:[%s4 + $0x1e0] sm:$0xff]
        %v2542 = vld [vmem:[%s4 + $0x1e8] sm:$0xff]
        %v2543 = vld [vmem:[%s4 + $0x1f0] sm:$0xff]
        %v2544 = vld [vmem:[%s4 + $0x1f8] sm:$0xff]
        %v2545 = vld [vmem:[%s4 + $0x200] sm:$0xff]
        %v2546 = vld [vmem:[%s4 + $0x208] sm:$0xff]
        %v2547 = vld [vmem:[%s4 + $0x210] sm:$0xff]
        %v2548 = vld [vmem:[%s4 + $0x218] sm:$0xff]
        %v2549 = vld [vmem:[%s4 + $0x220] sm:$0xff]
        %v2550 = vld [vmem:[%s4 + $0x228] sm:$0xff]
        %v2551 = vld [vmem:[%s4 + $0x230] sm:$0xff]
        %v2552 = vld [vmem:[%s4 + $0x238] sm:$0xff]
        %v2553 = vld [vmem:[%s4 + $0x240] sm:$0xff]
        %v2554 = vld [vmem:[%s4 + $0x248] sm:$0xff]
        %v2555 = vld [vmem:[%s4 + $0x250] sm:$0xff]
        %v2556 = vld [vmem:[%s4 + $0x258] sm:$0xff]
        %v2557 = vld [vmem:[%s4 + $0x260] sm:$0xff]
        %v2558 = vld [vmem:[%s4 + $0x268] sm:$0xff]
        %v2559 = vld [vmem:[%s4 + $0x270] sm:$0xff]
        %v2560 = vld [vmem:[%s4 + $0x278] sm:$0xff]
        %v2561 = vld [vmem:[%s4 + $0x280] sm:$0xff]
        %v2562 = vld [vmem:[%s4 + $0x288] sm:$0xff]
        %v2563 = vld [vmem:[%s4 + $0x290] sm:$0xff]
        %v2564 = vld [vmem:[%s4 + $0x298] sm:$0xff]
        %v2565 = vld [vmem:[%s4 + $0x2a0] sm:$0xff]
        %v2566 = vld [vmem:[%s4 + $0x2a8] sm:$0xff]
        %v2567 = vld [vmem:[%s4 + $0x2b0] sm:$0xff]
        %v2568 = vld [vmem:[%s4 + $0x2b8] sm:$0xff]
        %v2569 = vld [vmem:[%s4 + $0x2c0] sm:$0xff]
        %v2570 = vld [vmem:[%s4 + $0x2c8] sm:$0xff]
        %v2571 = vld [vmem:[%s4 + $0x2d0] sm:$0xff]
        %v2572 = vld [vmem:[%s4 + $0x2d8] sm:$0xff]
        %v2573 = vld [vmem:[%s4 + $0x2e0] sm:$0xff]
        %v2574 = vld [vmem:[%s4 + $0x2e8] sm:$0xff]
        %v2575 = vld [vmem:[%s4 + $0x2f0] sm:$0xff]
        %v2576 = vld [vmem:[%s4 + $0x2f8] sm:$0xff]
        %v2577 = vld [vmem:[%s4 + $0x300] sm:$0xff]
        %v2578 = vld [vmem:[%s4 + $0x308] sm:$0xff]
        %v2579 = vld [vmem:[%s4 + $0x310] sm:$0xff]
        %v2580 = vld [vmem:[%s4 + $0x318] sm:$0xff]
        %v2581 = vld [vmem:[%s4 + $0x320] sm:$0xff]
        %v2582 = vld [vmem:[%s4 + $0x328] sm:$0xff]
        %v2583 = vld [vmem:[%s4 + $0x330] sm:$0xff]
        %v2584 = vld [vmem:[%s4 + $0x338] sm:$0xff]
        %v2585 = vld [vmem:[%s4 + $0x340] sm:$0xff]
        %v2586 = vld [vmem:[%s4 + $0x348] sm:$0xff]
        %v2587 = vld [vmem:[%s4 + $0x350] sm:$0xff]
        %v2588 = vld [vmem:[%s4 + $0x358] sm:$0xff]
        %v2589 = vld [vmem:[%s4 + $0x360] sm:$0xff]
        %v2590 = vld [vmem:[%s4 + $0x368] sm:$0xff]
        %v2591 = vld [vmem:[%s4 + $0x370] sm:$0xff]
        %v2592 = vld [vmem:[%s4 + $0x378] sm:$0xff]
        %v2593 = vld [vmem:[%s4 + $0x380] sm:$0xff]
        %v2594 = vld [vmem:[%s4 + $0x388] sm:$0xff]
        %v2595 = vld [vmem:[%s4 + $0x390] sm:$0xff]
        %v2596 = vld [vmem:[%s4 + $0x398] sm:$0xff]
        %v2597 = vld [vmem:[%s4 + $0x3a0] sm:$0xff]
        %v2598 = vld [vmem:[%s4 + $0x3a8] sm:$0xff]
        %v2599 = vld [vmem:[%s4 + $0x3b0] sm:$0xff]
        %v2600 = vld [vmem:[%s4 + $0x3b8] sm:$0xff]
        %v2601 = vld [vmem:[%s4 + $0x3c0] sm:$0xff]
        %v2602 = vld [vmem:[%s4 + $0x3c8] sm:$0xff]
        %v2603 = vld [vmem:[%s4 + $0x3d0] sm:$0xff]
        %v2604 = vld [vmem:[%s4 + $0x3d8] sm:$0xff]
        %v2605 = vld [vmem:[%s4 + $0x3e0] sm:$0xff]
        %v2606 = vld [vmem:[%s4 + $0x3e8] sm:$0xff]
        %v2607 = vld [vmem:[%s4 + $0x3f0] sm:$0xff]
        %v2608 = vld [vmem:[%s4 + $0x3f8] sm:$0xff]
        %v2609 = vld [vmem:[%s4 + $0x400] sm:$0xff]
        %v2610 = vld [vmem:[%s4 + $0x408] sm:$0xff]
        %v2611 = vld [vmem:[%s4 + $0x410] sm:$0xff]
        %v2612 = vld [vmem:[%s4 + $0x418] sm:$0xff]
        %v2613 = vld [vmem:[%s4 + $0x420] sm:$0xff]
        %v2614 = vld [vmem:[%s4 + $0x428] sm:$0xff]
        %v2615 = vld [vmem:[%s4 + $0x430] sm:$0xff]
        %v2616 = vld [vmem:[%s4 + $0x438] sm:$0xff]
        %v2617 = vld [vmem:[%s4 + $0x440] sm:$0xff]
        %v2618 = vld [vmem:[%s4 + $0x448] sm:$0xff]
        %v2619 = vld [vmem:[%s4 + $0x450] sm:$0xff]
        %v2620 = vld [vmem:[%s4 + $0x458] sm:$0xff]
        %v2621 = vld [vmem:[%s4 + $0x460] sm:$0xff]
        %v2622 = vld [vmem:[%s4 + $0x468] sm:$0xff]
        %v2623 = vld [vmem:[%s4 + $0x470] sm:$0xff]
        %v2624 = vld [vmem:[%s4 + $0x478] sm:$0xff]
        %v2625 = vld [vmem:[%s6] sm:$0x1]
        %v2627 = vlaneseq
        %v2628 = vshrl.u32 %v2627, 7
        %v2629 = vsub.s32 0, %v2628
        %v2630 = vrot.slane %v2625, %v2629
        %2632 = vmatprep.subr.mxu0 0.0
        %2633 = vmatpush1.msra.mxu0 %v2481
        %2634 = vmatprep.subr.mxu0 0.0
        %2635 = vmatpush1.msra.mxu0 %v2482
        %2636 = vmatprep.subr.mxu0 0.0
        %2637 = vmatpush1.msra.mxu0 %v2483
        %2638 = vmatprep.subr.mxu0 0.0
        %2639 = vmatpush1.msra.mxu0 %v2484
        %2640 = vmatprep.subr.mxu0 0.0
        %2641 = vmatpush1.msra.mxu0 %v2485
        %2642 = vmatprep.subr.mxu0 0.0
        %2643 = vmatpush1.msra.mxu0 %v2486
        %2644 = vmatprep.subr.mxu0 0.0
        %2645 = vmatpush1.msra.mxu0 %v2487
        %2646 = vmatprep.subr.mxu0 0.0
        %2647 = vmatpush1.msra.mxu0 %v2488
        %2648 = vmatprep.subr.mxu0 0.0
        %2649 = vmatpush1.msra.mxu0 %v2489
        %2650 = vmatprep.subr.mxu0 0.0
        %2651 = vmatpush1.msra.mxu0 %v2490
        %2652 = vmatprep.subr.mxu0 0.0
        %2653 = vmatpush1.msra.mxu0 %v2491
        %2654 = vmatprep.subr.mxu0 0.0
        %2655 = vmatpush1.msra.mxu0 %v2492
        %2656 = vmatprep.subr.mxu0 0.0
        %2657 = vmatpush1.msra.mxu0 %v2493
        %2658 = vmatprep.subr.mxu0 0.0
        %2659 = vmatpush1.msra.mxu0 %v2494
        %2660 = vmatprep.subr.mxu0 0.0
        %2661 = vmatpush1.msra.mxu0 %v2495
        %2662 = vmatprep.subr.mxu0 0.0
        %2663 = vmatpush1.msra.mxu0 %v2496
        %2664 = vmatprep.subr.mxu0 0.0
        %2665 = vmatpush1.msra.mxu0 %v2497
        %2666 = vmatprep.subr.mxu0 0.0
        %2667 = vmatpush1.msra.mxu0 %v2498
        %2668 = vmatprep.subr.mxu0 0.0
        %2669 = vmatpush1.msra.mxu0 %v2499
        %2670 = vmatprep.subr.mxu0 0.0
        %2671 = vmatpush1.msra.mxu0 %v2500
        %2672 = vmatprep.subr.mxu0 0.0
        %2673 = vmatpush1.msra.mxu0 %v2501
        %2674 = vmatprep.subr.mxu0 0.0
        %2675 = vmatpush1.msra.mxu0 %v2502
        %2676 = vmatprep.subr.mxu0 0.0
        %2677 = vmatpush1.msra.mxu0 %v2503
        %2678 = vmatprep.subr.mxu0 0.0
        %2679 = vmatpush1.msra.mxu0 %v2504
        %2680 = vmatprep.subr.mxu0 0.0
        %2681 = vmatpush1.msra.mxu0 %v2505
        %2682 = vmatprep.subr.mxu0 0.0
        %2683 = vmatpush1.msra.mxu0 %v2506
        %2684 = vmatprep.subr.mxu0 0.0
        %2685 = vmatpush1.msra.mxu0 %v2507
        %2686 = vmatprep.subr.mxu0 0.0
        %2687 = vmatpush1.msra.mxu0 %v2508
        %2688 = vmatprep.subr.mxu0 0.0
        %2689 = vmatpush1.msra.mxu0 %v2509
        %2690 = vmatprep.subr.mxu0 0.0
        %2691 = vmatpush1.msra.mxu0 %v2510
        %2692 = vmatprep.subr.mxu0 0.0
        %2693 = vmatpush1.msra.mxu0 %v2511
        %2694 = vmatprep.subr.mxu0 0.0
        %2695 = vmatpush1.msra.mxu0 %v2512
        %2696 = vmatprep.mubr.f32.mxu0 %v2347
        %2697 = vmatmul.mubr.f32.gmra.mrb[0].mxu0 %v2331
        %v2698 = vpop.f32.mrb[0].mxu0
        %v2699 = vadd.f32 %v2630, %v2698
        %v2700 = vpop.f32.mrb[0].mxu0
        %2701 = vmatprep.mubr.f32.mxu0 %v2348
        %2702 = vmatmul.mubr.f32.gmra.mrb[0].mxu0 %v2332
        %v2703 = vpop.f32.mrb[0].mxu0
        %v2704 = vadd.f32 %v2630, %v2703
        %v2705 = vpop.f32.mrb[0].mxu0
        %2706 = vmatprep.mubr.f32.mxu0 %v2349
        %2707 = vmatmul.mubr.f32.gmra.mrb[0].mxu0 %v2333
        %v2708 = vpop.f32.mrb[0].mxu0
        %v2709 = vadd.f32 %v2630, %v2708
        %v2710 = vpop.f32.mrb[0].mxu0
        %2711 = vmatprep.mubr.f32.mxu0 %v2350
        %2712 = vmatmul.mubr.f32.gmra.mrb[0].mxu0 %v2334
        %v2713 = vpop.f32.mrb[0].mxu0
        %v2714 = vadd.f32 %v2630, %v2713
        %v2715 = vpop.f32.mrb[0].mxu0
        %2716 = vmatprep.mubr.f32.mxu0 %v2351
        %2717 = vmatmul.mubr.f32.gmra.mrb[0].mxu0 %v2335
        %v2718 = vpop.f32.mrb[0].mxu0
        %v2719 = vadd.f32 %v2630, %v2718
        %v2720 = vpop.f32.mrb[0].mxu0
        %2721 = vmatprep.mubr.f32.mxu0 %v2352
        %2722 = vmatmul.mubr.f32.gmra.mrb[0].mxu0 %v2336
        %v2723 = vpop.f32.mrb[0].mxu0
        %v2724 = vadd.f32 %v2630, %v2723
        %v2725 = vpop.f32.mrb[0].mxu0
        %2726 = vmatprep.mubr.f32.mxu0 %v2353
        %2727 = vmatmul.mubr.f32.gmra.mrb[0].mxu0 %v2337
        %v2728 = vpop.f32.mrb[0].mxu0
        %v2729 = vadd.f32 %v2630, %v2728
        %v2730 = vpop.f32.mrb[0].mxu0
        %2731 = vmatprep.mubr.f32.mxu0 %v2354
        %2732 = vmatmul.mubr.f32.gmra.mrb[0].mxu0 %v2338
        %v2733 = vpop.f32.mrb[0].mxu0
        %v2734 = vadd.f32 %v2630, %v2733
        %v2735 = vpop.f32.mrb[0].mxu0
        %2736 = vmatprep.mubr.f32.mxu0 %v2355
        %2737 = vmatmul.mubr.f32.gmra.mrb[0].mxu0 %v2339
        %v2738 = vpop.f32.mrb[0].mxu0
        %v2739 = vadd.f32 %v2630, %v2738
        %v2740 = vpop.f32.mrb[0].mxu0
        %2741 = vmatprep.mubr.f32.mxu0 %v2356
        %2742 = vmatmul.mubr.f32.gmra.mrb[0].mxu0 %v2340
        %v2743 = vpop.f32.mrb[0].mxu0
        %v2744 = vadd.f32 %v2630, %v2743
        %v2745 = vpop.f32.mrb[0].mxu0
        %2746 = vmatprep.mubr.f32.mxu0 %v2357
        %2747 = vmatmul.mubr.f32.gmra.mrb[0].mxu0 %v2341
        %v2748 = vpop.f32.mrb[0].mxu0
        %v2749 = vadd.f32 %v2630, %v2748
        %v2750 = vpop.f32.mrb[0].mxu0
        %2751 = vmatprep.mubr.f32.mxu0 %v2358
        %2752 = vmatmul.mubr.f32.gmra.mrb[0].mxu0 %v2342
        %v2753 = vpop.f32.mrb[0].mxu0
        %v2754 = vadd.f32 %v2630, %v2753
        %v2755 = vpop.f32.mrb[0].mxu0
        %2756 = vmatprep.mubr.f32.mxu0 %v2359
        %2757 = vmatmul.mubr.f32.gmra.mrb[0].mxu0 %v2343
        %v2758 = vpop.f32.mrb[0].mxu0
        %v2759 = vadd.f32 %v2630, %v2758
        %v2760 = vpop.f32.mrb[0].mxu0
        %2761 = vmatprep.mubr.f32.mxu0 %v2360
        %2762 = vmatmul.mubr.f32.gmra.mrb[0].mxu0 %v2344
        %v2763 = vpop.f32.mrb[0].mxu0
        %v2764 = vadd.f32 %v2630, %v2763
        %v2765 = vpop.f32.mrb[0].mxu0
        %2766 = vmatprep.mubr.f32.mxu0 %v2361
        %2767 = vmatmul.mubr.f32.gmra.mrb[0].mxu0 %v2345
        %v2768 = vpop.f32.mrb[0].mxu0
        %v2769 = vadd.f32 %v2630, %v2768
        %v2770 = vpop.f32.mrb[0].mxu0
        %2771 = vmatprep.mubr.f32.mxu0 %v2362
        %2772 = vmatmul.mubr.f32.gmra.mrb[0].mxu0 %v2346
        %v2773 = vpop.f32.mrb[0].mxu0
        %v2774 = vadd.f32 %v2630, %v2773
        %v2775 = vpop.f32.mrb[0].mxu0
        %2776 = vdwg.mxu0
        %2777 = vmatprep.subr.mxu0 0.0
        %2778 = vmatpush1.msra.mxu0 %v2513
        %2779 = vmatprep.subr.mxu0 0.0
        %2780 = vmatpush1.msra.mxu0 %v2514
        %2781 = vmatprep.subr.mxu0 0.0
        %2782 = vmatpush1.msra.mxu0 %v2515
        %2783 = vmatprep.subr.mxu0 0.0
        %2784 = vmatpush1.msra.mxu0 %v2516
        %2785 = vmatprep.subr.mxu0 0.0
        %2786 = vmatpush1.msra.mxu0 %v2517
        %2787 = vmatprep.subr.mxu0 0.0
        %2788 = vmatpush1.msra.mxu0 %v2518
        %2789 = vmatprep.subr.mxu0 0.0
        %2790 = vmatpush1.msra.mxu0 %v2519
        %2791 = vmatprep.subr.mxu0 0.0
        %2792 = vmatpush1.msra.mxu0 %v2520
        %2793 = vmatprep.subr.mxu0 0.0
        %2794 = vmatpush1.msra.mxu0 %v2521
        %2795 = vmatprep.subr.mxu0 0.0
        %2796 = vmatpush1.msra.mxu0 %v2522
        %2797 = vmatprep.subr.mxu0 0.0
        %2798 = vmatpush1.msra.mxu0 %v2523
        %2799 = vmatprep.subr.mxu0 0.0
        %2800 = vmatpush1.msra.mxu0 %v2524
        %2801 = vmatprep.subr.mxu0 0.0
        %2802 = vmatpush1.msra.mxu0 %v2525
        %2803 = vmatprep.subr.mxu0 0.0
        %2804 = vmatpush1.msra.mxu0 %v2526
        %2805 = vmatprep.subr.mxu0 0.0
        %2806 = vmatpush1.msra.mxu0 %v2527
        %2807 = vmatprep.subr.mxu0 0.0
        %2808 = vmatpush1.msra.mxu0 %v2528
        %2809 = vmatprep.subr.mxu0 0.0
        %2810 = vmatpush1.msra.mxu0 %v2529
        %2811 = vmatprep.subr.mxu0 0.0
        %2812 = vmatpush1.msra.mxu0 %v2530
        %2813 = vmatprep.subr.mxu0 0.0
        %2814 = vmatpush1.msra.mxu0 %v2531
        %2815 = vmatprep.subr.mxu0 0.0
        %2816 = vmatpush1.msra.mxu0 %v2532
        %2817 = vmatprep.subr.mxu0 0.0
        %2818 = vmatpush1.msra.mxu0 %v2533
        %2819 = vmatprep.subr.mxu0 0.0
        %2820 = vmatpush1.msra.mxu0 %v2534
        %2821 = vmatprep.subr.mxu0 0.0
        %2822 = vmatpush1.msra.mxu0 %v2535
        %2823 = vmatprep.subr.mxu0 0.0
        %2824 = vmatpush1.msra.mxu0 %v2536
        %2825 = vmatprep.subr.mxu0 0.0
        %2826 = vmatpush1.msra.mxu0 %v2537
        %2827 = vmatprep.subr.mxu0 0.0
        %2828 = vmatpush1.msra.mxu0 %v2538
        %2829 = vmatprep.subr.mxu0 0.0
        %2830 = vmatpush1.msra.mxu0 %v2539
        %2831 = vmatprep.subr.mxu0 0.0
        %2832 = vmatpush1.msra.mxu0 %v2540
        %2833 = vmatprep.subr.mxu0 0.0
        %2834 = vmatpush1.msra.mxu0 %v2541
        %2835 = vmatprep.subr.mxu0 0.0
        %2836 = vmatpush1.msra.mxu0 %v2542
        %2837 = vmatprep.subr.mxu0 0.0
        %2838 = vmatpush1.msra.mxu0 %v2543
        %2839 = vmatprep.subr.mxu0 0.0
        %2840 = vmatpush1.msra.mxu0 %v2544
        %2841 = vmatprep.mubr.f32.mxu0 %v2382
        %2842 = vmatmul.mubr.f32.gmra.mrb[0].mxu0 %v2363
        %v2843 = vpop.f32.mrb[0].mxu0
        %v2844 = vadd.f32 %v2699, %v2843
        %v2845 = vpop.f32.mrb[0].mxu0
        %2846 = vmatprep.mubr.f32.mxu0 %v2383
        %2847 = vmatmul.mubr.f32.gmra.mrb[0].mxu0 %v2364
        %v2848 = vpop.f32.mrb[0].mxu0
        %v2849 = vadd.f32 %v2704, %v2848
        %v2850 = vpop.f32.mrb[0].mxu0
        %2851 = vmatprep.mubr.f32.mxu0 %v2384
        %2852 = vmatmul.mubr.f32.gmra.mrb[0].mxu0 %v2365
        %v2853 = vpop.f32.mrb[0].mxu0
        %v2854 = vadd.f32 %v2709, %v2853
        %v2855 = vpop.f32.mrb[0].mxu0
        %2856 = vmatprep.mubr.f32.mxu0 %v2385
        %2857 = vmatmul.mubr.f32.gmra.mrb[0].mxu0 %v2366
        %v2858 = vpop.f32.mrb[0].mxu0
        %v2859 = vadd.f32 %v2714, %v2858
        %v2860 = vpop.f32.mrb[0].mxu0
        %2861 = vmatprep.mubr.f32.mxu0 %v2386
        %2862 = vmatmul.mubr.f32.gmra.mrb[0].mxu0 %v2367
        %v2863 = vpop.f32.mrb[0].mxu0
        %v2864 = vadd.f32 %v2719, %v2863
        %v2865 = vpop.f32.mrb[0].mxu0
        %2866 = vmatprep.mubr.f32.mxu0 %v2387
        %2867 = vmatmul.mubr.f32.gmra.mrb[0].mxu0 %v2368
        %v2868 = vpop.f32.mrb[0].mxu0
        %v2869 = vadd.f32 %v2724, %v2868
        %v2870 = vpop.f32.mrb[0].mxu0
        %2871 = vmatprep.mubr.f32.mxu0 %v2388
        %2872 = vmatmul.mubr.f32.gmra.mrb[0].mxu0 %v2369
        %v2873 = vpop.f32.mrb[0].mxu0
        %v2874 = vadd.f32 %v2729, %v2873
        %v2875 = vpop.f32.mrb[0].mxu0
        %2876 = vmatprep.mubr.f32.mxu0 %v2389
        %2877 = vmatmul.mubr.f32.gmra.mrb[0].mxu0 %v2370
        %v2878 = vpop.f32.mrb[0].mxu0
        %v2879 = vadd.f32 %v2734, %v2878
        %v2880 = vpop.f32.mrb[0].mxu0
        %2881 = vmatprep.mubr.f32.mxu0 %v2390
        %2882 = vmatmul.mubr.f32.gmra.mrb[0].mxu0 %v2371
        %v2883 = vpop.f32.mrb[0].mxu0
        %v2884 = vadd.f32 %v2739, %v2883
        %v2885 = vpop.f32.mrb[0].mxu0
        %2886 = vmatprep.mubr.f32.mxu0 %v2391
        %2887 = vmatmul.mubr.f32.gmra.mrb[0].mxu0 %v2372
        %v2888 = vpop.f32.mrb[0].mxu0
        %v2889 = vadd.f32 %v2744, %v2888
        %v2890 = vpop.f32.mrb[0].mxu0
        %2891 = vmatprep.mubr.f32.mxu0 %v2392
        %2892 = vmatmul.mubr.f32.gmra.mrb[0].mxu0 %v2373
        %v2893 = vpop.f32.mrb[0].mxu0
        %v2894 = vadd.f32 %v2749, %v2893
        %v2895 = vpop.f32.mrb[0].mxu0
        %2896 = vmatprep.mubr.f32.mxu0 %v2393
        %2897 = vmatmul.mubr.f32.gmra.mrb[0].mxu0 %v2374
        %v2898 = vpop.f32.mrb[0].mxu0
        %v2899 = vadd.f32 %v2754, %v2898
        %v2900 = vpop.f32.mrb[0].mxu0
        %2901 = vmatprep.mubr.f32.mxu0 %v2394
        %2902 = vmatmul.mubr.f32.gmra.mrb[0].mxu0 %v2375
        %v2903 = vpop.f32.mrb[0].mxu0
        %v2904 = vadd.f32 %v2759, %v2903
        %v2905 = vpop.f32.mrb[0].mxu0
        %2906 = vmatprep.mubr.f32.mxu0 %v2395
        %2907 = vmatmul.mubr.f32.gmra.mrb[0].mxu0 %v2376
        %v2908 = vpop.f32.mrb[0].mxu0
        %v2909 = vadd.f32 %v2764, %v2908
        %v2910 = vpop.f32.mrb[0].mxu0
        %2911 = vmatprep.mubr.f32.mxu0 %v2396
        %2912 = vmatmul.mubr.f32.gmra.mrb[0].mxu0 %v2377
        %v2913 = vpop.f32.mrb[0].mxu0
        %v2914 = vadd.f32 %v2769, %v2913
        %v2915 = vpop.f32.mrb[0].mxu0
        %2916 = vmatprep.mubr.f32.mxu0 %v2397
        %2917 = vmatmul.mubr.f32.gmra.mrb[0].mxu0 %v2378
        %v2918 = vpop.f32.mrb[0].mxu0
        %v2919 = vadd.f32 %v2774, %v2918
        %v2920 = vpop.f32.mrb[0].mxu0
        %2921 = vdwg.mxu0
        %2922 = vmatprep.subr.mxu0 0.0
        %2923 = vmatpush1.msra.mxu0 %v2545
        %2924 = vmatprep.subr.mxu0 0.0
        %2925 = vmatpush1.msra.mxu0 %v2546
        %2926 = vmatprep.subr.mxu0 0.0
        %2927 = vmatpush1.msra.mxu0 %v2547
        %2928 = vmatprep.subr.mxu0 0.0
        %2929 = vmatpush1.msra.mxu0 %v2548
        %2930 = vmatprep.subr.mxu0 0.0
        %2931 = vmatpush1.msra.mxu0 %v2549
        %2932 = vmatprep.subr.mxu0 0.0
        %2933 = vmatpush1.msra.mxu0 %v2550
        %2934 = vmatprep.subr.mxu0 0.0
        %2935 = vmatpush1.msra.mxu0 %v2551
        %2936 = vmatprep.subr.mxu0 0.0
        %2937 = vmatpush1.msra.mxu0 %v2552
        %2938 = vmatprep.subr.mxu0 0.0
        %2939 = vmatpush1.msra.mxu0 %v2553
        %2940 = vmatprep.subr.mxu0 0.0
        %2941 = vmatpush1.msra.mxu0 %v2554
        %2942 = vmatprep.subr.mxu0 0.0
        %2943 = vmatpush1.msra.mxu0 %v2555
        %2944 = vmatprep.subr.mxu0 0.0
        %2945 = vmatpush1.msra.mxu0 %v2556
        %2946 = vmatprep.subr.mxu0 0.0
        %2947 = vmatpush1.msra.mxu0 %v2557
        %2948 = vmatprep.subr.mxu0 0.0
        %2949 = vmatpush1.msra.mxu0 %v2558
        %2950 = vmatprep.subr.mxu0 0.0
        %2951 = vmatpush1.msra.mxu0 %v2559
        %2952 = vmatprep.subr.mxu0 0.0
        %2953 = vmatpush1.msra.mxu0 %v2560
        %2954 = vmatprep.subr.mxu0 0.0
        %2955 = vmatpush1.msra.mxu0 %v2561
        %2956 = vmatprep.subr.mxu0 0.0
        %2957 = vmatpush1.msra.mxu0 %v2562
        %2958 = vmatprep.subr.mxu0 0.0
        %2959 = vmatpush1.msra.mxu0 %v2563
        %2960 = vmatprep.subr.mxu0 0.0
        %2961 = vmatpush1.msra.mxu0 %v2564
        %2962 = vmatprep.subr.mxu0 0.0
        %2963 = vmatpush1.msra.mxu0 %v2565
        %2964 = vmatprep.subr.mxu0 0.0
        %2965 = vmatpush1.msra.mxu0 %v2566
        %2966 = vmatprep.subr.mxu0 0.0
        %2967 = vmatpush1.msra.mxu0 %v2567
        %2968 = vmatprep.subr.mxu0 0.0
        %2969 = vmatpush1.msra.mxu0 %v2568
        %2970 = vmatprep.subr.mxu0 0.0
        %2971 = vmatpush1.msra.mxu0 %v2569
        %2972 = vmatprep.subr.mxu0 0.0
        %2973 = vmatpush1.msra.mxu0 %v2570
        %2974 = vmatprep.subr.mxu0 0.0
        %2975 = vmatpush1.msra.mxu0 %v2571
        %2976 = vmatprep.subr.mxu0 0.0
        %2977 = vmatpush1.msra.mxu0 %v2572
        %2978 = vmatprep.subr.mxu0 0.0
        %2979 = vmatpush1.msra.mxu0 %v2573
        %2980 = vmatprep.subr.mxu0 0.0
        %2981 = vmatpush1.msra.mxu0 %v2574
        %2982 = vmatprep.subr.mxu0 0.0
        %2983 = vmatpush1.msra.mxu0 %v2575
        %2984 = vmatprep.subr.mxu0 0.0
        %2985 = vmatpush1.msra.mxu0 %v2576
        %2986 = vmatprep.mubr.f32.mxu0 %v2414
        %2987 = vmatmul.mubr.f32.gmra.mrb[0].mxu0 %v2398
        %v2988 = vpop.f32.mrb[0].mxu0
        %v2989 = vadd.f32 %v2844, %v2988
        %v2990 = vpop.f32.mrb[0].mxu0
        %2991 = vmatprep.mubr.f32.mxu0 %v2415
        %2992 = vmatmul.mubr.f32.gmra.mrb[0].mxu0 %v2399
        %v2993 = vpop.f32.mrb[0].mxu0
        %v2994 = vadd.f32 %v2849, %v2993
        %v2995 = vpop.f32.mrb[0].mxu0
        %2996 = vmatprep.mubr.f32.mxu0 %v2416
        %2997 = vmatmul.mubr.f32.gmra.mrb[0].mxu0 %v2400
        %v2998 = vpop.f32.mrb[0].mxu0
        %v2999 = vadd.f32 %v2854, %v2998
        %v3000 = vpop.f32.mrb[0].mxu0
        %3001 = vmatprep.mubr.f32.mxu0 %v2417
        %3002 = vmatmul.mubr.f32.gmra.mrb[0].mxu0 %v2401
        %v3003 = vpop.f32.mrb[0].mxu0
        %v3004 = vadd.f32 %v2859, %v3003
        %v3005 = vpop.f32.mrb[0].mxu0
        %3006 = vmatprep.mubr.f32.mxu0 %v2418
        %3007 = vmatmul.mubr.f32.gmra.mrb[0].mxu0 %v2402
        %v3008 = vpop.f32.mrb[0].mxu0
        %v3009 = vadd.f32 %v2864, %v3008
        %v3010 = vpop.f32.mrb[0].mxu0
        %3011 = vmatprep.mubr.f32.mxu0 %v2419
        %3012 = vmatmul.mubr.f32.gmra.mrb[0].mxu0 %v2403
        %v3013 = vpop.f32.mrb[0].mxu0
        %v3014 = vadd.f32 %v2869, %v3013
        %v3015 = vpop.f32.mrb[0].mxu0
        %3016 = vmatprep.mubr.f32.mxu0 %v2420
        %3017 = vmatmul.mubr.f32.gmra.mrb[0].mxu0 %v2404
        %v3018 = vpop.f32.mrb[0].mxu0
        %v3019 = vadd.f32 %v2874, %v3018
        %v3020 = vpop.f32.mrb[0].mxu0
        %3021 = vmatprep.mubr.f32.mxu0 %v2421
        %3022 = vmatmul.mubr.f32.gmra.mrb[0].mxu0 %v2405
        %v3023 = vpop.f32.mrb[0].mxu0
        %v3024 = vadd.f32 %v2879, %v3023
        %v3025 = vpop.f32.mrb[0].mxu0
        %3026 = vmatprep.mubr.f32.mxu0 %v2422
        %3027 = vmatmul.mubr.f32.gmra.mrb[0].mxu0 %v2406
        %v3028 = vpop.f32.mrb[0].mxu0
        %v3029 = vadd.f32 %v2884, %v3028
        %v3030 = vpop.f32.mrb[0].mxu0
        %3031 = vmatprep.mubr.f32.mxu0 %v2423
        %3032 = vmatmul.mubr.f32.gmra.mrb[0].mxu0 %v2407
        %v3033 = vpop.f32.mrb[0].mxu0
        %v3034 = vadd.f32 %v2889, %v3033
        %v3035 = vpop.f32.mrb[0].mxu0
        %3036 = vmatprep.mubr.f32.mxu0 %v2424
        %3037 = vmatmul.mubr.f32.gmra.mrb[0].mxu0 %v2408
        %v3038 = vpop.f32.mrb[0].mxu0
        %v3039 = vadd.f32 %v2894, %v3038
        %v3040 = vpop.f32.mrb[0].mxu0
        %3041 = vmatprep.mubr.f32.mxu0 %v2425
        %3042 = vmatmul.mubr.f32.gmra.mrb[0].mxu0 %v2409
        %v3043 = vpop.f32.mrb[0].mxu0
        %v3044 = vadd.f32 %v2899, %v3043
        %v3045 = vpop.f32.mrb[0].mxu0
        %3046 = vmatprep.mubr.f32.mxu0 %v2426
        %3047 = vmatmul.mubr.f32.gmra.mrb[0].mxu0 %v2410
        %v3048 = vpop.f32.mrb[0].mxu0
        %v3049 = vadd.f32 %v2904, %v3048
        %v3050 = vpop.f32.mrb[0].mxu0
        %3051 = vmatprep.mubr.f32.mxu0 %v2427
        %3052 = vmatmul.mubr.f32.gmra.mrb[0].mxu0 %v2411
        %v3053 = vpop.f32.mrb[0].mxu0
        %v3054 = vadd.f32 %v2909, %v3053
        %v3055 = vpop.f32.mrb[0].mxu0
        %3056 = vmatprep.mubr.f32.mxu0 %v2428
        %3057 = vmatmul.mubr.f32.gmra.mrb[0].mxu0 %v2412
        %v3058 = vpop.f32.mrb[0].mxu0
        %v3059 = vadd.f32 %v2914, %v3058
        %v3060 = vpop.f32.mrb[0].mxu0
        %3061 = vmatprep.mubr.f32.mxu0 %v2429
        %3062 = vmatmul.mubr.f32.gmra.mrb[0].mxu0 %v2413
        %v3063 = vpop.f32.mrb[0].mxu0
        %v3064 = vadd.f32 %v2919, %v3063
        %v3065 = vpop.f32.mrb[0].mxu0
        %3066 = vdwg.mxu0
        %3067 = vmatprep.subr.mxu0 0.0
        %3068 = vmatpush1.msra.mxu0 %v2577
        %3069 = vmatprep.subr.mxu0 0.0
        %3070 = vmatpush1.msra.mxu0 %v2578
        %3071 = vmatprep.subr.mxu0 0.0
        %3072 = vmatpush1.msra.mxu0 %v2579
        %3073 = vmatprep.subr.mxu0 0.0
        %3074 = vmatpush1.msra.mxu0 %v2580
        %3075 = vmatprep.subr.mxu0 0.0
        %3076 = vmatpush1.msra.mxu0 %v2581
        %3077 = vmatprep.subr.mxu0 0.0
        %3078 = vmatpush1.msra.mxu0 %v2582
        %3079 = vmatprep.subr.mxu0 0.0
        %3080 = vmatpush1.msra.mxu0 %v2583
        %3081 = vmatprep.subr.mxu0 0.0
        %3082 = vmatpush1.msra.mxu0 %v2584
        %3083 = vmatprep.subr.mxu0 0.0
        %3084 = vmatpush1.msra.mxu0 %v2585
        %3085 = vmatprep.subr.mxu0 0.0
        %3086 = vmatpush1.msra.mxu0 %v2586
        %3087 = vmatprep.subr.mxu0 0.0
        %3088 = vmatpush1.msra.mxu0 %v2587
        %3089 = vmatprep.subr.mxu0 0.0
        %3090 = vmatpush1.msra.mxu0 %v2588
        %3091 = vmatprep.subr.mxu0 0.0
        %3092 = vmatpush1.msra.mxu0 %v2589
        %3093 = vmatprep.subr.mxu0 0.0
        %3094 = vmatpush1.msra.mxu0 %v2590
        %3095 = vmatprep.subr.mxu0 0.0
        %3096 = vmatpush1.msra.mxu0 %v2591
        %3097 = vmatprep.subr.mxu0 0.0
        %3098 = vmatpush1.msra.mxu0 %v2592
        %3099 = vmatprep.subr.mxu0 0.0
        %3100 = vmatpush1.msra.mxu0 %v2593
        %3101 = vmatprep.subr.mxu0 0.0
        %3102 = vmatpush1.msra.mxu0 %v2594
        %3103 = vmatprep.subr.mxu0 0.0
        %3104 = vmatpush1.msra.mxu0 %v2595
        %3105 = vmatprep.subr.mxu0 0.0
        %3106 = vmatpush1.msra.mxu0 %v2596
        %3107 = vmatprep.subr.mxu0 0.0
        %3108 = vmatpush1.msra.mxu0 %v2597
        %3109 = vmatprep.subr.mxu0 0.0
        %3110 = vmatpush1.msra.mxu0 %v2598
        %3111 = vmatprep.subr.mxu0 0.0
        %3112 = vmatpush1.msra.mxu0 %v2599
        %3113 = vmatprep.subr.mxu0 0.0
        %3114 = vmatpush1.msra.mxu0 %v2600
        %3115 = vmatprep.subr.mxu0 0.0
        %3116 = vmatpush1.msra.mxu0 %v2601
        %3117 = vmatprep.subr.mxu0 0.0
        %3118 = vmatpush1.msra.mxu0 %v2602
        %3119 = vmatprep.subr.mxu0 0.0
        %3120 = vmatpush1.msra.mxu0 %v2603
        %3121 = vmatprep.subr.mxu0 0.0
        %3122 = vmatpush1.msra.mxu0 %v2604
        %3123 = vmatprep.subr.mxu0 0.0
        %3124 = vmatpush1.msra.mxu0 %v2605
        %3125 = vmatprep.subr.mxu0 0.0
        %3126 = vmatpush1.msra.mxu0 %v2606
        %3127 = vmatprep.subr.mxu0 0.0
        %3128 = vmatpush1.msra.mxu0 %v2607
        %3129 = vmatprep.subr.mxu0 0.0
        %3130 = vmatpush1.msra.mxu0 %v2608
        %3131 = vmatprep.mubr.f32.mxu0 %v2449
        %3132 = vmatmul.mubr.f32.gmra.mrb[0].mxu0 %v2433
        %v3133 = vpop.f32.mrb[0].mxu0
        %v3134 = vadd.f32 %v2989, %v3133
        %v3135 = vpop.f32.mrb[0].mxu0
        %3136 = vmatprep.mubr.f32.mxu0 %v2450
        %3137 = vmatmul.mubr.f32.gmra.mrb[0].mxu0 %v2434
        %v3138 = vpop.f32.mrb[0].mxu0
        %v3139 = vadd.f32 %v2994, %v3138
        %v3140 = vpop.f32.mrb[0].mxu0
        %3141 = vmatprep.mubr.f32.mxu0 %v2451
        %3142 = vmatmul.mubr.f32.gmra.mrb[0].mxu0 %v2435
        %v3143 = vpop.f32.mrb[0].mxu0
        %v3144 = vadd.f32 %v2999, %v3143
        %v3145 = vpop.f32.mrb[0].mxu0
        %3146 = vmatprep.mubr.f32.mxu0 %v2452
        %3147 = vmatmul.mubr.f32.gmra.mrb[0].mxu0 %v2436
        %v3148 = vpop.f32.mrb[0].mxu0
        %v3149 = vadd.f32 %v3004, %v3148
        %v3150 = vpop.f32.mrb[0].mxu0
        %3151 = vmatprep.mubr.f32.mxu0 %v2453
        %3152 = vmatmul.mubr.f32.gmra.mrb[0].mxu0 %v2437
        %v3153 = vpop.f32.mrb[0].mxu0
        %v3154 = vadd.f32 %v3009, %v3153
        %v3155 = vpop.f32.mrb[0].mxu0
        %3156 = vmatprep.mubr.f32.mxu0 %v2454
        %3157 = vmatmul.mubr.f32.gmra.mrb[0].mxu0 %v2438
        %v3158 = vpop.f32.mrb[0].mxu0
        %v3159 = vadd.f32 %v3014, %v3158
        %v3160 = vpop.f32.mrb[0].mxu0
        %3161 = vmatprep.mubr.f32.mxu0 %v2455
        %3162 = vmatmul.mubr.f32.gmra.mrb[0].mxu0 %v2439
        %v3163 = vpop.f32.mrb[0].mxu0
        %v3164 = vadd.f32 %v3019, %v3163
        %v3165 = vpop.f32.mrb[0].mxu0
        %3166 = vmatprep.mubr.f32.mxu0 %v2456
        %3167 = vmatmul.mubr.f32.gmra.mrb[0].mxu0 %v2440
        %v3168 = vpop.f32.mrb[0].mxu0
        %v3169 = vadd.f32 %v3024, %v3168
        %v3170 = vpop.f32.mrb[0].mxu0
        %3171 = vmatprep.mubr.f32.mxu0 %v2457
        %3172 = vmatmul.mubr.f32.gmra.mrb[0].mxu0 %v2441
        %v3173 = vpop.f32.mrb[0].mxu0
        %v3174 = vadd.f32 %v3029, %v3173
        %v3175 = vpop.f32.mrb[0].mxu0
        %3176 = vmatprep.mubr.f32.mxu0 %v2458
        %3177 = vmatmul.mubr.f32.gmra.mrb[0].mxu0 %v2442
        %v3178 = vpop.f32.mrb[0].mxu0
        %v3179 = vadd.f32 %v3034, %v3178
        %v3180 = vpop.f32.mrb[0].mxu0
        %3181 = vmatprep.mubr.f32.mxu0 %v2459
        %3182 = vmatmul.mubr.f32.gmra.mrb[0].mxu0 %v2443
        %v3183 = vpop.f32.mrb[0].mxu0
        %v3184 = vadd.f32 %v3039, %v3183
        %v3185 = vpop.f32.mrb[0].mxu0
        %3186 = vmatprep.mubr.f32.mxu0 %v2460
        %3187 = vmatmul.mubr.f32.gmra.mrb[0].mxu0 %v2444
        %v3188 = vpop.f32.mrb[0].mxu0
        %v3189 = vadd.f32 %v3044, %v3188
        %v3190 = vpop.f32.mrb[0].mxu0
        %3191 = vmatprep.mubr.f32.mxu0 %v2461
        %3192 = vmatmul.mubr.f32.gmra.mrb[0].mxu0 %v2445
        %v3193 = vpop.f32.mrb[0].mxu0
        %v3194 = vadd.f32 %v3049, %v3193
        %v3195 = vpop.f32.mrb[0].mxu0
        %3196 = vmatprep.mubr.f32.mxu0 %v2462
        %3197 = vmatmul.mubr.f32.gmra.mrb[0].mxu0 %v2446
        %v3198 = vpop.f32.mrb[0].mxu0
        %v3199 = vadd.f32 %v3054, %v3198
        %v3200 = vpop.f32.mrb[0].mxu0
        %3201 = vmatprep.mubr.f32.mxu0 %v2463
        %3202 = vmatmul.mubr.f32.gmra.mrb[0].mxu0 %v2447
        %v3203 = vpop.f32.mrb[0].mxu0
        %v3204 = vadd.f32 %v3059, %v3203
        %v3205 = vpop.f32.mrb[0].mxu0
        %3206 = vmatprep.mubr.f32.mxu0 %v2464
        %3207 = vmatmul.mubr.f32.gmra.mrb[0].mxu0 %v2448
        %v3208 = vpop.f32.mrb[0].mxu0
        %v3209 = vadd.f32 %v3064, %v3208
        %v3210 = vpop.f32.mrb[0].mxu0
        %3211 = vdwg.mxu0
        %3212 = vmatprep.subr.mxu0 0.0
        %3213 = vmatpush1.msra.mxu0 %v2609
        %3214 = vmatprep.subr.mxu0 0.0
        %3215 = vmatpush1.msra.mxu0 %v2610
        %3216 = vmatprep.subr.mxu0 0.0
        %3217 = vmatpush1.msra.mxu0 %v2611
        %3218 = vmatprep.subr.mxu0 0.0
        %3219 = vmatpush1.msra.mxu0 %v2612
        %3220 = vmatprep.subr.mxu0 0.0
        %3221 = vmatpush1.msra.mxu0 %v2613
        %3222 = vmatprep.subr.mxu0 0.0
        %3223 = vmatpush1.msra.mxu0 %v2614
        %3224 = vmatprep.subr.mxu0 0.0
        %3225 = vmatpush1.msra.mxu0 %v2615
        %3226 = vmatprep.subr.mxu0 0.0
        %3227 = vmatpush1.msra.mxu0 %v2616
        %3228 = vmatprep.subr.mxu0 0.0
        %3229 = vmatpush1.msra.mxu0 %v2617
        %3230 = vmatprep.subr.mxu0 0.0
        %3231 = vmatpush1.msra.mxu0 %v2618
        %3232 = vmatprep.subr.mxu0 0.0
        %3233 = vmatpush1.msra.mxu0 %v2619
        %3234 = vmatprep.subr.mxu0 0.0
        %3235 = vmatpush1.msra.mxu0 %v2620
        %3236 = vmatprep.subr.mxu0 0.0
        %3237 = vmatpush1.msra.mxu0 %v2621
        %3238 = vmatprep.subr.mxu0 0.0
        %3239 = vmatpush1.msra.mxu0 %v2622
        %3240 = vmatprep.subr.mxu0 0.0
        %3241 = vmatpush1.msra.mxu0 %v2623
        %3242 = vmatprep.subr.mxu0 0.0
        %3243 = vmatpush1.msra.mxu0 %v2624
        %3244 = vmatprep.subr.mxu0 0.0
        %3245 = vmatpush1.msra.mxu0 0.0
        %3246 = vmatprep.subr.mxu0 0.0
        %3247 = vmatpush1.msra.mxu0 0.0
        %3248 = vmatprep.subr.mxu0 0.0
        %3249 = vmatpush1.msra.mxu0 0.0
        %3250 = vmatprep.subr.mxu0 0.0
        %3251 = vmatpush1.msra.mxu0 0.0
        %3252 = vmatprep.subr.mxu0 0.0
        %3253 = vmatpush1.msra.mxu0 0.0
        %3254 = vmatprep.subr.mxu0 0.0
        %3255 = vmatpush1.msra.mxu0 0.0
        %3256 = vmatprep.subr.mxu0 0.0
        %3257 = vmatpush1.msra.mxu0 0.0
        %3258 = vmatprep.subr.mxu0 0.0
        %3259 = vmatpush1.msra.mxu0 0.0
        %3260 = vmatprep.subr.mxu0 0.0
        %3261 = vmatpush1.msra.mxu0 0.0
        %3262 = vmatprep.subr.mxu0 0.0
        %3263 = vmatpush1.msra.mxu0 0.0
        %3264 = vmatprep.subr.mxu0 0.0
        %3265 = vmatpush1.msra.mxu0 0.0
        %3266 = vmatprep.subr.mxu0 0.0
        %3267 = vmatpush1.msra.mxu0 0.0
        %3268 = vmatprep.subr.mxu0 0.0
        %3269 = vmatpush1.msra.mxu0 0.0
        %3270 = vmatprep.subr.mxu0 0.0
        %3271 = vmatpush1.msra.mxu0 0.0
        %3272 = vmatprep.subr.mxu0 0.0
        %3273 = vmatpush1.msra.mxu0 0.0
        %3274 = vmatprep.subr.mxu0 0.0
        %3275 = vmatpush1.msra.mxu0 0.0
        %3276 = vmatprep.mubr.f32.mxu0 0.0
        %3277 = vmatmul.mubr.f32.gmra.mrb[0].mxu0 %v2465
        %v3278 = vpop.f32.mrb[0].mxu0
        %v3279 = vadd.f32 %v3134, %v3278
        %v3280 = vpop.f32.mrb[0].mxu0
        %3281 = vmatprep.mubr.f32.mxu0 0.0
        %3282 = vmatmul.mubr.f32.gmra.mrb[0].mxu0 %v2466
        %v3283 = vpop.f32.mrb[0].mxu0
        %v3284 = vadd.f32 %v3139, %v3283
        %v3285 = vpop.f32.mrb[0].mxu0
        %3286 = vmatprep.mubr.f32.mxu0 0.0
        %3287 = vmatmul.mubr.f32.gmra.mrb[0].mxu0 %v2467
        %v3288 = vpop.f32.mrb[0].mxu0
        %v3289 = vadd.f32 %v3144, %v3288
        %v3290 = vpop.f32.mrb[0].mxu0
        %3291 = vmatprep.mubr.f32.mxu0 0.0
        %3292 = vmatmul.mubr.f32.gmra.mrb[0].mxu0 %v2468
        %v3293 = vpop.f32.mrb[0].mxu0
        %v3294 = vadd.f32 %v3149, %v3293
        %v3295 = vpop.f32.mrb[0].mxu0
        %3296 = vmatprep.mubr.f32.mxu0 0.0
        %3297 = vmatmul.mubr.f32.gmra.mrb[0].mxu0 %v2469
        %v3298 = vpop.f32.mrb[0].mxu0
        %v3299 = vadd.f32 %v3154, %v3298
        %v3300 = vpop.f32.mrb[0].mxu0
        %3301 = vmatprep.mubr.f32.mxu0 0.0
        %3302 = vmatmul.mubr.f32.gmra.mrb[0].mxu0 %v2470
        %v3303 = vpop.f32.mrb[0].mxu0
        %v3304 = vadd.f32 %v3159, %v3303
        %v3305 = vpop.f32.mrb[0].mxu0
        %3306 = vmatprep.mubr.f32.mxu0 0.0
        %3307 = vmatmul.mubr.f32.gmra.mrb[0].mxu0 %v2471
        %v3308 = vpop.f32.mrb[0].mxu0
        %v3309 = vadd.f32 %v3164, %v3308
        %v3310 = vpop.f32.mrb[0].mxu0
        %3311 = vmatprep.mubr.f32.mxu0 0.0
        %3312 = vmatmul.mubr.f32.gmra.mrb[0].mxu0 %v2472
        %v3313 = vpop.f32.mrb[0].mxu0
        %v3314 = vadd.f32 %v3169, %v3313
        %v3315 = vpop.f32.mrb[0].mxu0
        %3316 = vmatprep.mubr.f32.mxu0 0.0
        %3317 = vmatmul.mubr.f32.gmra.mrb[0].mxu0 %v2473
        %v3318 = vpop.f32.mrb[0].mxu0
        %v3319 = vadd.f32 %v3174, %v3318
        %v3320 = vpop.f32.mrb[0].mxu0
        %3321 = vmatprep.mubr.f32.mxu0 0.0
        %3322 = vmatmul.mubr.f32.gmra.mrb[0].mxu0 %v2474
        %v3323 = vpop.f32.mrb[0].mxu0
        %v3324 = vadd.f32 %v3179, %v3323
        %v3325 = vpop.f32.mrb[0].mxu0
        %3326 = vmatprep.mubr.f32.mxu0 0.0
        %3327 = vmatmul.mubr.f32.gmra.mrb[0].mxu0 %v2475
        %v3328 = vpop.f32.mrb[0].mxu0
        %v3329 = vadd.f32 %v3184, %v3328
        %v3330 = vpop.f32.mrb[0].mxu0
        %3331 = vmatprep.mubr.f32.mxu0 0.0
        %3332 = vmatmul.mubr.f32.gmra.mrb[0].mxu0 %v2476
        %v3333 = vpop.f32.mrb[0].mxu0
        %v3334 = vadd.f32 %v3189, %v3333
        %v3335 = vpop.f32.mrb[0].mxu0
        %3336 = vmatprep.mubr.f32.mxu0 0.0
        %3337 = vmatmul.mubr.f32.gmra.mrb[0].mxu0 %v2477
        %v3338 = vpop.f32.mrb[0].mxu0
        %v3339 = vadd.f32 %v3194, %v3338
        %v3340 = vpop.f32.mrb[0].mxu0
        %3341 = vmatprep.mubr.f32.mxu0 0.0
        %3342 = vmatmul.mubr.f32.gmra.mrb[0].mxu0 %v2478
        %v3343 = vpop.f32.mrb[0].mxu0
        %v3344 = vadd.f32 %v3199, %v3343
        %v3345 = vpop.f32.mrb[0].mxu0
        %3346 = vmatprep.mubr.f32.mxu0 0.0
        %3347 = vmatmul.mubr.f32.gmra.mrb[0].mxu0 %v2479
        %v3348 = vpop.f32.mrb[0].mxu0
        %v3349 = vadd.f32 %v3204, %v3348
        %v3350 = vpop.f32.mrb[0].mxu0
        %3351 = vmatprep.mubr.f32.mxu0 0.0
        %3352 = vmatmul.mubr.f32.gmra.mrb[0].mxu0 %v2480
        %v3353 = vpop.f32.mrb[0].mxu0
        %v3354 = vadd.f32 %v3209, %v3353
        %v3355 = vpop.f32.mrb[0].mxu0
        %3356 = vdwg.mxu0
        %v3357 = vmax.f32 %v3279, 0.0
        %v3358 = vmax.f32 %v3284, 0.0
        %v3359 = vmax.f32 %v3289, 0.0
        %v3360 = vmax.f32 %v3294, 0.0
        %v3361 = vmax.f32 %v3299, 0.0
        %v3362 = vmax.f32 %v3304, 0.0
        %v3363 = vmax.f32 %v3309, 0.0
        %v3364 = vmax.f32 %v3314, 0.0
        %v3365 = vmax.f32 %v3319, 0.0
        %v3366 = vmax.f32 %v3324, 0.0
        %v3367 = vmax.f32 %v3329, 0.0
        %v3368 = vmax.f32 %v3334, 0.0
        %v3369 = vmax.f32 %v3339, 0.0
        %v3370 = vmax.f32 %v3344, 0.0
        %v3371 = vmax.f32 %v3349, 0.0
        %v3372 = vmax.f32 %v3354, 0.0
        %v3373 = vadd.f32 %v2313, %v3357
        %v3374 = vadd.f32 %v2314, %v3358
        %v3375 = vadd.f32 %v2315, %v3359
        %v3376 = vadd.f32 %v2316, %v3360
        %v3377 = vadd.f32 %v2317, %v3361
        %v3378 = vadd.f32 %v2318, %v3362
        %v3379 = vadd.f32 %v2319, %v3363
        %v3380 = vadd.f32 %v2320, %v3364
        %v3381 = vadd.f32 %v2321, %v3365
        %v3382 = vadd.f32 %v2322, %v3366
        %v3383 = vadd.f32 %v2323, %v3367
        %v3384 = vadd.f32 %v2324, %v3368
        %v3385 = vadd.f32 %v2325, %v3369
        %v3386 = vadd.f32 %v2326, %v3370
        %v3387 = vadd.f32 %v2327, %v3371
        %v3388 = vadd.f32 %v2328, %v3372
        %s3389 = sadd.s32 %s332, 2
        %s3390 = smul.u32 %s3389, 32
        %s3391 = scalar_lea.vmem %s330, %s3390
        %v3392 = vld [vmem:[%s3391 + $0x2] sm:$0xff]
        %v3393 = vld [vmem:[%s3391 + $0xa] sm:$0xff]
        %v3394 = vld [vmem:[%s3391 + $0x22] sm:$0xff]
        %v3395 = vld [vmem:[%s3391 + $0x2a] sm:$0xff]
        %v3396 = vld [vmem:[%s3391 + $0x42] sm:$0xff]
        %v3397 = vld [vmem:[%s3391 + $0x4a] sm:$0xff]
        %v3398 = vld [vmem:[%s3391 + $0x62] sm:$0xff]
        %v3399 = vld [vmem:[%s3391 + $0x6a] sm:$0xff]
        %v3400 = vld [vmem:[%s3391 + $0x82] sm:$0xff]
        %v3401 = vld [vmem:[%s3391 + $0x8a] sm:$0xff]
        %v3402 = vld [vmem:[%s3391 + $0xa2] sm:$0xff]
        %v3403 = vld [vmem:[%s3391 + $0xaa] sm:$0xff]
        %v3404 = vld [vmem:[%s3391 + $0xc2] sm:$0xff]
        %v3405 = vld [vmem:[%s3391 + $0xca] sm:$0xff]
        %v3406 = vld [vmem:[%s3391 + $0xe2] sm:$0xff]
        %v3407 = vld [vmem:[%s3391 + $0xea] sm:$0xff]
        %v3408 = vld [vmem:[%s3391 + $0x5] sm:$0xff]
        %v3409 = vld [vmem:[%s3391 + $0xd] sm:$0xff]
        %v3410 = vld [vmem:[%s3391 + $0x25] sm:$0xff]
        %v3411 = vld [vmem:[%s3391 + $0x2d] sm:$0xff]
        %v3412 = vld [vmem:[%s3391 + $0x45] sm:$0xff]
        %v3413 = vld [vmem:[%s3391 + $0x4d] sm:$0xff]
        %v3414 = vld [vmem:[%s3391 + $0x65] sm:$0xff]
        %v3415 = vld [vmem:[%s3391 + $0x6d] sm:$0xff]
        %v3416 = vld [vmem:[%s3391 + $0x85] sm:$0xff]
        %v3417 = vld [vmem:[%s3391 + $0x8d] sm:$0xff]
        %v3418 = vld [vmem:[%s3391 + $0xa5] sm:$0xff]
        %v3419 = vld [vmem:[%s3391 + $0xad] sm:$0xff]
        %v3420 = vld [vmem:[%s3391 + $0xc5] sm:$0xff]
        %v3421 = vld [vmem:[%s3391 + $0xcd] sm:$0xff]
        %v3422 = vld [vmem:[%s3391 + $0xe5] sm:$0xff]
        %v3423 = vld [vmem:[%s3391 + $0xed] sm:$0xff]
        %v3424 = vld [vmem:[%s3391 + $0x8] sm:$0xff]
        %v3425 = vld [vmem:[%s3391 + $0x10] sm:$0xff]
        %v3426 = vld [vmem:[%s3391 + $0x28] sm:$0xff]
        %v3427 = vld [vmem:[%s3391 + $0x30] sm:$0xff]
        %v3428 = vld [vmem:[%s3391 + $0x48] sm:$0xff]
        %v3429 = vld [vmem:[%s3391 + $0x50] sm:$0xff]
        %v3430 = vld [vmem:[%s3391 + $0x68] sm:$0xff]
        %v3431 = vld [vmem:[%s3391 + $0x70] sm:$0xff]
        %v3432 = vld [vmem:[%s3391 + $0x88] sm:$0xff]
        %v3433 = vld [vmem:[%s3391 + $0x90] sm:$0xff]
        %v3434 = vld [vmem:[%s3391 + $0xa8] sm:$0xff]
        %v3435 = vld [vmem:[%s3391 + $0xb0] sm:$0xff]
        %v3436 = vld [vmem:[%s3391 + $0xc8] sm:$0xff]
        %v3437 = vld [vmem:[%s3391 + $0xd0] sm:$0xff]
        %v3438 = vld [vmem:[%s3391 + $0xe8] sm:$0xff]
        %v3439 = vld [vmem:[%s3391 + $0xf0] sm:$0xff]
        %v3440 = vld [vmem:[%s2381 + $0x2] sm:$0xff]
        %v3441 = vld [vmem:[%s2381 + $0xa] sm:$0xff]
        %v3442 = vld [vmem:[%s2381 + $0x22] sm:$0xff]
        %v3443 = vld [vmem:[%s2381 + $0x2a] sm:$0xff]
        %v3444 = vld [vmem:[%s2381 + $0x42] sm:$0xff]
        %v3445 = vld [vmem:[%s2381 + $0x4a] sm:$0xff]
        %v3446 = vld [vmem:[%s2381 + $0x62] sm:$0xff]
        %v3447 = vld [vmem:[%s2381 + $0x6a] sm:$0xff]
        %v3448 = vld [vmem:[%s2381 + $0x82] sm:$0xff]
        %v3449 = vld [vmem:[%s2381 + $0x8a] sm:$0xff]
        %v3450 = vld [vmem:[%s2381 + $0xa2] sm:$0xff]
        %v3451 = vld [vmem:[%s2381 + $0xaa] sm:$0xff]
        %v3452 = vld [vmem:[%s2381 + $0xc2] sm:$0xff]
        %v3453 = vld [vmem:[%s2381 + $0xca] sm:$0xff]
        %v3454 = vld [vmem:[%s2381 + $0xe2] sm:$0xff]
        %v3455 = vld [vmem:[%s2381 + $0xea] sm:$0xff]
        %v3456 = vld [vmem:[%s2381 + $0x8] sm:$0xff]
        %v3457 = vld [vmem:[%s2381 + $0x10] sm:$0xff]
        %v3458 = vld [vmem:[%s2381 + $0x28] sm:$0xff]
        %v3459 = vld [vmem:[%s2381 + $0x30] sm:$0xff]
        %v3460 = vld [vmem:[%s2381 + $0x48] sm:$0xff]
        %v3461 = vld [vmem:[%s2381 + $0x50] sm:$0xff]
        %v3462 = vld [vmem:[%s2381 + $0x68] sm:$0xff]
        %v3463 = vld [vmem:[%s2381 + $0x70] sm:$0xff]
        %v3464 = vld [vmem:[%s2381 + $0x88] sm:$0xff]
        %v3465 = vld [vmem:[%s2381 + $0x90] sm:$0xff]
        %v3466 = vld [vmem:[%s2381 + $0xa8] sm:$0xff]
        %v3467 = vld [vmem:[%s2381 + $0xb0] sm:$0xff]
        %v3468 = vld [vmem:[%s2381 + $0xc8] sm:$0xff]
        %v3469 = vld [vmem:[%s2381 + $0xd0] sm:$0xff]
        %v3470 = vld [vmem:[%s2381 + $0xe8] sm:$0xff]
        %v3471 = vld [vmem:[%s2381 + $0xf0] sm:$0xff]
        %s3472 = sadd.s32 %s332, 8
        %s3473 = smul.u32 %s3472, 32
        %s3474 = scalar_lea.vmem %s330, %s3473
        %v3475 = vld [vmem:[%s3474 + $0x2] sm:$0xff]
        %v3476 = vld [vmem:[%s3474 + $0xa] sm:$0xff]
        %v3477 = vld [vmem:[%s3474 + $0x22] sm:$0xff]
        %v3478 = vld [vmem:[%s3474 + $0x2a] sm:$0xff]
        %v3479 = vld [vmem:[%s3474 + $0x42] sm:$0xff]
        %v3480 = vld [vmem:[%s3474 + $0x4a] sm:$0xff]
        %v3481 = vld [vmem:[%s3474 + $0x62] sm:$0xff]
        %v3482 = vld [vmem:[%s3474 + $0x6a] sm:$0xff]
        %v3483 = vld [vmem:[%s3474 + $0x82] sm:$0xff]
        %v3484 = vld [vmem:[%s3474 + $0x8a] sm:$0xff]
        %v3485 = vld [vmem:[%s3474 + $0xa2] sm:$0xff]
        %v3486 = vld [vmem:[%s3474 + $0xaa] sm:$0xff]
        %v3487 = vld [vmem:[%s3474 + $0xc2] sm:$0xff]
        %v3488 = vld [vmem:[%s3474 + $0xca] sm:$0xff]
        %v3489 = vld [vmem:[%s3474 + $0xe2] sm:$0xff]
        %v3490 = vld [vmem:[%s3474 + $0xea] sm:$0xff]
        %v3491 = vld [vmem:[%s3474 + $0x5] sm:$0xff]
        %v3492 = vld [vmem:[%s3474 + $0xd] sm:$0xff]
        %v3493 = vld [vmem:[%s3474 + $0x25] sm:$0xff]
        %v3494 = vld [vmem:[%s3474 + $0x2d] sm:$0xff]
        %v3495 = vld [vmem:[%s3474 + $0x45] sm:$0xff]
        %v3496 = vld [vmem:[%s3474 + $0x4d] sm:$0xff]
        %v3497 = vld [vmem:[%s3474 + $0x65] sm:$0xff]
        %v3498 = vld [vmem:[%s3474 + $0x6d] sm:$0xff]
        %v3499 = vld [vmem:[%s3474 + $0x85] sm:$0xff]
        %v3500 = vld [vmem:[%s3474 + $0x8d] sm:$0xff]
        %v3501 = vld [vmem:[%s3474 + $0xa5] sm:$0xff]
        %v3502 = vld [vmem:[%s3474 + $0xad] sm:$0xff]
        %v3503 = vld [vmem:[%s3474 + $0xc5] sm:$0xff]
        %v3504 = vld [vmem:[%s3474 + $0xcd] sm:$0xff]
        %v3505 = vld [vmem:[%s3474 + $0xe5] sm:$0xff]
        %v3506 = vld [vmem:[%s3474 + $0xed] sm:$0xff]
        %v3507 = vld [vmem:[%s3474 + $0x8] sm:$0xff]
        %v3508 = vld [vmem:[%s3474 + $0x10] sm:$0xff]
        %v3509 = vld [vmem:[%s3474 + $0x28] sm:$0xff]
        %v3510 = vld [vmem:[%s3474 + $0x30] sm:$0xff]
        %v3511 = vld [vmem:[%s3474 + $0x48] sm:$0xff]
        %v3512 = vld [vmem:[%s3474 + $0x50] sm:$0xff]
        %v3513 = vld [vmem:[%s3474 + $0x68] sm:$0xff]
        %v3514 = vld [vmem:[%s3474 + $0x70] sm:$0xff]
        %v3515 = vld [vmem:[%s3474 + $0x88] sm:$0xff]
        %v3516 = vld [vmem:[%s3474 + $0x90] sm:$0xff]
        %v3517 = vld [vmem:[%s3474 + $0xa8] sm:$0xff]
        %v3518 = vld [vmem:[%s3474 + $0xb0] sm:$0xff]
        %v3519 = vld [vmem:[%s3474 + $0xc8] sm:$0xff]
        %v3520 = vld [vmem:[%s3474 + $0xd0] sm:$0xff]
        %v3521 = vld [vmem:[%s3474 + $0xe8] sm:$0xff]
        %v3522 = vld [vmem:[%s3474 + $0xf0] sm:$0xff]
        %3523 = vmatprep.subr.mxu0 0.0
        %3524 = vmatpush1.msra.mxu0 %v535
        %3525 = vmatprep.subr.mxu0 0.0
        %3526 = vmatpush1.msra.mxu0 %v536
        %3527 = vmatprep.subr.mxu0 0.0
        %3528 = vmatpush1.msra.mxu0 %v537
        %3529 = vmatprep.subr.mxu0 0.0
        %3530 = vmatpush1.msra.mxu0 %v538
        %3531 = vmatprep.subr.mxu0 0.0
        %3532 = vmatpush1.msra.mxu0 %v539
        %3533 = vmatprep.subr.mxu0 0.0
        %3534 = vmatpush1.msra.mxu0 %v540
        %3535 = vmatprep.subr.mxu0 0.0
        %3536 = vmatpush1.msra.mxu0 %v541
        %3537 = vmatprep.subr.mxu0 0.0
        %3538 = vmatpush1.msra.mxu0 %v542
        %3539 = vmatprep.subr.mxu0 0.0
        %3540 = vmatpush1.msra.mxu0 %v543
        %3541 = vmatprep.subr.mxu0 0.0
        %3542 = vmatpush1.msra.mxu0 %v544
        %3543 = vmatprep.subr.mxu0 0.0
        %3544 = vmatpush1.msra.mxu0 %v545
        %3545 = vmatprep.subr.mxu0 0.0
        %3546 = vmatpush1.msra.mxu0 %v546
        %3547 = vmatprep.subr.mxu0 0.0
        %3548 = vmatpush1.msra.mxu0 %v547
        %3549 = vmatprep.subr.mxu0 0.0
        %3550 = vmatpush1.msra.mxu0 %v548
        %3551 = vmatprep.subr.mxu0 0.0
        %3552 = vmatpush1.msra.mxu0 %v549
        %3553 = vmatprep.subr.mxu0 0.0
        %3554 = vmatpush1.msra.mxu0 %v550
        %3555 = vmatprep.subr.mxu0 0.0
        %3556 = vmatpush1.msra.mxu0 %v551
        %3557 = vmatprep.subr.mxu0 0.0
        %3558 = vmatpush1.msra.mxu0 %v552
        %3559 = vmatprep.subr.mxu0 0.0
        %3560 = vmatpush1.msra.mxu0 %v553
        %3561 = vmatprep.subr.mxu0 0.0
        %3562 = vmatpush1.msra.mxu0 %v554
        %3563 = vmatprep.subr.mxu0 0.0
        %3564 = vmatpush1.msra.mxu0 %v555
        %3565 = vmatprep.subr.mxu0 0.0
        %3566 = vmatpush1.msra.mxu0 %v556
        %3567 = vmatprep.subr.mxu0 0.0
        %3568 = vmatpush1.msra.mxu0 %v557
        %3569 = vmatprep.subr.mxu0 0.0
        %3570 = vmatpush1.msra.mxu0 %v558
        %3571 = vmatprep.subr.mxu0 0.0
        %3572 = vmatpush1.msra.mxu0 %v559
        %3573 = vmatprep.subr.mxu0 0.0
        %3574 = vmatpush1.msra.mxu0 %v560
        %3575 = vmatprep.subr.mxu0 0.0
        %3576 = vmatpush1.msra.mxu0 %v561
        %3577 = vmatprep.subr.mxu0 0.0
        %3578 = vmatpush1.msra.mxu0 %v562
        %3579 = vmatprep.subr.mxu0 0.0
        %3580 = vmatpush1.msra.mxu0 %v563
        %3581 = vmatprep.subr.mxu0 0.0
        %3582 = vmatpush1.msra.mxu0 %v564
        %3583 = vmatprep.subr.mxu0 0.0
        %3584 = vmatpush1.msra.mxu0 %v565
        %3585 = vmatprep.subr.mxu0 0.0
        %3586 = vmatpush1.msra.mxu0 %v566
        %3587 = vmatprep.mubr.f32.mxu0 %v3408
        %3588 = vmatmul.mubr.f32.gmra.mrb[0].mxu0 %v3392
        %v3589 = vpop.f32.mrb[0].mxu0
        %v3590 = vadd.f32 %v683, %v3589
        %v3591 = vpop.f32.mrb[0].mxu0
        %3592 = vmatprep.mubr.f32.mxu0 %v3409
        %3593 = vmatmul.mubr.f32.gmra.mrb[0].mxu0 %v3393
        %v3594 = vpop.f32.mrb[0].mxu0
        %v3595 = vadd.f32 %v683, %v3594
        %v3596 = vpop.f32.mrb[0].mxu0
        %3597 = vmatprep.mubr.f32.mxu0 %v3410
        %3598 = vmatmul.mubr.f32.gmra.mrb[0].mxu0 %v3394
        %v3599 = vpop.f32.mrb[0].mxu0
        %v3600 = vadd.f32 %v683, %v3599
        %v3601 = vpop.f32.mrb[0].mxu0
        %3602 = vmatprep.mubr.f32.mxu0 %v3411
        %3603 = vmatmul.mubr.f32.gmra.mrb[0].mxu0 %v3395
        %v3604 = vpop.f32.mrb[0].mxu0
        %v3605 = vadd.f32 %v683, %v3604
        %v3606 = vpop.f32.mrb[0].mxu0
        %3607 = vmatprep.mubr.f32.mxu0 %v3412
        %3608 = vmatmul.mubr.f32.gmra.mrb[0].mxu0 %v3396
        %v3609 = vpop.f32.mrb[0].mxu0
        %v3610 = vadd.f32 %v683, %v3609
        %v3611 = vpop.f32.mrb[0].mxu0
        %3612 = vmatprep.mubr.f32.mxu0 %v3413
        %3613 = vmatmul.mubr.f32.gmra.mrb[0].mxu0 %v3397
        %v3614 = vpop.f32.mrb[0].mxu0
        %v3615 = vadd.f32 %v683, %v3614
        %v3616 = vpop.f32.mrb[0].mxu0
        %3617 = vmatprep.mubr.f32.mxu0 %v3414
        %3618 = vmatmul.mubr.f32.gmra.mrb[0].mxu0 %v3398
        %v3619 = vpop.f32.mrb[0].mxu0
        %v3620 = vadd.f32 %v683, %v3619
        %v3621 = vpop.f32.mrb[0].mxu0
        %3622 = vmatprep.mubr.f32.mxu0 %v3415
        %3623 = vmatmul.mubr.f32.gmra.mrb[0].mxu0 %v3399
        %v3624 = vpop.f32.mrb[0].mxu0
        %v3625 = vadd.f32 %v683, %v3624
        %v3626 = vpop.f32.mrb[0].mxu0
        %3627 = vmatprep.mubr.f32.mxu0 %v3416
        %3628 = vmatmul.mubr.f32.gmra.mrb[0].mxu0 %v3400
        %v3629 = vpop.f32.mrb[0].mxu0
        %v3630 = vadd.f32 %v683, %v3629
        %v3631 = vpop.f32.mrb[0].mxu0
        %3632 = vmatprep.mubr.f32.mxu0 %v3417
        %3633 = vmatmul.mubr.f32.gmra.mrb[0].mxu0 %v3401
        %v3634 = vpop.f32.mrb[0].mxu0
        %v3635 = vadd.f32 %v683, %v3634
        %v3636 = vpop.f32.mrb[0].mxu0
        %3637 = vmatprep.mubr.f32.mxu0 %v3418
        %3638 = vmatmul.mubr.f32.gmra.mrb[0].mxu0 %v3402
        %v3639 = vpop.f32.mrb[0].mxu0
        %v3640 = vadd.f32 %v683, %v3639
        %v3641 = vpop.f32.mrb[0].mxu0
        %3642 = vmatprep.mubr.f32.mxu0 %v3419
        %3643 = vmatmul.mubr.f32.gmra.mrb[0].mxu0 %v3403
        %v3644 = vpop.f32.mrb[0].mxu0
        %v3645 = vadd.f32 %v683, %v3644
        %v3646 = vpop.f32.mrb[0].mxu0
        %3647 = vmatprep.mubr.f32.mxu0 %v3420
        %3648 = vmatmul.mubr.f32.gmra.mrb[0].mxu0 %v3404
        %v3649 = vpop.f32.mrb[0].mxu0
        %v3650 = vadd.f32 %v683, %v3649
        %v3651 = vpop.f32.mrb[0].mxu0
        %3652 = vmatprep.mubr.f32.mxu0 %v3421
        %3653 = vmatmul.mubr.f32.gmra.mrb[0].mxu0 %v3405
        %v3654 = vpop.f32.mrb[0].mxu0
        %v3655 = vadd.f32 %v683, %v3654
        %v3656 = vpop.f32.mrb[0].mxu0
        %3657 = vmatprep.mubr.f32.mxu0 %v3422
        %3658 = vmatmul.mubr.f32.gmra.mrb[0].mxu0 %v3406
        %v3659 = vpop.f32.mrb[0].mxu0
        %v3660 = vadd.f32 %v683, %v3659
        %v3661 = vpop.f32.mrb[0].mxu0
        %3662 = vmatprep.mubr.f32.mxu0 %v3423
        %3663 = vmatmul.mubr.f32.gmra.mrb[0].mxu0 %v3407
        %v3664 = vpop.f32.mrb[0].mxu0
        %v3665 = vadd.f32 %v683, %v3664
        %v3666 = vpop.f32.mrb[0].mxu0
        %3667 = vdwg.mxu0
        %3668 = vmatprep.subr.mxu0 0.0
        %3669 = vmatpush1.msra.mxu0 %v567
        %3670 = vmatprep.subr.mxu0 0.0
        %3671 = vmatpush1.msra.mxu0 %v568
        %3672 = vmatprep.subr.mxu0 0.0
        %3673 = vmatpush1.msra.mxu0 %v569
        %3674 = vmatprep.subr.mxu0 0.0
        %3675 = vmatpush1.msra.mxu0 %v570
        %3676 = vmatprep.subr.mxu0 0.0
        %3677 = vmatpush1.msra.mxu0 %v571
        %3678 = vmatprep.subr.mxu0 0.0
        %3679 = vmatpush1.msra.mxu0 %v572
        %3680 = vmatprep.subr.mxu0 0.0
        %3681 = vmatpush1.msra.mxu0 %v573
        %3682 = vmatprep.subr.mxu0 0.0
        %3683 = vmatpush1.msra.mxu0 %v574
        %3684 = vmatprep.subr.mxu0 0.0
        %3685 = vmatpush1.msra.mxu0 %v575
        %3686 = vmatprep.subr.mxu0 0.0
        %3687 = vmatpush1.msra.mxu0 %v576
        %3688 = vmatprep.subr.mxu0 0.0
        %3689 = vmatpush1.msra.mxu0 %v577
        %3690 = vmatprep.subr.mxu0 0.0
        %3691 = vmatpush1.msra.mxu0 %v578
        %3692 = vmatprep.subr.mxu0 0.0
        %3693 = vmatpush1.msra.mxu0 %v579
        %3694 = vmatprep.subr.mxu0 0.0
        %3695 = vmatpush1.msra.mxu0 %v580
        %3696 = vmatprep.subr.mxu0 0.0
        %3697 = vmatpush1.msra.mxu0 %v581
        %3698 = vmatprep.subr.mxu0 0.0
        %3699 = vmatpush1.msra.mxu0 %v582
        %3700 = vmatprep.subr.mxu0 0.0
        %3701 = vmatpush1.msra.mxu0 %v583
        %3702 = vmatprep.subr.mxu0 0.0
        %3703 = vmatpush1.msra.mxu0 %v584
        %3704 = vmatprep.subr.mxu0 0.0
        %3705 = vmatpush1.msra.mxu0 %v585
        %3706 = vmatprep.subr.mxu0 0.0
        %3707 = vmatpush1.msra.mxu0 %v586
        %3708 = vmatprep.subr.mxu0 0.0
        %3709 = vmatpush1.msra.mxu0 %v587
        %3710 = vmatprep.subr.mxu0 0.0
        %3711 = vmatpush1.msra.mxu0 %v588
        %3712 = vmatprep.subr.mxu0 0.0
        %3713 = vmatpush1.msra.mxu0 %v589
        %3714 = vmatprep.subr.mxu0 0.0
        %3715 = vmatpush1.msra.mxu0 %v590
        %3716 = vmatprep.subr.mxu0 0.0
        %3717 = vmatpush1.msra.mxu0 %v591
        %3718 = vmatprep.subr.mxu0 0.0
        %3719 = vmatpush1.msra.mxu0 %v592
        %3720 = vmatprep.subr.mxu0 0.0
        %3721 = vmatpush1.msra.mxu0 %v593
        %3722 = vmatprep.subr.mxu0 0.0
        %3723 = vmatpush1.msra.mxu0 %v594
        %3724 = vmatprep.subr.mxu0 0.0
        %3725 = vmatpush1.msra.mxu0 %v595
        %3726 = vmatprep.subr.mxu0 0.0
        %3727 = vmatpush1.msra.mxu0 %v596
        %3728 = vmatprep.subr.mxu0 0.0
        %3729 = vmatpush1.msra.mxu0 %v597
        %3730 = vmatprep.subr.mxu0 0.0
        %3731 = vmatpush1.msra.mxu0 %v598
        %3732 = vmatprep.mubr.f32.mxu0 %v3440
        %3733 = vmatmul.mubr.f32.gmra.mrb[0].mxu0 %v3424
        %v3734 = vpop.f32.mrb[0].mxu0
        %v3735 = vadd.f32 %v3590, %v3734
        %v3736 = vpop.f32.mrb[0].mxu0
        %3737 = vmatprep.mubr.f32.mxu0 %v3441
        %3738 = vmatmul.mubr.f32.gmra.mrb[0].mxu0 %v3425
        %v3739 = vpop.f32.mrb[0].mxu0
        %v3740 = vadd.f32 %v3595, %v3739
        %v3741 = vpop.f32.mrb[0].mxu0
        %3742 = vmatprep.mubr.f32.mxu0 %v3442
        %3743 = vmatmul.mubr.f32.gmra.mrb[0].mxu0 %v3426
        %v3744 = vpop.f32.mrb[0].mxu0
        %v3745 = vadd.f32 %v3600, %v3744
        %v3746 = vpop.f32.mrb[0].mxu0
        %3747 = vmatprep.mubr.f32.mxu0 %v3443
        %3748 = vmatmul.mubr.f32.gmra.mrb[0].mxu0 %v3427
        %v3749 = vpop.f32.mrb[0].mxu0
        %v3750 = vadd.f32 %v3605, %v3749
        %v3751 = vpop.f32.mrb[0].mxu0
        %3752 = vmatprep.mubr.f32.mxu0 %v3444
        %3753 = vmatmul.mubr.f32.gmra.mrb[0].mxu0 %v3428
        %v3754 = vpop.f32.mrb[0].mxu0
        %v3755 = vadd.f32 %v3610, %v3754
        %v3756 = vpop.f32.mrb[0].mxu0
        %3757 = vmatprep.mubr.f32.mxu0 %v3445
        %3758 = vmatmul.mubr.f32.gmra.mrb[0].mxu0 %v3429
        %v3759 = vpop.f32.mrb[0].mxu0
        %v3760 = vadd.f32 %v3615, %v3759
        %v3761 = vpop.f32.mrb[0].mxu0
        %3762 = vmatprep.mubr.f32.mxu0 %v3446
        %3763 = vmatmul.mubr.f32.gmra.mrb[0].mxu0 %v3430
        %v3764 = vpop.f32.mrb[0].mxu0
        %v3765 = vadd.f32 %v3620, %v3764
        %v3766 = vpop.f32.mrb[0].mxu0
        %3767 = vmatprep.mubr.f32.mxu0 %v3447
        %3768 = vmatmul.mubr.f32.gmra.mrb[0].mxu0 %v3431
        %v3769 = vpop.f32.mrb[0].mxu0
        %v3770 = vadd.f32 %v3625, %v3769
        %v3771 = vpop.f32.mrb[0].mxu0
        %3772 = vmatprep.mubr.f32.mxu0 %v3448
        %3773 = vmatmul.mubr.f32.gmra.mrb[0].mxu0 %v3432
        %v3774 = vpop.f32.mrb[0].mxu0
        %v3775 = vadd.f32 %v3630, %v3774
        %v3776 = vpop.f32.mrb[0].mxu0
        %3777 = vmatprep.mubr.f32.mxu0 %v3449
        %3778 = vmatmul.mubr.f32.gmra.mrb[0].mxu0 %v3433
        %v3779 = vpop.f32.mrb[0].mxu0
        %v3780 = vadd.f32 %v3635, %v3779
        %v3781 = vpop.f32.mrb[0].mxu0
        %3782 = vmatprep.mubr.f32.mxu0 %v3450
        %3783 = vmatmul.mubr.f32.gmra.mrb[0].mxu0 %v3434
        %v3784 = vpop.f32.mrb[0].mxu0
        %v3785 = vadd.f32 %v3640, %v3784
        %v3786 = vpop.f32.mrb[0].mxu0
        %3787 = vmatprep.mubr.f32.mxu0 %v3451
        %3788 = vmatmul.mubr.f32.gmra.mrb[0].mxu0 %v3435
        %v3789 = vpop.f32.mrb[0].mxu0
        %v3790 = vadd.f32 %v3645, %v3789
        %v3791 = vpop.f32.mrb[0].mxu0
        %3792 = vmatprep.mubr.f32.mxu0 %v3452
        %3793 = vmatmul.mubr.f32.gmra.mrb[0].mxu0 %v3436
        %v3794 = vpop.f32.mrb[0].mxu0
        %v3795 = vadd.f32 %v3650, %v3794
        %v3796 = vpop.f32.mrb[0].mxu0
        %3797 = vmatprep.mubr.f32.mxu0 %v3453
        %3798 = vmatmul.mubr.f32.gmra.mrb[0].mxu0 %v3437
        %v3799 = vpop.f32.mrb[0].mxu0
        %v3800 = vadd.f32 %v3655, %v3799
        %v3801 = vpop.f32.mrb[0].mxu0
        %3802 = vmatprep.mubr.f32.mxu0 %v3454
        %3803 = vmatmul.mubr.f32.gmra.mrb[0].mxu0 %v3438
        %v3804 = vpop.f32.mrb[0].mxu0
        %v3805 = vadd.f32 %v3660, %v3804
        %v3806 = vpop.f32.mrb[0].mxu0
        %3807 = vmatprep.mubr.f32.mxu0 %v3455
        %3808 = vmatmul.mubr.f32.gmra.mrb[0].mxu0 %v3439
        %v3809 = vpop.f32.mrb[0].mxu0
        %v3810 = vadd.f32 %v3665, %v3809
        %v3811 = vpop.f32.mrb[0].mxu0
        %3812 = vdwg.mxu0
        %3813 = vmatprep.subr.mxu0 0.0
        %3814 = vmatpush1.msra.mxu0 %v599
        %3815 = vmatprep.subr.mxu0 0.0
        %3816 = vmatpush1.msra.mxu0 %v600
        %3817 = vmatprep.subr.mxu0 0.0
        %3818 = vmatpush1.msra.mxu0 %v601
        %3819 = vmatprep.subr.mxu0 0.0
        %3820 = vmatpush1.msra.mxu0 %v602
        %3821 = vmatprep.subr.mxu0 0.0
        %3822 = vmatpush1.msra.mxu0 %v603
        %3823 = vmatprep.subr.mxu0 0.0
        %3824 = vmatpush1.msra.mxu0 %v604
        %3825 = vmatprep.subr.mxu0 0.0
        %3826 = vmatpush1.msra.mxu0 %v605
        %3827 = vmatprep.subr.mxu0 0.0
        %3828 = vmatpush1.msra.mxu0 %v606
        %3829 = vmatprep.subr.mxu0 0.0
        %3830 = vmatpush1.msra.mxu0 %v607
        %3831 = vmatprep.subr.mxu0 0.0
        %3832 = vmatpush1.msra.mxu0 %v608
        %3833 = vmatprep.subr.mxu0 0.0
        %3834 = vmatpush1.msra.mxu0 %v609
        %3835 = vmatprep.subr.mxu0 0.0
        %3836 = vmatpush1.msra.mxu0 %v610
        %3837 = vmatprep.subr.mxu0 0.0
        %3838 = vmatpush1.msra.mxu0 %v611
        %3839 = vmatprep.subr.mxu0 0.0
        %3840 = vmatpush1.msra.mxu0 %v612
        %3841 = vmatprep.subr.mxu0 0.0
        %3842 = vmatpush1.msra.mxu0 %v613
        %3843 = vmatprep.subr.mxu0 0.0
        %3844 = vmatpush1.msra.mxu0 %v614
        %3845 = vmatprep.subr.mxu0 0.0
        %3846 = vmatpush1.msra.mxu0 %v615
        %3847 = vmatprep.subr.mxu0 0.0
        %3848 = vmatpush1.msra.mxu0 %v616
        %3849 = vmatprep.subr.mxu0 0.0
        %3850 = vmatpush1.msra.mxu0 %v617
        %3851 = vmatprep.subr.mxu0 0.0
        %3852 = vmatpush1.msra.mxu0 %v618
        %3853 = vmatprep.subr.mxu0 0.0
        %3854 = vmatpush1.msra.mxu0 %v619
        %3855 = vmatprep.subr.mxu0 0.0
        %3856 = vmatpush1.msra.mxu0 %v620
        %3857 = vmatprep.subr.mxu0 0.0
        %3858 = vmatpush1.msra.mxu0 %v621
        %3859 = vmatprep.subr.mxu0 0.0
        %3860 = vmatpush1.msra.mxu0 %v622
        %3861 = vmatprep.subr.mxu0 0.0
        %3862 = vmatpush1.msra.mxu0 %v623
        %3863 = vmatprep.subr.mxu0 0.0
        %3864 = vmatpush1.msra.mxu0 %v624
        %3865 = vmatprep.subr.mxu0 0.0
        %3866 = vmatpush1.msra.mxu0 %v625
        %3867 = vmatprep.subr.mxu0 0.0
        %3868 = vmatpush1.msra.mxu0 %v626
        %3869 = vmatprep.subr.mxu0 0.0
        %3870 = vmatpush1.msra.mxu0 %v627
        %3871 = vmatprep.subr.mxu0 0.0
        %3872 = vmatpush1.msra.mxu0 %v628
        %3873 = vmatprep.subr.mxu0 0.0
        %3874 = vmatpush1.msra.mxu0 %v629
        %3875 = vmatprep.subr.mxu0 0.0
        %3876 = vmatpush1.msra.mxu0 %v630
        %3877 = vmatprep.mubr.f32.mxu0 %v3456
        %3878 = vmatmul.mubr.f32.gmra.mrb[0].mxu0 %v2398
        %v3879 = vpop.f32.mrb[0].mxu0
        %v3880 = vadd.f32 %v3735, %v3879
        %v3881 = vpop.f32.mrb[0].mxu0
        %3882 = vmatprep.mubr.f32.mxu0 %v3457
        %3883 = vmatmul.mubr.f32.gmra.mrb[0].mxu0 %v2399
        %v3884 = vpop.f32.mrb[0].mxu0
        %v3885 = vadd.f32 %v3740, %v3884
        %v3886 = vpop.f32.mrb[0].mxu0
        %3887 = vmatprep.mubr.f32.mxu0 %v3458
        %3888 = vmatmul.mubr.f32.gmra.mrb[0].mxu0 %v2400
        %v3889 = vpop.f32.mrb[0].mxu0
        %v3890 = vadd.f32 %v3745, %v3889
        %v3891 = vpop.f32.mrb[0].mxu0
        %3892 = vmatprep.mubr.f32.mxu0 %v3459
        %3893 = vmatmul.mubr.f32.gmra.mrb[0].mxu0 %v2401
        %v3894 = vpop.f32.mrb[0].mxu0
        %v3895 = vadd.f32 %v3750, %v3894
        %v3896 = vpop.f32.mrb[0].mxu0
        %3897 = vmatprep.mubr.f32.mxu0 %v3460
        %3898 = vmatmul.mubr.f32.gmra.mrb[0].mxu0 %v2402
        %v3899 = vpop.f32.mrb[0].mxu0
        %v3900 = vadd.f32 %v3755, %v3899
        %v3901 = vpop.f32.mrb[0].mxu0
        %3902 = vmatprep.mubr.f32.mxu0 %v3461
        %3903 = vmatmul.mubr.f32.gmra.mrb[0].mxu0 %v2403
        %v3904 = vpop.f32.mrb[0].mxu0
        %v3905 = vadd.f32 %v3760, %v3904
        %v3906 = vpop.f32.mrb[0].mxu0
        %3907 = vmatprep.mubr.f32.mxu0 %v3462
        %3908 = vmatmul.mubr.f32.gmra.mrb[0].mxu0 %v2404
        %v3909 = vpop.f32.mrb[0].mxu0
        %v3910 = vadd.f32 %v3765, %v3909
        %v3911 = vpop.f32.mrb[0].mxu0
        %3912 = vmatprep.mubr.f32.mxu0 %v3463
        %3913 = vmatmul.mubr.f32.gmra.mrb[0].mxu0 %v2405
        %v3914 = vpop.f32.mrb[0].mxu0
        %v3915 = vadd.f32 %v3770, %v3914
        %v3916 = vpop.f32.mrb[0].mxu0
        %3917 = vmatprep.mubr.f32.mxu0 %v3464
        %3918 = vmatmul.mubr.f32.gmra.mrb[0].mxu0 %v2406
        %v3919 = vpop.f32.mrb[0].mxu0
        %v3920 = vadd.f32 %v3775, %v3919
        %v3921 = vpop.f32.mrb[0].mxu0
        %3922 = vmatprep.mubr.f32.mxu0 %v3465
        %3923 = vmatmul.mubr.f32.gmra.mrb[0].mxu0 %v2407
        %v3924 = vpop.f32.mrb[0].mxu0
        %v3925 = vadd.f32 %v3780, %v3924
        %v3926 = vpop.f32.mrb[0].mxu0
        %3927 = vmatprep.mubr.f32.mxu0 %v3466
        %3928 = vmatmul.mubr.f32.gmra.mrb[0].mxu0 %v2408
        %v3929 = vpop.f32.mrb[0].mxu0
        %v3930 = vadd.f32 %v3785, %v3929
        %v3931 = vpop.f32.mrb[0].mxu0
        %3932 = vmatprep.mubr.f32.mxu0 %v3467
        %3933 = vmatmul.mubr.f32.gmra.mrb[0].mxu0 %v2409
        %v3934 = vpop.f32.mrb[0].mxu0
        %v3935 = vadd.f32 %v3790, %v3934
        %v3936 = vpop.f32.mrb[0].mxu0
        %3937 = vmatprep.mubr.f32.mxu0 %v3468
        %3938 = vmatmul.mubr.f32.gmra.mrb[0].mxu0 %v2410
        %v3939 = vpop.f32.mrb[0].mxu0
        %v3940 = vadd.f32 %v3795, %v3939
        %v3941 = vpop.f32.mrb[0].mxu0
        %3942 = vmatprep.mubr.f32.mxu0 %v3469
        %3943 = vmatmul.mubr.f32.gmra.mrb[0].mxu0 %v2411
        %v3944 = vpop.f32.mrb[0].mxu0
        %v3945 = vadd.f32 %v3800, %v3944
        %v3946 = vpop.f32.mrb[0].mxu0
        %3947 = vmatprep.mubr.f32.mxu0 %v3470
        %3948 = vmatmul.mubr.f32.gmra.mrb[0].mxu0 %v2412
        %v3949 = vpop.f32.mrb[0].mxu0
        %v3950 = vadd.f32 %v3805, %v3949
        %v3951 = vpop.f32.mrb[0].mxu0
        %3952 = vmatprep.mubr.f32.mxu0 %v3471
        %3953 = vmatmul.mubr.f32.gmra.mrb[0].mxu0 %v2413
        %v3954 = vpop.f32.mrb[0].mxu0
        %v3955 = vadd.f32 %v3810, %v3954
        %v3956 = vpop.f32.mrb[0].mxu0
        %3957 = vdwg.mxu0
        %3958 = vmatprep.subr.mxu0 0.0
        %3959 = vmatpush1.msra.mxu0 %v631
        %3960 = vmatprep.subr.mxu0 0.0
        %3961 = vmatpush1.msra.mxu0 %v632
        %3962 = vmatprep.subr.mxu0 0.0
        %3963 = vmatpush1.msra.mxu0 %v633
        %3964 = vmatprep.subr.mxu0 0.0
        %3965 = vmatpush1.msra.mxu0 %v634
        %3966 = vmatprep.subr.mxu0 0.0
        %3967 = vmatpush1.msra.mxu0 %v635
        %3968 = vmatprep.subr.mxu0 0.0
        %3969 = vmatpush1.msra.mxu0 %v636
        %3970 = vmatprep.subr.mxu0 0.0
        %3971 = vmatpush1.msra.mxu0 %v637
        %3972 = vmatprep.subr.mxu0 0.0
        %3973 = vmatpush1.msra.mxu0 %v638
        %3974 = vmatprep.subr.mxu0 0.0
        %3975 = vmatpush1.msra.mxu0 %v639
        %3976 = vmatprep.subr.mxu0 0.0
        %3977 = vmatpush1.msra.mxu0 %v640
        %3978 = vmatprep.subr.mxu0 0.0
        %3979 = vmatpush1.msra.mxu0 %v641
        %3980 = vmatprep.subr.mxu0 0.0
        %3981 = vmatpush1.msra.mxu0 %v642
        %3982 = vmatprep.subr.mxu0 0.0
        %3983 = vmatpush1.msra.mxu0 %v643
        %3984 = vmatprep.subr.mxu0 0.0
        %3985 = vmatpush1.msra.mxu0 %v644
        %3986 = vmatprep.subr.mxu0 0.0
        %3987 = vmatpush1.msra.mxu0 %v645
        %3988 = vmatprep.subr.mxu0 0.0
        %3989 = vmatpush1.msra.mxu0 %v646
        %3990 = vmatprep.subr.mxu0 0.0
        %3991 = vmatpush1.msra.mxu0 %v647
        %3992 = vmatprep.subr.mxu0 0.0
        %3993 = vmatpush1.msra.mxu0 %v648
        %3994 = vmatprep.subr.mxu0 0.0
        %3995 = vmatpush1.msra.mxu0 %v649
        %3996 = vmatprep.subr.mxu0 0.0
        %3997 = vmatpush1.msra.mxu0 %v650
        %3998 = vmatprep.subr.mxu0 0.0
        %3999 = vmatpush1.msra.mxu0 %v651
        %4000 = vmatprep.subr.mxu0 0.0
        %4001 = vmatpush1.msra.mxu0 %v652
        %4002 = vmatprep.subr.mxu0 0.0
        %4003 = vmatpush1.msra.mxu0 %v653
        %4004 = vmatprep.subr.mxu0 0.0
        %4005 = vmatpush1.msra.mxu0 %v654
        %4006 = vmatprep.subr.mxu0 0.0
        %4007 = vmatpush1.msra.mxu0 %v655
        %4008 = vmatprep.subr.mxu0 0.0
        %4009 = vmatpush1.msra.mxu0 %v656
        %4010 = vmatprep.subr.mxu0 0.0
        %4011 = vmatpush1.msra.mxu0 %v657
        %4012 = vmatprep.subr.mxu0 0.0
        %4013 = vmatpush1.msra.mxu0 %v658
        %4014 = vmatprep.subr.mxu0 0.0
        %4015 = vmatpush1.msra.mxu0 %v659
        %4016 = vmatprep.subr.mxu0 0.0
        %4017 = vmatpush1.msra.mxu0 %v660
        %4018 = vmatprep.subr.mxu0 0.0
        %4019 = vmatpush1.msra.mxu0 %v661
        %4020 = vmatprep.subr.mxu0 0.0
        %4021 = vmatpush1.msra.mxu0 %v662
        %4022 = vmatprep.mubr.f32.mxu0 %v3491
        %4023 = vmatmul.mubr.f32.gmra.mrb[0].mxu0 %v3475
        %v4024 = vpop.f32.mrb[0].mxu0
        %v4025 = vadd.f32 %v3880, %v4024
        %v4026 = vpop.f32.mrb[0].mxu0
        %4027 = vmatprep.mubr.f32.mxu0 %v3492
        %4028 = vmatmul.mubr.f32.gmra.mrb[0].mxu0 %v3476
        %v4029 = vpop.f32.mrb[0].mxu0
        %v4030 = vadd.f32 %v3885, %v4029
        %v4031 = vpop.f32.mrb[0].mxu0
        %4032 = vmatprep.mubr.f32.mxu0 %v3493
        %4033 = vmatmul.mubr.f32.gmra.mrb[0].mxu0 %v3477
        %v4034 = vpop.f32.mrb[0].mxu0
        %v4035 = vadd.f32 %v3890, %v4034
        %v4036 = vpop.f32.mrb[0].mxu0
        %4037 = vmatprep.mubr.f32.mxu0 %v3494
        %4038 = vmatmul.mubr.f32.gmra.mrb[0].mxu0 %v3478
        %v4039 = vpop.f32.mrb[0].mxu0
        %v4040 = vadd.f32 %v3895, %v4039
        %v4041 = vpop.f32.mrb[0].mxu0
        %4042 = vmatprep.mubr.f32.mxu0 %v3495
        %4043 = vmatmul.mubr.f32.gmra.mrb[0].mxu0 %v3479
        %v4044 = vpop.f32.mrb[0].mxu0
        %v4045 = vadd.f32 %v3900, %v4044
        %v4046 = vpop.f32.mrb[0].mxu0
        %4047 = vmatprep.mubr.f32.mxu0 %v3496
        %4048 = vmatmul.mubr.f32.gmra.mrb[0].mxu0 %v3480
        %v4049 = vpop.f32.mrb[0].mxu0
        %v4050 = vadd.f32 %v3905, %v4049
        %v4051 = vpop.f32.mrb[0].mxu0
        %4052 = vmatprep.mubr.f32.mxu0 %v3497
        %4053 = vmatmul.mubr.f32.gmra.mrb[0].mxu0 %v3481
        %v4054 = vpop.f32.mrb[0].mxu0
        %v4055 = vadd.f32 %v3910, %v4054
        %v4056 = vpop.f32.mrb[0].mxu0
        %4057 = vmatprep.mubr.f32.mxu0 %v3498
        %4058 = vmatmul.mubr.f32.gmra.mrb[0].mxu0 %v3482
        %v4059 = vpop.f32.mrb[0].mxu0
        %v4060 = vadd.f32 %v3915, %v4059
        %v4061 = vpop.f32.mrb[0].mxu0
        %4062 = vmatprep.mubr.f32.mxu0 %v3499
        %4063 = vmatmul.mubr.f32.gmra.mrb[0].mxu0 %v3483
        %v4064 = vpop.f32.mrb[0].mxu0
        %v4065 = vadd.f32 %v3920, %v4064
        %v4066 = vpop.f32.mrb[0].mxu0
        %4067 = vmatprep.mubr.f32.mxu0 %v3500
        %4068 = vmatmul.mubr.f32.gmra.mrb[0].mxu0 %v3484
        %v4069 = vpop.f32.mrb[0].mxu0
        %v4070 = vadd.f32 %v3925, %v4069
        %v4071 = vpop.f32.mrb[0].mxu0
        %4072 = vmatprep.mubr.f32.mxu0 %v3501
        %4073 = vmatmul.mubr.f32.gmra.mrb[0].mxu0 %v3485
        %v4074 = vpop.f32.mrb[0].mxu0
        %v4075 = vadd.f32 %v3930, %v4074
        %v4076 = vpop.f32.mrb[0].mxu0
        %4077 = vmatprep.mubr.f32.mxu0 %v3502
        %4078 = vmatmul.mubr.f32.gmra.mrb[0].mxu0 %v3486
        %v4079 = vpop.f32.mrb[0].mxu0
        %v4080 = vadd.f32 %v3935, %v4079
        %v4081 = vpop.f32.mrb[0].mxu0
        %4082 = vmatprep.mubr.f32.mxu0 %v3503
        %4083 = vmatmul.mubr.f32.gmra.mrb[0].mxu0 %v3487
        %v4084 = vpop.f32.mrb[0].mxu0
        %v4085 = vadd.f32 %v3940, %v4084
        %v4086 = vpop.f32.mrb[0].mxu0
        %4087 = vmatprep.mubr.f32.mxu0 %v3504
        %4088 = vmatmul.mubr.f32.gmra.mrb[0].mxu0 %v3488
        %v4089 = vpop.f32.mrb[0].mxu0
        %v4090 = vadd.f32 %v3945, %v4089
        %v4091 = vpop.f32.mrb[0].mxu0
        %4092 = vmatprep.mubr.f32.mxu0 %v3505
        %4093 = vmatmul.mubr.f32.gmra.mrb[0].mxu0 %v3489
        %v4094 = vpop.f32.mrb[0].mxu0
        %v4095 = vadd.f32 %v3950, %v4094
        %v4096 = vpop.f32.mrb[0].mxu0
        %4097 = vmatprep.mubr.f32.mxu0 %v3506
        %4098 = vmatmul.mubr.f32.gmra.mrb[0].mxu0 %v3490
        %v4099 = vpop.f32.mrb[0].mxu0
        %v4100 = vadd.f32 %v3955, %v4099
        %v4101 = vpop.f32.mrb[0].mxu0
        %4102 = vdwg.mxu0
        %4103 = vmatprep.subr.mxu0 0.0
        %4104 = vmatpush1.msra.mxu0 %v663
        %4105 = vmatprep.subr.mxu0 0.0
        %4106 = vmatpush1.msra.mxu0 %v664
        %4107 = vmatprep.subr.mxu0 0.0
        %4108 = vmatpush1.msra.mxu0 %v665
        %4109 = vmatprep.subr.mxu0 0.0
        %4110 = vmatpush1.msra.mxu0 %v666
        %4111 = vmatprep.subr.mxu0 0.0
        %4112 = vmatpush1.msra.mxu0 %v667
        %4113 = vmatprep.subr.mxu0 0.0
        %4114 = vmatpush1.msra.mxu0 %v668
        %4115 = vmatprep.subr.mxu0 0.0
        %4116 = vmatpush1.msra.mxu0 %v669
        %4117 = vmatprep.subr.mxu0 0.0
        %4118 = vmatpush1.msra.mxu0 %v670
        %4119 = vmatprep.subr.mxu0 0.0
        %4120 = vmatpush1.msra.mxu0 %v671
        %4121 = vmatprep.subr.mxu0 0.0
        %4122 = vmatpush1.msra.mxu0 %v672
        %4123 = vmatprep.subr.mxu0 0.0
        %4124 = vmatpush1.msra.mxu0 %v673
        %4125 = vmatprep.subr.mxu0 0.0
        %4126 = vmatpush1.msra.mxu0 %v674
        %4127 = vmatprep.subr.mxu0 0.0
        %4128 = vmatpush1.msra.mxu0 %v675
        %4129 = vmatprep.subr.mxu0 0.0
        %4130 = vmatpush1.msra.mxu0 %v676
        %4131 = vmatprep.subr.mxu0 0.0
        %4132 = vmatpush1.msra.mxu0 %v677
        %4133 = vmatprep.subr.mxu0 0.0
        %4134 = vmatpush1.msra.mxu0 %v678
        %4135 = vmatprep.subr.mxu0 0.0
        %4136 = vmatpush1.msra.mxu0 0.0
        %4137 = vmatprep.subr.mxu0 0.0
        %4138 = vmatpush1.msra.mxu0 0.0
        %4139 = vmatprep.subr.mxu0 0.0
        %4140 = vmatpush1.msra.mxu0 0.0
        %4141 = vmatprep.subr.mxu0 0.0
        %4142 = vmatpush1.msra.mxu0 0.0
        %4143 = vmatprep.subr.mxu0 0.0
        %4144 = vmatpush1.msra.mxu0 0.0
        %4145 = vmatprep.subr.mxu0 0.0
        %4146 = vmatpush1.msra.mxu0 0.0
        %4147 = vmatprep.subr.mxu0 0.0
        %4148 = vmatpush1.msra.mxu0 0.0
        %4149 = vmatprep.subr.mxu0 0.0
        %4150 = vmatpush1.msra.mxu0 0.0
        %4151 = vmatprep.subr.mxu0 0.0
        %4152 = vmatpush1.msra.mxu0 0.0
        %4153 = vmatprep.subr.mxu0 0.0
        %4154 = vmatpush1.msra.mxu0 0.0
        %4155 = vmatprep.subr.mxu0 0.0
        %4156 = vmatpush1.msra.mxu0 0.0
        %4157 = vmatprep.subr.mxu0 0.0
        %4158 = vmatpush1.msra.mxu0 0.0
        %4159 = vmatprep.subr.mxu0 0.0
        %4160 = vmatpush1.msra.mxu0 0.0
        %4161 = vmatprep.subr.mxu0 0.0
        %4162 = vmatpush1.msra.mxu0 0.0
        %4163 = vmatprep.subr.mxu0 0.0
        %4164 = vmatpush1.msra.mxu0 0.0
        %4165 = vmatprep.subr.mxu0 0.0
        %4166 = vmatpush1.msra.mxu0 0.0
        %4167 = vmatprep.mubr.f32.mxu0 0.0
        %4168 = vmatmul.mubr.f32.gmra.mrb[0].mxu0 %v3507
        %v4169 = vpop.f32.mrb[0].mxu0
        %v4170 = vadd.f32 %v4025, %v4169
        %v4171 = vpop.f32.mrb[0].mxu0
        %4172 = vmatprep.mubr.f32.mxu0 0.0
        %4173 = vmatmul.mubr.f32.gmra.mrb[0].mxu0 %v3508
        %v4174 = vpop.f32.mrb[0].mxu0
        %v4175 = vadd.f32 %v4030, %v4174
        %v4176 = vpop.f32.mrb[0].mxu0
        %4177 = vmatprep.mubr.f32.mxu0 0.0
        %4178 = vmatmul.mubr.f32.gmra.mrb[0].mxu0 %v3509
        %v4179 = vpop.f32.mrb[0].mxu0
        %v4180 = vadd.f32 %v4035, %v4179
        %v4181 = vpop.f32.mrb[0].mxu0
        %4182 = vmatprep.mubr.f32.mxu0 0.0
        %4183 = vmatmul.mubr.f32.gmra.mrb[0].mxu0 %v3510
        %v4184 = vpop.f32.mrb[0].mxu0
        %v4185 = vadd.f32 %v4040, %v4184
        %v4186 = vpop.f32.mrb[0].mxu0
        %4187 = vmatprep.mubr.f32.mxu0 0.0
        %4188 = vmatmul.mubr.f32.gmra.mrb[0].mxu0 %v3511
        %v4189 = vpop.f32.mrb[0].mxu0
        %v4190 = vadd.f32 %v4045, %v4189
        %v4191 = vpop.f32.mrb[0].mxu0
        %4192 = vmatprep.mubr.f32.mxu0 0.0
        %4193 = vmatmul.mubr.f32.gmra.mrb[0].mxu0 %v3512
        %v4194 = vpop.f32.mrb[0].mxu0
        %v4195 = vadd.f32 %v4050, %v4194
        %v4196 = vpop.f32.mrb[0].mxu0
        %4197 = vmatprep.mubr.f32.mxu0 0.0
        %4198 = vmatmul.mubr.f32.gmra.mrb[0].mxu0 %v3513
        %v4199 = vpop.f32.mrb[0].mxu0
        %v4200 = vadd.f32 %v4055, %v4199
        %v4201 = vpop.f32.mrb[0].mxu0
        %4202 = vmatprep.mubr.f32.mxu0 0.0
        %4203 = vmatmul.mubr.f32.gmra.mrb[0].mxu0 %v3514
        %v4204 = vpop.f32.mrb[0].mxu0
        %v4205 = vadd.f32 %v4060, %v4204
        %v4206 = vpop.f32.mrb[0].mxu0
        %4207 = vmatprep.mubr.f32.mxu0 0.0
        %4208 = vmatmul.mubr.f32.gmra.mrb[0].mxu0 %v3515
        %v4209 = vpop.f32.mrb[0].mxu0
        %v4210 = vadd.f32 %v4065, %v4209
        %v4211 = vpop.f32.mrb[0].mxu0
        %4212 = vmatprep.mubr.f32.mxu0 0.0
        %4213 = vmatmul.mubr.f32.gmra.mrb[0].mxu0 %v3516
        %v4214 = vpop.f32.mrb[0].mxu0
        %v4215 = vadd.f32 %v4070, %v4214
        %v4216 = vpop.f32.mrb[0].mxu0
        %4217 = vmatprep.mubr.f32.mxu0 0.0
        %4218 = vmatmul.mubr.f32.gmra.mrb[0].mxu0 %v3517
        %v4219 = vpop.f32.mrb[0].mxu0
        %v4220 = vadd.f32 %v4075, %v4219
        %v4221 = vpop.f32.mrb[0].mxu0
        %4222 = vmatprep.mubr.f32.mxu0 0.0
        %4223 = vmatmul.mubr.f32.gmra.mrb[0].mxu0 %v3518
        %v4224 = vpop.f32.mrb[0].mxu0
        %v4225 = vadd.f32 %v4080, %v4224
        %v4226 = vpop.f32.mrb[0].mxu0
        %4227 = vmatprep.mubr.f32.mxu0 0.0
        %4228 = vmatmul.mubr.f32.gmra.mrb[0].mxu0 %v3519
        %v4229 = vpop.f32.mrb[0].mxu0
        %v4230 = vadd.f32 %v4085, %v4229
        %v4231 = vpop.f32.mrb[0].mxu0
        %4232 = vmatprep.mubr.f32.mxu0 0.0
        %4233 = vmatmul.mubr.f32.gmra.mrb[0].mxu0 %v3520
        %v4234 = vpop.f32.mrb[0].mxu0
        %v4235 = vadd.f32 %v4090, %v4234
        %v4236 = vpop.f32.mrb[0].mxu0
        %4237 = vmatprep.mubr.f32.mxu0 0.0
        %4238 = vmatmul.mubr.f32.gmra.mrb[0].mxu0 %v3521
        %v4239 = vpop.f32.mrb[0].mxu0
        %v4240 = vadd.f32 %v4095, %v4239
        %v4241 = vpop.f32.mrb[0].mxu0
        %4242 = vmatprep.mubr.f32.mxu0 0.0
        %4243 = vmatmul.mubr.f32.gmra.mrb[0].mxu0 %v3522
        %v4244 = vpop.f32.mrb[0].mxu0
        %v4245 = vadd.f32 %v4100, %v4244
        %v4246 = vpop.f32.mrb[0].mxu0
        %4247 = vdwg.mxu0
        %v4248 = vmax.f32 %v4170, 0.0
        %v4249 = vmax.f32 %v4175, 0.0
        %v4250 = vmax.f32 %v4180, 0.0
        %v4251 = vmax.f32 %v4185, 0.0
        %v4252 = vmax.f32 %v4190, 0.0
        %v4253 = vmax.f32 %v4195, 0.0
        %v4254 = vmax.f32 %v4200, 0.0
        %v4255 = vmax.f32 %v4205, 0.0
        %v4256 = vmax.f32 %v4210, 0.0
        %v4257 = vmax.f32 %v4215, 0.0
        %v4258 = vmax.f32 %v4220, 0.0
        %v4259 = vmax.f32 %v4225, 0.0
        %v4260 = vmax.f32 %v4230, 0.0
        %v4261 = vmax.f32 %v4235, 0.0
        %v4262 = vmax.f32 %v4240, 0.0
        %v4263 = vmax.f32 %v4245, 0.0
        %v4264 = vadd.f32 %v3373, %v4248
        %v4265 = vadd.f32 %v3374, %v4249
        %v4266 = vadd.f32 %v3375, %v4250
        %v4267 = vadd.f32 %v3376, %v4251
        %v4268 = vadd.f32 %v3377, %v4252
        %v4269 = vadd.f32 %v3378, %v4253
        %v4270 = vadd.f32 %v3379, %v4254
        %v4271 = vadd.f32 %v3380, %v4255
        %v4272 = vadd.f32 %v3381, %v4256
        %v4273 = vadd.f32 %v3382, %v4257
        %v4274 = vadd.f32 %v3383, %v4258
        %v4275 = vadd.f32 %v3384, %v4259
        %v4276 = vadd.f32 %v3385, %v4260
        %v4277 = vadd.f32 %v3386, %v4261
        %v4278 = vadd.f32 %v3387, %v4262
        %v4279 = vadd.f32 %v3388, %v4263
        %4280 = vst [vmem:[%s315] sm:$0xff] %v4264
        %4281 = vst [vmem:[%s315 + $0x8] sm:$0xff] %v4265
        %4282 = vst [vmem:[%s315 + $0x10] sm:$0xff] %v4266
        %4283 = vst [vmem:[%s315 + $0x18] sm:$0xff] %v4267
        %4284 = vst [vmem:[%s315 + $0x20] sm:$0xff] %v4268
        %4285 = vst [vmem:[%s315 + $0x28] sm:$0xff] %v4269
        %4286 = vst [vmem:[%s315 + $0x30] sm:$0xff] %v4270
        %4287 = vst [vmem:[%s315 + $0x38] sm:$0xff] %v4271
        %4288 = vst [vmem:[%s315 + $0x40] sm:$0xff] %v4272
        %4289 = vst [vmem:[%s315 + $0x48] sm:$0xff] %v4273
        %4290 = vst [vmem:[%s315 + $0x50] sm:$0xff] %v4274
        %4291 = vst [vmem:[%s315 + $0x58] sm:$0xff] %v4275
        %4292 = vst [vmem:[%s315 + $0x60] sm:$0xff] %v4276
        %4293 = vst [vmem:[%s315 + $0x68] sm:$0xff] %v4277
        %4294 = vst [vmem:[%s315 + $0x70] sm:$0xff] %v4278
        %4295 = vst [vmem:[%s315 + $0x78] sm:$0xff] %v4279
        %s4296 = sand.u32 %s205, 1
        %s4297 = scalar_lea.sflag [#allocation3], %s4296
        %s4298 = sand.u32 %s205, 1
        %s4299 = smul.addr %s4298, 128
        %s4300 = scalar_lea.vmem [#allocation2], %s4299
        // Predicated region
        $region49: #{dac_block.5} parent=47 // pred_check
          %p4301 = pneg %p215
        $region50: #{dac_block.5} parent=47 // pred_check_branch
          %4303 = sbr.rel (%p4301) target = $region52
        $region51: #{dac_block.5} parent=47 // pred_region
          %s4304 = smul.u32 8, %s26
          %s4306 = ssub.s32 2048, 2048
          %4307 = vsyncadd %s4297, %s4306
          %s4308 = smul.addr %s4304, 2
          %s4309 = smul.addr %s25, 32
          %s4310 = sadd.s32 %s4308, %s4309
          %s4311 = smul.addr %s4310, 128
          %s4312 = scalar_lea.hbm %s7, %s4311
          %s4313 = sshll.u32 %s4300, 4
          %s4314 = int_to_ptr.vmem [resolvable:$true] %s4313
          %4319 = dma.vmem_to_hbm [thread:$0]  %s4314, 2048, %s4312, %s4297, 128, 128, 8
        $region52: #{dac_block.5} parent=47 // pred_fallthru
          _
      $region48: #{dac_block.5} parent=5 // pred_fallthru
        _
      %p4320 = scmp.le.s32.totalorder 2, %s16
      // Predicated region
      $region53: #{dac_block.5} parent=5 // pred_check
        %p4321 = pneg %p4320
      $region54: #{dac_block.5} parent=5 // pred_check_branch
        %4323 = sbr.rel (%p4321) target = $region56
      $region55: #{dac_block.5} parent=5 // pred_region
        %s4324 = ssub.s32 %s16, 2
        // Predicated region
        $region57: #{dac_block.5} parent=55 // pred_check
          %p4325 = pneg %p221
        $region58: #{dac_block.5} parent=55 // pred_check_branch
          %4327 = sbr.rel (%p4325) target = $region60
        $region59: #{dac_block.5} parent=55 // pred_region
          %s4328 = sand.u32 %s206, 1
          %s4329 = scalar_lea.sflag [#allocation3], %s4328
          %s4330 = sand.u32 %s206, 1
          %s4331 = smul.addr %s4330, 128
          %s4332 = scalar_lea.vmem [#allocation2], %s4331
          %4333 = dma.done %s4329, 2048
        $region60: #{dac_block.5} parent=55 // pred_fallthru
          _
      $region56: #{dac_block.5} parent=5 // pred_fallthru
        _
    $region6: #{dac_block.5} parent=1 // loop_footer
      %s20 = sadd.s32 1, %s16
    $region7: #{dac_block.5} parent=1 // loop_footer_branch
      %15 = sbr.rel target = $region3
    $region8: #{dac_block.5} parent=1 // loop_exit
      _
    %4334 = vsyncpa [#allocation3], 1
    %s4335 = scalar_lea.sflag [#allocation3], 1
    %4336 = vsyncpa %s4335, 1

</llo_original>
